<compile_context>
chip_gen: v6e
topology: v6e:2x2x1
jax: 0.10.0
libtpu: 0.0.40
codegen_flags: <defaults>
</compile_context>

<pallas_src>
import functools
import math

import numpy as np
import jax
import jax.numpy as jnp
from jax import lax
from jax.experimental import pallas as pl
from jax.experimental.pallas import tpu as pltpu

# ----------------------------- model constants ------------------------------
B_DEFAULT = 2
IMG = 20                 # small synthetic image / spectrogram resolution
ACTION_SIZE = 4
HIDDEN_SIZE = 128        # AudioNavOptionNet hidden_size
VISUAL_FEAT = 128        # SMTCNN.feature_dims (approximated)
AUDIO_FEAT = 128         # AudioCNN output_size
ACTION_FEAT = 16         # action_encoder output
POSE_DIMS = 4            # PoseSensor dims
QUERY_EMB = 32           # query_count_emb_size
D_MODEL = 128            # SMTStateEncoder hidden_state_size (approximated)
MEM_SIZE = 8             # external memory length
NFEATS = VISUAL_FEAT + ACTION_FEAT + AUDIO_FEAT + POSE_DIMS + QUERY_EMB  # 308


# --------------------------- in-kernel math helpers ---------------------------
def _mm(a, b):
    """MXU matmul: bf16 operands, f32 accumulation."""
    return jnp.dot(a.astype(jnp.bfloat16), b.astype(jnp.bfloat16),
                   preferred_element_type=jnp.float32)


def _mm_t(a, b):
    """a @ b.T: bf16 operands, f32 accumulation."""
    return lax.dot_general(a.astype(jnp.bfloat16), b.astype(jnp.bfloat16),
                           dimension_numbers=(((1,), (1,)), ((), ())),
                           preferred_element_type=jnp.float32)


def _relu(x):
    return jnp.maximum(x, 0.0)


def _cnn_encoder(patches_ref, g2_ref, w1_ref, b1_ref, w2_ref, b2_ref,
                 w3_ref, b3_ref, wl_ref, bl_ref, B):
    """Conv-ReLU, Conv-ReLU, Conv, Flatten, Linear-ReLU, entirely in VMEM.

    `patches_ref` holds the im2col patches of the 20x20 input for the 5x5/stride-2 conv1,
    with spatial-major rows (row = (oi*8 + oj)*B + n).  conv2 (3x3, stride 2 -> 3x3 map) is
    computed tap-by-tap: g2_ref[t] is a 0/1 selection matrix gathering the conv1 rows every
    conv2 output position needs for tap t, and w2_ref[t] is that tap's (32,64) weight slice.
    conv3 (3x3 over the whole 3x3 map) accumulates over the 9 positions with w3_ref[p].
    """
    h1 = _relu(_mm(patches_ref[...], w1_ref[...]) + b1_ref[...])        # (64*B, 32)

    acc = None
    for t in range(9):                                                  # conv2 taps
        rows = _mm(g2_ref[t], h1)                                       # (9B, 32) row gather
        term = _mm(rows, w2_ref[t])                                     # (9B, 64)
        acc = term if acc is None else acc + term
    h2 = _relu(acc + b2_ref[...])                                       # (9B, 64) rows=(pos,batch)

    acc3 = None
    for p in range(9):                                                  # conv3 positions
        term = _mm(h2[p * B:(p + 1) * B, :], w3_ref[p])                 # (B, 32)
        acc3 = term if acc3 is None else acc3 + term
    h3 = acc3 + b3_ref[...]                                             # conv3: no ReLU

    return _relu(_mm(h3, wl_ref[...]) + bl_ref[...])                    # (B, 128)


# ------------------------------ fused forward kernel ------------------------------
def _forward_kernel(*refs, scale):
    (p_rgbd, p_spec, g2,
     vw1, vb1, vw2, vb2, vw3, vb3, vwl, vbl,
     gw1, gb1, gw2, gb2, gw3, gb3, gwl, gbl,
     act, pose, query, goal, mem, bias,
     wq_vis, wq_act, wq_aud, wq_pose, wq_qry, wq_goal, bq,
     wkv, bkv, wo, bo, wf1, bf1, wf2, bf2,
     x_att_ref, vis_ref, aud_ref) = refs

    B = act.shape[0]

    # --- get_features: visual (RGB+D) and audio (spectrogram) CNN encoders ---
    visual = _cnn_encoder(p_rgbd, g2, vw1, vb1, vw2, vb2, vw3, vb3, vwl, vbl, B)  # (B,128)
    audio = _cnn_encoder(p_spec, g2, gw1, gb1, gw2, gb2, gw3, gb3, gwl, gbl, B)   # (B,128)

    act_v, pose_v, query_v, goal_v = act[...], pose[...], query[...], goal[...]

    # --- SMT state encoder (single masked-attention layer + FFN approximation) ---
    # q = concat([visual, action, audio, pose, query_state, goal]) @ Wq + bq,
    # computed as split-K partial matmuls (no in-kernel concat needed).
    q = (bq[...]
         + _mm(visual, wq_vis[...]) + _mm(act_v, wq_act[...])
         + _mm(audio, wq_aud[...]) + _mm(pose_v, wq_pose[...])
         + _mm(query_v, wq_qry[...]) + _mm(goal_v, wq_goal[...]))        # (B, 128)

    kv = _mm(mem[...], wkv[...]) + bkv[...]                              # (B*M, 256) packed K|V
    k = kv[:, :D_MODEL]
    v = kv[:, D_MODEL:]

    s = _mm_t(q, k) * scale + bias[...]                                  # (B, B*M), masked
    s = s - jnp.max(s, axis=-1, keepdims=True)
    p = jnp.exp(s)
    p = p * pl.reciprocal(jnp.sum(p, axis=-1, keepdims=True), approx=True)
    att = _mm(p, v)                                                      # (B, 128)

    att = _mm(att, wo[...]) + bo[...]
    h = q + att
    ff = _relu(_mm(h, wf1[...]) + bf1[...])
    ff = _mm(ff, wf2[...]) + bf2[...]

    x_att_ref[...] = h + ff                                              # (B, 128)
    vis_ref[...] = visual                                                # (B, 128)
    aud_ref[...] = audio                                                 # (B, 128)


# ------------------------------ JAX-side layout glue ------------------------------
def _im2col_first(x, kh, kw, stride):
    """im2col for the first (5x5 / stride-2) conv, spatial-major rows: row=(oi*ow+oj)*N+n."""
    N, H, W, C = x.shape
    oh = (H - kh) // stride + 1
    ow = (W - kw) // stride + 1
    cols = []
    for i in range(kh):
        for j in range(kw):
            cols.append(x[:, i:i + stride * (oh - 1) + 1:stride,
                           j:j + stride * (ow - 1) + 1:stride, :])
    p = jnp.concatenate(cols, axis=-1)            # (N, oh, ow, kh*kw*C), (ki,kj,c) feature order
    p = jnp.transpose(p, (1, 2, 0, 3))            # spatial-major rows
    return p.reshape(oh * ow * N, kh * kw * C)


def _conv2_gather(B):
    """0/1 selection matrices: g[t] @ h1 gathers, for conv2 tap t=(ki,kj), the conv1
    activations needed by all 9 conv2 output positions (result rows ordered (pos, batch))."""
    g = np.zeros((9, 9 * B, 64 * B), np.float32)
    for oi in range(3):
        for oj in range(3):
            pos = oi * 3 + oj
            for ki in range(3):
                for kj in range(3):
                    t = ki * 3 + kj
                    s = (2 * oi + ki) * 8 + (2 * oj + kj)
                    for n in range(B):
                        g[t, pos * B + n, s * B + n] = 1.0
    return jnp.asarray(g)


def _cnn_weights(p):
    return (p['w1'].reshape(-1, p['w1'].shape[-1]),    # (kh*kw*Cin, 32)
            p['b1'].reshape(1, -1),
            p['w2'].reshape(9, 32, 64),                # per-tap (ki*3+kj, Cin, Cout)
            p['b2'].reshape(1, -1),
            p['w3'].reshape(9, 64, 32),                # per-position
            p['b3'].reshape(1, -1),
            p['wl'],
            p['bl'].reshape(1, -1))


def _split_rows(w, sizes):
    out, off = [], 0
    for s in sizes:
        out.append(w[off:off + s])
        off += s
    return out


# ------------------------------------ forward ------------------------------------
@jax.jit
def audio_nav_option_net_forward(params, observations, rnn_hidden_states,
                                 prev_actions, masks, ext_memory,
                                 ext_memory_masks, query_state, last_query_info):
    B = prev_actions.shape[0]
    M = ext_memory.shape[0]

    # ---- layout-only glue (all matmul compute happens inside the fused kernel) ----
    rgbd = jnp.concatenate([observations['rgb'], observations['depth']], axis=-1)
    p_rgbd = _im2col_first(rgbd, 5, 5, 2)                                   # (64B, 100)
    p_spec = _im2col_first(observations['spectrogram'], 5, 5, 2)            # (64B, 50)
    g2 = _conv2_gather(B)                                                   # (9, 9B, 64B)

    # action encoder as a table lookup (was a padded one_hot @ W matmul).
    wa, ba = params['action_encoder']
    action_feat = wa[prev_actions[:, 0]] + ba[None, :]                      # (B, 16)

    # belief as goal (use_label_belief=True, use_location_belief=True,
    # normalize_category_distribution=False, use_belief_encoding=False).
    belief = jnp.concatenate(
        [observations['category_belief'], observations['location_belief'],
         jnp.zeros((B, HIDDEN_SIZE - 23), jnp.float32)], axis=-1)           # (B, 128)

    # external memory flattened batch-major; block-diagonal additive attention bias.
    mem2d = jnp.transpose(ext_memory, (1, 0, 2)).reshape(B * M, ext_memory.shape[-1])
    eye = jnp.eye(B, dtype=jnp.float32)
    valid = eye[:, :, None] * ext_memory_masks.astype(jnp.float32)[None, :, :]
    attn_bias = jnp.where(valid.reshape(B, B * M) > 0.0, 0.0, -1e9).astype(jnp.float32)

    smt = params['smt']
    wq_full, bq = smt['q']
    wq_vis, wq_act, wq_aud, wq_pose, wq_qry, wq_goal = _split_rows(
        wq_full, [VISUAL_FEAT, ACTION_FEAT, AUDIO_FEAT, POSE_DIMS, QUERY_EMB, HIDDEN_SIZE])
    wk, bk = smt['k']
    wv, bv = smt['v']
    wkv = jnp.concatenate([wk, wv], axis=1)                                 # (308, 256) packed
    bkv = jnp.concatenate([bk, bv]).reshape(1, -1)                          # (1, 256)
    wo, bo = smt['o']
    wf1, bf1 = smt['ff1']
    wf2, bf2 = smt['ff2']

    inputs = (
        p_rgbd, p_spec, g2,
        *_cnn_weights(params['visual_encoder']),
        *_cnn_weights(params['goal_encoder']),
        action_feat, observations['pose'], query_state, belief,
        mem2d, attn_bias,
        wq_vis, wq_act, wq_aud, wq_pose, wq_qry, wq_goal, bq.reshape(1, -1),
        wkv, bkv, wo, bo.reshape(1, -1),
        wf1, bf1.reshape(1, -1), wf2, bf2.reshape(1, -1),
    )

    # Advisory cost hints so XLA schedules the custom call against surrounding glue ops.
    mm_shapes = (
        [(64 * B, 100, 32), (64 * B, 50, 32)]
        + 2 * 9 * [(9 * B, 64 * B, 32), (9 * B, 32, 64)]
        + 2 * 9 * [(B, 64, 32)]
        + 2 * [(B, 32, 128)]
        + [(B, VISUAL_FEAT, D_MODEL), (B, ACTION_FEAT, D_MODEL), (B, AUDIO_FEAT, D_MODEL),
           (B, POSE_DIMS, D_MODEL), (B, QUERY_EMB, D_MODEL), (B, HIDDEN_SIZE, D_MODEL)]
        + [(B * M, NFEATS, 2 * D_MODEL), (B, D_MODEL, B * M), (B, B * M, D_MODEL),
           (B, D_MODEL, D_MODEL), (B, D_MODEL, HIDDEN_SIZE), (B, HIDDEN_SIZE, D_MODEL)]
    )
    flops = sum(2 * m * k * n for m, k, n in mm_shapes)
    out_bytes = 4 * B * (D_MODEL + VISUAL_FEAT + AUDIO_FEAT)
    bytes_accessed = sum(a.size * a.dtype.itemsize for a in inputs) + out_bytes
    cost = pl.CostEstimate(flops=int(flops), transcendentals=int(B * B * M + B),
                           bytes_accessed=int(bytes_accessed))

    vmem_spec = pl.BlockSpec(memory_space=pltpu.MemorySpace.VMEM)
    x_att, visual_feat, audio_feat = pl.pallas_call(
        functools.partial(_forward_kernel, scale=1.0 / math.sqrt(D_MODEL)),
        out_shape=(jax.ShapeDtypeStruct((B, D_MODEL), jnp.float32),
                   jax.ShapeDtypeStruct((B, VISUAL_FEAT), jnp.float32),
                   jax.ShapeDtypeStruct((B, AUDIO_FEAT), jnp.float32)),
        in_specs=[vmem_spec] * len(inputs),
        out_specs=(vmem_spec, vmem_spec, vmem_spec),
        cost_estimate=cost,
    )(*inputs)

    # x_for_memory = cat([x, last_query_info]) where x = cat([visual, action, audio, pose]).
    # _use_residual_connection is False -> x_att is returned as-is.
    x_for_memory = jnp.concatenate(
        [visual_feat, action_feat, audio_feat, observations['pose'], last_query_info], axis=1)

    return x_att, rnn_hidden_states, x_for_memory


# ------------------------------- parameter init -------------------------------
def _init_linear(key, fan_in, fan_out):
    w = jax.random.normal(key, (fan_in, fan_out), jnp.float32) / jnp.sqrt(fan_in)
    b = jnp.zeros((fan_out,), jnp.float32)
    return w, b


def _init_conv(key, kh, kw, cin, cout):
    w = jax.random.normal(key, (kh, kw, cin, cout), jnp.float32) / jnp.sqrt(kh * kw * cin)
    b = jnp.zeros((cout,), jnp.float32)
    return w, b


def _cnn_params(key, cin, out_dim):
    k1, k2, k3, k4 = jax.random.split(key, 4)
    w1, b1 = _init_conv(k1, 5, 5, cin, 32)
    w2, b2 = _init_conv(k2, 3, 3, 32, 64)
    w3, b3 = _init_conv(k3, 3, 3, 64, 32)
    wl, bl = _init_linear(k4, 32, out_dim)   # final spatial size is 1x1
    return dict(w1=w1, b1=b1, w2=w2, b2=b2, w3=w3, b3=b3, wl=wl, bl=bl)


def init_params(key):
    ks = jax.random.split(key, 9)
    return {
        'visual_encoder': _cnn_params(ks[0], 4, VISUAL_FEAT),
        'goal_encoder': _cnn_params(ks[1], 2, AUDIO_FEAT),
        'action_encoder': _init_linear(ks[2], ACTION_SIZE, ACTION_FEAT),
        'smt': {
            'q': _init_linear(ks[3], NFEATS + HIDDEN_SIZE, D_MODEL),
            'k': _init_linear(ks[4], NFEATS, D_MODEL),
            'v': _init_linear(ks[5], NFEATS, D_MODEL),
            'o': _init_linear(ks[6], D_MODEL, D_MODEL),
            'ff1': _init_linear(ks[7], D_MODEL, HIDDEN_SIZE),   # dim_feedforward=hidden_size
            'ff2': _init_linear(ks[8], HIDDEN_SIZE, D_MODEL),
        },
    }


# ------------------------------------ main ------------------------------------
if __name__ == "__main__":
    key = jax.random.PRNGKey(0)
    k = jax.random.split(key, 12)
    B = B_DEFAULT

    observations = {
        'rgb': jax.random.uniform(k[0], (B, IMG, IMG, 3), jnp.float32),
        'depth': jax.random.uniform(k[1], (B, IMG, IMG, 1), jnp.float32),
        'spectrogram': jax.random.uniform(k[2], (B, IMG, IMG, 2), jnp.float32),
        'pose': jax.random.normal(k[3], (B, POSE_DIMS), jnp.float32),
        'category_belief': jax.nn.softmax(
            jax.random.normal(k[4], (B, 21), jnp.float32), axis=1),
        'location_belief': jax.random.normal(k[5], (B, 2), jnp.float32),
    }
    prev_actions = jax.random.randint(k[6], (B, 1), 0, ACTION_SIZE)
    rnn_hidden_states = jnp.zeros((1, B, HIDDEN_SIZE), jnp.float32)
    masks = jnp.ones((B, 1), jnp.float32)   # unused by forward (matches original)
    ext_memory = jax.random.normal(k[7], (MEM_SIZE, B, NFEATS), jnp.float32)
    ext_memory_masks = (jax.random.uniform(k[8], (B, MEM_SIZE)) > 0.2).astype(jnp.float32)
    ext_memory_masks = ext_memory_masks.at[:, 0].set(1.0)   # at least one valid slot
    query_state = jax.random.normal(k[9], (B, QUERY_EMB), jnp.float32)
    last_query_info = jax.random.normal(k[10], (B, QUERY_EMB), jnp.float32)

    params = init_params(jax.random.PRNGKey(1234))

    x_att, rnn_out, x_for_memory = audio_nav_option_net_forward(
        params, observations, rnn_hidden_states, prev_actions, masks,
        ext_memory, ext_memory_masks, query_state, last_query_info)
    jax.block_until_ready((x_att, rnn_out, x_for_memory))

    assert x_att.shape == (B, D_MODEL)
    assert rnn_out.shape == rnn_hidden_states.shape
    assert x_for_memory.shape == (B, NFEATS)
    assert bool(jnp.all(jnp.isfinite(x_att)))
    assert bool(jnp.all(jnp.isfinite(x_for_memory)))
    print("KERNEL_OK")
</pallas_src>

<mosaic_0001>
module attributes {stable_mosaic.version = 11 : i64} {
  func.func @_forward_kernel(%arg0: memref<128x100xf32, #tpu.memory_space<vmem>>, %arg1: memref<128x50xf32, #tpu.memory_space<vmem>>, %arg2: memref<9x18x128xf32, #tpu.memory_space<vmem>>, %arg3: memref<100x32xf32, #tpu.memory_space<vmem>>, %arg4: memref<1x32xf32, #tpu.memory_space<vmem>>, %arg5: memref<9x32x64xf32, #tpu.memory_space<vmem>>, %arg6: memref<1x64xf32, #tpu.memory_space<vmem>>, %arg7: memref<9x64x32xf32, #tpu.memory_space<vmem>>, %arg8: memref<1x32xf32, #tpu.memory_space<vmem>>, %arg9: memref<32x128xf32, #tpu.memory_space<vmem>>, %arg10: memref<1x128xf32, #tpu.memory_space<vmem>>, %arg11: memref<50x32xf32, #tpu.memory_space<vmem>>, %arg12: memref<1x32xf32, #tpu.memory_space<vmem>>, %arg13: memref<9x32x64xf32, #tpu.memory_space<vmem>>, %arg14: memref<1x64xf32, #tpu.memory_space<vmem>>, %arg15: memref<9x64x32xf32, #tpu.memory_space<vmem>>, %arg16: memref<1x32xf32, #tpu.memory_space<vmem>>, %arg17: memref<32x128xf32, #tpu.memory_space<vmem>>, %arg18: memref<1x128xf32, #tpu.memory_space<vmem>>, %arg19: memref<2x16xf32, #tpu.memory_space<vmem>>, %arg20: memref<2x4xf32, #tpu.memory_space<vmem>>, %arg21: memref<2x32xf32, #tpu.memory_space<vmem>>, %arg22: memref<2x128xf32, #tpu.memory_space<vmem>>, %arg23: memref<16x308xf32, #tpu.memory_space<vmem>>, %arg24: memref<2x16xf32, #tpu.memory_space<vmem>>, %arg25: memref<128x128xf32, #tpu.memory_space<vmem>>, %arg26: memref<16x128xf32, #tpu.memory_space<vmem>>, %arg27: memref<128x128xf32, #tpu.memory_space<vmem>>, %arg28: memref<4x128xf32, #tpu.memory_space<vmem>>, %arg29: memref<32x128xf32, #tpu.memory_space<vmem>>, %arg30: memref<128x128xf32, #tpu.memory_space<vmem>>, %arg31: memref<1x128xf32, #tpu.memory_space<vmem>>, %arg32: memref<308x256xf32, #tpu.memory_space<vmem>>, %arg33: memref<1x256xf32, #tpu.memory_space<vmem>>, %arg34: memref<128x128xf32, #tpu.memory_space<vmem>>, %arg35: memref<1x128xf32, #tpu.memory_space<vmem>>, %arg36: memref<128x128xf32, #tpu.memory_space<vmem>>, %arg37: memref<1x128xf32, #tpu.memory_space<vmem>>, %arg38: memref<128x128xf32, #tpu.memory_space<vmem>>, %arg39: memref<1x128xf32, #tpu.memory_space<vmem>>, %arg40: memref<2x128xf32, #tpu.memory_space<vmem>>, %arg41: memref<2x128xf32, #tpu.memory_space<vmem>>, %arg42: memref<2x128xf32, #tpu.memory_space<vmem>>) attributes {dimension_semantics = [], scalar_prefetch = 0 : i64, scratch_operands = 0 : i64, tpu.core_type = #tpu.core_type<tc>} {
    %c0 = arith.constant 0 : index
    %c0_0 = arith.constant 0 : index
    %0 = vector.load %arg0[%c0, %c0_0] : memref<128x100xf32, #tpu.memory_space<vmem>>, vector<128x100xf32>
    %c0_1 = arith.constant 0 : index
    %c0_2 = arith.constant 0 : index
    %1 = vector.load %arg3[%c0_1, %c0_2] : memref<100x32xf32, #tpu.memory_space<vmem>>, vector<100x32xf32>
    %2 = arith.truncf %0 : vector<128x100xf32> to vector<128x100xbf16>
    %3 = arith.truncf %1 : vector<100x32xf32> to vector<100x32xbf16>
    %cst = arith.constant dense<0.000000e+00> : vector<128x32xf32>
    %4 = tpu.matmul %2, %3, %cst {dimension_numbers = #tpu.dot_dimension_numbers<[1], [0], [0], [1], [0, 0, 1, 1], [], []>} : vector<128x100xbf16>, vector<100x32xbf16>, vector<128x32xf32> -> vector<128x32xf32>
    %c0_3 = arith.constant 0 : index
    %c0_4 = arith.constant 0 : index
    %5 = vector.load %arg4[%c0_3, %c0_4] : memref<1x32xf32, #tpu.memory_space<vmem>>, vector<1x32xf32>
    %6 = vector.broadcast %5 : vector<1x32xf32> to vector<128x32xf32>
    %7 = arith.addf %4, %6 : vector<128x32xf32>
    %cst_5 = arith.constant 0.000000e+00 : f32
    %8 = vector.broadcast %cst_5 : f32 to vector<128x32xf32>
    %9 = arith.maximumf %7, %8 : vector<128x32xf32>
    %c0_6 = arith.constant 0 : index
    %c0_7 = arith.constant 0 : index
    %c0_8 = arith.constant 0 : index
    %10 = vector.load %arg2[%c0_6, %c0_7, %c0_8] : memref<9x18x128xf32, #tpu.memory_space<vmem>>, vector<1x18x128xf32>
    %11 = vector.shape_cast %10 : vector<1x18x128xf32> to vector<18x128xf32>
    %12 = arith.truncf %11 : vector<18x128xf32> to vector<18x128xbf16>
    %13 = arith.truncf %9 : vector<128x32xf32> to vector<128x32xbf16>
    %cst_9 = arith.constant dense<0.000000e+00> : vector<18x32xf32>
    %14 = tpu.matmul %12, %13, %cst_9 {dimension_numbers = #tpu.dot_dimension_numbers<[1], [0], [0], [1], [0, 0, 1, 1], [], []>} : vector<18x128xbf16>, vector<128x32xbf16>, vector<18x32xf32> -> vector<18x32xf32>
    %c0_10 = arith.constant 0 : index
    %c0_11 = arith.constant 0 : index
    %c0_12 = arith.constant 0 : index
    %15 = vector.load %arg5[%c0_10, %c0_11, %c0_12] : memref<9x32x64xf32, #tpu.memory_space<vmem>>, vector<1x32x64xf32>
    %16 = vector.shape_cast %15 : vector<1x32x64xf32> to vector<32x64xf32>
    %17 = arith.truncf %14 : vector<18x32xf32> to vector<18x32xbf16>
    %18 = arith.truncf %16 : vector<32x64xf32> to vector<32x64xbf16>
    %cst_13 = arith.constant dense<0.000000e+00> : vector<18x64xf32>
    %19 = tpu.matmul %17, %18, %cst_13 {dimension_numbers = #tpu.dot_dimension_numbers<[1], [0], [0], [1], [0, 0, 1, 1], [], []>} : vector<18x32xbf16>, vector<32x64xbf16>, vector<18x64xf32> -> vector<18x64xf32>
    %c1 = arith.constant 1 : index
    %c0_14 = arith.constant 0 : index
    %c0_15 = arith.constant 0 : index
    %20 = vector.load %arg2[%c1, %c0_14, %c0_15] : memref<9x18x128xf32, #tpu.memory_space<vmem>>, vector<1x18x128xf32>
    %21 = vector.shape_cast %20 : vector<1x18x128xf32> to vector<18x128xf32>
    %22 = arith.truncf %21 : vector<18x128xf32> to vector<18x128xbf16>
    %23 = arith.truncf %9 : vector<128x32xf32> to vector<128x32xbf16>
    %cst_16 = arith.constant dense<0.000000e+00> : vector<18x32xf32>
    %24 = tpu.matmul %22, %23, %cst_16 {dimension_numbers = #tpu.dot_dimension_numbers<[1], [0], [0], [1], [0, 0, 1, 1], [], []>} : vector<18x128xbf16>, vector<128x32xbf16>, vector<18x32xf32> -> vector<18x32xf32>
    %c1_17 = arith.constant 1 : index
    %c0_18 = arith.constant 0 : index
    %c0_19 = arith.constant 0 : index
    %25 = vector.load %arg5[%c1_17, %c0_18, %c0_19] : memref<9x32x64xf32, #tpu.memory_space<vmem>>, vector<1x32x64xf32>
    %26 = vector.shape_cast %25 : vector<1x32x64xf32> to vector<32x64xf32>
    %27 = arith.truncf %24 : vector<18x32xf32> to vector<18x32xbf16>
    %28 = arith.truncf %26 : vector<32x64xf32> to vector<32x64xbf16>
    %cst_20 = arith.constant dense<0.000000e+00> : vector<18x64xf32>
    %29 = tpu.matmul %27, %28, %cst_20 {dimension_numbers = #tpu.dot_dimension_numbers<[1], [0], [0], [1], [0, 0, 1, 1], [], []>} : vector<18x32xbf16>, vector<32x64xbf16>, vector<18x64xf32> -> vector<18x64xf32>
    %30 = arith.addf %19, %29 : vector<18x64xf32>
    %c2 = arith.constant 2 : index
    %c0_21 = arith.constant 0 : index
    %c0_22 = arith.constant 0 : index
    %31 = vector.load %arg2[%c2, %c0_21, %c0_22] : memref<9x18x128xf32, #tpu.memory_space<vmem>>, vector<1x18x128xf32>
    %32 = vector.shape_cast %31 : vector<1x18x128xf32> to vector<18x128xf32>
    %33 = arith.truncf %32 : vector<18x128xf32> to vector<18x128xbf16>
    %34 = arith.truncf %9 : vector<128x32xf32> to vector<128x32xbf16>
    %cst_23 = arith.constant dense<0.000000e+00> : vector<18x32xf32>
    %35 = tpu.matmul %33, %34, %cst_23 {dimension_numbers = #tpu.dot_dimension_numbers<[1], [0], [0], [1], [0, 0, 1, 1], [], []>} : vector<18x128xbf16>, vector<128x32xbf16>, vector<18x32xf32> -> vector<18x32xf32>
    %c2_24 = arith.constant 2 : index
    %c0_25 = arith.constant 0 : index
    %c0_26 = arith.constant 0 : index
    %36 = vector.load %arg5[%c2_24, %c0_25, %c0_26] : memref<9x32x64xf32, #tpu.memory_space<vmem>>, vector<1x32x64xf32>
    %37 = vector.shape_cast %36 : vector<1x32x64xf32> to vector<32x64xf32>
    %38 = arith.truncf %35 : vector<18x32xf32> to vector<18x32xbf16>
    %39 = arith.truncf %37 : vector<32x64xf32> to vector<32x64xbf16>
    %cst_27 = arith.constant dense<0.000000e+00> : vector<18x64xf32>
    %40 = tpu.matmul %38, %39, %cst_27 {dimension_numbers = #tpu.dot_dimension_numbers<[1], [0], [0], [1], [0, 0, 1, 1], [], []>} : vector<18x32xbf16>, vector<32x64xbf16>, vector<18x64xf32> -> vector<18x64xf32>
    %41 = arith.addf %30, %40 : vector<18x64xf32>
    %c3 = arith.constant 3 : index
    %c0_28 = arith.constant 0 : index
    %c0_29 = arith.constant 0 : index
    %42 = vector.load %arg2[%c3, %c0_28, %c0_29] : memref<9x18x128xf32, #tpu.memory_space<vmem>>, vector<1x18x128xf32>
    %43 = vector.shape_cast %42 : vector<1x18x128xf32> to vector<18x128xf32>
    %44 = arith.truncf %43 : vector<18x128xf32> to vector<18x128xbf16>
    %45 = arith.truncf %9 : vector<128x32xf32> to vector<128x32xbf16>
    %cst_30 = arith.constant dense<0.000000e+00> : vector<18x32xf32>
    %46 = tpu.matmul %44, %45, %cst_30 {dimension_numbers = #tpu.dot_dimension_numbers<[1], [0], [0], [1], [0, 0, 1, 1], [], []>} : vector<18x128xbf16>, vector<128x32xbf16>, vector<18x32xf32> -> vector<18x32xf32>
    %c3_31 = arith.constant 3 : index
    %c0_32 = arith.constant 0 : index
    %c0_33 = arith.constant 0 : index
    %47 = vector.load %arg5[%c3_31, %c0_32, %c0_33] : memref<9x32x64xf32, #tpu.memory_space<vmem>>, vector<1x32x64xf32>
    %48 = vector.shape_cast %47 : vector<1x32x64xf32> to vector<32x64xf32>
    %49 = arith.truncf %46 : vector<18x32xf32> to vector<18x32xbf16>
    %50 = arith.truncf %48 : vector<32x64xf32> to vector<32x64xbf16>
    %cst_34 = arith.constant dense<0.000000e+00> : vector<18x64xf32>
    %51 = tpu.matmul %49, %50, %cst_34 {dimension_numbers = #tpu.dot_dimension_numbers<[1], [0], [0], [1], [0, 0, 1, 1], [], []>} : vector<18x32xbf16>, vector<32x64xbf16>, vector<18x64xf32> -> vector<18x64xf32>
    %52 = arith.addf %41, %51 : vector<18x64xf32>
    %c4 = arith.constant 4 : index
    %c0_35 = arith.constant 0 : index
    %c0_36 = arith.constant 0 : index
    %53 = vector.load %arg2[%c4, %c0_35, %c0_36] : memref<9x18x128xf32, #tpu.memory_space<vmem>>, vector<1x18x128xf32>
    %54 = vector.shape_cast %53 : vector<1x18x128xf32> to vector<18x128xf32>
    %55 = arith.truncf %54 : vector<18x128xf32> to vector<18x128xbf16>
    %56 = arith.truncf %9 : vector<128x32xf32> to vector<128x32xbf16>
    %cst_37 = arith.constant dense<0.000000e+00> : vector<18x32xf32>
    %57 = tpu.matmul %55, %56, %cst_37 {dimension_numbers = #tpu.dot_dimension_numbers<[1], [0], [0], [1], [0, 0, 1, 1], [], []>} : vector<18x128xbf16>, vector<128x32xbf16>, vector<18x32xf32> -> vector<18x32xf32>
    %c4_38 = arith.constant 4 : index
    %c0_39 = arith.constant 0 : index
    %c0_40 = arith.constant 0 : index
    %58 = vector.load %arg5[%c4_38, %c0_39, %c0_40] : memref<9x32x64xf32, #tpu.memory_space<vmem>>, vector<1x32x64xf32>
    %59 = vector.shape_cast %58 : vector<1x32x64xf32> to vector<32x64xf32>
    %60 = arith.truncf %57 : vector<18x32xf32> to vector<18x32xbf16>
    %61 = arith.truncf %59 : vector<32x64xf32> to vector<32x64xbf16>
    %cst_41 = arith.constant dense<0.000000e+00> : vector<18x64xf32>
    %62 = tpu.matmul %60, %61, %cst_41 {dimension_numbers = #tpu.dot_dimension_numbers<[1], [0], [0], [1], [0, 0, 1, 1], [], []>} : vector<18x32xbf16>, vector<32x64xbf16>, vector<18x64xf32> -> vector<18x64xf32>
    %63 = arith.addf %52, %62 : vector<18x64xf32>
    %c5 = arith.constant 5 : index
    %c0_42 = arith.constant 0 : index
    %c0_43 = arith.constant 0 : index
    %64 = vector.load %arg2[%c5, %c0_42, %c0_43] : memref<9x18x128xf32, #tpu.memory_space<vmem>>, vector<1x18x128xf32>
    %65 = vector.shape_cast %64 : vector<1x18x128xf32> to vector<18x128xf32>
    %66 = arith.truncf %65 : vector<18x128xf32> to vector<18x128xbf16>
    %67 = arith.truncf %9 : vector<128x32xf32> to vector<128x32xbf16>
    %cst_44 = arith.constant dense<0.000000e+00> : vector<18x32xf32>
    %68 = tpu.matmul %66, %67, %cst_44 {dimension_numbers = #tpu.dot_dimension_numbers<[1], [0], [0], [1], [0, 0, 1, 1], [], []>} : vector<18x128xbf16>, vector<128x32xbf16>, vector<18x32xf32> -> vector<18x32xf32>
    %c5_45 = arith.constant 5 : index
    %c0_46 = arith.constant 0 : index
    %c0_47 = arith.constant 0 : index
    %69 = vector.load %arg5[%c5_45, %c0_46, %c0_47] : memref<9x32x64xf32, #tpu.memory_space<vmem>>, vector<1x32x64xf32>
    %70 = vector.shape_cast %69 : vector<1x32x64xf32> to vector<32x64xf32>
    %71 = arith.truncf %68 : vector<18x32xf32> to vector<18x32xbf16>
    %72 = arith.truncf %70 : vector<32x64xf32> to vector<32x64xbf16>
    %cst_48 = arith.constant dense<0.000000e+00> : vector<18x64xf32>
    %73 = tpu.matmul %71, %72, %cst_48 {dimension_numbers = #tpu.dot_dimension_numbers<[1], [0], [0], [1], [0, 0, 1, 1], [], []>} : vector<18x32xbf16>, vector<32x64xbf16>, vector<18x64xf32> -> vector<18x64xf32>
    %74 = arith.addf %63, %73 : vector<18x64xf32>
    %c6 = arith.constant 6 : index
    %c0_49 = arith.constant 0 : index
    %c0_50 = arith.constant 0 : index
    %75 = vector.load %arg2[%c6, %c0_49, %c0_50] : memref<9x18x128xf32, #tpu.memory_space<vmem>>, vector<1x18x128xf32>
    %76 = vector.shape_cast %75 : vector<1x18x128xf32> to vector<18x128xf32>
    %77 = arith.truncf %76 : vector<18x128xf32> to vector<18x128xbf16>
    %78 = arith.truncf %9 : vector<128x32xf32> to vector<128x32xbf16>
    %cst_51 = arith.constant dense<0.000000e+00> : vector<18x32xf32>
    %79 = tpu.matmul %77, %78, %cst_51 {dimension_numbers = #tpu.dot_dimension_numbers<[1], [0], [0], [1], [0, 0, 1, 1], [], []>} : vector<18x128xbf16>, vector<128x32xbf16>, vector<18x32xf32> -> vector<18x32xf32>
    %c6_52 = arith.constant 6 : index
    %c0_53 = arith.constant 0 : index
    %c0_54 = arith.constant 0 : index
    %80 = vector.load %arg5[%c6_52, %c0_53, %c0_54] : memref<9x32x64xf32, #tpu.memory_space<vmem>>, vector<1x32x64xf32>
    %81 = vector.shape_cast %80 : vector<1x32x64xf32> to vector<32x64xf32>
    %82 = arith.truncf %79 : vector<18x32xf32> to vector<18x32xbf16>
    %83 = arith.truncf %81 : vector<32x64xf32> to vector<32x64xbf16>
    %cst_55 = arith.constant dense<0.000000e+00> : vector<18x64xf32>
    %84 = tpu.matmul %82, %83, %cst_55 {dimension_numbers = #tpu.dot_dimension_numbers<[1], [0], [0], [1], [0, 0, 1, 1], [], []>} : vector<18x32xbf16>, vector<32x64xbf16>, vector<18x64xf32> -> vector<18x64xf32>
    %85 = arith.addf %74, %84 : vector<18x64xf32>
    %c7 = arith.constant 7 : index
    %c0_56 = arith.constant 0 : index
    %c0_57 = arith.constant 0 : index
    %86 = vector.load %arg2[%c7, %c0_56, %c0_57] : memref<9x18x128xf32, #tpu.memory_space<vmem>>, vector<1x18x128xf32>
    %87 = vector.shape_cast %86 : vector<1x18x128xf32> to vector<18x128xf32>
    %88 = arith.truncf %87 : vector<18x128xf32> to vector<18x128xbf16>
    %89 = arith.truncf %9 : vector<128x32xf32> to vector<128x32xbf16>
    %cst_58 = arith.constant dense<0.000000e+00> : vector<18x32xf32>
    %90 = tpu.matmul %88, %89, %cst_58 {dimension_numbers = #tpu.dot_dimension_numbers<[1], [0], [0], [1], [0, 0, 1, 1], [], []>} : vector<18x128xbf16>, vector<128x32xbf16>, vector<18x32xf32> -> vector<18x32xf32>
    %c7_59 = arith.constant 7 : index
    %c0_60 = arith.constant 0 : index
    %c0_61 = arith.constant 0 : index
    %91 = vector.load %arg5[%c7_59, %c0_60, %c0_61] : memref<9x32x64xf32, #tpu.memory_space<vmem>>, vector<1x32x64xf32>
    %92 = vector.shape_cast %91 : vector<1x32x64xf32> to vector<32x64xf32>
    %93 = arith.truncf %90 : vector<18x32xf32> to vector<18x32xbf16>
    %94 = arith.truncf %92 : vector<32x64xf32> to vector<32x64xbf16>
    %cst_62 = arith.constant dense<0.000000e+00> : vector<18x64xf32>
    %95 = tpu.matmul %93, %94, %cst_62 {dimension_numbers = #tpu.dot_dimension_numbers<[1], [0], [0], [1], [0, 0, 1, 1], [], []>} : vector<18x32xbf16>, vector<32x64xbf16>, vector<18x64xf32> -> vector<18x64xf32>
    %96 = arith.addf %85, %95 : vector<18x64xf32>
    %c8 = arith.constant 8 : index
    %c0_63 = arith.constant 0 : index
    %c0_64 = arith.constant 0 : index
    %97 = vector.load %arg2[%c8, %c0_63, %c0_64] : memref<9x18x128xf32, #tpu.memory_space<vmem>>, vector<1x18x128xf32>
    %98 = vector.shape_cast %97 : vector<1x18x128xf32> to vector<18x128xf32>
    %99 = arith.truncf %98 : vector<18x128xf32> to vector<18x128xbf16>
    %100 = arith.truncf %9 : vector<128x32xf32> to vector<128x32xbf16>
    %cst_65 = arith.constant dense<0.000000e+00> : vector<18x32xf32>
    %101 = tpu.matmul %99, %100, %cst_65 {dimension_numbers = #tpu.dot_dimension_numbers<[1], [0], [0], [1], [0, 0, 1, 1], [], []>} : vector<18x128xbf16>, vector<128x32xbf16>, vector<18x32xf32> -> vector<18x32xf32>
    %c8_66 = arith.constant 8 : index
    %c0_67 = arith.constant 0 : index
    %c0_68 = arith.constant 0 : index
    %102 = vector.load %arg5[%c8_66, %c0_67, %c0_68] : memref<9x32x64xf32, #tpu.memory_space<vmem>>, vector<1x32x64xf32>
    %103 = vector.shape_cast %102 : vector<1x32x64xf32> to vector<32x64xf32>
    %104 = arith.truncf %101 : vector<18x32xf32> to vector<18x32xbf16>
    %105 = arith.truncf %103 : vector<32x64xf32> to vector<32x64xbf16>
    %cst_69 = arith.constant dense<0.000000e+00> : vector<18x64xf32>
    %106 = tpu.matmul %104, %105, %cst_69 {dimension_numbers = #tpu.dot_dimension_numbers<[1], [0], [0], [1], [0, 0, 1, 1], [], []>} : vector<18x32xbf16>, vector<32x64xbf16>, vector<18x64xf32> -> vector<18x64xf32>
    %107 = arith.addf %96, %106 : vector<18x64xf32>
    %c0_70 = arith.constant 0 : index
    %c0_71 = arith.constant 0 : index
    %108 = vector.load %arg6[%c0_70, %c0_71] : memref<1x64xf32, #tpu.memory_space<vmem>>, vector<1x64xf32>
    %109 = vector.broadcast %108 : vector<1x64xf32> to vector<18x64xf32>
    %110 = arith.addf %107, %109 : vector<18x64xf32>
    %cst_72 = arith.constant 0.000000e+00 : f32
    %111 = vector.broadcast %cst_72 : f32 to vector<18x64xf32>
    %112 = arith.maximumf %110, %111 : vector<18x64xf32>
    %113 = vector.extract_strided_slice %112 {offsets = [0, 0], sizes = [2, 64], strides = [1, 1]} : vector<18x64xf32> to vector<2x64xf32>
    %c0_73 = arith.constant 0 : index
    %c0_74 = arith.constant 0 : index
    %c0_75 = arith.constant 0 : index
    %114 = vector.load %arg7[%c0_73, %c0_74, %c0_75] : memref<9x64x32xf32, #tpu.memory_space<vmem>>, vector<1x64x32xf32>
    %115 = vector.shape_cast %114 : vector<1x64x32xf32> to vector<64x32xf32>
    %116 = arith.truncf %113 : vector<2x64xf32> to vector<2x64xbf16>
    %117 = arith.truncf %115 : vector<64x32xf32> to vector<64x32xbf16>
    %cst_76 = arith.constant dense<0.000000e+00> : vector<2x32xf32>
    %118 = tpu.matmul %116, %117, %cst_76 {dimension_numbers = #tpu.dot_dimension_numbers<[1], [0], [0], [1], [0, 0, 1, 1], [], []>} : vector<2x64xbf16>, vector<64x32xbf16>, vector<2x32xf32> -> vector<2x32xf32>
    %119 = vector.extract_strided_slice %112 {offsets = [2, 0], sizes = [2, 64], strides = [1, 1]} : vector<18x64xf32> to vector<2x64xf32>
    %c1_77 = arith.constant 1 : index
    %c0_78 = arith.constant 0 : index
    %c0_79 = arith.constant 0 : index
    %120 = vector.load %arg7[%c1_77, %c0_78, %c0_79] : memref<9x64x32xf32, #tpu.memory_space<vmem>>, vector<1x64x32xf32>
    %121 = vector.shape_cast %120 : vector<1x64x32xf32> to vector<64x32xf32>
    %122 = arith.truncf %119 : vector<2x64xf32> to vector<2x64xbf16>
    %123 = arith.truncf %121 : vector<64x32xf32> to vector<64x32xbf16>
    %cst_80 = arith.constant dense<0.000000e+00> : vector<2x32xf32>
    %124 = tpu.matmul %122, %123, %cst_80 {dimension_numbers = #tpu.dot_dimension_numbers<[1], [0], [0], [1], [0, 0, 1, 1], [], []>} : vector<2x64xbf16>, vector<64x32xbf16>, vector<2x32xf32> -> vector<2x32xf32>
    %125 = arith.addf %118, %124 : vector<2x32xf32>
    %126 = vector.extract_strided_slice %112 {offsets = [4, 0], sizes = [2, 64], strides = [1, 1]} : vector<18x64xf32> to vector<2x64xf32>
    %c2_81 = arith.constant 2 : index
    %c0_82 = arith.constant 0 : index
    %c0_83 = arith.constant 0 : index
    %127 = vector.load %arg7[%c2_81, %c0_82, %c0_83] : memref<9x64x32xf32, #tpu.memory_space<vmem>>, vector<1x64x32xf32>
    %128 = vector.shape_cast %127 : vector<1x64x32xf32> to vector<64x32xf32>
    %129 = arith.truncf %126 : vector<2x64xf32> to vector<2x64xbf16>
    %130 = arith.truncf %128 : vector<64x32xf32> to vector<64x32xbf16>
    %cst_84 = arith.constant dense<0.000000e+00> : vector<2x32xf32>
    %131 = tpu.matmul %129, %130, %cst_84 {dimension_numbers = #tpu.dot_dimension_numbers<[1], [0], [0], [1], [0, 0, 1, 1], [], []>} : vector<2x64xbf16>, vector<64x32xbf16>, vector<2x32xf32> -> vector<2x32xf32>
    %132 = arith.addf %125, %131 : vector<2x32xf32>
    %133 = vector.extract_strided_slice %112 {offsets = [6, 0], sizes = [2, 64], strides = [1, 1]} : vector<18x64xf32> to vector<2x64xf32>
    %c3_85 = arith.constant 3 : index
    %c0_86 = arith.constant 0 : index
    %c0_87 = arith.constant 0 : index
    %134 = vector.load %arg7[%c3_85, %c0_86, %c0_87] : memref<9x64x32xf32, #tpu.memory_space<vmem>>, vector<1x64x32xf32>
    %135 = vector.shape_cast %134 : vector<1x64x32xf32> to vector<64x32xf32>
    %136 = arith.truncf %133 : vector<2x64xf32> to vector<2x64xbf16>
    %137 = arith.truncf %135 : vector<64x32xf32> to vector<64x32xbf16>
    %cst_88 = arith.constant dense<0.000000e+00> : vector<2x32xf32>
    %138 = tpu.matmul %136, %137, %cst_88 {dimension_numbers = #tpu.dot_dimension_numbers<[1], [0], [0], [1], [0, 0, 1, 1], [], []>} : vector<2x64xbf16>, vector<64x32xbf16>, vector<2x32xf32> -> vector<2x32xf32>
    %139 = arith.addf %132, %138 : vector<2x32xf32>
    %140 = vector.extract_strided_slice %112 {offsets = [8, 0], sizes = [2, 64], strides = [1, 1]} : vector<18x64xf32> to vector<2x64xf32>
    %c4_89 = arith.constant 4 : index
    %c0_90 = arith.constant 0 : index
    %c0_91 = arith.constant 0 : index
    %141 = vector.load %arg7[%c4_89, %c0_90, %c0_91] : memref<9x64x32xf32, #tpu.memory_space<vmem>>, vector<1x64x32xf32>
    %142 = vector.shape_cast %141 : vector<1x64x32xf32> to vector<64x32xf32>
    %143 = arith.truncf %140 : vector<2x64xf32> to vector<2x64xbf16>
    %144 = arith.truncf %142 : vector<64x32xf32> to vector<64x32xbf16>
    %cst_92 = arith.constant dense<0.000000e+00> : vector<2x32xf32>
    %145 = tpu.matmul %143, %144, %cst_92 {dimension_numbers = #tpu.dot_dimension_numbers<[1], [0], [0], [1], [0, 0, 1, 1], [], []>} : vector<2x64xbf16>, vector<64x32xbf16>, vector<2x32xf32> -> vector<2x32xf32>
    %146 = arith.addf %139, %145 : vector<2x32xf32>
    %147 = vector.extract_strided_slice %112 {offsets = [10, 0], sizes = [2, 64], strides = [1, 1]} : vector<18x64xf32> to vector<2x64xf32>
    %c5_93 = arith.constant 5 : index
    %c0_94 = arith.constant 0 : index
    %c0_95 = arith.constant 0 : index
    %148 = vector.load %arg7[%c5_93, %c0_94, %c0_95] : memref<9x64x32xf32, #tpu.memory_space<vmem>>, vector<1x64x32xf32>
    %149 = vector.shape_cast %148 : vector<1x64x32xf32> to vector<64x32xf32>
    %150 = arith.truncf %147 : vector<2x64xf32> to vector<2x64xbf16>
    %151 = arith.truncf %149 : vector<64x32xf32> to vector<64x32xbf16>
    %cst_96 = arith.constant dense<0.000000e+00> : vector<2x32xf32>
    %152 = tpu.matmul %150, %151, %cst_96 {dimension_numbers = #tpu.dot_dimension_numbers<[1], [0], [0], [1], [0, 0, 1, 1], [], []>} : vector<2x64xbf16>, vector<64x32xbf16>, vector<2x32xf32> -> vector<2x32xf32>
    %153 = arith.addf %146, %152 : vector<2x32xf32>
    %154 = vector.extract_strided_slice %112 {offsets = [12, 0], sizes = [2, 64], strides = [1, 1]} : vector<18x64xf32> to vector<2x64xf32>
    %c6_97 = arith.constant 6 : index
    %c0_98 = arith.constant 0 : index
    %c0_99 = arith.constant 0 : index
    %155 = vector.load %arg7[%c6_97, %c0_98, %c0_99] : memref<9x64x32xf32, #tpu.memory_space<vmem>>, vector<1x64x32xf32>
    %156 = vector.shape_cast %155 : vector<1x64x32xf32> to vector<64x32xf32>
    %157 = arith.truncf %154 : vector<2x64xf32> to vector<2x64xbf16>
    %158 = arith.truncf %156 : vector<64x32xf32> to vector<64x32xbf16>
    %cst_100 = arith.constant dense<0.000000e+00> : vector<2x32xf32>
    %159 = tpu.matmul %157, %158, %cst_100 {dimension_numbers = #tpu.dot_dimension_numbers<[1], [0], [0], [1], [0, 0, 1, 1], [], []>} : vector<2x64xbf16>, vector<64x32xbf16>, vector<2x32xf32> -> vector<2x32xf32>
    %160 = arith.addf %153, %159 : vector<2x32xf32>
    %161 = vector.extract_strided_slice %112 {offsets = [14, 0], sizes = [2, 64], strides = [1, 1]} : vector<18x64xf32> to vector<2x64xf32>
    %c7_101 = arith.constant 7 : index
    %c0_102 = arith.constant 0 : index
    %c0_103 = arith.constant 0 : index
    %162 = vector.load %arg7[%c7_101, %c0_102, %c0_103] : memref<9x64x32xf32, #tpu.memory_space<vmem>>, vector<1x64x32xf32>
    %163 = vector.shape_cast %162 : vector<1x64x32xf32> to vector<64x32xf32>
    %164 = arith.truncf %161 : vector<2x64xf32> to vector<2x64xbf16>
    %165 = arith.truncf %163 : vector<64x32xf32> to vector<64x32xbf16>
    %cst_104 = arith.constant dense<0.000000e+00> : vector<2x32xf32>
    %166 = tpu.matmul %164, %165, %cst_104 {dimension_numbers = #tpu.dot_dimension_numbers<[1], [0], [0], [1], [0, 0, 1, 1], [], []>} : vector<2x64xbf16>, vector<64x32xbf16>, vector<2x32xf32> -> vector<2x32xf32>
    %167 = arith.addf %160, %166 : vector<2x32xf32>
    %168 = vector.extract_strided_slice %112 {offsets = [16, 0], sizes = [2, 64], strides = [1, 1]} : vector<18x64xf32> to vector<2x64xf32>
    %c8_105 = arith.constant 8 : index
    %c0_106 = arith.constant 0 : index
    %c0_107 = arith.constant 0 : index
    %169 = vector.load %arg7[%c8_105, %c0_106, %c0_107] : memref<9x64x32xf32, #tpu.memory_space<vmem>>, vector<1x64x32xf32>
    %170 = vector.shape_cast %169 : vector<1x64x32xf32> to vector<64x32xf32>
    %171 = arith.truncf %168 : vector<2x64xf32> to vector<2x64xbf16>
    %172 = arith.truncf %170 : vector<64x32xf32> to vector<64x32xbf16>
    %cst_108 = arith.constant dense<0.000000e+00> : vector<2x32xf32>
    %173 = tpu.matmul %171, %172, %cst_108 {dimension_numbers = #tpu.dot_dimension_numbers<[1], [0], [0], [1], [0, 0, 1, 1], [], []>} : vector<2x64xbf16>, vector<64x32xbf16>, vector<2x32xf32> -> vector<2x32xf32>
    %174 = arith.addf %167, %173 : vector<2x32xf32>
    %c0_109 = arith.constant 0 : index
    %c0_110 = arith.constant 0 : index
    %175 = vector.load %arg8[%c0_109, %c0_110] : memref<1x32xf32, #tpu.memory_space<vmem>>, vector<1x32xf32>
    %176 = vector.broadcast %175 : vector<1x32xf32> to vector<2x32xf32>
    %177 = arith.addf %174, %176 : vector<2x32xf32>
    %c0_111 = arith.constant 0 : index
    %c0_112 = arith.constant 0 : index
    %178 = vector.load %arg9[%c0_111, %c0_112] : memref<32x128xf32, #tpu.memory_space<vmem>>, vector<32x128xf32>
    %179 = arith.truncf %177 : vector<2x32xf32> to vector<2x32xbf16>
    %180 = arith.truncf %178 : vector<32x128xf32> to vector<32x128xbf16>
    %cst_113 = arith.constant dense<0.000000e+00> : vector<2x128xf32>
    %181 = tpu.matmul %179, %180, %cst_113 {dimension_numbers = #tpu.dot_dimension_numbers<[1], [0], [0], [1], [0, 0, 1, 1], [], []>} : vector<2x32xbf16>, vector<32x128xbf16>, vector<2x128xf32> -> vector<2x128xf32>
    %c0_114 = arith.constant 0 : index
    %c0_115 = arith.constant 0 : index
    %182 = vector.load %arg10[%c0_114, %c0_115] : memref<1x128xf32, #tpu.memory_space<vmem>>, vector<1x128xf32>
    %183 = vector.broadcast %182 : vector<1x128xf32> to vector<2x128xf32>
    %184 = arith.addf %181, %183 : vector<2x128xf32>
    %cst_116 = arith.constant 0.000000e+00 : f32
    %185 = vector.broadcast %cst_116 : f32 to vector<2x128xf32>
    %186 = arith.maximumf %184, %185 : vector<2x128xf32>
    %c0_117 = arith.constant 0 : index
    %c0_118 = arith.constant 0 : index
    %187 = vector.load %arg1[%c0_117, %c0_118] : memref<128x50xf32, #tpu.memory_space<vmem>>, vector<128x50xf32>
    %c0_119 = arith.constant 0 : index
    %c0_120 = arith.constant 0 : index
    %188 = vector.load %arg11[%c0_119, %c0_120] : memref<50x32xf32, #tpu.memory_space<vmem>>, vector<50x32xf32>
    %189 = arith.truncf %187 : vector<128x50xf32> to vector<128x50xbf16>
    %190 = arith.truncf %188 : vector<50x32xf32> to vector<50x32xbf16>
    %cst_121 = arith.constant dense<0.000000e+00> : vector<128x32xf32>
    %191 = tpu.matmul %189, %190, %cst_121 {dimension_numbers = #tpu.dot_dimension_numbers<[1], [0], [0], [1], [0, 0, 1, 1], [], []>} : vector<128x50xbf16>, vector<50x32xbf16>, vector<128x32xf32> -> vector<128x32xf32>
    %c0_122 = arith.constant 0 : index
    %c0_123 = arith.constant 0 : index
    %192 = vector.load %arg12[%c0_122, %c0_123] : memref<1x32xf32, #tpu.memory_space<vmem>>, vector<1x32xf32>
    %193 = vector.broadcast %192 : vector<1x32xf32> to vector<128x32xf32>
    %194 = arith.addf %191, %193 : vector<128x32xf32>
    %cst_124 = arith.constant 0.000000e+00 : f32
    %195 = vector.broadcast %cst_124 : f32 to vector<128x32xf32>
    %196 = arith.maximumf %194, %195 : vector<128x32xf32>
    %c0_125 = arith.constant 0 : index
    %c0_126 = arith.constant 0 : index
    %c0_127 = arith.constant 0 : index
    %197 = vector.load %arg2[%c0_125, %c0_126, %c0_127] : memref<9x18x128xf32, #tpu.memory_space<vmem>>, vector<1x18x128xf32>
    %198 = vector.shape_cast %197 : vector<1x18x128xf32> to vector<18x128xf32>
    %199 = arith.truncf %198 : vector<18x128xf32> to vector<18x128xbf16>
    %200 = arith.truncf %196 : vector<128x32xf32> to vector<128x32xbf16>
    %cst_128 = arith.constant dense<0.000000e+00> : vector<18x32xf32>
    %201 = tpu.matmul %199, %200, %cst_128 {dimension_numbers = #tpu.dot_dimension_numbers<[1], [0], [0], [1], [0, 0, 1, 1], [], []>} : vector<18x128xbf16>, vector<128x32xbf16>, vector<18x32xf32> -> vector<18x32xf32>
    %c0_129 = arith.constant 0 : index
    %c0_130 = arith.constant 0 : index
    %c0_131 = arith.constant 0 : index
    %202 = vector.load %arg13[%c0_129, %c0_130, %c0_131] : memref<9x32x64xf32, #tpu.memory_space<vmem>>, vector<1x32x64xf32>
    %203 = vector.shape_cast %202 : vector<1x32x64xf32> to vector<32x64xf32>
    %204 = arith.truncf %201 : vector<18x32xf32> to vector<18x32xbf16>
    %205 = arith.truncf %203 : vector<32x64xf32> to vector<32x64xbf16>
    %cst_132 = arith.constant dense<0.000000e+00> : vector<18x64xf32>
    %206 = tpu.matmul %204, %205, %cst_132 {dimension_numbers = #tpu.dot_dimension_numbers<[1], [0], [0], [1], [0, 0, 1, 1], [], []>} : vector<18x32xbf16>, vector<32x64xbf16>, vector<18x64xf32> -> vector<18x64xf32>
    %c1_133 = arith.constant 1 : index
    %c0_134 = arith.constant 0 : index
    %c0_135 = arith.constant 0 : index
    %207 = vector.load %arg2[%c1_133, %c0_134, %c0_135] : memref<9x18x128xf32, #tpu.memory_space<vmem>>, vector<1x18x128xf32>
    %208 = vector.shape_cast %207 : vector<1x18x128xf32> to vector<18x128xf32>
    %209 = arith.truncf %208 : vector<18x128xf32> to vector<18x128xbf16>
    %210 = arith.truncf %196 : vector<128x32xf32> to vector<128x32xbf16>
    %cst_136 = arith.constant dense<0.000000e+00> : vector<18x32xf32>
    %211 = tpu.matmul %209, %210, %cst_136 {dimension_numbers = #tpu.dot_dimension_numbers<[1], [0], [0], [1], [0, 0, 1, 1], [], []>} : vector<18x128xbf16>, vector<128x32xbf16>, vector<18x32xf32> -> vector<18x32xf32>
    %c1_137 = arith.constant 1 : index
    %c0_138 = arith.constant 0 : index
    %c0_139 = arith.constant 0 : index
    %212 = vector.load %arg13[%c1_137, %c0_138, %c0_139] : memref<9x32x64xf32, #tpu.memory_space<vmem>>, vector<1x32x64xf32>
    %213 = vector.shape_cast %212 : vector<1x32x64xf32> to vector<32x64xf32>
    %214 = arith.truncf %211 : vector<18x32xf32> to vector<18x32xbf16>
    %215 = arith.truncf %213 : vector<32x64xf32> to vector<32x64xbf16>
    %cst_140 = arith.constant dense<0.000000e+00> : vector<18x64xf32>
    %216 = tpu.matmul %214, %215, %cst_140 {dimension_numbers = #tpu.dot_dimension_numbers<[1], [0], [0], [1], [0, 0, 1, 1], [], []>} : vector<18x32xbf16>, vector<32x64xbf16>, vector<18x64xf32> -> vector<18x64xf32>
    %217 = arith.addf %206, %216 : vector<18x64xf32>
    %c2_141 = arith.constant 2 : index
    %c0_142 = arith.constant 0 : index
    %c0_143 = arith.constant 0 : index
    %218 = vector.load %arg2[%c2_141, %c0_142, %c0_143] : memref<9x18x128xf32, #tpu.memory_space<vmem>>, vector<1x18x128xf32>
    %219 = vector.shape_cast %218 : vector<1x18x128xf32> to vector<18x128xf32>
    %220 = arith.truncf %219 : vector<18x128xf32> to vector<18x128xbf16>
    %221 = arith.truncf %196 : vector<128x32xf32> to vector<128x32xbf16>
    %cst_144 = arith.constant dense<0.000000e+00> : vector<18x32xf32>
    %222 = tpu.matmul %220, %221, %cst_144 {dimension_numbers = #tpu.dot_dimension_numbers<[1], [0], [0], [1], [0, 0, 1, 1], [], []>} : vector<18x128xbf16>, vector<128x32xbf16>, vector<18x32xf32> -> vector<18x32xf32>
    %c2_145 = arith.constant 2 : index
    %c0_146 = arith.constant 0 : index
    %c0_147 = arith.constant 0 : index
    %223 = vector.load %arg13[%c2_145, %c0_146, %c0_147] : memref<9x32x64xf32, #tpu.memory_space<vmem>>, vector<1x32x64xf32>
    %224 = vector.shape_cast %223 : vector<1x32x64xf32> to vector<32x64xf32>
    %225 = arith.truncf %222 : vector<18x32xf32> to vector<18x32xbf16>
    %226 = arith.truncf %224 : vector<32x64xf32> to vector<32x64xbf16>
    %cst_148 = arith.constant dense<0.000000e+00> : vector<18x64xf32>
    %227 = tpu.matmul %225, %226, %cst_148 {dimension_numbers = #tpu.dot_dimension_numbers<[1], [0], [0], [1], [0, 0, 1, 1], [], []>} : vector<18x32xbf16>, vector<32x64xbf16>, vector<18x64xf32> -> vector<18x64xf32>
    %228 = arith.addf %217, %227 : vector<18x64xf32>
    %c3_149 = arith.constant 3 : index
    %c0_150 = arith.constant 0 : index
    %c0_151 = arith.constant 0 : index
    %229 = vector.load %arg2[%c3_149, %c0_150, %c0_151] : memref<9x18x128xf32, #tpu.memory_space<vmem>>, vector<1x18x128xf32>
    %230 = vector.shape_cast %229 : vector<1x18x128xf32> to vector<18x128xf32>
    %231 = arith.truncf %230 : vector<18x128xf32> to vector<18x128xbf16>
    %232 = arith.truncf %196 : vector<128x32xf32> to vector<128x32xbf16>
    %cst_152 = arith.constant dense<0.000000e+00> : vector<18x32xf32>
    %233 = tpu.matmul %231, %232, %cst_152 {dimension_numbers = #tpu.dot_dimension_numbers<[1], [0], [0], [1], [0, 0, 1, 1], [], []>} : vector<18x128xbf16>, vector<128x32xbf16>, vector<18x32xf32> -> vector<18x32xf32>
    %c3_153 = arith.constant 3 : index
    %c0_154 = arith.constant 0 : index
    %c0_155 = arith.constant 0 : index
    %234 = vector.load %arg13[%c3_153, %c0_154, %c0_155] : memref<9x32x64xf32, #tpu.memory_space<vmem>>, vector<1x32x64xf32>
    %235 = vector.shape_cast %234 : vector<1x32x64xf32> to vector<32x64xf32>
    %236 = arith.truncf %233 : vector<18x32xf32> to vector<18x32xbf16>
    %237 = arith.truncf %235 : vector<32x64xf32> to vector<32x64xbf16>
    %cst_156 = arith.constant dense<0.000000e+00> : vector<18x64xf32>
    %238 = tpu.matmul %236, %237, %cst_156 {dimension_numbers = #tpu.dot_dimension_numbers<[1], [0], [0], [1], [0, 0, 1, 1], [], []>} : vector<18x32xbf16>, vector<32x64xbf16>, vector<18x64xf32> -> vector<18x64xf32>
    %239 = arith.addf %228, %238 : vector<18x64xf32>
    %c4_157 = arith.constant 4 : index
    %c0_158 = arith.constant 0 : index
    %c0_159 = arith.constant 0 : index
    %240 = vector.load %arg2[%c4_157, %c0_158, %c0_159] : memref<9x18x128xf32, #tpu.memory_space<vmem>>, vector<1x18x128xf32>
    %241 = vector.shape_cast %240 : vector<1x18x128xf32> to vector<18x128xf32>
    %242 = arith.truncf %241 : vector<18x128xf32> to vector<18x128xbf16>
    %243 = arith.truncf %196 : vector<128x32xf32> to vector<128x32xbf16>
    %cst_160 = arith.constant dense<0.000000e+00> : vector<18x32xf32>
    %244 = tpu.matmul %242, %243, %cst_160 {dimension_numbers = #tpu.dot_dimension_numbers<[1], [0], [0], [1], [0, 0, 1, 1], [], []>} : vector<18x128xbf16>, vector<128x32xbf16>, vector<18x32xf32> -> vector<18x32xf32>
    %c4_161 = arith.constant 4 : index
    %c0_162 = arith.constant 0 : index
    %c0_163 = arith.constant 0 : index
    %245 = vector.load %arg13[%c4_161, %c0_162, %c0_163] : memref<9x32x64xf32, #tpu.memory_space<vmem>>, vector<1x32x64xf32>
    %246 = vector.shape_cast %245 : vector<1x32x64xf32> to vector<32x64xf32>
    %247 = arith.truncf %244 : vector<18x32xf32> to vector<18x32xbf16>
    %248 = arith.truncf %246 : vector<32x64xf32> to vector<32x64xbf16>
    %cst_164 = arith.constant dense<0.000000e+00> : vector<18x64xf32>
    %249 = tpu.matmul %247, %248, %cst_164 {dimension_numbers = #tpu.dot_dimension_numbers<[1], [0], [0], [1], [0, 0, 1, 1], [], []>} : vector<18x32xbf16>, vector<32x64xbf16>, vector<18x64xf32> -> vector<18x64xf32>
    %250 = arith.addf %239, %249 : vector<18x64xf32>
    %c5_165 = arith.constant 5 : index
    %c0_166 = arith.constant 0 : index
    %c0_167 = arith.constant 0 : index
    %251 = vector.load %arg2[%c5_165, %c0_166, %c0_167] : memref<9x18x128xf32, #tpu.memory_space<vmem>>, vector<1x18x128xf32>
    %252 = vector.shape_cast %251 : vector<1x18x128xf32> to vector<18x128xf32>
    %253 = arith.truncf %252 : vector<18x128xf32> to vector<18x128xbf16>
    %254 = arith.truncf %196 : vector<128x32xf32> to vector<128x32xbf16>
    %cst_168 = arith.constant dense<0.000000e+00> : vector<18x32xf32>
    %255 = tpu.matmul %253, %254, %cst_168 {dimension_numbers = #tpu.dot_dimension_numbers<[1], [0], [0], [1], [0, 0, 1, 1], [], []>} : vector<18x128xbf16>, vector<128x32xbf16>, vector<18x32xf32> -> vector<18x32xf32>
    %c5_169 = arith.constant 5 : index
    %c0_170 = arith.constant 0 : index
    %c0_171 = arith.constant 0 : index
    %256 = vector.load %arg13[%c5_169, %c0_170, %c0_171] : memref<9x32x64xf32, #tpu.memory_space<vmem>>, vector<1x32x64xf32>
    %257 = vector.shape_cast %256 : vector<1x32x64xf32> to vector<32x64xf32>
    %258 = arith.truncf %255 : vector<18x32xf32> to vector<18x32xbf16>
    %259 = arith.truncf %257 : vector<32x64xf32> to vector<32x64xbf16>
    %cst_172 = arith.constant dense<0.000000e+00> : vector<18x64xf32>
    %260 = tpu.matmul %258, %259, %cst_172 {dimension_numbers = #tpu.dot_dimension_numbers<[1], [0], [0], [1], [0, 0, 1, 1], [], []>} : vector<18x32xbf16>, vector<32x64xbf16>, vector<18x64xf32> -> vector<18x64xf32>
    %261 = arith.addf %250, %260 : vector<18x64xf32>
    %c6_173 = arith.constant 6 : index
    %c0_174 = arith.constant 0 : index
    %c0_175 = arith.constant 0 : index
    %262 = vector.load %arg2[%c6_173, %c0_174, %c0_175] : memref<9x18x128xf32, #tpu.memory_space<vmem>>, vector<1x18x128xf32>
    %263 = vector.shape_cast %262 : vector<1x18x128xf32> to vector<18x128xf32>
    %264 = arith.truncf %263 : vector<18x128xf32> to vector<18x128xbf16>
    %265 = arith.truncf %196 : vector<128x32xf32> to vector<128x32xbf16>
    %cst_176 = arith.constant dense<0.000000e+00> : vector<18x32xf32>
    %266 = tpu.matmul %264, %265, %cst_176 {dimension_numbers = #tpu.dot_dimension_numbers<[1], [0], [0], [1], [0, 0, 1, 1], [], []>} : vector<18x128xbf16>, vector<128x32xbf16>, vector<18x32xf32> -> vector<18x32xf32>
    %c6_177 = arith.constant 6 : index
    %c0_178 = arith.constant 0 : index
    %c0_179 = arith.constant 0 : index
    %267 = vector.load %arg13[%c6_177, %c0_178, %c0_179] : memref<9x32x64xf32, #tpu.memory_space<vmem>>, vector<1x32x64xf32>
    %268 = vector.shape_cast %267 : vector<1x32x64xf32> to vector<32x64xf32>
    %269 = arith.truncf %266 : vector<18x32xf32> to vector<18x32xbf16>
    %270 = arith.truncf %268 : vector<32x64xf32> to vector<32x64xbf16>
    %cst_180 = arith.constant dense<0.000000e+00> : vector<18x64xf32>
    %271 = tpu.matmul %269, %270, %cst_180 {dimension_numbers = #tpu.dot_dimension_numbers<[1], [0], [0], [1], [0, 0, 1, 1], [], []>} : vector<18x32xbf16>, vector<32x64xbf16>, vector<18x64xf32> -> vector<18x64xf32>
    %272 = arith.addf %261, %271 : vector<18x64xf32>
    %c7_181 = arith.constant 7 : index
    %c0_182 = arith.constant 0 : index
    %c0_183 = arith.constant 0 : index
    %273 = vector.load %arg2[%c7_181, %c0_182, %c0_183] : memref<9x18x128xf32, #tpu.memory_space<vmem>>, vector<1x18x128xf32>
    %274 = vector.shape_cast %273 : vector<1x18x128xf32> to vector<18x128xf32>
    %275 = arith.truncf %274 : vector<18x128xf32> to vector<18x128xbf16>
    %276 = arith.truncf %196 : vector<128x32xf32> to vector<128x32xbf16>
    %cst_184 = arith.constant dense<0.000000e+00> : vector<18x32xf32>
    %277 = tpu.matmul %275, %276, %cst_184 {dimension_numbers = #tpu.dot_dimension_numbers<[1], [0], [0], [1], [0, 0, 1, 1], [], []>} : vector<18x128xbf16>, vector<128x32xbf16>, vector<18x32xf32> -> vector<18x32xf32>
    %c7_185 = arith.constant 7 : index
    %c0_186 = arith.constant 0 : index
    %c0_187 = arith.constant 0 : index
    %278 = vector.load %arg13[%c7_185, %c0_186, %c0_187] : memref<9x32x64xf32, #tpu.memory_space<vmem>>, vector<1x32x64xf32>
    %279 = vector.shape_cast %278 : vector<1x32x64xf32> to vector<32x64xf32>
    %280 = arith.truncf %277 : vector<18x32xf32> to vector<18x32xbf16>
    %281 = arith.truncf %279 : vector<32x64xf32> to vector<32x64xbf16>
    %cst_188 = arith.constant dense<0.000000e+00> : vector<18x64xf32>
    %282 = tpu.matmul %280, %281, %cst_188 {dimension_numbers = #tpu.dot_dimension_numbers<[1], [0], [0], [1], [0, 0, 1, 1], [], []>} : vector<18x32xbf16>, vector<32x64xbf16>, vector<18x64xf32> -> vector<18x64xf32>
    %283 = arith.addf %272, %282 : vector<18x64xf32>
    %c8_189 = arith.constant 8 : index
    %c0_190 = arith.constant 0 : index
    %c0_191 = arith.constant 0 : index
    %284 = vector.load %arg2[%c8_189, %c0_190, %c0_191] : memref<9x18x128xf32, #tpu.memory_space<vmem>>, vector<1x18x128xf32>
    %285 = vector.shape_cast %284 : vector<1x18x128xf32> to vector<18x128xf32>
    %286 = arith.truncf %285 : vector<18x128xf32> to vector<18x128xbf16>
    %287 = arith.truncf %196 : vector<128x32xf32> to vector<128x32xbf16>
    %cst_192 = arith.constant dense<0.000000e+00> : vector<18x32xf32>
    %288 = tpu.matmul %286, %287, %cst_192 {dimension_numbers = #tpu.dot_dimension_numbers<[1], [0], [0], [1], [0, 0, 1, 1], [], []>} : vector<18x128xbf16>, vector<128x32xbf16>, vector<18x32xf32> -> vector<18x32xf32>
    %c8_193 = arith.constant 8 : index
    %c0_194 = arith.constant 0 : index
    %c0_195 = arith.constant 0 : index
    %289 = vector.load %arg13[%c8_193, %c0_194, %c0_195] : memref<9x32x64xf32, #tpu.memory_space<vmem>>, vector<1x32x64xf32>
    %290 = vector.shape_cast %289 : vector<1x32x64xf32> to vector<32x64xf32>
    %291 = arith.truncf %288 : vector<18x32xf32> to vector<18x32xbf16>
    %292 = arith.truncf %290 : vector<32x64xf32> to vector<32x64xbf16>
    %cst_196 = arith.constant dense<0.000000e+00> : vector<18x64xf32>
    %293 = tpu.matmul %291, %292, %cst_196 {dimension_numbers = #tpu.dot_dimension_numbers<[1], [0], [0], [1], [0, 0, 1, 1], [], []>} : vector<18x32xbf16>, vector<32x64xbf16>, vector<18x64xf32> -> vector<18x64xf32>
    %294 = arith.addf %283, %293 : vector<18x64xf32>
    %c0_197 = arith.constant 0 : index
    %c0_198 = arith.constant 0 : index
    %295 = vector.load %arg14[%c0_197, %c0_198] : memref<1x64xf32, #tpu.memory_space<vmem>>, vector<1x64xf32>
    %296 = vector.broadcast %295 : vector<1x64xf32> to vector<18x64xf32>
    %297 = arith.addf %294, %296 : vector<18x64xf32>
    %cst_199 = arith.constant 0.000000e+00 : f32
    %298 = vector.broadcast %cst_199 : f32 to vector<18x64xf32>
    %299 = arith.maximumf %297, %298 : vector<18x64xf32>
    %300 = vector.extract_strided_slice %299 {offsets = [0, 0], sizes = [2, 64], strides = [1, 1]} : vector<18x64xf32> to vector<2x64xf32>
    %c0_200 = arith.constant 0 : index
    %c0_201 = arith.constant 0 : index
    %c0_202 = arith.constant 0 : index
    %301 = vector.load %arg15[%c0_200, %c0_201, %c0_202] : memref<9x64x32xf32, #tpu.memory_space<vmem>>, vector<1x64x32xf32>
    %302 = vector.shape_cast %301 : vector<1x64x32xf32> to vector<64x32xf32>
    %303 = arith.truncf %300 : vector<2x64xf32> to vector<2x64xbf16>
    %304 = arith.truncf %302 : vector<64x32xf32> to vector<64x32xbf16>
    %cst_203 = arith.constant dense<0.000000e+00> : vector<2x32xf32>
    %305 = tpu.matmul %303, %304, %cst_203 {dimension_numbers = #tpu.dot_dimension_numbers<[1], [0], [0], [1], [0, 0, 1, 1], [], []>} : vector<2x64xbf16>, vector<64x32xbf16>, vector<2x32xf32> -> vector<2x32xf32>
    %306 = vector.extract_strided_slice %299 {offsets = [2, 0], sizes = [2, 64], strides = [1, 1]} : vector<18x64xf32> to vector<2x64xf32>
    %c1_204 = arith.constant 1 : index
    %c0_205 = arith.constant 0 : index
    %c0_206 = arith.constant 0 : index
    %307 = vector.load %arg15[%c1_204, %c0_205, %c0_206] : memref<9x64x32xf32, #tpu.memory_space<vmem>>, vector<1x64x32xf32>
    %308 = vector.shape_cast %307 : vector<1x64x32xf32> to vector<64x32xf32>
    %309 = arith.truncf %306 : vector<2x64xf32> to vector<2x64xbf16>
    %310 = arith.truncf %308 : vector<64x32xf32> to vector<64x32xbf16>
    %cst_207 = arith.constant dense<0.000000e+00> : vector<2x32xf32>
    %311 = tpu.matmul %309, %310, %cst_207 {dimension_numbers = #tpu.dot_dimension_numbers<[1], [0], [0], [1], [0, 0, 1, 1], [], []>} : vector<2x64xbf16>, vector<64x32xbf16>, vector<2x32xf32> -> vector<2x32xf32>
    %312 = arith.addf %305, %311 : vector<2x32xf32>
    %313 = vector.extract_strided_slice %299 {offsets = [4, 0], sizes = [2, 64], strides = [1, 1]} : vector<18x64xf32> to vector<2x64xf32>
    %c2_208 = arith.constant 2 : index
    %c0_209 = arith.constant 0 : index
    %c0_210 = arith.constant 0 : index
    %314 = vector.load %arg15[%c2_208, %c0_209, %c0_210] : memref<9x64x32xf32, #tpu.memory_space<vmem>>, vector<1x64x32xf32>
    %315 = vector.shape_cast %314 : vector<1x64x32xf32> to vector<64x32xf32>
    %316 = arith.truncf %313 : vector<2x64xf32> to vector<2x64xbf16>
    %317 = arith.truncf %315 : vector<64x32xf32> to vector<64x32xbf16>
    %cst_211 = arith.constant dense<0.000000e+00> : vector<2x32xf32>
    %318 = tpu.matmul %316, %317, %cst_211 {dimension_numbers = #tpu.dot_dimension_numbers<[1], [0], [0], [1], [0, 0, 1, 1], [], []>} : vector<2x64xbf16>, vector<64x32xbf16>, vector<2x32xf32> -> vector<2x32xf32>
    %319 = arith.addf %312, %318 : vector<2x32xf32>
    %320 = vector.extract_strided_slice %299 {offsets = [6, 0], sizes = [2, 64], strides = [1, 1]} : vector<18x64xf32> to vector<2x64xf32>
    %c3_212 = arith.constant 3 : index
    %c0_213 = arith.constant 0 : index
    %c0_214 = arith.constant 0 : index
    %321 = vector.load %arg15[%c3_212, %c0_213, %c0_214] : memref<9x64x32xf32, #tpu.memory_space<vmem>>, vector<1x64x32xf32>
    %322 = vector.shape_cast %321 : vector<1x64x32xf32> to vector<64x32xf32>
    %323 = arith.truncf %320 : vector<2x64xf32> to vector<2x64xbf16>
    %324 = arith.truncf %322 : vector<64x32xf32> to vector<64x32xbf16>
    %cst_215 = arith.constant dense<0.000000e+00> : vector<2x32xf32>
    %325 = tpu.matmul %323, %324, %cst_215 {dimension_numbers = #tpu.dot_dimension_numbers<[1], [0], [0], [1], [0, 0, 1, 1], [], []>} : vector<2x64xbf16>, vector<64x32xbf16>, vector<2x32xf32> -> vector<2x32xf32>
    %326 = arith.addf %319, %325 : vector<2x32xf32>
    %327 = vector.extract_strided_slice %299 {offsets = [8, 0], sizes = [2, 64], strides = [1, 1]} : vector<18x64xf32> to vector<2x64xf32>
    %c4_216 = arith.constant 4 : index
    %c0_217 = arith.constant 0 : index
    %c0_218 = arith.constant 0 : index
    %328 = vector.load %arg15[%c4_216, %c0_217, %c0_218] : memref<9x64x32xf32, #tpu.memory_space<vmem>>, vector<1x64x32xf32>
    %329 = vector.shape_cast %328 : vector<1x64x32xf32> to vector<64x32xf32>
    %330 = arith.truncf %327 : vector<2x64xf32> to vector<2x64xbf16>
    %331 = arith.truncf %329 : vector<64x32xf32> to vector<64x32xbf16>
    %cst_219 = arith.constant dense<0.000000e+00> : vector<2x32xf32>
    %332 = tpu.matmul %330, %331, %cst_219 {dimension_numbers = #tpu.dot_dimension_numbers<[1], [0], [0], [1], [0, 0, 1, 1], [], []>} : vector<2x64xbf16>, vector<64x32xbf16>, vector<2x32xf32> -> vector<2x32xf32>
    %333 = arith.addf %326, %332 : vector<2x32xf32>
    %334 = vector.extract_strided_slice %299 {offsets = [10, 0], sizes = [2, 64], strides = [1, 1]} : vector<18x64xf32> to vector<2x64xf32>
    %c5_220 = arith.constant 5 : index
    %c0_221 = arith.constant 0 : index
    %c0_222 = arith.constant 0 : index
    %335 = vector.load %arg15[%c5_220, %c0_221, %c0_222] : memref<9x64x32xf32, #tpu.memory_space<vmem>>, vector<1x64x32xf32>
    %336 = vector.shape_cast %335 : vector<1x64x32xf32> to vector<64x32xf32>
    %337 = arith.truncf %334 : vector<2x64xf32> to vector<2x64xbf16>
    %338 = arith.truncf %336 : vector<64x32xf32> to vector<64x32xbf16>
    %cst_223 = arith.constant dense<0.000000e+00> : vector<2x32xf32>
    %339 = tpu.matmul %337, %338, %cst_223 {dimension_numbers = #tpu.dot_dimension_numbers<[1], [0], [0], [1], [0, 0, 1, 1], [], []>} : vector<2x64xbf16>, vector<64x32xbf16>, vector<2x32xf32> -> vector<2x32xf32>
    %340 = arith.addf %333, %339 : vector<2x32xf32>
    %341 = vector.extract_strided_slice %299 {offsets = [12, 0], sizes = [2, 64], strides = [1, 1]} : vector<18x64xf32> to vector<2x64xf32>
    %c6_224 = arith.constant 6 : index
    %c0_225 = arith.constant 0 : index
    %c0_226 = arith.constant 0 : index
    %342 = vector.load %arg15[%c6_224, %c0_225, %c0_226] : memref<9x64x32xf32, #tpu.memory_space<vmem>>, vector<1x64x32xf32>
    %343 = vector.shape_cast %342 : vector<1x64x32xf32> to vector<64x32xf32>
    %344 = arith.truncf %341 : vector<2x64xf32> to vector<2x64xbf16>
    %345 = arith.truncf %343 : vector<64x32xf32> to vector<64x32xbf16>
    %cst_227 = arith.constant dense<0.000000e+00> : vector<2x32xf32>
    %346 = tpu.matmul %344, %345, %cst_227 {dimension_numbers = #tpu.dot_dimension_numbers<[1], [0], [0], [1], [0, 0, 1, 1], [], []>} : vector<2x64xbf16>, vector<64x32xbf16>, vector<2x32xf32> -> vector<2x32xf32>
    %347 = arith.addf %340, %346 : vector<2x32xf32>
    %348 = vector.extract_strided_slice %299 {offsets = [14, 0], sizes = [2, 64], strides = [1, 1]} : vector<18x64xf32> to vector<2x64xf32>
    %c7_228 = arith.constant 7 : index
    %c0_229 = arith.constant 0 : index
    %c0_230 = arith.constant 0 : index
    %349 = vector.load %arg15[%c7_228, %c0_229, %c0_230] : memref<9x64x32xf32, #tpu.memory_space<vmem>>, vector<1x64x32xf32>
    %350 = vector.shape_cast %349 : vector<1x64x32xf32> to vector<64x32xf32>
    %351 = arith.truncf %348 : vector<2x64xf32> to vector<2x64xbf16>
    %352 = arith.truncf %350 : vector<64x32xf32> to vector<64x32xbf16>
    %cst_231 = arith.constant dense<0.000000e+00> : vector<2x32xf32>
    %353 = tpu.matmul %351, %352, %cst_231 {dimension_numbers = #tpu.dot_dimension_numbers<[1], [0], [0], [1], [0, 0, 1, 1], [], []>} : vector<2x64xbf16>, vector<64x32xbf16>, vector<2x32xf32> -> vector<2x32xf32>
    %354 = arith.addf %347, %353 : vector<2x32xf32>
    %355 = vector.extract_strided_slice %299 {offsets = [16, 0], sizes = [2, 64], strides = [1, 1]} : vector<18x64xf32> to vector<2x64xf32>
    %c8_232 = arith.constant 8 : index
    %c0_233 = arith.constant 0 : index
    %c0_234 = arith.constant 0 : index
    %356 = vector.load %arg15[%c8_232, %c0_233, %c0_234] : memref<9x64x32xf32, #tpu.memory_space<vmem>>, vector<1x64x32xf32>
    %357 = vector.shape_cast %356 : vector<1x64x32xf32> to vector<64x32xf32>
    %358 = arith.truncf %355 : vector<2x64xf32> to vector<2x64xbf16>
    %359 = arith.truncf %357 : vector<64x32xf32> to vector<64x32xbf16>
    %cst_235 = arith.constant dense<0.000000e+00> : vector<2x32xf32>
    %360 = tpu.matmul %358, %359, %cst_235 {dimension_numbers = #tpu.dot_dimension_numbers<[1], [0], [0], [1], [0, 0, 1, 1], [], []>} : vector<2x64xbf16>, vector<64x32xbf16>, vector<2x32xf32> -> vector<2x32xf32>
    %361 = arith.addf %354, %360 : vector<2x32xf32>
    %c0_236 = arith.constant 0 : index
    %c0_237 = arith.constant 0 : index
    %362 = vector.load %arg16[%c0_236, %c0_237] : memref<1x32xf32, #tpu.memory_space<vmem>>, vector<1x32xf32>
    %363 = vector.broadcast %362 : vector<1x32xf32> to vector<2x32xf32>
    %364 = arith.addf %361, %363 : vector<2x32xf32>
    %c0_238 = arith.constant 0 : index
    %c0_239 = arith.constant 0 : index
    %365 = vector.load %arg17[%c0_238, %c0_239] : memref<32x128xf32, #tpu.memory_space<vmem>>, vector<32x128xf32>
    %366 = arith.truncf %364 : vector<2x32xf32> to vector<2x32xbf16>
    %367 = arith.truncf %365 : vector<32x128xf32> to vector<32x128xbf16>
    %cst_240 = arith.constant dense<0.000000e+00> : vector<2x128xf32>
    %368 = tpu.matmul %366, %367, %cst_240 {dimension_numbers = #tpu.dot_dimension_numbers<[1], [0], [0], [1], [0, 0, 1, 1], [], []>} : vector<2x32xbf16>, vector<32x128xbf16>, vector<2x128xf32> -> vector<2x128xf32>
    %c0_241 = arith.constant 0 : index
    %c0_242 = arith.constant 0 : index
    %369 = vector.load %arg18[%c0_241, %c0_242] : memref<1x128xf32, #tpu.memory_space<vmem>>, vector<1x128xf32>
    %370 = vector.broadcast %369 : vector<1x128xf32> to vector<2x128xf32>
    %371 = arith.addf %368, %370 : vector<2x128xf32>
    %cst_243 = arith.constant 0.000000e+00 : f32
    %372 = vector.broadcast %cst_243 : f32 to vector<2x128xf32>
    %373 = arith.maximumf %371, %372 : vector<2x128xf32>
    %c0_244 = arith.constant 0 : index
    %c0_245 = arith.constant 0 : index
    %374 = vector.load %arg19[%c0_244, %c0_245] : memref<2x16xf32, #tpu.memory_space<vmem>>, vector<2x16xf32>
    %c0_246 = arith.constant 0 : index
    %c0_247 = arith.constant 0 : index
    %375 = vector.load %arg20[%c0_246, %c0_247] : memref<2x4xf32, #tpu.memory_space<vmem>>, vector<2x4xf32>
    %c0_248 = arith.constant 0 : index
    %c0_249 = arith.constant 0 : index
    %376 = vector.load %arg21[%c0_248, %c0_249] : memref<2x32xf32, #tpu.memory_space<vmem>>, vector<2x32xf32>
    %c0_250 = arith.constant 0 : index
    %c0_251 = arith.constant 0 : index
    %377 = vector.load %arg22[%c0_250, %c0_251] : memref<2x128xf32, #tpu.memory_space<vmem>>, vector<2x128xf32>
    %c0_252 = arith.constant 0 : index
    %c0_253 = arith.constant 0 : index
    %378 = vector.load %arg31[%c0_252, %c0_253] : memref<1x128xf32, #tpu.memory_space<vmem>>, vector<1x128xf32>
    %c0_254 = arith.constant 0 : index
    %c0_255 = arith.constant 0 : index
    %379 = vector.load %arg25[%c0_254, %c0_255] : memref<128x128xf32, #tpu.memory_space<vmem>>, vector<128x128xf32>
    %380 = arith.truncf %186 : vector<2x128xf32> to vector<2x128xbf16>
    %381 = arith.truncf %379 : vector<128x128xf32> to vector<128x128xbf16>
    %cst_256 = arith.constant dense<0.000000e+00> : vector<2x128xf32>
    %382 = tpu.matmul %380, %381, %cst_256 {dimension_numbers = #tpu.dot_dimension_numbers<[1], [0], [0], [1], [0, 0, 1, 1], [], []>} : vector<2x128xbf16>, vector<128x128xbf16>, vector<2x128xf32> -> vector<2x128xf32>
    %383 = vector.broadcast %378 : vector<1x128xf32> to vector<2x128xf32>
    %384 = arith.addf %383, %382 : vector<2x128xf32>
    %c0_257 = arith.constant 0 : index
    %c0_258 = arith.constant 0 : index
    %385 = vector.load %arg26[%c0_257, %c0_258] : memref<16x128xf32, #tpu.memory_space<vmem>>, vector<16x128xf32>
    %386 = arith.truncf %374 : vector<2x16xf32> to vector<2x16xbf16>
    %387 = arith.truncf %385 : vector<16x128xf32> to vector<16x128xbf16>
    %cst_259 = arith.constant dense<0.000000e+00> : vector<2x128xf32>
    %388 = tpu.matmul %386, %387, %cst_259 {dimension_numbers = #tpu.dot_dimension_numbers<[1], [0], [0], [1], [0, 0, 1, 1], [], []>} : vector<2x16xbf16>, vector<16x128xbf16>, vector<2x128xf32> -> vector<2x128xf32>
    %389 = arith.addf %384, %388 : vector<2x128xf32>
    %c0_260 = arith.constant 0 : index
    %c0_261 = arith.constant 0 : index
    %390 = vector.load %arg27[%c0_260, %c0_261] : memref<128x128xf32, #tpu.memory_space<vmem>>, vector<128x128xf32>
    %391 = arith.truncf %373 : vector<2x128xf32> to vector<2x128xbf16>
    %392 = arith.truncf %390 : vector<128x128xf32> to vector<128x128xbf16>
    %cst_262 = arith.constant dense<0.000000e+00> : vector<2x128xf32>
    %393 = tpu.matmul %391, %392, %cst_262 {dimension_numbers = #tpu.dot_dimension_numbers<[1], [0], [0], [1], [0, 0, 1, 1], [], []>} : vector<2x128xbf16>, vector<128x128xbf16>, vector<2x128xf32> -> vector<2x128xf32>
    %394 = arith.addf %389, %393 : vector<2x128xf32>
    %c0_263 = arith.constant 0 : index
    %c0_264 = arith.constant 0 : index
    %395 = vector.load %arg28[%c0_263, %c0_264] : memref<4x128xf32, #tpu.memory_space<vmem>>, vector<4x128xf32>
    %396 = arith.truncf %375 : vector<2x4xf32> to vector<2x4xbf16>
    %397 = arith.truncf %395 : vector<4x128xf32> to vector<4x128xbf16>
    %cst_265 = arith.constant dense<0.000000e+00> : vector<2x128xf32>
    %398 = tpu.matmul %396, %397, %cst_265 {dimension_numbers = #tpu.dot_dimension_numbers<[1], [0], [0], [1], [0, 0, 1, 1], [], []>} : vector<2x4xbf16>, vector<4x128xbf16>, vector<2x128xf32> -> vector<2x128xf32>
    %399 = arith.addf %394, %398 : vector<2x128xf32>
    %c0_266 = arith.constant 0 : index
    %c0_267 = arith.constant 0 : index
    %400 = vector.load %arg29[%c0_266, %c0_267] : memref<32x128xf32, #tpu.memory_space<vmem>>, vector<32x128xf32>
    %401 = arith.truncf %376 : vector<2x32xf32> to vector<2x32xbf16>
    %402 = arith.truncf %400 : vector<32x128xf32> to vector<32x128xbf16>
    %cst_268 = arith.constant dense<0.000000e+00> : vector<2x128xf32>
    %403 = tpu.matmul %401, %402, %cst_268 {dimension_numbers = #tpu.dot_dimension_numbers<[1], [0], [0], [1], [0, 0, 1, 1], [], []>} : vector<2x32xbf16>, vector<32x128xbf16>, vector<2x128xf32> -> vector<2x128xf32>
    %404 = arith.addf %399, %403 : vector<2x128xf32>
    %c0_269 = arith.constant 0 : index
    %c0_270 = arith.constant 0 : index
    %405 = vector.load %arg30[%c0_269, %c0_270] : memref<128x128xf32, #tpu.memory_space<vmem>>, vector<128x128xf32>
    %406 = arith.truncf %377 : vector<2x128xf32> to vector<2x128xbf16>
    %407 = arith.truncf %405 : vector<128x128xf32> to vector<128x128xbf16>
    %cst_271 = arith.constant dense<0.000000e+00> : vector<2x128xf32>
    %408 = tpu.matmul %406, %407, %cst_271 {dimension_numbers = #tpu.dot_dimension_numbers<[1], [0], [0], [1], [0, 0, 1, 1], [], []>} : vector<2x128xbf16>, vector<128x128xbf16>, vector<2x128xf32> -> vector<2x128xf32>
    %409 = arith.addf %404, %408 : vector<2x128xf32>
    %c0_272 = arith.constant 0 : index
    %c0_273 = arith.constant 0 : index
    %410 = vector.load %arg23[%c0_272, %c0_273] : memref<16x308xf32, #tpu.memory_space<vmem>>, vector<16x308xf32>
    %c0_274 = arith.constant 0 : index
    %c0_275 = arith.constant 0 : index
    %411 = vector.load %arg32[%c0_274, %c0_275] : memref<308x256xf32, #tpu.memory_space<vmem>>, vector<308x256xf32>
    %412 = arith.truncf %410 : vector<16x308xf32> to vector<16x308xbf16>
    %413 = arith.truncf %411 : vector<308x256xf32> to vector<308x256xbf16>
    %cst_276 = arith.constant dense<0.000000e+00> : vector<16x256xf32>
    %414 = tpu.matmul %412, %413, %cst_276 {dimension_numbers = #tpu.dot_dimension_numbers<[1], [0], [0], [1], [0, 0, 1, 1], [], []>} : vector<16x308xbf16>, vector<308x256xbf16>, vector<16x256xf32> -> vector<16x256xf32>
    %c0_277 = arith.constant 0 : index
    %c0_278 = arith.constant 0 : index
    %415 = vector.load %arg33[%c0_277, %c0_278] : memref<1x256xf32, #tpu.memory_space<vmem>>, vector<1x256xf32>
    %416 = vector.broadcast %415 : vector<1x256xf32> to vector<16x256xf32>
    %417 = arith.addf %414, %416 : vector<16x256xf32>
    %418 = vector.extract_strided_slice %417 {offsets = [0, 0], sizes = [16, 128], strides = [1, 1]} : vector<16x256xf32> to vector<16x128xf32>
    %419 = vector.extract_strided_slice %417 {offsets = [0, 128], sizes = [16, 128], strides = [1, 1]} : vector<16x256xf32> to vector<16x128xf32>
    %420 = arith.truncf %409 : vector<2x128xf32> to vector<2x128xbf16>
    %421 = arith.truncf %418 : vector<16x128xf32> to vector<16x128xbf16>
    %cst_279 = arith.constant dense<0.000000e+00> : vector<2x16xf32>
    %422 = tpu.matmul %420, %421, %cst_279 {dimension_numbers = #tpu.dot_dimension_numbers<[1], [1], [0], [0], [0, 0, 1, 0], [], []>} : vector<2x128xbf16>, vector<16x128xbf16>, vector<2x16xf32> -> vector<2x16xf32>
    %cst_280 = arith.constant 0.0883883461 : f32
    %423 = vector.broadcast %cst_280 : f32 to vector<2x16xf32>
    %424 = arith.mulf %422, %423 : vector<2x16xf32>
    %c0_281 = arith.constant 0 : index
    %c0_282 = arith.constant 0 : index
    %425 = vector.load %arg24[%c0_281, %c0_282] : memref<2x16xf32, #tpu.memory_space<vmem>>, vector<2x16xf32>
    %426 = arith.addf %424, %425 : vector<2x16xf32>
    %cst_283 = arith.constant dense<0xFF800000> : vector<2xf32>
    %427 = vector.multi_reduction <maximumf>, %426, %cst_283 [1] : vector<2x16xf32> to vector<2xf32>
    %428 = vector.shape_cast %427 : vector<2xf32> to vector<2x1xf32>
    %429 = vector.broadcast %428 : vector<2x1xf32> to vector<2x16xf32>
    %430 = arith.subf %426, %429 : vector<2x16xf32>
    %431 = math.exp %430 : vector<2x16xf32>
    %cst_284 = arith.constant dense<0.000000e+00> : vector<2xf32>
    %432 = vector.multi_reduction <add>, %431, %cst_284 [1] : vector<2x16xf32> to vector<2xf32>
    %433 = vector.shape_cast %432 : vector<2xf32> to vector<2x1xf32>
    %434 = tpu.reciprocal %433 {approx = true} : vector<2x1xf32> -> vector<2x1xf32>
    %435 = vector.broadcast %434 : vector<2x1xf32> to vector<2x16xf32>
    %436 = arith.mulf %431, %435 : vector<2x16xf32>
    %437 = arith.truncf %436 : vector<2x16xf32> to vector<2x16xbf16>
    %438 = arith.truncf %419 : vector<16x128xf32> to vector<16x128xbf16>
    %cst_285 = arith.constant dense<0.000000e+00> : vector<2x128xf32>
    %439 = tpu.matmul %437, %438, %cst_285 {dimension_numbers = #tpu.dot_dimension_numbers<[1], [0], [0], [1], [0, 0, 1, 1], [], []>} : vector<2x16xbf16>, vector<16x128xbf16>, vector<2x128xf32> -> vector<2x128xf32>
    %c0_286 = arith.constant 0 : index
    %c0_287 = arith.constant 0 : index
    %440 = vector.load %arg34[%c0_286, %c0_287] : memref<128x128xf32, #tpu.memory_space<vmem>>, vector<128x128xf32>
    %441 = arith.truncf %439 : vector<2x128xf32> to vector<2x128xbf16>
    %442 = arith.truncf %440 : vector<128x128xf32> to vector<128x128xbf16>
    %cst_288 = arith.constant dense<0.000000e+00> : vector<2x128xf32>
    %443 = tpu.matmul %441, %442, %cst_288 {dimension_numbers = #tpu.dot_dimension_numbers<[1], [0], [0], [1], [0, 0, 1, 1], [], []>} : vector<2x128xbf16>, vector<128x128xbf16>, vector<2x128xf32> -> vector<2x128xf32>
    %c0_289 = arith.constant 0 : index
    %c0_290 = arith.constant 0 : index
    %444 = vector.load %arg35[%c0_289, %c0_290] : memref<1x128xf32, #tpu.memory_space<vmem>>, vector<1x128xf32>
    %445 = vector.broadcast %444 : vector<1x128xf32> to vector<2x128xf32>
    %446 = arith.addf %443, %445 : vector<2x128xf32>
    %447 = arith.addf %409, %446 : vector<2x128xf32>
    %c0_291 = arith.constant 0 : index
    %c0_292 = arith.constant 0 : index
    %448 = vector.load %arg36[%c0_291, %c0_292] : memref<128x128xf32, #tpu.memory_space<vmem>>, vector<128x128xf32>
    %449 = arith.truncf %447 : vector<2x128xf32> to vector<2x128xbf16>
    %450 = arith.truncf %448 : vector<128x128xf32> to vector<128x128xbf16>
    %cst_293 = arith.constant dense<0.000000e+00> : vector<2x128xf32>
    %451 = tpu.matmul %449, %450, %cst_293 {dimension_numbers = #tpu.dot_dimension_numbers<[1], [0], [0], [1], [0, 0, 1, 1], [], []>} : vector<2x128xbf16>, vector<128x128xbf16>, vector<2x128xf32> -> vector<2x128xf32>
    %c0_294 = arith.constant 0 : index
    %c0_295 = arith.constant 0 : index
    %452 = vector.load %arg37[%c0_294, %c0_295] : memref<1x128xf32, #tpu.memory_space<vmem>>, vector<1x128xf32>
    %453 = vector.broadcast %452 : vector<1x128xf32> to vector<2x128xf32>
    %454 = arith.addf %451, %453 : vector<2x128xf32>
    %cst_296 = arith.constant 0.000000e+00 : f32
    %455 = vector.broadcast %cst_296 : f32 to vector<2x128xf32>
    %456 = arith.maximumf %454, %455 : vector<2x128xf32>
    %c0_297 = arith.constant 0 : index
    %c0_298 = arith.constant 0 : index
    %457 = vector.load %arg38[%c0_297, %c0_298] : memref<128x128xf32, #tpu.memory_space<vmem>>, vector<128x128xf32>
    %458 = arith.truncf %456 : vector<2x128xf32> to vector<2x128xbf16>
    %459 = arith.truncf %457 : vector<128x128xf32> to vector<128x128xbf16>
    %cst_299 = arith.constant dense<0.000000e+00> : vector<2x128xf32>
    %460 = tpu.matmul %458, %459, %cst_299 {dimension_numbers = #tpu.dot_dimension_numbers<[1], [0], [0], [1], [0, 0, 1, 1], [], []>} : vector<2x128xbf16>, vector<128x128xbf16>, vector<2x128xf32> -> vector<2x128xf32>
    %c0_300 = arith.constant 0 : index
    %c0_301 = arith.constant 0 : index
    %461 = vector.load %arg39[%c0_300, %c0_301] : memref<1x128xf32, #tpu.memory_space<vmem>>, vector<1x128xf32>
    %462 = vector.broadcast %461 : vector<1x128xf32> to vector<2x128xf32>
    %463 = arith.addf %460, %462 : vector<2x128xf32>
    %464 = arith.addf %447, %463 : vector<2x128xf32>
    %c0_302 = arith.constant 0 : index
    %c0_303 = arith.constant 0 : index
    %465 = vector.load %arg40[%c0_302, %c0_303] : memref<2x128xf32, #tpu.memory_space<vmem>>, vector<2x128xf32>
    tpu.vector_store %arg40[%c0_302, %c0_303], %464 {strides = array<i32>} : memref<2x128xf32, #tpu.memory_space<vmem>>, vector<2x128xf32>,
    %c0_304 = arith.constant 0 : index
    %c0_305 = arith.constant 0 : index
    %466 = vector.load %arg41[%c0_304, %c0_305] : memref<2x128xf32, #tpu.memory_space<vmem>>, vector<2x128xf32>
    tpu.vector_store %arg41[%c0_304, %c0_305], %186 {strides = array<i32>} : memref<2x128xf32, #tpu.memory_space<vmem>>, vector<2x128xf32>,
    %c0_306 = arith.constant 0 : index
    %c0_307 = arith.constant 0 : index
    %467 = vector.load %arg42[%c0_306, %c0_307] : memref<2x128xf32, #tpu.memory_space<vmem>>, vector<2x128xf32>
    tpu.vector_store %arg42[%c0_306, %c0_307], %373 {strides = array<i32>} : memref<2x128xf32, #tpu.memory_space<vmem>>, vector<2x128xf32>,
    return
  }
}

</mosaic_0001>

<llo_original>
// kernel: audio_nav_option_net_forward.1
$region0: #{audio_nav_option_net_forward.1}
  #allocation0 [shape = 'u32[]', space=smem, size = 0x4, offset = 0x4, fixed_abs, tag = 'smem constant byte address 0x4 - core index']
  #allocation1 [shape = 'u32[144,128]{1,0:T(1,128)}', space=vmem, size = 0x12000, scoped, tag = 'internal scratch']
  %s0 = inlined_call_operand.smem [shape: u32[43], index: -1, kind: input, shape index: {}]
  %s1 = sld [smem:[%s0]]
  %s2 = scalar_lea.smem %s0, 1
  %s3 = sld [smem:[%s2]]
  %s4 = scalar_lea.smem %s0, 2
  %s5 = sld [smem:[%s4]]
  %s6 = scalar_lea.smem %s0, 3
  %s7 = sld [smem:[%s6]]
  %s8 = scalar_lea.smem %s0, 4
  %s9 = sld [smem:[%s8]]
  %s10 = scalar_lea.smem %s0, 5
  %s11 = sld [smem:[%s10]]
  %s12 = scalar_lea.smem %s0, 6
  %s13 = sld [smem:[%s12]]
  %s14 = scalar_lea.smem %s0, 7
  %s15 = sld [smem:[%s14]]
  %s16 = scalar_lea.smem %s0, 8
  %s17 = sld [smem:[%s16]]
  %s18 = scalar_lea.smem %s0, 9
  %s19 = sld [smem:[%s18]]
  %s20 = scalar_lea.smem %s0, 10
  %s21 = sld [smem:[%s20]]
  %s22 = scalar_lea.smem %s0, 11
  %s23 = sld [smem:[%s22]]
  %s24 = scalar_lea.smem %s0, 12
  %s25 = sld [smem:[%s24]]
  %s26 = scalar_lea.smem %s0, 13
  %s27 = sld [smem:[%s26]]
  %s28 = scalar_lea.smem %s0, 14
  %s29 = sld [smem:[%s28]]
  %s30 = scalar_lea.smem %s0, 15
  %s31 = sld [smem:[%s30]]
  %s32 = scalar_lea.smem %s0, 16
  %s33 = sld [smem:[%s32]]
  %s34 = scalar_lea.smem %s0, 17
  %s35 = sld [smem:[%s34]]
  %s36 = scalar_lea.smem %s0, 18
  %s37 = sld [smem:[%s36]]
  %s38 = scalar_lea.smem %s0, 19
  %s39 = sld [smem:[%s38]]
  %s40 = scalar_lea.smem %s0, 20
  %s41 = sld [smem:[%s40]]
  %s42 = scalar_lea.smem %s0, 21
  %s43 = sld [smem:[%s42]]
  %s44 = scalar_lea.smem %s0, 22
  %s45 = sld [smem:[%s44]]
  %s46 = scalar_lea.smem %s0, 23
  %s47 = sld [smem:[%s46]]
  %s48 = scalar_lea.smem %s0, 24
  %s49 = sld [smem:[%s48]]
  %s50 = scalar_lea.smem %s0, 25
  %s51 = sld [smem:[%s50]]
  %s52 = scalar_lea.smem %s0, 26
  %s53 = sld [smem:[%s52]]
  %s54 = scalar_lea.smem %s0, 27
  %s55 = sld [smem:[%s54]]
  %s56 = scalar_lea.smem %s0, 28
  %s57 = sld [smem:[%s56]]
  %s58 = scalar_lea.smem %s0, 29
  %s59 = sld [smem:[%s58]]
  %s60 = scalar_lea.smem %s0, 30
  %s61 = sld [smem:[%s60]]
  %s62 = scalar_lea.smem %s0, 31
  %s63 = sld [smem:[%s62]]
  %s64 = scalar_lea.smem %s0, 32
  %s65 = sld [smem:[%s64]]
  %s66 = scalar_lea.smem %s0, 33
  %s67 = sld [smem:[%s66]]
  %s68 = scalar_lea.smem %s0, 34
  %s69 = sld [smem:[%s68]]
  %s70 = scalar_lea.smem %s0, 35
  %s71 = sld [smem:[%s70]]
  %s72 = scalar_lea.smem %s0, 36
  %s73 = sld [smem:[%s72]]
  %s74 = scalar_lea.smem %s0, 37
  %s75 = sld [smem:[%s74]]
  %s76 = scalar_lea.smem %s0, 38
  %s77 = sld [smem:[%s76]]
  %s78 = scalar_lea.smem %s0, 39
  %s79 = sld [smem:[%s78]]
  %s80 = scalar_lea.smem %s0, 40
  %s81 = sld [smem:[%s80]]
  %s82 = scalar_lea.smem %s0, 41
  %s83 = sld [smem:[%s82]]
  %s84 = scalar_lea.smem %s0, 42
  %s85 = sld [smem:[%s84]]
  %86 = xla_tuple %s81, %s83, %s85
  %s87 = sld [smem:[#allocation0]]
  $region186: #{audio_nav_option_net_forward.1} parent=0
    _
  %s89 = ssub.s32 1, %s87
  %s90 = scalar_select 0, %s89, %s87
  $region1: #{audio_nav_option_net_forward.1} parent=0
    #allocation2 [shape = 'u8[1024]{0}', space=vmem, size = 0x400, scoped, tag = 'output window, operand 0, single buffered']
    #allocation3 [shape = 's32[1]{0}', space=sflag, size = 0x4, scoped, tag = 'scoped memory for audio_nav_option_net_forward.1']
    %91 = vsyncpa [#allocation3], 0
    // Predicated region
    $region2: #{audio_nav_option_net_forward.1} parent=1 // pred_check
      _
    $region3: #{audio_nav_option_net_forward.1} parent=1 // pred_check_branch
      %93 = sbr.rel (0) target = $region5
    $region4: #{audio_nav_option_net_forward.1} parent=1 // pred_region
      _
    $region5: #{audio_nav_option_net_forward.1} parent=1 // pred_fallthru
      _
    // Predicated region
    $region6: #{audio_nav_option_net_forward.1} parent=1 // pred_check
      _
    $region7: #{audio_nav_option_net_forward.1} parent=1 // pred_check_branch
      %95 = sbr.rel (0) target = $region9
    $region8: #{audio_nav_option_net_forward.1} parent=1 // pred_region
      _
    $region9: #{audio_nav_option_net_forward.1} parent=1 // pred_fallthru
      _
    // Predicated region
    $region10: #{audio_nav_option_net_forward.1} parent=1 // pred_check
      _
    $region11: #{audio_nav_option_net_forward.1} parent=1 // pred_check_branch
      %97 = sbr.rel (0) target = $region13
    $region12: #{audio_nav_option_net_forward.1} parent=1 // pred_region
      _
    $region13: #{audio_nav_option_net_forward.1} parent=1 // pred_fallthru
      _
    // Predicated region
    $region14: #{audio_nav_option_net_forward.1} parent=1 // pred_check
      _
    $region15: #{audio_nav_option_net_forward.1} parent=1 // pred_check_branch
      %99 = sbr.rel (0) target = $region17
    $region16: #{audio_nav_option_net_forward.1} parent=1 // pred_region
      _
    $region17: #{audio_nav_option_net_forward.1} parent=1 // pred_fallthru
      _
    // Predicated region
    $region18: #{audio_nav_option_net_forward.1} parent=1 // pred_check
      _
    $region19: #{audio_nav_option_net_forward.1} parent=1 // pred_check_branch
      %101 = sbr.rel (0) target = $region21
    $region20: #{audio_nav_option_net_forward.1} parent=1 // pred_region
      _
    $region21: #{audio_nav_option_net_forward.1} parent=1 // pred_fallthru
      _
    // Predicated region
    $region22: #{audio_nav_option_net_forward.1} parent=1 // pred_check
      _
    $region23: #{audio_nav_option_net_forward.1} parent=1 // pred_check_branch
      %103 = sbr.rel (0) target = $region25
    $region24: #{audio_nav_option_net_forward.1} parent=1 // pred_region
      _
    $region25: #{audio_nav_option_net_forward.1} parent=1 // pred_fallthru
      _
    // Predicated region
    $region26: #{audio_nav_option_net_forward.1} parent=1 // pred_check
      _
    $region27: #{audio_nav_option_net_forward.1} parent=1 // pred_check_branch
      %105 = sbr.rel (0) target = $region29
    $region28: #{audio_nav_option_net_forward.1} parent=1 // pred_region
      _
    $region29: #{audio_nav_option_net_forward.1} parent=1 // pred_fallthru
      _
    // Predicated region
    $region30: #{audio_nav_option_net_forward.1} parent=1 // pred_check
      _
    $region31: #{audio_nav_option_net_forward.1} parent=1 // pred_check_branch
      %107 = sbr.rel (0) target = $region33
    $region32: #{audio_nav_option_net_forward.1} parent=1 // pred_region
      _
    $region33: #{audio_nav_option_net_forward.1} parent=1 // pred_fallthru
      _
    // Predicated region
    $region34: #{audio_nav_option_net_forward.1} parent=1 // pred_check
      _
    $region35: #{audio_nav_option_net_forward.1} parent=1 // pred_check_branch
      %109 = sbr.rel (0) target = $region37
    $region36: #{audio_nav_option_net_forward.1} parent=1 // pred_region
      _
    $region37: #{audio_nav_option_net_forward.1} parent=1 // pred_fallthru
      _
    // Predicated region
    $region38: #{audio_nav_option_net_forward.1} parent=1 // pred_check
      _
    $region39: #{audio_nav_option_net_forward.1} parent=1 // pred_check_branch
      %111 = sbr.rel (0) target = $region41
    $region40: #{audio_nav_option_net_forward.1} parent=1 // pred_region
      _
    $region41: #{audio_nav_option_net_forward.1} parent=1 // pred_fallthru
      _
    // Predicated region
    $region42: #{audio_nav_option_net_forward.1} parent=1 // pred_check
      _
    $region43: #{audio_nav_option_net_forward.1} parent=1 // pred_check_branch
      %113 = sbr.rel (0) target = $region45
    $region44: #{audio_nav_option_net_forward.1} parent=1 // pred_region
      _
    $region45: #{audio_nav_option_net_forward.1} parent=1 // pred_fallthru
      _
    // Predicated region
    $region46: #{audio_nav_option_net_forward.1} parent=1 // pred_check
      _
    $region47: #{audio_nav_option_net_forward.1} parent=1 // pred_check_branch
      %115 = sbr.rel (0) target = $region49
    $region48: #{audio_nav_option_net_forward.1} parent=1 // pred_region
      _
    $region49: #{audio_nav_option_net_forward.1} parent=1 // pred_fallthru
      _
    // Predicated region
    $region50: #{audio_nav_option_net_forward.1} parent=1 // pred_check
      _
    $region51: #{audio_nav_option_net_forward.1} parent=1 // pred_check_branch
      %117 = sbr.rel (0) target = $region53
    $region52: #{audio_nav_option_net_forward.1} parent=1 // pred_region
      _
    $region53: #{audio_nav_option_net_forward.1} parent=1 // pred_fallthru
      _
    // Predicated region
    $region54: #{audio_nav_option_net_forward.1} parent=1 // pred_check
      _
    $region55: #{audio_nav_option_net_forward.1} parent=1 // pred_check_branch
      %119 = sbr.rel (0) target = $region57
    $region56: #{audio_nav_option_net_forward.1} parent=1 // pred_region
      _
    $region57: #{audio_nav_option_net_forward.1} parent=1 // pred_fallthru
      _
    // Predicated region
    $region58: #{audio_nav_option_net_forward.1} parent=1 // pred_check
      _
    $region59: #{audio_nav_option_net_forward.1} parent=1 // pred_check_branch
      %121 = sbr.rel (0) target = $region61
    $region60: #{audio_nav_option_net_forward.1} parent=1 // pred_region
      _
    $region61: #{audio_nav_option_net_forward.1} parent=1 // pred_fallthru
      _
    // Predicated region
    $region62: #{audio_nav_option_net_forward.1} parent=1 // pred_check
      _
    $region63: #{audio_nav_option_net_forward.1} parent=1 // pred_check_branch
      %123 = sbr.rel (0) target = $region65
    $region64: #{audio_nav_option_net_forward.1} parent=1 // pred_region
      _
    $region65: #{audio_nav_option_net_forward.1} parent=1 // pred_fallthru
      _
    // Predicated region
    $region66: #{audio_nav_option_net_forward.1} parent=1 // pred_check
      _
    $region67: #{audio_nav_option_net_forward.1} parent=1 // pred_check_branch
      %125 = sbr.rel (0) target = $region69
    $region68: #{audio_nav_option_net_forward.1} parent=1 // pred_region
      _
    $region69: #{audio_nav_option_net_forward.1} parent=1 // pred_fallthru
      _
    // Predicated region
    $region70: #{audio_nav_option_net_forward.1} parent=1 // pred_check
      _
    $region71: #{audio_nav_option_net_forward.1} parent=1 // pred_check_branch
      %127 = sbr.rel (0) target = $region73
    $region72: #{audio_nav_option_net_forward.1} parent=1 // pred_region
      _
    $region73: #{audio_nav_option_net_forward.1} parent=1 // pred_fallthru
      _
    // Predicated region
    $region74: #{audio_nav_option_net_forward.1} parent=1 // pred_check
      _
    $region75: #{audio_nav_option_net_forward.1} parent=1 // pred_check_branch
      %129 = sbr.rel (0) target = $region77
    $region76: #{audio_nav_option_net_forward.1} parent=1 // pred_region
      _
    $region77: #{audio_nav_option_net_forward.1} parent=1 // pred_fallthru
      _
    // Predicated region
    $region78: #{audio_nav_option_net_forward.1} parent=1 // pred_check
      _
    $region79: #{audio_nav_option_net_forward.1} parent=1 // pred_check_branch
      %131 = sbr.rel (0) target = $region81
    $region80: #{audio_nav_option_net_forward.1} parent=1 // pred_region
      _
    $region81: #{audio_nav_option_net_forward.1} parent=1 // pred_fallthru
      _
    // Predicated region
    $region82: #{audio_nav_option_net_forward.1} parent=1 // pred_check
      _
    $region83: #{audio_nav_option_net_forward.1} parent=1 // pred_check_branch
      %133 = sbr.rel (0) target = $region85
    $region84: #{audio_nav_option_net_forward.1} parent=1 // pred_region
      _
    $region85: #{audio_nav_option_net_forward.1} parent=1 // pred_fallthru
      _
    // Predicated region
    $region86: #{audio_nav_option_net_forward.1} parent=1 // pred_check
      _
    $region87: #{audio_nav_option_net_forward.1} parent=1 // pred_check_branch
      %135 = sbr.rel (0) target = $region89
    $region88: #{audio_nav_option_net_forward.1} parent=1 // pred_region
      _
    $region89: #{audio_nav_option_net_forward.1} parent=1 // pred_fallthru
      _
    // Predicated region
    $region90: #{audio_nav_option_net_forward.1} parent=1 // pred_check
      _
    $region91: #{audio_nav_option_net_forward.1} parent=1 // pred_check_branch
      %137 = sbr.rel (0) target = $region93
    $region92: #{audio_nav_option_net_forward.1} parent=1 // pred_region
      _
    $region93: #{audio_nav_option_net_forward.1} parent=1 // pred_fallthru
      _
    // Predicated region
    $region94: #{audio_nav_option_net_forward.1} parent=1 // pred_check
      _
    $region95: #{audio_nav_option_net_forward.1} parent=1 // pred_check_branch
      %139 = sbr.rel (0) target = $region97
    $region96: #{audio_nav_option_net_forward.1} parent=1 // pred_region
      _
    $region97: #{audio_nav_option_net_forward.1} parent=1 // pred_fallthru
      _
    // Predicated region
    $region98: #{audio_nav_option_net_forward.1} parent=1 // pred_check
      _
    $region99: #{audio_nav_option_net_forward.1} parent=1 // pred_check_branch
      %141 = sbr.rel (0) target = $region101
    $region100: #{audio_nav_option_net_forward.1} parent=1 // pred_region
      _
    $region101: #{audio_nav_option_net_forward.1} parent=1 // pred_fallthru
      _
    // Predicated region
    $region102: #{audio_nav_option_net_forward.1} parent=1 // pred_check
      _
    $region103: #{audio_nav_option_net_forward.1} parent=1 // pred_check_branch
      %143 = sbr.rel (0) target = $region105
    $region104: #{audio_nav_option_net_forward.1} parent=1 // pred_region
      _
    $region105: #{audio_nav_option_net_forward.1} parent=1 // pred_fallthru
      _
    // Predicated region
    $region106: #{audio_nav_option_net_forward.1} parent=1 // pred_check
      _
    $region107: #{audio_nav_option_net_forward.1} parent=1 // pred_check_branch
      %145 = sbr.rel (0) target = $region109
    $region108: #{audio_nav_option_net_forward.1} parent=1 // pred_region
      _
    $region109: #{audio_nav_option_net_forward.1} parent=1 // pred_fallthru
      _
    // Predicated region
    $region110: #{audio_nav_option_net_forward.1} parent=1 // pred_check
      _
    $region111: #{audio_nav_option_net_forward.1} parent=1 // pred_check_branch
      %147 = sbr.rel (0) target = $region113
    $region112: #{audio_nav_option_net_forward.1} parent=1 // pred_region
      _
    $region113: #{audio_nav_option_net_forward.1} parent=1 // pred_fallthru
      _
    // Predicated region
    $region114: #{audio_nav_option_net_forward.1} parent=1 // pred_check
      _
    $region115: #{audio_nav_option_net_forward.1} parent=1 // pred_check_branch
      %149 = sbr.rel (0) target = $region117
    $region116: #{audio_nav_option_net_forward.1} parent=1 // pred_region
      _
    $region117: #{audio_nav_option_net_forward.1} parent=1 // pred_fallthru
      _
    // Predicated region
    $region118: #{audio_nav_option_net_forward.1} parent=1 // pred_check
      _
    $region119: #{audio_nav_option_net_forward.1} parent=1 // pred_check_branch
      %151 = sbr.rel (0) target = $region121
    $region120: #{audio_nav_option_net_forward.1} parent=1 // pred_region
      _
    $region121: #{audio_nav_option_net_forward.1} parent=1 // pred_fallthru
      _
    // Predicated region
    $region122: #{audio_nav_option_net_forward.1} parent=1 // pred_check
      _
    $region123: #{audio_nav_option_net_forward.1} parent=1 // pred_check_branch
      %153 = sbr.rel (0) target = $region125
    $region124: #{audio_nav_option_net_forward.1} parent=1 // pred_region
      _
    $region125: #{audio_nav_option_net_forward.1} parent=1 // pred_fallthru
      _
    // Predicated region
    $region126: #{audio_nav_option_net_forward.1} parent=1 // pred_check
      _
    $region127: #{audio_nav_option_net_forward.1} parent=1 // pred_check_branch
      %155 = sbr.rel (0) target = $region129
    $region128: #{audio_nav_option_net_forward.1} parent=1 // pred_region
      _
    $region129: #{audio_nav_option_net_forward.1} parent=1 // pred_fallthru
      _
    // Predicated region
    $region130: #{audio_nav_option_net_forward.1} parent=1 // pred_check
      _
    $region131: #{audio_nav_option_net_forward.1} parent=1 // pred_check_branch
      %157 = sbr.rel (0) target = $region133
    $region132: #{audio_nav_option_net_forward.1} parent=1 // pred_region
      _
    $region133: #{audio_nav_option_net_forward.1} parent=1 // pred_fallthru
      _
    // Predicated region
    $region134: #{audio_nav_option_net_forward.1} parent=1 // pred_check
      _
    $region135: #{audio_nav_option_net_forward.1} parent=1 // pred_check_branch
      %159 = sbr.rel (0) target = $region137
    $region136: #{audio_nav_option_net_forward.1} parent=1 // pred_region
      _
    $region137: #{audio_nav_option_net_forward.1} parent=1 // pred_fallthru
      _
    // Predicated region
    $region138: #{audio_nav_option_net_forward.1} parent=1 // pred_check
      _
    $region139: #{audio_nav_option_net_forward.1} parent=1 // pred_check_branch
      %161 = sbr.rel (0) target = $region141
    $region140: #{audio_nav_option_net_forward.1} parent=1 // pred_region
      _
    $region141: #{audio_nav_option_net_forward.1} parent=1 // pred_fallthru
      _
    // Predicated region
    $region142: #{audio_nav_option_net_forward.1} parent=1 // pred_check
      _
    $region143: #{audio_nav_option_net_forward.1} parent=1 // pred_check_branch
      %163 = sbr.rel (0) target = $region145
    $region144: #{audio_nav_option_net_forward.1} parent=1 // pred_region
      _
    $region145: #{audio_nav_option_net_forward.1} parent=1 // pred_fallthru
      _
    // Predicated region
    $region146: #{audio_nav_option_net_forward.1} parent=1 // pred_check
      _
    $region147: #{audio_nav_option_net_forward.1} parent=1 // pred_check_branch
      %165 = sbr.rel (0) target = $region149
    $region148: #{audio_nav_option_net_forward.1} parent=1 // pred_region
      _
    $region149: #{audio_nav_option_net_forward.1} parent=1 // pred_fallthru
      _
    // Predicated region
    $region150: #{audio_nav_option_net_forward.1} parent=1 // pred_check
      _
    $region151: #{audio_nav_option_net_forward.1} parent=1 // pred_check_branch
      %167 = sbr.rel (0) target = $region153
    $region152: #{audio_nav_option_net_forward.1} parent=1 // pred_region
      _
    $region153: #{audio_nav_option_net_forward.1} parent=1 // pred_fallthru
      _
    // Predicated region
    $region154: #{audio_nav_option_net_forward.1} parent=1 // pred_check
      _
    $region155: #{audio_nav_option_net_forward.1} parent=1 // pred_check_branch
      %169 = sbr.rel (0) target = $region157
    $region156: #{audio_nav_option_net_forward.1} parent=1 // pred_region
      _
    $region157: #{audio_nav_option_net_forward.1} parent=1 // pred_fallthru
      _
    // Predicated region
    $region158: #{audio_nav_option_net_forward.1} parent=1 // pred_check
      _
    $region159: #{audio_nav_option_net_forward.1} parent=1 // pred_check_branch
      %171 = sbr.rel (0) target = $region161
    $region160: #{audio_nav_option_net_forward.1} parent=1 // pred_region
      _
    $region161: #{audio_nav_option_net_forward.1} parent=1 // pred_fallthru
      _
    %v173 = vld [vmem:[%s1] sm:$0xff]
    %v174 = vld [vmem:[%s1 + $0x8] sm:$0xff]
    %v175 = vld [vmem:[%s1 + $0x10] sm:$0xff]
    %v176 = vld [vmem:[%s1 + $0x18] sm:$0xff]
    %v177 = vld [vmem:[%s1 + $0x20] sm:$0xff]
    %v178 = vld [vmem:[%s1 + $0x28] sm:$0xff]
    %v179 = vld [vmem:[%s1 + $0x30] sm:$0xff]
    %v180 = vld [vmem:[%s1 + $0x38] sm:$0xff]
    %v181 = vld [vmem:[%s1 + $0x40] sm:$0xff]
    %v182 = vld [vmem:[%s1 + $0x48] sm:$0xff]
    %v183 = vld [vmem:[%s1 + $0x50] sm:$0xff]
    %v184 = vld [vmem:[%s1 + $0x58] sm:$0xff]
    %v185 = vld [vmem:[%s1 + $0x60] sm:$0xff]
    %v186 = vld [vmem:[%s1 + $0x68] sm:$0xff]
    %v187 = vld [vmem:[%s1 + $0x70] sm:$0xff]
    %v188 = vld [vmem:[%s1 + $0x78] sm:$0xff]
    %v189 = vld [vmem:[%s7] sm:$0xff]
    %v190 = vld [vmem:[%s7 + $0x8] sm:$0xff]
    %v191 = vld [vmem:[%s7 + $0x10] sm:$0xff]
    %v192 = vld [vmem:[%s7 + $0x18] sm:$0xff]
    %v193 = vld [vmem:[%s7 + $0x20] sm:$0xff]
    %v194 = vld [vmem:[%s7 + $0x28] sm:$0xff]
    %v195 = vld [vmem:[%s7 + $0x30] sm:$0xff]
    %v196 = vld [vmem:[%s7 + $0x38] sm:$0xff]
    %v197 = vld [vmem:[%s7 + $0x40] sm:$0xff]
    %v198 = vld [vmem:[%s7 + $0x48] sm:$0xff]
    %v199 = vld [vmem:[%s7 + $0x50] sm:$0xff]
    %v200 = vld [vmem:[%s7 + $0x58] sm:$0xff]
    %v201 = vld [vmem:[%s7 + $0x60] sm:$0xf]
    %v202 = vpack.c.bf16 %v174, %v173
    %v203 = vpack.c.bf16 %v176, %v175
    %v204 = vpack.c.bf16 %v178, %v177
    %v205 = vpack.c.bf16 %v180, %v179
    %v206 = vpack.c.bf16 %v182, %v181
    %v207 = vpack.c.bf16 %v184, %v183
    %v208 = vpack.c.bf16 %v186, %v185
    %v209 = vpack.c.bf16 %v188, %v187
    %v210 = vpack.c.bf16 %v190, %v189
    %v211 = vpack.c.bf16 %v192, %v191
    %v212 = vpack.c.bf16 %v194, %v193
    %v213 = vpack.c.bf16 %v196, %v195
    %v214 = vpack.c.bf16 %v198, %v197
    %v215 = vpack.c.bf16 %v200, %v199
    %v216 = vpack.c.bf16 %v201, %v201
    %v217 = vld [vmem:[%s9] sm:$0x1]
    %v219 = vlaneseq
    %v220 = vshrl.u32 %v219, 7
    %v221 = vsub.s32 0, %v220
    %v222 = vrot.slane %v217, %v221
    %vm224 = vcmask 818176
    %v226 = vsel %vm224, %v202, 0
    %v229 = vsel %vm224, %v203, 0
    %v232 = vsel %vm224, %v204, 0
    %v235 = vsel %vm224, %v205, 0
    %v238 = vsel %vm224, %v206, 0
    %v241 = vsel %vm224, %v207, 0
    %v244 = vsel %vm224, %v208, 0
    %v247 = vsel %vm224, %v209, 0
    %vm249 = vcmask 1041408
    %v251 = vsel %vm249, %v216, 0
    %253 = vmatprep.subr.bf16.mxu0 0
    %254 = vmatpush1.bf16.msra.mxu0 0
    %255 = vmatprep.subr.bf16.mxu0 0
    %256 = vmatpush1.bf16.msra.mxu0 %v251
    %257 = vmatprep.subr.bf16.mxu0 0
    %258 = vmatpush1.bf16.msra.mxu0 %v215
    %259 = vmatprep.subr.bf16.mxu0 0
    %260 = vmatpush1.bf16.msra.mxu0 %v214
    %261 = vmatprep.subr.bf16.mxu0 0
    %262 = vmatpush1.bf16.msra.mxu0 %v213
    %263 = vmatprep.subr.bf16.mxu0 0
    %264 = vmatpush1.bf16.msra.mxu0 %v212
    %265 = vmatprep.subr.bf16.mxu0 0
    %266 = vmatpush1.bf16.msra.mxu0 %v211
    %267 = vmatprep.subr.bf16.mxu0 0
    %268 = vmatpush1.bf16.msra.mxu0 %v210
    %269 = vmatprep.subr.bf16.mxu0 0
    %270 = vmatpush2.bf16.msra.mxu0 0
    %271 = vmatprep.subr.bf16.mxu0 0
    %272 = vmatpush2.bf16.msra.mxu0 0
    %273 = vmatprep.subr.bf16.mxu0 0
    %274 = vmatpush2.bf16.msra.mxu0 0
    %275 = vmatprep.subr.bf16.mxu0 0
    %276 = vmatpush2.bf16.msra.mxu0 0
    %277 = vmatprep.subr.bf16.mxu0 0
    %278 = vmatpush2.bf16.msra.mxu0 0
    %279 = vmatprep.subr.bf16.mxu0 0
    %280 = vmatpush2.bf16.msra.mxu0 0
    %281 = vmatprep.subr.bf16.mxu0 0
    %282 = vmatpush2.bf16.msra.mxu0 0
    %283 = vmatprep.subr.bf16.mxu0 0
    %284 = vmatpush2.bf16.msra.mxu0 0
    %285 = vmatprep.mubr.bf16.mxu0 0
    %286 = vmatmul.mubr.bf16.gmra.mxu0 %v226
    %v287 = vpop.f32.mrf.mxu0
    %v288 = vadd.f32 %v222, %v287
    %v289 = vpop.f32.mrf.mxu0
    %v290 = vpop.f32.mrf.mxu0
    %v291 = vadd.f32 %v222, %v290
    %v292 = vpop.f32.mrf.mxu0
    %293 = vmatprep.mubr.bf16.mxu0 0
    %294 = vmatmul.mubr.bf16.gmra.mxu0 %v229
    %v295 = vpop.f32.mrf.mxu0
    %v296 = vadd.f32 %v222, %v295
    %v297 = vpop.f32.mrf.mxu0
    %v298 = vpop.f32.mrf.mxu0
    %v299 = vadd.f32 %v222, %v298
    %v300 = vpop.f32.mrf.mxu0
    %301 = vmatprep.mubr.bf16.mxu0 0
    %302 = vmatmul.mubr.bf16.gmra.mxu0 %v232
    %v303 = vpop.f32.mrf.mxu0
    %v304 = vadd.f32 %v222, %v303
    %v305 = vpop.f32.mrf.mxu0
    %v306 = vpop.f32.mrf.mxu0
    %v307 = vadd.f32 %v222, %v306
    %v308 = vpop.f32.mrf.mxu0
    %309 = vmatprep.mubr.bf16.mxu0 0
    %310 = vmatmul.mubr.bf16.gmra.mxu0 %v235
    %v311 = vpop.f32.mrf.mxu0
    %v312 = vadd.f32 %v222, %v311
    %v313 = vpop.f32.mrf.mxu0
    %v314 = vpop.f32.mrf.mxu0
    %v315 = vadd.f32 %v222, %v314
    %v316 = vpop.f32.mrf.mxu0
    %317 = vmatprep.mubr.bf16.mxu0 0
    %318 = vmatmul.mubr.bf16.gmra.mxu0 %v238
    %v319 = vpop.f32.mrf.mxu0
    %v320 = vadd.f32 %v222, %v319
    %v321 = vpop.f32.mrf.mxu0
    %v322 = vpop.f32.mrf.mxu0
    %v323 = vadd.f32 %v222, %v322
    %v324 = vpop.f32.mrf.mxu0
    %325 = vmatprep.mubr.bf16.mxu0 0
    %326 = vmatmul.mubr.bf16.gmra.mxu0 %v241
    %v327 = vpop.f32.mrf.mxu0
    %v328 = vadd.f32 %v222, %v327
    %v329 = vpop.f32.mrf.mxu0
    %v330 = vpop.f32.mrf.mxu0
    %v331 = vadd.f32 %v222, %v330
    %v332 = vpop.f32.mrf.mxu0
    %333 = vmatprep.mubr.bf16.mxu0 0
    %334 = vmatmul.mubr.bf16.gmra.mxu0 %v244
    %v335 = vpop.f32.mrf.mxu0
    %v336 = vadd.f32 %v222, %v335
    %v337 = vpop.f32.mrf.mxu0
    %v338 = vpop.f32.mrf.mxu0
    %v339 = vadd.f32 %v222, %v338
    %v340 = vpop.f32.mrf.mxu0
    %341 = vmatprep.mubr.bf16.mxu0 0
    %342 = vmatmul.mubr.bf16.gmra.mxu0 %v247
    %v343 = vpop.f32.mrf.mxu0
    %v344 = vadd.f32 %v222, %v343
    %v345 = vpop.f32.mrf.mxu0
    %v346 = vpop.f32.mrf.mxu0
    %v347 = vadd.f32 %v222, %v346
    %v348 = vpop.f32.mrf.mxu0
    %349 = vdwg.mxu0
    %v350 = vmax.f32 %v288, 0.0
    %v351 = vmax.f32 %v291, 0.0
    %v352 = vmax.f32 %v296, 0.0
    %v353 = vmax.f32 %v299, 0.0
    %v354 = vmax.f32 %v304, 0.0
    %v355 = vmax.f32 %v307, 0.0
    %v356 = vmax.f32 %v312, 0.0
    %v357 = vmax.f32 %v315, 0.0
    %v358 = vmax.f32 %v320, 0.0
    %v359 = vmax.f32 %v323, 0.0
    %v360 = vmax.f32 %v328, 0.0
    %v361 = vmax.f32 %v331, 0.0
    %v362 = vmax.f32 %v336, 0.0
    %v363 = vmax.f32 %v339, 0.0
    %v364 = vmax.f32 %v344, 0.0
    %v365 = vmax.f32 %v347, 0.0
    %v366 = vld [vmem:[%s5] sm:$0xff]
    %v367 = vld [vmem:[%s5 + $0x8] sm:$0xff]
    %v368 = vld [vmem:[%s5 + $0x10] sm:$0x3]
    %v369 = vpack.c.bf16 %v367, %v366
    %v370 = vpack.c.bf16 %v368, %v368
    %v371 = vpack.c.bf16 %v351, %v350
    %v372 = vpack.c.bf16 %v353, %v352
    %v373 = vpack.c.bf16 %v355, %v354
    %v374 = vpack.c.bf16 %v357, %v356
    %v375 = vpack.c.bf16 %v359, %v358
    %v376 = vpack.c.bf16 %v361, %v360
    %v377 = vpack.c.bf16 %v363, %v362
    %v378 = vpack.c.bf16 %v365, %v364
    %379 = vmatprep.subr.bf16.mxu0 0
    %380 = vmatpush1.bf16.msra.mxu0 %v378
    %381 = vmatprep.subr.bf16.mxu0 0
    %382 = vmatpush1.bf16.msra.mxu0 %v377
    %383 = vmatprep.subr.bf16.mxu0 0
    %384 = vmatpush1.bf16.msra.mxu0 %v376
    %385 = vmatprep.subr.bf16.mxu0 0
    %386 = vmatpush1.bf16.msra.mxu0 %v375
    %387 = vmatprep.subr.bf16.mxu0 0
    %388 = vmatpush1.bf16.msra.mxu0 %v374
    %389 = vmatprep.subr.bf16.mxu0 0
    %390 = vmatpush1.bf16.msra.mxu0 %v373
    %391 = vmatprep.subr.bf16.mxu0 0
    %392 = vmatpush1.bf16.msra.mxu0 %v372
    %393 = vmatprep.subr.bf16.mxu0 0
    %394 = vmatpush1.bf16.msra.mxu0 %v371
    %395 = vmatprep.subr.bf16.mxu0 0
    %396 = vmatpush2.bf16.msra.mxu0 0
    %397 = vmatprep.subr.bf16.mxu0 0
    %398 = vmatpush2.bf16.msra.mxu0 0
    %399 = vmatprep.subr.bf16.mxu0 0
    %400 = vmatpush2.bf16.msra.mxu0 0
    %401 = vmatprep.subr.bf16.mxu0 0
    %402 = vmatpush2.bf16.msra.mxu0 0
    %403 = vmatprep.subr.bf16.mxu0 0
    %404 = vmatpush2.bf16.msra.mxu0 0
    %405 = vmatprep.subr.bf16.mxu0 0
    %406 = vmatpush2.bf16.msra.mxu0 0
    %407 = vmatprep.subr.bf16.mxu0 0
    %408 = vmatpush2.bf16.msra.mxu0 0
    %409 = vmatprep.subr.bf16.mxu0 0
    %410 = vmatpush2.bf16.msra.mxu0 0
    %411 = vmatprep.mubr.bf16.mxu0 0
    %412 = vmatmul.mubr.bf16.gmra.mxu0 %v369
    %v413 = vpop.f32.mrf.mxu0
    %v414 = vadd.f32 0.0, %v413
    %v415 = vpop.f32.mrf.mxu0
    %v416 = vpop.f32.mrf.mxu0
    %v417 = vadd.f32 0.0, %v416
    %v418 = vpop.f32.mrf.mxu0
    %419 = vmatprep.mubr.bf16.mxu0 0
    %420 = vmatmul.mubr.bf16.gmra.mxu0 %v370
    %v421 = vpop.f32.mrf.mxu0
    %v422 = vadd.f32 0.0, %v421
    %v423 = vpop.f32.mrf.mxu0
    %v424 = vpop.f32.mrf.mxu0
    %v425 = vpop.f32.mrf.mxu0
    %426 = vdwg.mxu0
    %v427 = vld [vmem:[%s11] sm:$0xff]
    %v428 = vld [vmem:[%s11 + $0x8] sm:$0xff]
    %v429 = vld [vmem:[%s11 + $0x10] sm:$0xff]
    %v430 = vld [vmem:[%s11 + $0x18] sm:$0xff]
    %v431 = vpack.c.bf16 %v417, %v414
    %v432 = vpack.c.bf16 %v422, %v422
    %v433 = vpack.c.bf16 %v428, %v427
    %v434 = vpack.c.bf16 %v430, %v429
    %s435 = scalar_lea.vmem %s5, 24
    %v436 = vld [vmem:[%s435] sm:$0xff]
    %v437 = vld [vmem:[%s435 + $0x8] sm:$0xff]
    %v438 = vld [vmem:[%s435 + $0x10] sm:$0x3]
    %v439 = vpack.c.bf16 %v437, %v436
    %v440 = vpack.c.bf16 %v438, %v438
    %441 = vmatprep.subr.bf16.mxu0 0
    %442 = vmatpush1.bf16.msra.mxu0 %v378
    %443 = vmatprep.subr.bf16.mxu0 0
    %444 = vmatpush1.bf16.msra.mxu0 %v377
    %445 = vmatprep.subr.bf16.mxu0 0
    %446 = vmatpush1.bf16.msra.mxu0 %v376
    %447 = vmatprep.subr.bf16.mxu0 0
    %448 = vmatpush1.bf16.msra.mxu0 %v375
    %449 = vmatprep.subr.bf16.mxu0 0
    %450 = vmatpush1.bf16.msra.mxu0 %v374
    %451 = vmatprep.subr.bf16.mxu0 0
    %452 = vmatpush1.bf16.msra.mxu0 %v373
    %453 = vmatprep.subr.bf16.mxu0 0
    %454 = vmatpush1.bf16.msra.mxu0 %v372
    %455 = vmatprep.subr.bf16.mxu0 0
    %456 = vmatpush1.bf16.msra.mxu0 %v371
    %457 = vmatprep.subr.bf16.mxu0 0
    %458 = vmatpush2.bf16.msra.mxu0 0
    %459 = vmatprep.subr.bf16.mxu0 0
    %460 = vmatpush2.bf16.msra.mxu0 0
    %461 = vmatprep.subr.bf16.mxu0 0
    %462 = vmatpush2.bf16.msra.mxu0 0
    %463 = vmatprep.subr.bf16.mxu0 0
    %464 = vmatpush2.bf16.msra.mxu0 0
    %465 = vmatprep.subr.bf16.mxu0 0
    %466 = vmatpush2.bf16.msra.mxu0 0
    %467 = vmatprep.subr.bf16.mxu0 0
    %468 = vmatpush2.bf16.msra.mxu0 0
    %469 = vmatprep.subr.bf16.mxu0 0
    %470 = vmatpush2.bf16.msra.mxu0 0
    %471 = vmatprep.subr.bf16.mxu0 0
    %472 = vmatpush2.bf16.msra.mxu0 0
    %473 = vmatprep.mubr.bf16.mxu0 0
    %474 = vmatmul.mubr.bf16.gmra.mxu0 %v439
    %v475 = vpop.f32.mrf.mxu0
    %v476 = vadd.f32 0.0, %v475
    %v477 = vpop.f32.mrf.mxu0
    %v478 = vpop.f32.mrf.mxu0
    %v479 = vadd.f32 0.0, %v478
    %v480 = vpop.f32.mrf.mxu0
    %481 = vmatprep.mubr.bf16.mxu0 0
    %482 = vmatmul.mubr.bf16.gmra.mxu0 %v440
    %v483 = vpop.f32.mrf.mxu0
    %v484 = vadd.f32 0.0, %v483
    %v485 = vpop.f32.mrf.mxu0
    %v486 = vpop.f32.mrf.mxu0
    %v487 = vpop.f32.mrf.mxu0
    %488 = vdwg.mxu0
    %s489 = scalar_lea.vmem %s11, 32
    %v490 = vld [vmem:[%s489] sm:$0xff]
    %v491 = vld [vmem:[%s489 + $0x8] sm:$0xff]
    %v492 = vld [vmem:[%s489 + $0x10] sm:$0xff]
    %v493 = vld [vmem:[%s489 + $0x18] sm:$0xff]
    %v494 = vpack.c.bf16 %v479, %v476
    %v495 = vpack.c.bf16 %v484, %v484
    %v496 = vpack.c.bf16 %v491, %v490
    %v497 = vpack.c.bf16 %v493, %v492
    %vm498 = vcmask 261120
    %v500 = vsel %vm498, %v494, 0
    %v503 = vsel %vm498, %v495, 0
    %505 = vmatprep.subr.bf16.mxu0 0
    %506 = vmatpush1.bf16.msra.mxu0 0
    %507 = vmatprep.subr.bf16.mxu0 0
    %508 = vmatpush1.bf16.msra.mxu0 0
    %509 = vmatprep.subr.bf16.mxu0 0
    %510 = vmatpush1.bf16.msra.mxu0 0
    %511 = vmatprep.subr.bf16.mxu0 0
    %512 = vmatpush1.bf16.msra.mxu0 0
    %513 = vmatprep.subr.bf16.mxu0 0
    %514 = vmatpush1.bf16.msra.mxu0 0
    %515 = vmatprep.subr.bf16.mxu0 0
    %516 = vmatpush1.bf16.msra.mxu0 0
    %517 = vmatprep.subr.bf16.mxu0 0
    %518 = vmatpush1.bf16.msra.mxu0 %v497
    %519 = vmatprep.subr.bf16.mxu0 0
    %520 = vmatpush1.bf16.msra.mxu0 %v496
    %521 = vmatprep.subr.bf16.mxu0 0
    %522 = vmatpush2.bf16.msra.mxu0 0
    %523 = vmatprep.subr.bf16.mxu0 0
    %524 = vmatpush2.bf16.msra.mxu0 0
    %525 = vmatprep.subr.bf16.mxu0 0
    %526 = vmatpush2.bf16.msra.mxu0 0
    %527 = vmatprep.subr.bf16.mxu0 0
    %528 = vmatpush2.bf16.msra.mxu0 0
    %529 = vmatprep.subr.bf16.mxu0 0
    %530 = vmatpush2.bf16.msra.mxu0 0
    %531 = vmatprep.subr.bf16.mxu0 0
    %532 = vmatpush2.bf16.msra.mxu0 0
    %533 = vmatprep.subr.bf16.mxu0 0
    %534 = vmatpush2.bf16.msra.mxu0 0
    %535 = vmatprep.subr.bf16.mxu0 0
    %536 = vmatpush2.bf16.msra.mxu0 0
    %537 = vmatprep.mubr.bf16.mxu0 0
    %538 = vmatmul.mubr.bf16.gmra.mxu0 %v500
    %v539 = vpop.f32.mrf.mxu0
    %v540 = vadd.f32 0.0, %v539
    %v541 = vpop.f32.mrf.mxu0
    %v542 = vpop.f32.mrf.mxu0
    %v543 = vadd.f32 0.0, %v542
    %v544 = vpop.f32.mrf.mxu0
    %545 = vmatprep.mubr.bf16.mxu0 0
    %546 = vmatmul.mubr.bf16.gmra.mxu0 %v503
    %v547 = vpop.f32.mrf.mxu0
    %v548 = vadd.f32 0.0, %v547
    %v549 = vpop.f32.mrf.mxu0
    %v550 = vpop.f32.mrf.mxu0
    %v551 = vpop.f32.mrf.mxu0
    %552 = vdwg.mxu0
    %v554 = vsel %vm498, %v431, 0
    %v557 = vsel %vm498, %v432, 0
    %559 = vmatprep.subr.bf16.mxu0 0
    %560 = vmatpush1.bf16.msra.mxu0 0
    %561 = vmatprep.subr.bf16.mxu0 0
    %562 = vmatpush1.bf16.msra.mxu0 0
    %563 = vmatprep.subr.bf16.mxu0 0
    %564 = vmatpush1.bf16.msra.mxu0 0
    %565 = vmatprep.subr.bf16.mxu0 0
    %566 = vmatpush1.bf16.msra.mxu0 0
    %567 = vmatprep.subr.bf16.mxu0 0
    %568 = vmatpush1.bf16.msra.mxu0 0
    %569 = vmatprep.subr.bf16.mxu0 0
    %570 = vmatpush1.bf16.msra.mxu0 0
    %571 = vmatprep.subr.bf16.mxu0 0
    %572 = vmatpush1.bf16.msra.mxu0 %v434
    %573 = vmatprep.subr.bf16.mxu0 0
    %574 = vmatpush1.bf16.msra.mxu0 %v433
    %575 = vmatprep.subr.bf16.mxu0 0
    %576 = vmatpush2.bf16.msra.mxu0 0
    %577 = vmatprep.subr.bf16.mxu0 0
    %578 = vmatpush2.bf16.msra.mxu0 0
    %579 = vmatprep.subr.bf16.mxu0 0
    %580 = vmatpush2.bf16.msra.mxu0 0
    %581 = vmatprep.subr.bf16.mxu0 0
    %582 = vmatpush2.bf16.msra.mxu0 0
    %583 = vmatprep.subr.bf16.mxu0 0
    %584 = vmatpush2.bf16.msra.mxu0 0
    %585 = vmatprep.subr.bf16.mxu0 0
    %586 = vmatpush2.bf16.msra.mxu0 0
    %587 = vmatprep.subr.bf16.mxu0 0
    %588 = vmatpush2.bf16.msra.mxu0 0
    %589 = vmatprep.subr.bf16.mxu0 0
    %590 = vmatpush2.bf16.msra.mxu0 0
    %591 = vmatprep.mubr.bf16.mxu0 0
    %592 = vmatmul.mubr.bf16.gmra.mxu0 %v554
    %v593 = vpop.f32.mrf.mxu0
    %v594 = vadd.f32 %v540, %v593
    %v595 = vpop.f32.mrf.mxu0
    %v596 = vpop.f32.mrf.mxu0
    %v597 = vadd.f32 %v543, %v596
    %v598 = vpop.f32.mrf.mxu0
    %599 = vmatprep.mubr.bf16.mxu0 0
    %600 = vmatmul.mubr.bf16.gmra.mxu0 %v557
    %v601 = vpop.f32.mrf.mxu0
    %v602 = vadd.f32 %v548, %v601
    %v603 = vpop.f32.mrf.mxu0
    %v604 = vpop.f32.mrf.mxu0
    %v605 = vpop.f32.mrf.mxu0
    %606 = vdwg.mxu0
    %s607 = scalar_lea.vmem %s5, 48
    %v608 = vld [vmem:[%s607] sm:$0xff]
    %v609 = vld [vmem:[%s607 + $0x8] sm:$0xff]
    %v610 = vld [vmem:[%s607 + $0x10] sm:$0x3]
    %v611 = vpack.c.bf16 %v609, %v608
    %v612 = vpack.c.bf16 %v610, %v610
    %613 = vmatprep.subr.bf16.mxu0 0
    %614 = vmatpush1.bf16.msra.mxu0 %v378
    %615 = vmatprep.subr.bf16.mxu0 0
    %616 = vmatpush1.bf16.msra.mxu0 %v377
    %617 = vmatprep.subr.bf16.mxu0 0
    %618 = vmatpush1.bf16.msra.mxu0 %v376
    %619 = vmatprep.subr.bf16.mxu0 0
    %620 = vmatpush1.bf16.msra.mxu0 %v375
    %621 = vmatprep.subr.bf16.mxu0 0
    %622 = vmatpush1.bf16.msra.mxu0 %v374
    %623 = vmatprep.subr.bf16.mxu0 0
    %624 = vmatpush1.bf16.msra.mxu0 %v373
    %625 = vmatprep.subr.bf16.mxu0 0
    %626 = vmatpush1.bf16.msra.mxu0 %v372
    %627 = vmatprep.subr.bf16.mxu0 0
    %628 = vmatpush1.bf16.msra.mxu0 %v371
    %629 = vmatprep.subr.bf16.mxu0 0
    %630 = vmatpush2.bf16.msra.mxu0 0
    %631 = vmatprep.subr.bf16.mxu0 0
    %632 = vmatpush2.bf16.msra.mxu0 0
    %633 = vmatprep.subr.bf16.mxu0 0
    %634 = vmatpush2.bf16.msra.mxu0 0
    %635 = vmatprep.subr.bf16.mxu0 0
    %636 = vmatpush2.bf16.msra.mxu0 0
    %637 = vmatprep.subr.bf16.mxu0 0
    %638 = vmatpush2.bf16.msra.mxu0 0
    %639 = vmatprep.subr.bf16.mxu0 0
    %640 = vmatpush2.bf16.msra.mxu0 0
    %641 = vmatprep.subr.bf16.mxu0 0
    %642 = vmatpush2.bf16.msra.mxu0 0
    %643 = vmatprep.subr.bf16.mxu0 0
    %644 = vmatpush2.bf16.msra.mxu0 0
    %645 = vmatprep.mubr.bf16.mxu0 0
    %646 = vmatmul.mubr.bf16.gmra.mxu0 %v611
    %v647 = vpop.f32.mrf.mxu0
    %v648 = vadd.f32 0.0, %v647
    %v649 = vpop.f32.mrf.mxu0
    %v650 = vpop.f32.mrf.mxu0
    %v651 = vadd.f32 0.0, %v650
    %v652 = vpop.f32.mrf.mxu0
    %653 = vmatprep.mubr.bf16.mxu0 0
    %654 = vmatmul.mubr.bf16.gmra.mxu0 %v612
    %v655 = vpop.f32.mrf.mxu0
    %v656 = vadd.f32 0.0, %v655
    %v657 = vpop.f32.mrf.mxu0
    %v658 = vpop.f32.mrf.mxu0
    %v659 = vpop.f32.mrf.mxu0
    %660 = vdwg.mxu0
    %s661 = scalar_lea.vmem %s11, 64
    %v662 = vld [vmem:[%s661] sm:$0xff]
    %v663 = vld [vmem:[%s661 + $0x8] sm:$0xff]
    %v664 = vld [vmem:[%s661 + $0x10] sm:$0xff]
    %v665 = vld [vmem:[%s661 + $0x18] sm:$0xff]
    %v666 = vpack.c.bf16 %v651, %v648
    %v667 = vpack.c.bf16 %v656, %v656
    %v668 = vpack.c.bf16 %v663, %v662
    %v669 = vpack.c.bf16 %v665, %v664
    %v671 = vsel %vm498, %v666, 0
    %v674 = vsel %vm498, %v667, 0
    %676 = vmatprep.subr.bf16.mxu0 0
    %677 = vmatpush1.bf16.msra.mxu0 0
    %678 = vmatprep.subr.bf16.mxu0 0
    %679 = vmatpush1.bf16.msra.mxu0 0
    %680 = vmatprep.subr.bf16.mxu0 0
    %681 = vmatpush1.bf16.msra.mxu0 0
    %682 = vmatprep.subr.bf16.mxu0 0
    %683 = vmatpush1.bf16.msra.mxu0 0
    %684 = vmatprep.subr.bf16.mxu0 0
    %685 = vmatpush1.bf16.msra.mxu0 0
    %686 = vmatprep.subr.bf16.mxu0 0
    %687 = vmatpush1.bf16.msra.mxu0 0
    %688 = vmatprep.subr.bf16.mxu0 0
    %689 = vmatpush1.bf16.msra.mxu0 %v669
    %690 = vmatprep.subr.bf16.mxu0 0
    %691 = vmatpush1.bf16.msra.mxu0 %v668
    %692 = vmatprep.subr.bf16.mxu0 0
    %693 = vmatpush2.bf16.msra.mxu0 0
    %694 = vmatprep.subr.bf16.mxu0 0
    %695 = vmatpush2.bf16.msra.mxu0 0
    %696 = vmatprep.subr.bf16.mxu0 0
    %697 = vmatpush2.bf16.msra.mxu0 0
    %698 = vmatprep.subr.bf16.mxu0 0
    %699 = vmatpush2.bf16.msra.mxu0 0
    %700 = vmatprep.subr.bf16.mxu0 0
    %701 = vmatpush2.bf16.msra.mxu0 0
    %702 = vmatprep.subr.bf16.mxu0 0
    %703 = vmatpush2.bf16.msra.mxu0 0
    %704 = vmatprep.subr.bf16.mxu0 0
    %705 = vmatpush2.bf16.msra.mxu0 0
    %706 = vmatprep.subr.bf16.mxu0 0
    %707 = vmatpush2.bf16.msra.mxu0 0
    %708 = vmatprep.mubr.bf16.mxu0 0
    %709 = vmatmul.mubr.bf16.gmra.mxu0 %v671
    %v710 = vpop.f32.mrf.mxu0
    %v711 = vadd.f32 0.0, %v710
    %v712 = vpop.f32.mrf.mxu0
    %v713 = vpop.f32.mrf.mxu0
    %v714 = vadd.f32 0.0, %v713
    %v715 = vpop.f32.mrf.mxu0
    %716 = vmatprep.mubr.bf16.mxu0 0
    %717 = vmatmul.mubr.bf16.gmra.mxu0 %v674
    %v718 = vpop.f32.mrf.mxu0
    %v719 = vadd.f32 0.0, %v718
    %v720 = vpop.f32.mrf.mxu0
    %v721 = vpop.f32.mrf.mxu0
    %v722 = vpop.f32.mrf.mxu0
    %723 = vdwg.mxu0
    %v724 = vadd.f32 %v594, %v711
    %v725 = vadd.f32 %v597, %v714
    %v726 = vadd.f32 %v602, %v719
    %s727 = scalar_lea.vmem %s5, 72
    %v728 = vld [vmem:[%s727] sm:$0xff]
    %v729 = vld [vmem:[%s727 + $0x8] sm:$0xff]
    %v730 = vld [vmem:[%s727 + $0x10] sm:$0x3]
    %v731 = vpack.c.bf16 %v729, %v728
    %v732 = vpack.c.bf16 %v730, %v730
    %733 = vmatprep.subr.bf16.mxu0 0
    %734 = vmatpush1.bf16.msra.mxu0 %v378
    %735 = vmatprep.subr.bf16.mxu0 0
    %736 = vmatpush1.bf16.msra.mxu0 %v377
    %737 = vmatprep.subr.bf16.mxu0 0
    %738 = vmatpush1.bf16.msra.mxu0 %v376
    %739 = vmatprep.subr.bf16.mxu0 0
    %740 = vmatpush1.bf16.msra.mxu0 %v375
    %741 = vmatprep.subr.bf16.mxu0 0
    %742 = vmatpush1.bf16.msra.mxu0 %v374
    %743 = vmatprep.subr.bf16.mxu0 0
    %744 = vmatpush1.bf16.msra.mxu0 %v373
    %745 = vmatprep.subr.bf16.mxu0 0
    %746 = vmatpush1.bf16.msra.mxu0 %v372
    %747 = vmatprep.subr.bf16.mxu0 0
    %748 = vmatpush1.bf16.msra.mxu0 %v371
    %749 = vmatprep.subr.bf16.mxu0 0
    %750 = vmatpush2.bf16.msra.mxu0 0
    %751 = vmatprep.subr.bf16.mxu0 0
    %752 = vmatpush2.bf16.msra.mxu0 0
    %753 = vmatprep.subr.bf16.mxu0 0
    %754 = vmatpush2.bf16.msra.mxu0 0
    %755 = vmatprep.subr.bf16.mxu0 0
    %756 = vmatpush2.bf16.msra.mxu0 0
    %757 = vmatprep.subr.bf16.mxu0 0
    %758 = vmatpush2.bf16.msra.mxu0 0
    %759 = vmatprep.subr.bf16.mxu0 0
    %760 = vmatpush2.bf16.msra.mxu0 0
    %761 = vmatprep.subr.bf16.mxu0 0
    %762 = vmatpush2.bf16.msra.mxu0 0
    %763 = vmatprep.subr.bf16.mxu0 0
    %764 = vmatpush2.bf16.msra.mxu0 0
    %765 = vmatprep.mubr.bf16.mxu0 0
    %766 = vmatmul.mubr.bf16.gmra.mxu0 %v731
    %v767 = vpop.f32.mrf.mxu0
    %v768 = vadd.f32 0.0, %v767
    %v769 = vpop.f32.mrf.mxu0
    %v770 = vpop.f32.mrf.mxu0
    %v771 = vadd.f32 0.0, %v770
    %v772 = vpop.f32.mrf.mxu0
    %773 = vmatprep.mubr.bf16.mxu0 0
    %774 = vmatmul.mubr.bf16.gmra.mxu0 %v732
    %v775 = vpop.f32.mrf.mxu0
    %v776 = vadd.f32 0.0, %v775
    %v777 = vpop.f32.mrf.mxu0
    %v778 = vpop.f32.mrf.mxu0
    %v779 = vpop.f32.mrf.mxu0
    %780 = vdwg.mxu0
    %s781 = scalar_lea.vmem %s11, 96
    %v782 = vld [vmem:[%s781] sm:$0xff]
    %v783 = vld [vmem:[%s781 + $0x8] sm:$0xff]
    %v784 = vld [vmem:[%s781 + $0x10] sm:$0xff]
    %v785 = vld [vmem:[%s781 + $0x18] sm:$0xff]
    %v786 = vpack.c.bf16 %v771, %v768
    %v787 = vpack.c.bf16 %v776, %v776
    %v788 = vpack.c.bf16 %v783, %v782
    %v789 = vpack.c.bf16 %v785, %v784
    %v791 = vsel %vm498, %v786, 0
    %v794 = vsel %vm498, %v787, 0
    %796 = vmatprep.subr.bf16.mxu0 0
    %797 = vmatpush1.bf16.msra.mxu0 0
    %798 = vmatprep.subr.bf16.mxu0 0
    %799 = vmatpush1.bf16.msra.mxu0 0
    %800 = vmatprep.subr.bf16.mxu0 0
    %801 = vmatpush1.bf16.msra.mxu0 0
    %802 = vmatprep.subr.bf16.mxu0 0
    %803 = vmatpush1.bf16.msra.mxu0 0
    %804 = vmatprep.subr.bf16.mxu0 0
    %805 = vmatpush1.bf16.msra.mxu0 0
    %806 = vmatprep.subr.bf16.mxu0 0
    %807 = vmatpush1.bf16.msra.mxu0 0
    %808 = vmatprep.subr.bf16.mxu0 0
    %809 = vmatpush1.bf16.msra.mxu0 %v789
    %810 = vmatprep.subr.bf16.mxu0 0
    %811 = vmatpush1.bf16.msra.mxu0 %v788
    %812 = vmatprep.subr.bf16.mxu0 0
    %813 = vmatpush2.bf16.msra.mxu0 0
    %814 = vmatprep.subr.bf16.mxu0 0
    %815 = vmatpush2.bf16.msra.mxu0 0
    %816 = vmatprep.subr.bf16.mxu0 0
    %817 = vmatpush2.bf16.msra.mxu0 0
    %818 = vmatprep.subr.bf16.mxu0 0
    %819 = vmatpush2.bf16.msra.mxu0 0
    %820 = vmatprep.subr.bf16.mxu0 0
    %821 = vmatpush2.bf16.msra.mxu0 0
    %822 = vmatprep.subr.bf16.mxu0 0
    %823 = vmatpush2.bf16.msra.mxu0 0
    %824 = vmatprep.subr.bf16.mxu0 0
    %825 = vmatpush2.bf16.msra.mxu0 0
    %826 = vmatprep.subr.bf16.mxu0 0
    %827 = vmatpush2.bf16.msra.mxu0 0
    %828 = vmatprep.mubr.bf16.mxu0 0
    %829 = vmatmul.mubr.bf16.gmra.mxu0 %v791
    %v830 = vpop.f32.mrf.mxu0
    %v831 = vadd.f32 0.0, %v830
    %v832 = vpop.f32.mrf.mxu0
    %v833 = vpop.f32.mrf.mxu0
    %v834 = vadd.f32 0.0, %v833
    %v835 = vpop.f32.mrf.mxu0
    %836 = vmatprep.mubr.bf16.mxu0 0
    %837 = vmatmul.mubr.bf16.gmra.mxu0 %v794
    %v838 = vpop.f32.mrf.mxu0
    %v839 = vadd.f32 0.0, %v838
    %v840 = vpop.f32.mrf.mxu0
    %v841 = vpop.f32.mrf.mxu0
    %v842 = vpop.f32.mrf.mxu0
    %843 = vdwg.mxu0
    %v844 = vadd.f32 %v724, %v831
    %v845 = vadd.f32 %v725, %v834
    %v846 = vadd.f32 %v726, %v839
    %s847 = scalar_lea.vmem %s5, 96
    %v848 = vld [vmem:[%s847] sm:$0xff]
    %v849 = vld [vmem:[%s847 + $0x8] sm:$0xff]
    %v850 = vld [vmem:[%s847 + $0x10] sm:$0x3]
    %v851 = vpack.c.bf16 %v849, %v848
    %v852 = vpack.c.bf16 %v850, %v850
    %853 = vmatprep.subr.bf16.mxu0 0
    %854 = vmatpush1.bf16.msra.mxu0 %v378
    %855 = vmatprep.subr.bf16.mxu0 0
    %856 = vmatpush1.bf16.msra.mxu0 %v377
    %857 = vmatprep.subr.bf16.mxu0 0
    %858 = vmatpush1.bf16.msra.mxu0 %v376
    %859 = vmatprep.subr.bf16.mxu0 0
    %860 = vmatpush1.bf16.msra.mxu0 %v375
    %861 = vmatprep.subr.bf16.mxu0 0
    %862 = vmatpush1.bf16.msra.mxu0 %v374
    %863 = vmatprep.subr.bf16.mxu0 0
    %864 = vmatpush1.bf16.msra.mxu0 %v373
    %865 = vmatprep.subr.bf16.mxu0 0
    %866 = vmatpush1.bf16.msra.mxu0 %v372
    %867 = vmatprep.subr.bf16.mxu0 0
    %868 = vmatpush1.bf16.msra.mxu0 %v371
    %869 = vmatprep.subr.bf16.mxu0 0
    %870 = vmatpush2.bf16.msra.mxu0 0
    %871 = vmatprep.subr.bf16.mxu0 0
    %872 = vmatpush2.bf16.msra.mxu0 0
    %873 = vmatprep.subr.bf16.mxu0 0
    %874 = vmatpush2.bf16.msra.mxu0 0
    %875 = vmatprep.subr.bf16.mxu0 0
    %876 = vmatpush2.bf16.msra.mxu0 0
    %877 = vmatprep.subr.bf16.mxu0 0
    %878 = vmatpush2.bf16.msra.mxu0 0
    %879 = vmatprep.subr.bf16.mxu0 0
    %880 = vmatpush2.bf16.msra.mxu0 0
    %881 = vmatprep.subr.bf16.mxu0 0
    %882 = vmatpush2.bf16.msra.mxu0 0
    %883 = vmatprep.subr.bf16.mxu0 0
    %884 = vmatpush2.bf16.msra.mxu0 0
    %885 = vmatprep.mubr.bf16.mxu0 0
    %886 = vmatmul.mubr.bf16.gmra.mxu0 %v851
    %v887 = vpop.f32.mrf.mxu0
    %v888 = vadd.f32 0.0, %v887
    %v889 = vpop.f32.mrf.mxu0
    %v890 = vpop.f32.mrf.mxu0
    %v891 = vadd.f32 0.0, %v890
    %v892 = vpop.f32.mrf.mxu0
    %893 = vmatprep.mubr.bf16.mxu0 0
    %894 = vmatmul.mubr.bf16.gmra.mxu0 %v852
    %v895 = vpop.f32.mrf.mxu0
    %v896 = vadd.f32 0.0, %v895
    %v897 = vpop.f32.mrf.mxu0
    %v898 = vpop.f32.mrf.mxu0
    %v899 = vpop.f32.mrf.mxu0
    %900 = vdwg.mxu0
    %s901 = scalar_lea.vmem %s11, 128
    %v902 = vld [vmem:[%s901] sm:$0xff]
    %v903 = vld [vmem:[%s901 + $0x8] sm:$0xff]
    %v904 = vld [vmem:[%s901 + $0x10] sm:$0xff]
    %v905 = vld [vmem:[%s901 + $0x18] sm:$0xff]
    %v906 = vpack.c.bf16 %v891, %v888
    %v907 = vpack.c.bf16 %v896, %v896
    %v908 = vpack.c.bf16 %v903, %v902
    %v909 = vpack.c.bf16 %v905, %v904
    %v911 = vsel %vm498, %v906, 0
    %v914 = vsel %vm498, %v907, 0
    %916 = vmatprep.subr.bf16.mxu0 0
    %917 = vmatpush1.bf16.msra.mxu0 0
    %918 = vmatprep.subr.bf16.mxu0 0
    %919 = vmatpush1.bf16.msra.mxu0 0
    %920 = vmatprep.subr.bf16.mxu0 0
    %921 = vmatpush1.bf16.msra.mxu0 0
    %922 = vmatprep.subr.bf16.mxu0 0
    %923 = vmatpush1.bf16.msra.mxu0 0
    %924 = vmatprep.subr.bf16.mxu0 0
    %925 = vmatpush1.bf16.msra.mxu0 0
    %926 = vmatprep.subr.bf16.mxu0 0
    %927 = vmatpush1.bf16.msra.mxu0 0
    %928 = vmatprep.subr.bf16.mxu0 0
    %929 = vmatpush1.bf16.msra.mxu0 %v909
    %930 = vmatprep.subr.bf16.mxu0 0
    %931 = vmatpush1.bf16.msra.mxu0 %v908
    %932 = vmatprep.subr.bf16.mxu0 0
    %933 = vmatpush2.bf16.msra.mxu0 0
    %934 = vmatprep.subr.bf16.mxu0 0
    %935 = vmatpush2.bf16.msra.mxu0 0
    %936 = vmatprep.subr.bf16.mxu0 0
    %937 = vmatpush2.bf16.msra.mxu0 0
    %938 = vmatprep.subr.bf16.mxu0 0
    %939 = vmatpush2.bf16.msra.mxu0 0
    %940 = vmatprep.subr.bf16.mxu0 0
    %941 = vmatpush2.bf16.msra.mxu0 0
    %942 = vmatprep.subr.bf16.mxu0 0
    %943 = vmatpush2.bf16.msra.mxu0 0
    %944 = vmatprep.subr.bf16.mxu0 0
    %945 = vmatpush2.bf16.msra.mxu0 0
    %946 = vmatprep.subr.bf16.mxu0 0
    %947 = vmatpush2.bf16.msra.mxu0 0
    %948 = vmatprep.mubr.bf16.mxu0 0
    %949 = vmatmul.mubr.bf16.gmra.mxu0 %v911
    %v950 = vpop.f32.mrf.mxu0
    %v951 = vadd.f32 0.0, %v950
    %v952 = vpop.f32.mrf.mxu0
    %v953 = vpop.f32.mrf.mxu0
    %v954 = vadd.f32 0.0, %v953
    %v955 = vpop.f32.mrf.mxu0
    %956 = vmatprep.mubr.bf16.mxu0 0
    %957 = vmatmul.mubr.bf16.gmra.mxu0 %v914
    %v958 = vpop.f32.mrf.mxu0
    %v959 = vadd.f32 0.0, %v958
    %v960 = vpop.f32.mrf.mxu0
    %v961 = vpop.f32.mrf.mxu0
    %v962 = vpop.f32.mrf.mxu0
    %963 = vdwg.mxu0
    %v964 = vadd.f32 %v844, %v951
    %v965 = vadd.f32 %v845, %v954
    %v966 = vadd.f32 %v846, %v959
    %s967 = scalar_lea.vmem %s5, 120
    %v968 = vld [vmem:[%s967] sm:$0xff]
    %v969 = vld [vmem:[%s967 + $0x8] sm:$0xff]
    %v970 = vld [vmem:[%s967 + $0x10] sm:$0x3]
    %v971 = vpack.c.bf16 %v969, %v968
    %v972 = vpack.c.bf16 %v970, %v970
    %973 = vmatprep.subr.bf16.mxu0 0
    %974 = vmatpush1.bf16.msra.mxu0 %v378
    %975 = vmatprep.subr.bf16.mxu0 0
    %976 = vmatpush1.bf16.msra.mxu0 %v377
    %977 = vmatprep.subr.bf16.mxu0 0
    %978 = vmatpush1.bf16.msra.mxu0 %v376
    %979 = vmatprep.subr.bf16.mxu0 0
    %980 = vmatpush1.bf16.msra.mxu0 %v375
    %981 = vmatprep.subr.bf16.mxu0 0
    %982 = vmatpush1.bf16.msra.mxu0 %v374
    %983 = vmatprep.subr.bf16.mxu0 0
    %984 = vmatpush1.bf16.msra.mxu0 %v373
    %985 = vmatprep.subr.bf16.mxu0 0
    %986 = vmatpush1.bf16.msra.mxu0 %v372
    %987 = vmatprep.subr.bf16.mxu0 0
    %988 = vmatpush1.bf16.msra.mxu0 %v371
    %989 = vmatprep.subr.bf16.mxu0 0
    %990 = vmatpush2.bf16.msra.mxu0 0
    %991 = vmatprep.subr.bf16.mxu0 0
    %992 = vmatpush2.bf16.msra.mxu0 0
    %993 = vmatprep.subr.bf16.mxu0 0
    %994 = vmatpush2.bf16.msra.mxu0 0
    %995 = vmatprep.subr.bf16.mxu0 0
    %996 = vmatpush2.bf16.msra.mxu0 0
    %997 = vmatprep.subr.bf16.mxu0 0
    %998 = vmatpush2.bf16.msra.mxu0 0
    %999 = vmatprep.subr.bf16.mxu0 0
    %1000 = vmatpush2.bf16.msra.mxu0 0
    %1001 = vmatprep.subr.bf16.mxu0 0
    %1002 = vmatpush2.bf16.msra.mxu0 0
    %1003 = vmatprep.subr.bf16.mxu0 0
    %1004 = vmatpush2.bf16.msra.mxu0 0
    %1005 = vmatprep.mubr.bf16.mxu0 0
    %1006 = vmatmul.mubr.bf16.gmra.mxu0 %v971
    %v1007 = vpop.f32.mrf.mxu0
    %v1008 = vadd.f32 0.0, %v1007
    %v1009 = vpop.f32.mrf.mxu0
    %v1010 = vpop.f32.mrf.mxu0
    %v1011 = vadd.f32 0.0, %v1010
    %v1012 = vpop.f32.mrf.mxu0
    %1013 = vmatprep.mubr.bf16.mxu0 0
    %1014 = vmatmul.mubr.bf16.gmra.mxu0 %v972
    %v1015 = vpop.f32.mrf.mxu0
    %v1016 = vadd.f32 0.0, %v1015
    %v1017 = vpop.f32.mrf.mxu0
    %v1018 = vpop.f32.mrf.mxu0
    %v1019 = vpop.f32.mrf.mxu0
    %1020 = vdwg.mxu0
    %s1021 = scalar_lea.vmem %s11, 160
    %v1022 = vld [vmem:[%s1021] sm:$0xff]
    %v1023 = vld [vmem:[%s1021 + $0x8] sm:$0xff]
    %v1024 = vld [vmem:[%s1021 + $0x10] sm:$0xff]
    %v1025 = vld [vmem:[%s1021 + $0x18] sm:$0xff]
    %v1026 = vpack.c.bf16 %v1011, %v1008
    %v1027 = vpack.c.bf16 %v1016, %v1016
    %v1028 = vpack.c.bf16 %v1023, %v1022
    %v1029 = vpack.c.bf16 %v1025, %v1024
    %v1031 = vsel %vm498, %v1026, 0
    %v1034 = vsel %vm498, %v1027, 0
    %1036 = vmatprep.subr.bf16.mxu0 0
    %1037 = vmatpush1.bf16.msra.mxu0 0
    %1038 = vmatprep.subr.bf16.mxu0 0
    %1039 = vmatpush1.bf16.msra.mxu0 0
    %1040 = vmatprep.subr.bf16.mxu0 0
    %1041 = vmatpush1.bf16.msra.mxu0 0
    %1042 = vmatprep.subr.bf16.mxu0 0
    %1043 = vmatpush1.bf16.msra.mxu0 0
    %1044 = vmatprep.subr.bf16.mxu0 0
    %1045 = vmatpush1.bf16.msra.mxu0 0
    %1046 = vmatprep.subr.bf16.mxu0 0
    %1047 = vmatpush1.bf16.msra.mxu0 0
    %1048 = vmatprep.subr.bf16.mxu0 0
    %1049 = vmatpush1.bf16.msra.mxu0 %v1029
    %1050 = vmatprep.subr.bf16.mxu0 0
    %1051 = vmatpush1.bf16.msra.mxu0 %v1028
    %1052 = vmatprep.subr.bf16.mxu0 0
    %1053 = vmatpush2.bf16.msra.mxu0 0
    %1054 = vmatprep.subr.bf16.mxu0 0
    %1055 = vmatpush2.bf16.msra.mxu0 0
    %1056 = vmatprep.subr.bf16.mxu0 0
    %1057 = vmatpush2.bf16.msra.mxu0 0
    %1058 = vmatprep.subr.bf16.mxu0 0
    %1059 = vmatpush2.bf16.msra.mxu0 0
    %1060 = vmatprep.subr.bf16.mxu0 0
    %1061 = vmatpush2.bf16.msra.mxu0 0
    %1062 = vmatprep.subr.bf16.mxu0 0
    %1063 = vmatpush2.bf16.msra.mxu0 0
    %1064 = vmatprep.subr.bf16.mxu0 0
    %1065 = vmatpush2.bf16.msra.mxu0 0
    %1066 = vmatprep.subr.bf16.mxu0 0
    %1067 = vmatpush2.bf16.msra.mxu0 0
    %1068 = vmatprep.mubr.bf16.mxu0 0
    %1069 = vmatmul.mubr.bf16.gmra.mxu0 %v1031
    %v1070 = vpop.f32.mrf.mxu0
    %v1071 = vadd.f32 0.0, %v1070
    %v1072 = vpop.f32.mrf.mxu0
    %v1073 = vpop.f32.mrf.mxu0
    %v1074 = vadd.f32 0.0, %v1073
    %v1075 = vpop.f32.mrf.mxu0
    %1076 = vmatprep.mubr.bf16.mxu0 0
    %1077 = vmatmul.mubr.bf16.gmra.mxu0 %v1034
    %v1078 = vpop.f32.mrf.mxu0
    %v1079 = vadd.f32 0.0, %v1078
    %v1080 = vpop.f32.mrf.mxu0
    %v1081 = vpop.f32.mrf.mxu0
    %v1082 = vpop.f32.mrf.mxu0
    %1083 = vdwg.mxu0
    %v1084 = vadd.f32 %v964, %v1071
    %v1085 = vadd.f32 %v965, %v1074
    %v1086 = vadd.f32 %v966, %v1079
    %s1087 = scalar_lea.vmem %s5, 144
    %v1088 = vld [vmem:[%s1087] sm:$0xff]
    %v1089 = vld [vmem:[%s1087 + $0x8] sm:$0xff]
    %v1090 = vld [vmem:[%s1087 + $0x10] sm:$0x3]
    %v1091 = vpack.c.bf16 %v1089, %v1088
    %v1092 = vpack.c.bf16 %v1090, %v1090
    %1093 = vmatprep.subr.bf16.mxu0 0
    %1094 = vmatpush1.bf16.msra.mxu0 %v378
    %1095 = vmatprep.subr.bf16.mxu0 0
    %1096 = vmatpush1.bf16.msra.mxu0 %v377
    %1097 = vmatprep.subr.bf16.mxu0 0
    %1098 = vmatpush1.bf16.msra.mxu0 %v376
    %1099 = vmatprep.subr.bf16.mxu0 0
    %1100 = vmatpush1.bf16.msra.mxu0 %v375
    %1101 = vmatprep.subr.bf16.mxu0 0
    %1102 = vmatpush1.bf16.msra.mxu0 %v374
    %1103 = vmatprep.subr.bf16.mxu0 0
    %1104 = vmatpush1.bf16.msra.mxu0 %v373
    %1105 = vmatprep.subr.bf16.mxu0 0
    %1106 = vmatpush1.bf16.msra.mxu0 %v372
    %1107 = vmatprep.subr.bf16.mxu0 0
    %1108 = vmatpush1.bf16.msra.mxu0 %v371
    %1109 = vmatprep.subr.bf16.mxu0 0
    %1110 = vmatpush2.bf16.msra.mxu0 0
    %1111 = vmatprep.subr.bf16.mxu0 0
    %1112 = vmatpush2.bf16.msra.mxu0 0
    %1113 = vmatprep.subr.bf16.mxu0 0
    %1114 = vmatpush2.bf16.msra.mxu0 0
    %1115 = vmatprep.subr.bf16.mxu0 0
    %1116 = vmatpush2.bf16.msra.mxu0 0
    %1117 = vmatprep.subr.bf16.mxu0 0
    %1118 = vmatpush2.bf16.msra.mxu0 0
    %1119 = vmatprep.subr.bf16.mxu0 0
    %1120 = vmatpush2.bf16.msra.mxu0 0
    %1121 = vmatprep.subr.bf16.mxu0 0
    %1122 = vmatpush2.bf16.msra.mxu0 0
    %1123 = vmatprep.subr.bf16.mxu0 0
    %1124 = vmatpush2.bf16.msra.mxu0 0
    %1125 = vmatprep.mubr.bf16.mxu0 0
    %1126 = vmatmul.mubr.bf16.gmra.mxu0 %v1091
    %v1127 = vpop.f32.mrf.mxu0
    %v1128 = vadd.f32 0.0, %v1127
    %v1129 = vpop.f32.mrf.mxu0
    %v1130 = vpop.f32.mrf.mxu0
    %v1131 = vadd.f32 0.0, %v1130
    %v1132 = vpop.f32.mrf.mxu0
    %1133 = vmatprep.mubr.bf16.mxu0 0
    %1134 = vmatmul.mubr.bf16.gmra.mxu0 %v1092
    %v1135 = vpop.f32.mrf.mxu0
    %v1136 = vadd.f32 0.0, %v1135
    %v1137 = vpop.f32.mrf.mxu0
    %v1138 = vpop.f32.mrf.mxu0
    %v1139 = vpop.f32.mrf.mxu0
    %1140 = vdwg.mxu0
    %s1141 = scalar_lea.vmem %s11, 192
    %v1142 = vld [vmem:[%s1141] sm:$0xff]
    %v1143 = vld [vmem:[%s1141 + $0x8] sm:$0xff]
    %v1144 = vld [vmem:[%s1141 + $0x10] sm:$0xff]
    %v1145 = vld [vmem:[%s1141 + $0x18] sm:$0xff]
    %v1146 = vpack.c.bf16 %v1131, %v1128
    %v1147 = vpack.c.bf16 %v1136, %v1136
    %v1148 = vpack.c.bf16 %v1143, %v1142
    %v1149 = vpack.c.bf16 %v1145, %v1144
    %v1151 = vsel %vm498, %v1146, 0
    %v1154 = vsel %vm498, %v1147, 0
    %1156 = vmatprep.subr.bf16.mxu0 0
    %1157 = vmatpush1.bf16.msra.mxu0 0
    %1158 = vmatprep.subr.bf16.mxu0 0
    %1159 = vmatpush1.bf16.msra.mxu0 0
    %1160 = vmatprep.subr.bf16.mxu0 0
    %1161 = vmatpush1.bf16.msra.mxu0 0
    %1162 = vmatprep.subr.bf16.mxu0 0
    %1163 = vmatpush1.bf16.msra.mxu0 0
    %1164 = vmatprep.subr.bf16.mxu0 0
    %1165 = vmatpush1.bf16.msra.mxu0 0
    %1166 = vmatprep.subr.bf16.mxu0 0
    %1167 = vmatpush1.bf16.msra.mxu0 0
    %1168 = vmatprep.subr.bf16.mxu0 0
    %1169 = vmatpush1.bf16.msra.mxu0 %v1149
    %1170 = vmatprep.subr.bf16.mxu0 0
    %1171 = vmatpush1.bf16.msra.mxu0 %v1148
    %1172 = vmatprep.subr.bf16.mxu0 0
    %1173 = vmatpush2.bf16.msra.mxu0 0
    %1174 = vmatprep.subr.bf16.mxu0 0
    %1175 = vmatpush2.bf16.msra.mxu0 0
    %1176 = vmatprep.subr.bf16.mxu0 0
    %1177 = vmatpush2.bf16.msra.mxu0 0
    %1178 = vmatprep.subr.bf16.mxu0 0
    %1179 = vmatpush2.bf16.msra.mxu0 0
    %1180 = vmatprep.subr.bf16.mxu0 0
    %1181 = vmatpush2.bf16.msra.mxu0 0
    %1182 = vmatprep.subr.bf16.mxu0 0
    %1183 = vmatpush2.bf16.msra.mxu0 0
    %1184 = vmatprep.subr.bf16.mxu0 0
    %1185 = vmatpush2.bf16.msra.mxu0 0
    %1186 = vmatprep.subr.bf16.mxu0 0
    %1187 = vmatpush2.bf16.msra.mxu0 0
    %1188 = vmatprep.mubr.bf16.mxu0 0
    %1189 = vmatmul.mubr.bf16.gmra.mxu0 %v1151
    %v1190 = vpop.f32.mrf.mxu0
    %v1191 = vadd.f32 0.0, %v1190
    %v1192 = vpop.f32.mrf.mxu0
    %v1193 = vpop.f32.mrf.mxu0
    %v1194 = vadd.f32 0.0, %v1193
    %v1195 = vpop.f32.mrf.mxu0
    %1196 = vmatprep.mubr.bf16.mxu0 0
    %1197 = vmatmul.mubr.bf16.gmra.mxu0 %v1154
    %v1198 = vpop.f32.mrf.mxu0
    %v1199 = vadd.f32 0.0, %v1198
    %v1200 = vpop.f32.mrf.mxu0
    %v1201 = vpop.f32.mrf.mxu0
    %v1202 = vpop.f32.mrf.mxu0
    %1203 = vdwg.mxu0
    %v1204 = vadd.f32 %v1084, %v1191
    %v1205 = vadd.f32 %v1085, %v1194
    %v1206 = vadd.f32 %v1086, %v1199
    %s1207 = scalar_lea.vmem %s5, 168
    %v1208 = vld [vmem:[%s1207] sm:$0xff]
    %v1209 = vld [vmem:[%s1207 + $0x8] sm:$0xff]
    %v1210 = vld [vmem:[%s1207 + $0x10] sm:$0x3]
    %v1211 = vpack.c.bf16 %v1209, %v1208
    %v1212 = vpack.c.bf16 %v1210, %v1210
    %1213 = vmatprep.subr.bf16.mxu0 0
    %1214 = vmatpush1.bf16.msra.mxu0 %v378
    %1215 = vmatprep.subr.bf16.mxu0 0
    %1216 = vmatpush1.bf16.msra.mxu0 %v377
    %1217 = vmatprep.subr.bf16.mxu0 0
    %1218 = vmatpush1.bf16.msra.mxu0 %v376
    %1219 = vmatprep.subr.bf16.mxu0 0
    %1220 = vmatpush1.bf16.msra.mxu0 %v375
    %1221 = vmatprep.subr.bf16.mxu0 0
    %1222 = vmatpush1.bf16.msra.mxu0 %v374
    %1223 = vmatprep.subr.bf16.mxu0 0
    %1224 = vmatpush1.bf16.msra.mxu0 %v373
    %1225 = vmatprep.subr.bf16.mxu0 0
    %1226 = vmatpush1.bf16.msra.mxu0 %v372
    %1227 = vmatprep.subr.bf16.mxu0 0
    %1228 = vmatpush1.bf16.msra.mxu0 %v371
    %1229 = vmatprep.subr.bf16.mxu0 0
    %1230 = vmatpush2.bf16.msra.mxu0 0
    %1231 = vmatprep.subr.bf16.mxu0 0
    %1232 = vmatpush2.bf16.msra.mxu0 0
    %1233 = vmatprep.subr.bf16.mxu0 0
    %1234 = vmatpush2.bf16.msra.mxu0 0
    %1235 = vmatprep.subr.bf16.mxu0 0
    %1236 = vmatpush2.bf16.msra.mxu0 0
    %1237 = vmatprep.subr.bf16.mxu0 0
    %1238 = vmatpush2.bf16.msra.mxu0 0
    %1239 = vmatprep.subr.bf16.mxu0 0
    %1240 = vmatpush2.bf16.msra.mxu0 0
    %1241 = vmatprep.subr.bf16.mxu0 0
    %1242 = vmatpush2.bf16.msra.mxu0 0
    %1243 = vmatprep.subr.bf16.mxu0 0
    %1244 = vmatpush2.bf16.msra.mxu0 0
    %1245 = vmatprep.mubr.bf16.mxu0 0
    %1246 = vmatmul.mubr.bf16.gmra.mxu0 %v1211
    %v1247 = vpop.f32.mrf.mxu0
    %v1248 = vadd.f32 0.0, %v1247
    %v1249 = vpop.f32.mrf.mxu0
    %v1250 = vpop.f32.mrf.mxu0
    %v1251 = vadd.f32 0.0, %v1250
    %v1252 = vpop.f32.mrf.mxu0
    %1253 = vmatprep.mubr.bf16.mxu0 0
    %1254 = vmatmul.mubr.bf16.gmra.mxu0 %v1212
    %v1255 = vpop.f32.mrf.mxu0
    %v1256 = vadd.f32 0.0, %v1255
    %v1257 = vpop.f32.mrf.mxu0
    %v1258 = vpop.f32.mrf.mxu0
    %v1259 = vpop.f32.mrf.mxu0
    %1260 = vdwg.mxu0
    %s1261 = scalar_lea.vmem %s11, 224
    %v1262 = vld [vmem:[%s1261] sm:$0xff]
    %v1263 = vld [vmem:[%s1261 + $0x8] sm:$0xff]
    %v1264 = vld [vmem:[%s1261 + $0x10] sm:$0xff]
    %v1265 = vld [vmem:[%s1261 + $0x18] sm:$0xff]
    %v1266 = vpack.c.bf16 %v1251, %v1248
    %v1267 = vpack.c.bf16 %v1256, %v1256
    %v1268 = vpack.c.bf16 %v1263, %v1262
    %v1269 = vpack.c.bf16 %v1265, %v1264
    %v1271 = vsel %vm498, %v1266, 0
    %v1274 = vsel %vm498, %v1267, 0
    %1276 = vmatprep.subr.bf16.mxu0 0
    %1277 = vmatpush1.bf16.msra.mxu0 0
    %1278 = vmatprep.subr.bf16.mxu0 0
    %1279 = vmatpush1.bf16.msra.mxu0 0
    %1280 = vmatprep.subr.bf16.mxu0 0
    %1281 = vmatpush1.bf16.msra.mxu0 0
    %1282 = vmatprep.subr.bf16.mxu0 0
    %1283 = vmatpush1.bf16.msra.mxu0 0
    %1284 = vmatprep.subr.bf16.mxu0 0
    %1285 = vmatpush1.bf16.msra.mxu0 0
    %1286 = vmatprep.subr.bf16.mxu0 0
    %1287 = vmatpush1.bf16.msra.mxu0 0
    %1288 = vmatprep.subr.bf16.mxu0 0
    %1289 = vmatpush1.bf16.msra.mxu0 %v1269
    %1290 = vmatprep.subr.bf16.mxu0 0
    %1291 = vmatpush1.bf16.msra.mxu0 %v1268
    %1292 = vmatprep.subr.bf16.mxu0 0
    %1293 = vmatpush2.bf16.msra.mxu0 0
    %1294 = vmatprep.subr.bf16.mxu0 0
    %1295 = vmatpush2.bf16.msra.mxu0 0
    %1296 = vmatprep.subr.bf16.mxu0 0
    %1297 = vmatpush2.bf16.msra.mxu0 0
    %1298 = vmatprep.subr.bf16.mxu0 0
    %1299 = vmatpush2.bf16.msra.mxu0 0
    %1300 = vmatprep.subr.bf16.mxu0 0
    %1301 = vmatpush2.bf16.msra.mxu0 0
    %1302 = vmatprep.subr.bf16.mxu0 0
    %1303 = vmatpush2.bf16.msra.mxu0 0
    %1304 = vmatprep.subr.bf16.mxu0 0
    %1305 = vmatpush2.bf16.msra.mxu0 0
    %1306 = vmatprep.subr.bf16.mxu0 0
    %1307 = vmatpush2.bf16.msra.mxu0 0
    %1308 = vmatprep.mubr.bf16.mxu0 0
    %1309 = vmatmul.mubr.bf16.gmra.mxu0 %v1271
    %v1310 = vpop.f32.mrf.mxu0
    %v1311 = vadd.f32 0.0, %v1310
    %v1312 = vpop.f32.mrf.mxu0
    %v1313 = vpop.f32.mrf.mxu0
    %v1314 = vadd.f32 0.0, %v1313
    %v1315 = vpop.f32.mrf.mxu0
    %1316 = vmatprep.mubr.bf16.mxu0 0
    %1317 = vmatmul.mubr.bf16.gmra.mxu0 %v1274
    %v1318 = vpop.f32.mrf.mxu0
    %v1319 = vadd.f32 0.0, %v1318
    %v1320 = vpop.f32.mrf.mxu0
    %v1321 = vpop.f32.mrf.mxu0
    %v1322 = vpop.f32.mrf.mxu0
    %1323 = vdwg.mxu0
    %v1324 = vadd.f32 %v1204, %v1311
    %v1325 = vadd.f32 %v1205, %v1314
    %v1326 = vadd.f32 %v1206, %v1319
    %s1327 = scalar_lea.vmem %s5, 192
    %v1328 = vld [vmem:[%s1327] sm:$0xff]
    %v1329 = vld [vmem:[%s1327 + $0x8] sm:$0xff]
    %v1330 = vld [vmem:[%s1327 + $0x10] sm:$0x3]
    %v1331 = vpack.c.bf16 %v1329, %v1328
    %v1332 = vpack.c.bf16 %v1330, %v1330
    %1333 = vmatprep.subr.bf16.mxu0 0
    %1334 = vmatpush1.bf16.msra.mxu0 %v378
    %1335 = vmatprep.subr.bf16.mxu0 0
    %1336 = vmatpush1.bf16.msra.mxu0 %v377
    %1337 = vmatprep.subr.bf16.mxu0 0
    %1338 = vmatpush1.bf16.msra.mxu0 %v376
    %1339 = vmatprep.subr.bf16.mxu0 0
    %1340 = vmatpush1.bf16.msra.mxu0 %v375
    %1341 = vmatprep.subr.bf16.mxu0 0
    %1342 = vmatpush1.bf16.msra.mxu0 %v374
    %1343 = vmatprep.subr.bf16.mxu0 0
    %1344 = vmatpush1.bf16.msra.mxu0 %v373
    %1345 = vmatprep.subr.bf16.mxu0 0
    %1346 = vmatpush1.bf16.msra.mxu0 %v372
    %1347 = vmatprep.subr.bf16.mxu0 0
    %1348 = vmatpush1.bf16.msra.mxu0 %v371
    %1349 = vmatprep.subr.bf16.mxu0 0
    %1350 = vmatpush2.bf16.msra.mxu0 0
    %1351 = vmatprep.subr.bf16.mxu0 0
    %1352 = vmatpush2.bf16.msra.mxu0 0
    %1353 = vmatprep.subr.bf16.mxu0 0
    %1354 = vmatpush2.bf16.msra.mxu0 0
    %1355 = vmatprep.subr.bf16.mxu0 0
    %1356 = vmatpush2.bf16.msra.mxu0 0
    %1357 = vmatprep.subr.bf16.mxu0 0
    %1358 = vmatpush2.bf16.msra.mxu0 0
    %1359 = vmatprep.subr.bf16.mxu0 0
    %1360 = vmatpush2.bf16.msra.mxu0 0
    %1361 = vmatprep.subr.bf16.mxu0 0
    %1362 = vmatpush2.bf16.msra.mxu0 0
    %1363 = vmatprep.subr.bf16.mxu0 0
    %1364 = vmatpush2.bf16.msra.mxu0 0
    %1365 = vmatprep.mubr.bf16.mxu0 0
    %1366 = vmatmul.mubr.bf16.gmra.mxu0 %v1331
    %v1367 = vpop.f32.mrf.mxu0
    %v1368 = vadd.f32 0.0, %v1367
    %v1369 = vpop.f32.mrf.mxu0
    %v1370 = vpop.f32.mrf.mxu0
    %v1371 = vadd.f32 0.0, %v1370
    %v1372 = vpop.f32.mrf.mxu0
    %1373 = vmatprep.mubr.bf16.mxu0 0
    %1374 = vmatmul.mubr.bf16.gmra.mxu0 %v1332
    %v1375 = vpop.f32.mrf.mxu0
    %v1376 = vadd.f32 0.0, %v1375
    %v1377 = vpop.f32.mrf.mxu0
    %v1378 = vpop.f32.mrf.mxu0
    %v1379 = vpop.f32.mrf.mxu0
    %1380 = vdwg.mxu0
    %s1381 = scalar_lea.vmem %s11, 256
    %v1382 = vld [vmem:[%s1381] sm:$0xff]
    %v1383 = vld [vmem:[%s1381 + $0x8] sm:$0xff]
    %v1384 = vld [vmem:[%s1381 + $0x10] sm:$0xff]
    %v1385 = vld [vmem:[%s1381 + $0x18] sm:$0xff]
    %v1386 = vpack.c.bf16 %v1371, %v1368
    %v1387 = vpack.c.bf16 %v1376, %v1376
    %v1388 = vpack.c.bf16 %v1383, %v1382
    %v1389 = vpack.c.bf16 %v1385, %v1384
    %v1391 = vsel %vm498, %v1386, 0
    %v1394 = vsel %vm498, %v1387, 0
    %1396 = vmatprep.subr.bf16.mxu0 0
    %1397 = vmatpush1.bf16.msra.mxu0 0
    %1398 = vmatprep.subr.bf16.mxu0 0
    %1399 = vmatpush1.bf16.msra.mxu0 0
    %1400 = vmatprep.subr.bf16.mxu0 0
    %1401 = vmatpush1.bf16.msra.mxu0 0
    %1402 = vmatprep.subr.bf16.mxu0 0
    %1403 = vmatpush1.bf16.msra.mxu0 0
    %1404 = vmatprep.subr.bf16.mxu0 0
    %1405 = vmatpush1.bf16.msra.mxu0 0
    %1406 = vmatprep.subr.bf16.mxu0 0
    %1407 = vmatpush1.bf16.msra.mxu0 0
    %1408 = vmatprep.subr.bf16.mxu0 0
    %1409 = vmatpush1.bf16.msra.mxu0 %v1389
    %1410 = vmatprep.subr.bf16.mxu0 0
    %1411 = vmatpush1.bf16.msra.mxu0 %v1388
    %1412 = vmatprep.subr.bf16.mxu0 0
    %1413 = vmatpush2.bf16.msra.mxu0 0
    %1414 = vmatprep.subr.bf16.mxu0 0
    %1415 = vmatpush2.bf16.msra.mxu0 0
    %1416 = vmatprep.subr.bf16.mxu0 0
    %1417 = vmatpush2.bf16.msra.mxu0 0
    %1418 = vmatprep.subr.bf16.mxu0 0
    %1419 = vmatpush2.bf16.msra.mxu0 0
    %1420 = vmatprep.subr.bf16.mxu0 0
    %1421 = vmatpush2.bf16.msra.mxu0 0
    %1422 = vmatprep.subr.bf16.mxu0 0
    %1423 = vmatpush2.bf16.msra.mxu0 0
    %1424 = vmatprep.subr.bf16.mxu0 0
    %1425 = vmatpush2.bf16.msra.mxu0 0
    %1426 = vmatprep.subr.bf16.mxu0 0
    %1427 = vmatpush2.bf16.msra.mxu0 0
    %1428 = vmatprep.mubr.bf16.mxu0 0
    %1429 = vmatmul.mubr.bf16.gmra.mxu0 %v1391
    %v1430 = vpop.f32.mrf.mxu0
    %v1431 = vadd.f32 0.0, %v1430
    %v1432 = vpop.f32.mrf.mxu0
    %v1433 = vpop.f32.mrf.mxu0
    %v1434 = vadd.f32 0.0, %v1433
    %v1435 = vpop.f32.mrf.mxu0
    %1436 = vmatprep.mubr.bf16.mxu0 0
    %1437 = vmatmul.mubr.bf16.gmra.mxu0 %v1394
    %v1438 = vpop.f32.mrf.mxu0
    %v1439 = vadd.f32 0.0, %v1438
    %v1440 = vpop.f32.mrf.mxu0
    %v1441 = vpop.f32.mrf.mxu0
    %v1442 = vpop.f32.mrf.mxu0
    %1443 = vdwg.mxu0
    %v1444 = vadd.f32 %v1324, %v1431
    %v1445 = vadd.f32 %v1325, %v1434
    %v1446 = vadd.f32 %v1326, %v1439
    %v1447 = vld [vmem:[%s13] sm:$0x1]
    %v1449 = vlaneseq
    %v1450 = vshrl.u32 %v1449, 7
    %v1451 = vsub.s32 0, %v1450
    %v1452 = vrot.slane %v1447, %v1451
    %v1454 = vadd.f32 %v1444, %v1452
    %v1455 = vadd.f32 %v1445, %v1452
    %v1456 = vadd.f32 %v1446, %v1452
    %v1457 = vmax.f32 %v1454, 0.0
    %v1458 = vmax.f32 %v1455, 0.0
    %v1459 = vmax.f32 %v1456, 0.0
    %v1460 = vld [vmem:[%s15] sm:$0xff]
    %v1461 = vld [vmem:[%s15 + $0x8] sm:$0xff]
    %v1462 = vld [vmem:[%s15 + $0x10] sm:$0xff]
    %v1463 = vld [vmem:[%s15 + $0x18] sm:$0xff]
    %v1464 = vld [vmem:[%s15 + $0x20] sm:$0xff]
    %v1465 = vld [vmem:[%s15 + $0x28] sm:$0xff]
    %v1466 = vld [vmem:[%s15 + $0x30] sm:$0xff]
    %v1467 = vld [vmem:[%s15 + $0x38] sm:$0xff]
    %v1468 = vpack.c.bf16 %v1457, %v1457
    %v1469 = vpack.c.bf16 %v1461, %v1460
    %v1470 = vpack.c.bf16 %v1463, %v1462
    %v1471 = vpack.c.bf16 %v1465, %v1464
    %v1472 = vpack.c.bf16 %v1467, %v1466
    %s1473 = scalar_lea.vmem %s15, 64
    %v1474 = vld [vmem:[%s1473] sm:$0xff]
    %v1475 = vld [vmem:[%s1473 + $0x8] sm:$0xff]
    %v1476 = vld [vmem:[%s1473 + $0x10] sm:$0xff]
    %v1477 = vld [vmem:[%s1473 + $0x18] sm:$0xff]
    %v1478 = vld [vmem:[%s1473 + $0x20] sm:$0xff]
    %v1479 = vld [vmem:[%s1473 + $0x28] sm:$0xff]
    %v1480 = vld [vmem:[%s1473 + $0x30] sm:$0xff]
    %v1481 = vld [vmem:[%s1473 + $0x38] sm:$0xff]
    %v1482 = vpack.c.bf16 %v1475, %v1474
    %v1483 = vpack.c.bf16 %v1477, %v1476
    %v1484 = vpack.c.bf16 %v1479, %v1478
    %v1485 = vpack.c.bf16 %v1481, %v1480
    %v1487 = vrot.slane %v1468, 1
    %vm1488 = vcmask 523264
    %v1490 = vsel %vm1488, %v1487, 0
    %1492 = vmatprep.subr.bf16.mxu0 0
    %1493 = vmatpush1.bf16.msra.mxu0 0
    %1494 = vmatprep.subr.bf16.mxu0 0
    %1495 = vmatpush1.bf16.msra.mxu0 0
    %1496 = vmatprep.subr.bf16.mxu0 0
    %1497 = vmatpush1.bf16.msra.mxu0 0
    %1498 = vmatprep.subr.bf16.mxu0 0
    %1499 = vmatpush1.bf16.msra.mxu0 0
    %1500 = vmatprep.subr.bf16.mxu0 0
    %1501 = vmatpush1.bf16.msra.mxu0 %v1485
    %1502 = vmatprep.subr.bf16.mxu0 0
    %1503 = vmatpush1.bf16.msra.mxu0 %v1484
    %1504 = vmatprep.subr.bf16.mxu0 0
    %1505 = vmatpush1.bf16.msra.mxu0 %v1483
    %1506 = vmatprep.subr.bf16.mxu0 0
    %1507 = vmatpush1.bf16.msra.mxu0 %v1482
    %1508 = vmatprep.subr.bf16.mxu0 0
    %1509 = vmatpush2.bf16.msra.mxu0 0
    %1510 = vmatprep.subr.bf16.mxu0 0
    %1511 = vmatpush2.bf16.msra.mxu0 0
    %1512 = vmatprep.subr.bf16.mxu0 0
    %1513 = vmatpush2.bf16.msra.mxu0 0
    %1514 = vmatprep.subr.bf16.mxu0 0
    %1515 = vmatpush2.bf16.msra.mxu0 0
    %1516 = vmatprep.subr.bf16.mxu0 0
    %1517 = vmatpush2.bf16.msra.mxu0 0
    %1518 = vmatprep.subr.bf16.mxu0 0
    %1519 = vmatpush2.bf16.msra.mxu0 0
    %1520 = vmatprep.subr.bf16.mxu0 0
    %1521 = vmatpush2.bf16.msra.mxu0 0
    %1522 = vmatprep.subr.bf16.mxu0 0
    %1523 = vmatpush2.bf16.msra.mxu0 0
    %1524 = vmatprep.mubr.bf16.mxu0 0
    %1525 = vmatmul.mubr.bf16.gmra.mxu0 %v1490
    %v1526 = vpop.f32.mrf.mxu0
    %v1527 = vadd.f32 0.0, %v1526
    %v1528 = vpop.f32.mrf.mxu0
    %v1529 = vpop.f32.mrf.mxu0
    %v1530 = vpop.f32.mrf.mxu0
    %1531 = vdwg.mxu0
    %v1533 = vsel %vm1488, %v1468, 0
    %1535 = vmatprep.subr.bf16.mxu0 0
    %1536 = vmatpush1.bf16.msra.mxu0 0
    %1537 = vmatprep.subr.bf16.mxu0 0
    %1538 = vmatpush1.bf16.msra.mxu0 0
    %1539 = vmatprep.subr.bf16.mxu0 0
    %1540 = vmatpush1.bf16.msra.mxu0 0
    %1541 = vmatprep.subr.bf16.mxu0 0
    %1542 = vmatpush1.bf16.msra.mxu0 0
    %1543 = vmatprep.subr.bf16.mxu0 0
    %1544 = vmatpush1.bf16.msra.mxu0 %v1472
    %1545 = vmatprep.subr.bf16.mxu0 0
    %1546 = vmatpush1.bf16.msra.mxu0 %v1471
    %1547 = vmatprep.subr.bf16.mxu0 0
    %1548 = vmatpush1.bf16.msra.mxu0 %v1470
    %1549 = vmatprep.subr.bf16.mxu0 0
    %1550 = vmatpush1.bf16.msra.mxu0 %v1469
    %1551 = vmatprep.subr.bf16.mxu0 0
    %1552 = vmatpush2.bf16.msra.mxu0 0
    %1553 = vmatprep.subr.bf16.mxu0 0
    %1554 = vmatpush2.bf16.msra.mxu0 0
    %1555 = vmatprep.subr.bf16.mxu0 0
    %1556 = vmatpush2.bf16.msra.mxu0 0
    %1557 = vmatprep.subr.bf16.mxu0 0
    %1558 = vmatpush2.bf16.msra.mxu0 0
    %1559 = vmatprep.subr.bf16.mxu0 0
    %1560 = vmatpush2.bf16.msra.mxu0 0
    %1561 = vmatprep.subr.bf16.mxu0 0
    %1562 = vmatpush2.bf16.msra.mxu0 0
    %1563 = vmatprep.subr.bf16.mxu0 0
    %1564 = vmatpush2.bf16.msra.mxu0 0
    %1565 = vmatprep.subr.bf16.mxu0 0
    %1566 = vmatpush2.bf16.msra.mxu0 0
    %1567 = vmatprep.mubr.bf16.mxu0 0
    %1568 = vmatmul.mubr.bf16.gmra.mxu0 %v1533
    %v1569 = vpop.f32.mrf.mxu0
    %v1570 = vadd.f32 %v1527, %v1569
    %v1571 = vpop.f32.mrf.mxu0
    %v1572 = vpop.f32.mrf.mxu0
    %v1573 = vpop.f32.mrf.mxu0
    %1574 = vdwg.mxu0
    %s1575 = scalar_lea.vmem %s15, 128
    %v1576 = vld [vmem:[%s1575] sm:$0xff]
    %v1577 = vld [vmem:[%s1575 + $0x8] sm:$0xff]
    %v1578 = vld [vmem:[%s1575 + $0x10] sm:$0xff]
    %v1579 = vld [vmem:[%s1575 + $0x18] sm:$0xff]
    %v1580 = vld [vmem:[%s1575 + $0x20] sm:$0xff]
    %v1581 = vld [vmem:[%s1575 + $0x28] sm:$0xff]
    %v1582 = vld [vmem:[%s1575 + $0x30] sm:$0xff]
    %v1583 = vld [vmem:[%s1575 + $0x38] sm:$0xff]
    %v1584 = vpack.c.bf16 %v1577, %v1576
    %v1585 = vpack.c.bf16 %v1579, %v1578
    %v1586 = vpack.c.bf16 %v1581, %v1580
    %v1587 = vpack.c.bf16 %v1583, %v1582
    %v1588 = vrot.slane %v1468, 2
    %v1590 = vsel %vm1488, %v1588, 0
    %1592 = vmatprep.subr.bf16.mxu0 0
    %1593 = vmatpush1.bf16.msra.mxu0 0
    %1594 = vmatprep.subr.bf16.mxu0 0
    %1595 = vmatpush1.bf16.msra.mxu0 0
    %1596 = vmatprep.subr.bf16.mxu0 0
    %1597 = vmatpush1.bf16.msra.mxu0 0
    %1598 = vmatprep.subr.bf16.mxu0 0
    %1599 = vmatpush1.bf16.msra.mxu0 0
    %1600 = vmatprep.subr.bf16.mxu0 0
    %1601 = vmatpush1.bf16.msra.mxu0 %v1587
    %1602 = vmatprep.subr.bf16.mxu0 0
    %1603 = vmatpush1.bf16.msra.mxu0 %v1586
    %1604 = vmatprep.subr.bf16.mxu0 0
    %1605 = vmatpush1.bf16.msra.mxu0 %v1585
    %1606 = vmatprep.subr.bf16.mxu0 0
    %1607 = vmatpush1.bf16.msra.mxu0 %v1584
    %1608 = vmatprep.subr.bf16.mxu0 0
    %1609 = vmatpush2.bf16.msra.mxu0 0
    %1610 = vmatprep.subr.bf16.mxu0 0
    %1611 = vmatpush2.bf16.msra.mxu0 0
    %1612 = vmatprep.subr.bf16.mxu0 0
    %1613 = vmatpush2.bf16.msra.mxu0 0
    %1614 = vmatprep.subr.bf16.mxu0 0
    %1615 = vmatpush2.bf16.msra.mxu0 0
    %1616 = vmatprep.subr.bf16.mxu0 0
    %1617 = vmatpush2.bf16.msra.mxu0 0
    %1618 = vmatprep.subr.bf16.mxu0 0
    %1619 = vmatpush2.bf16.msra.mxu0 0
    %1620 = vmatprep.subr.bf16.mxu0 0
    %1621 = vmatpush2.bf16.msra.mxu0 0
    %1622 = vmatprep.subr.bf16.mxu0 0
    %1623 = vmatpush2.bf16.msra.mxu0 0
    %1624 = vmatprep.mubr.bf16.mxu0 0
    %1625 = vmatmul.mubr.bf16.gmra.mxu0 %v1590
    %v1626 = vpop.f32.mrf.mxu0
    %v1627 = vadd.f32 0.0, %v1626
    %v1628 = vpop.f32.mrf.mxu0
    %v1629 = vpop.f32.mrf.mxu0
    %v1630 = vpop.f32.mrf.mxu0
    %1631 = vdwg.mxu0
    %v1632 = vadd.f32 %v1570, %v1627
    %s1633 = scalar_lea.vmem %s15, 192
    %v1634 = vld [vmem:[%s1633] sm:$0xff]
    %v1635 = vld [vmem:[%s1633 + $0x8] sm:$0xff]
    %v1636 = vld [vmem:[%s1633 + $0x10] sm:$0xff]
    %v1637 = vld [vmem:[%s1633 + $0x18] sm:$0xff]
    %v1638 = vld [vmem:[%s1633 + $0x20] sm:$0xff]
    %v1639 = vld [vmem:[%s1633 + $0x28] sm:$0xff]
    %v1640 = vld [vmem:[%s1633 + $0x30] sm:$0xff]
    %v1641 = vld [vmem:[%s1633 + $0x38] sm:$0xff]
    %v1642 = vpack.c.bf16 %v1635, %v1634
    %v1643 = vpack.c.bf16 %v1637, %v1636
    %v1644 = vpack.c.bf16 %v1639, %v1638
    %v1645 = vpack.c.bf16 %v1641, %v1640
    %v1646 = vrot.slane %v1468, 3
    %v1648 = vsel %vm1488, %v1646, 0
    %1650 = vmatprep.subr.bf16.mxu0 0
    %1651 = vmatpush1.bf16.msra.mxu0 0
    %1652 = vmatprep.subr.bf16.mxu0 0
    %1653 = vmatpush1.bf16.msra.mxu0 0
    %1654 = vmatprep.subr.bf16.mxu0 0
    %1655 = vmatpush1.bf16.msra.mxu0 0
    %1656 = vmatprep.subr.bf16.mxu0 0
    %1657 = vmatpush1.bf16.msra.mxu0 0
    %1658 = vmatprep.subr.bf16.mxu0 0
    %1659 = vmatpush1.bf16.msra.mxu0 %v1645
    %1660 = vmatprep.subr.bf16.mxu0 0
    %1661 = vmatpush1.bf16.msra.mxu0 %v1644
    %1662 = vmatprep.subr.bf16.mxu0 0
    %1663 = vmatpush1.bf16.msra.mxu0 %v1643
    %1664 = vmatprep.subr.bf16.mxu0 0
    %1665 = vmatpush1.bf16.msra.mxu0 %v1642
    %1666 = vmatprep.subr.bf16.mxu0 0
    %1667 = vmatpush2.bf16.msra.mxu0 0
    %1668 = vmatprep.subr.bf16.mxu0 0
    %1669 = vmatpush2.bf16.msra.mxu0 0
    %1670 = vmatprep.subr.bf16.mxu0 0
    %1671 = vmatpush2.bf16.msra.mxu0 0
    %1672 = vmatprep.subr.bf16.mxu0 0
    %1673 = vmatpush2.bf16.msra.mxu0 0
    %1674 = vmatprep.subr.bf16.mxu0 0
    %1675 = vmatpush2.bf16.msra.mxu0 0
    %1676 = vmatprep.subr.bf16.mxu0 0
    %1677 = vmatpush2.bf16.msra.mxu0 0
    %1678 = vmatprep.subr.bf16.mxu0 0
    %1679 = vmatpush2.bf16.msra.mxu0 0
    %1680 = vmatprep.subr.bf16.mxu0 0
    %1681 = vmatpush2.bf16.msra.mxu0 0
    %1682 = vmatprep.mubr.bf16.mxu0 0
    %1683 = vmatmul.mubr.bf16.gmra.mxu0 %v1648
    %v1684 = vpop.f32.mrf.mxu0
    %v1685 = vadd.f32 0.0, %v1684
    %v1686 = vpop.f32.mrf.mxu0
    %v1687 = vpop.f32.mrf.mxu0
    %v1688 = vpop.f32.mrf.mxu0
    %1689 = vdwg.mxu0
    %v1690 = vadd.f32 %v1632, %v1685
    %s1691 = scalar_lea.vmem %s15, 256
    %v1692 = vld [vmem:[%s1691] sm:$0xff]
    %v1693 = vld [vmem:[%s1691 + $0x8] sm:$0xff]
    %v1694 = vld [vmem:[%s1691 + $0x10] sm:$0xff]
    %v1695 = vld [vmem:[%s1691 + $0x18] sm:$0xff]
    %v1696 = vld [vmem:[%s1691 + $0x20] sm:$0xff]
    %v1697 = vld [vmem:[%s1691 + $0x28] sm:$0xff]
    %v1698 = vld [vmem:[%s1691 + $0x30] sm:$0xff]
    %v1699 = vld [vmem:[%s1691 + $0x38] sm:$0xff]
    %v1700 = vpack.c.bf16 %v1458, %v1458
    %v1701 = vpack.c.bf16 %v1693, %v1692
    %v1702 = vpack.c.bf16 %v1695, %v1694
    %v1703 = vpack.c.bf16 %v1697, %v1696
    %v1704 = vpack.c.bf16 %v1699, %v1698
    %v1706 = vsel %vm1488, %v1700, 0
    %1708 = vmatprep.subr.bf16.mxu0 0
    %1709 = vmatpush1.bf16.msra.mxu0 0
    %1710 = vmatprep.subr.bf16.mxu0 0
    %1711 = vmatpush1.bf16.msra.mxu0 0
    %1712 = vmatprep.subr.bf16.mxu0 0
    %1713 = vmatpush1.bf16.msra.mxu0 0
    %1714 = vmatprep.subr.bf16.mxu0 0
    %1715 = vmatpush1.bf16.msra.mxu0 0
    %1716 = vmatprep.subr.bf16.mxu0 0
    %1717 = vmatpush1.bf16.msra.mxu0 %v1704
    %1718 = vmatprep.subr.bf16.mxu0 0
    %1719 = vmatpush1.bf16.msra.mxu0 %v1703
    %1720 = vmatprep.subr.bf16.mxu0 0
    %1721 = vmatpush1.bf16.msra.mxu0 %v1702
    %1722 = vmatprep.subr.bf16.mxu0 0
    %1723 = vmatpush1.bf16.msra.mxu0 %v1701
    %1724 = vmatprep.subr.bf16.mxu0 0
    %1725 = vmatpush2.bf16.msra.mxu0 0
    %1726 = vmatprep.subr.bf16.mxu0 0
    %1727 = vmatpush2.bf16.msra.mxu0 0
    %1728 = vmatprep.subr.bf16.mxu0 0
    %1729 = vmatpush2.bf16.msra.mxu0 0
    %1730 = vmatprep.subr.bf16.mxu0 0
    %1731 = vmatpush2.bf16.msra.mxu0 0
    %1732 = vmatprep.subr.bf16.mxu0 0
    %1733 = vmatpush2.bf16.msra.mxu0 0
    %1734 = vmatprep.subr.bf16.mxu0 0
    %1735 = vmatpush2.bf16.msra.mxu0 0
    %1736 = vmatprep.subr.bf16.mxu0 0
    %1737 = vmatpush2.bf16.msra.mxu0 0
    %1738 = vmatprep.subr.bf16.mxu0 0
    %1739 = vmatpush2.bf16.msra.mxu0 0
    %1740 = vmatprep.mubr.bf16.mxu0 0
    %1741 = vmatmul.mubr.bf16.gmra.mxu0 %v1706
    %v1742 = vpop.f32.mrf.mxu0
    %v1743 = vadd.f32 0.0, %v1742
    %v1744 = vpop.f32.mrf.mxu0
    %v1745 = vpop.f32.mrf.mxu0
    %v1746 = vpop.f32.mrf.mxu0
    %1747 = vdwg.mxu0
    %v1748 = vadd.f32 %v1690, %v1743
    %s1749 = scalar_lea.vmem %s15, 320
    %v1750 = vld [vmem:[%s1749] sm:$0xff]
    %v1751 = vld [vmem:[%s1749 + $0x8] sm:$0xff]
    %v1752 = vld [vmem:[%s1749 + $0x10] sm:$0xff]
    %v1753 = vld [vmem:[%s1749 + $0x18] sm:$0xff]
    %v1754 = vld [vmem:[%s1749 + $0x20] sm:$0xff]
    %v1755 = vld [vmem:[%s1749 + $0x28] sm:$0xff]
    %v1756 = vld [vmem:[%s1749 + $0x30] sm:$0xff]
    %v1757 = vld [vmem:[%s1749 + $0x38] sm:$0xff]
    %v1758 = vpack.c.bf16 %v1751, %v1750
    %v1759 = vpack.c.bf16 %v1753, %v1752
    %v1760 = vpack.c.bf16 %v1755, %v1754
    %v1761 = vpack.c.bf16 %v1757, %v1756
    %v1763 = vrot.slane %v1700, 1
    %v1765 = vsel %vm1488, %v1763, 0
    %1767 = vmatprep.subr.bf16.mxu0 0
    %1768 = vmatpush1.bf16.msra.mxu0 0
    %1769 = vmatprep.subr.bf16.mxu0 0
    %1770 = vmatpush1.bf16.msra.mxu0 0
    %1771 = vmatprep.subr.bf16.mxu0 0
    %1772 = vmatpush1.bf16.msra.mxu0 0
    %1773 = vmatprep.subr.bf16.mxu0 0
    %1774 = vmatpush1.bf16.msra.mxu0 0
    %1775 = vmatprep.subr.bf16.mxu0 0
    %1776 = vmatpush1.bf16.msra.mxu0 %v1761
    %1777 = vmatprep.subr.bf16.mxu0 0
    %1778 = vmatpush1.bf16.msra.mxu0 %v1760
    %1779 = vmatprep.subr.bf16.mxu0 0
    %1780 = vmatpush1.bf16.msra.mxu0 %v1759
    %1781 = vmatprep.subr.bf16.mxu0 0
    %1782 = vmatpush1.bf16.msra.mxu0 %v1758
    %1783 = vmatprep.subr.bf16.mxu0 0
    %1784 = vmatpush2.bf16.msra.mxu0 0
    %1785 = vmatprep.subr.bf16.mxu0 0
    %1786 = vmatpush2.bf16.msra.mxu0 0
    %1787 = vmatprep.subr.bf16.mxu0 0
    %1788 = vmatpush2.bf16.msra.mxu0 0
    %1789 = vmatprep.subr.bf16.mxu0 0
    %1790 = vmatpush2.bf16.msra.mxu0 0
    %1791 = vmatprep.subr.bf16.mxu0 0
    %1792 = vmatpush2.bf16.msra.mxu0 0
    %1793 = vmatprep.subr.bf16.mxu0 0
    %1794 = vmatpush2.bf16.msra.mxu0 0
    %1795 = vmatprep.subr.bf16.mxu0 0
    %1796 = vmatpush2.bf16.msra.mxu0 0
    %1797 = vmatprep.subr.bf16.mxu0 0
    %1798 = vmatpush2.bf16.msra.mxu0 0
    %1799 = vmatprep.mubr.bf16.mxu0 0
    %1800 = vmatmul.mubr.bf16.gmra.mxu0 %v1765
    %v1801 = vpop.f32.mrf.mxu0
    %v1802 = vadd.f32 0.0, %v1801
    %v1803 = vpop.f32.mrf.mxu0
    %v1804 = vpop.f32.mrf.mxu0
    %v1805 = vpop.f32.mrf.mxu0
    %1806 = vdwg.mxu0
    %v1807 = vadd.f32 %v1748, %v1802
    %s1808 = scalar_lea.vmem %s15, 384
    %v1809 = vld [vmem:[%s1808] sm:$0xff]
    %v1810 = vld [vmem:[%s1808 + $0x8] sm:$0xff]
    %v1811 = vld [vmem:[%s1808 + $0x10] sm:$0xff]
    %v1812 = vld [vmem:[%s1808 + $0x18] sm:$0xff]
    %v1813 = vld [vmem:[%s1808 + $0x20] sm:$0xff]
    %v1814 = vld [vmem:[%s1808 + $0x28] sm:$0xff]
    %v1815 = vld [vmem:[%s1808 + $0x30] sm:$0xff]
    %v1816 = vld [vmem:[%s1808 + $0x38] sm:$0xff]
    %v1817 = vpack.c.bf16 %v1810, %v1809
    %v1818 = vpack.c.bf16 %v1812, %v1811
    %v1819 = vpack.c.bf16 %v1814, %v1813
    %v1820 = vpack.c.bf16 %v1816, %v1815
    %v1821 = vrot.slane %v1700, 2
    %v1823 = vsel %vm1488, %v1821, 0
    %1825 = vmatprep.subr.bf16.mxu0 0
    %1826 = vmatpush1.bf16.msra.mxu0 0
    %1827 = vmatprep.subr.bf16.mxu0 0
    %1828 = vmatpush1.bf16.msra.mxu0 0
    %1829 = vmatprep.subr.bf16.mxu0 0
    %1830 = vmatpush1.bf16.msra.mxu0 0
    %1831 = vmatprep.subr.bf16.mxu0 0
    %1832 = vmatpush1.bf16.msra.mxu0 0
    %1833 = vmatprep.subr.bf16.mxu0 0
    %1834 = vmatpush1.bf16.msra.mxu0 %v1820
    %1835 = vmatprep.subr.bf16.mxu0 0
    %1836 = vmatpush1.bf16.msra.mxu0 %v1819
    %1837 = vmatprep.subr.bf16.mxu0 0
    %1838 = vmatpush1.bf16.msra.mxu0 %v1818
    %1839 = vmatprep.subr.bf16.mxu0 0
    %1840 = vmatpush1.bf16.msra.mxu0 %v1817
    %1841 = vmatprep.subr.bf16.mxu0 0
    %1842 = vmatpush2.bf16.msra.mxu0 0
    %1843 = vmatprep.subr.bf16.mxu0 0
    %1844 = vmatpush2.bf16.msra.mxu0 0
    %1845 = vmatprep.subr.bf16.mxu0 0
    %1846 = vmatpush2.bf16.msra.mxu0 0
    %1847 = vmatprep.subr.bf16.mxu0 0
    %1848 = vmatpush2.bf16.msra.mxu0 0
    %1849 = vmatprep.subr.bf16.mxu0 0
    %1850 = vmatpush2.bf16.msra.mxu0 0
    %1851 = vmatprep.subr.bf16.mxu0 0
    %1852 = vmatpush2.bf16.msra.mxu0 0
    %1853 = vmatprep.subr.bf16.mxu0 0
    %1854 = vmatpush2.bf16.msra.mxu0 0
    %1855 = vmatprep.subr.bf16.mxu0 0
    %1856 = vmatpush2.bf16.msra.mxu0 0
    %1857 = vmatprep.mubr.bf16.mxu0 0
    %1858 = vmatmul.mubr.bf16.gmra.mxu0 %v1823
    %v1859 = vpop.f32.mrf.mxu0
    %v1860 = vadd.f32 0.0, %v1859
    %v1861 = vpop.f32.mrf.mxu0
    %v1862 = vpop.f32.mrf.mxu0
    %v1863 = vpop.f32.mrf.mxu0
    %1864 = vdwg.mxu0
    %v1865 = vadd.f32 %v1807, %v1860
    %s1866 = scalar_lea.vmem %s15, 448
    %v1867 = vld [vmem:[%s1866] sm:$0xff]
    %v1868 = vld [vmem:[%s1866 + $0x8] sm:$0xff]
    %v1869 = vld [vmem:[%s1866 + $0x10] sm:$0xff]
    %v1870 = vld [vmem:[%s1866 + $0x18] sm:$0xff]
    %v1871 = vld [vmem:[%s1866 + $0x20] sm:$0xff]
    %v1872 = vld [vmem:[%s1866 + $0x28] sm:$0xff]
    %v1873 = vld [vmem:[%s1866 + $0x30] sm:$0xff]
    %v1874 = vld [vmem:[%s1866 + $0x38] sm:$0xff]
    %v1875 = vpack.c.bf16 %v1868, %v1867
    %v1876 = vpack.c.bf16 %v1870, %v1869
    %v1877 = vpack.c.bf16 %v1872, %v1871
    %v1878 = vpack.c.bf16 %v1874, %v1873
    %v1879 = vrot.slane %v1700, 3
    %v1881 = vsel %vm1488, %v1879, 0
    %1883 = vmatprep.subr.bf16.mxu0 0
    %1884 = vmatpush1.bf16.msra.mxu0 0
    %1885 = vmatprep.subr.bf16.mxu0 0
    %1886 = vmatpush1.bf16.msra.mxu0 0
    %1887 = vmatprep.subr.bf16.mxu0 0
    %1888 = vmatpush1.bf16.msra.mxu0 0
    %1889 = vmatprep.subr.bf16.mxu0 0
    %1890 = vmatpush1.bf16.msra.mxu0 0
    %1891 = vmatprep.subr.bf16.mxu0 0
    %1892 = vmatpush1.bf16.msra.mxu0 %v1878
    %1893 = vmatprep.subr.bf16.mxu0 0
    %1894 = vmatpush1.bf16.msra.mxu0 %v1877
    %1895 = vmatprep.subr.bf16.mxu0 0
    %1896 = vmatpush1.bf16.msra.mxu0 %v1876
    %1897 = vmatprep.subr.bf16.mxu0 0
    %1898 = vmatpush1.bf16.msra.mxu0 %v1875
    %1899 = vmatprep.subr.bf16.mxu0 0
    %1900 = vmatpush2.bf16.msra.mxu0 0
    %1901 = vmatprep.subr.bf16.mxu0 0
    %1902 = vmatpush2.bf16.msra.mxu0 0
    %1903 = vmatprep.subr.bf16.mxu0 0
    %1904 = vmatpush2.bf16.msra.mxu0 0
    %1905 = vmatprep.subr.bf16.mxu0 0
    %1906 = vmatpush2.bf16.msra.mxu0 0
    %1907 = vmatprep.subr.bf16.mxu0 0
    %1908 = vmatpush2.bf16.msra.mxu0 0
    %1909 = vmatprep.subr.bf16.mxu0 0
    %1910 = vmatpush2.bf16.msra.mxu0 0
    %1911 = vmatprep.subr.bf16.mxu0 0
    %1912 = vmatpush2.bf16.msra.mxu0 0
    %1913 = vmatprep.subr.bf16.mxu0 0
    %1914 = vmatpush2.bf16.msra.mxu0 0
    %1915 = vmatprep.mubr.bf16.mxu0 0
    %1916 = vmatmul.mubr.bf16.gmra.mxu0 %v1881
    %v1917 = vpop.f32.mrf.mxu0
    %v1918 = vadd.f32 0.0, %v1917
    %v1919 = vpop.f32.mrf.mxu0
    %v1920 = vpop.f32.mrf.mxu0
    %v1921 = vpop.f32.mrf.mxu0
    %1922 = vdwg.mxu0
    %v1923 = vadd.f32 %v1865, %v1918
    %s1924 = scalar_lea.vmem %s15, 512
    %v1925 = vld [vmem:[%s1924] sm:$0xff]
    %v1926 = vld [vmem:[%s1924 + $0x8] sm:$0xff]
    %v1927 = vld [vmem:[%s1924 + $0x10] sm:$0xff]
    %v1928 = vld [vmem:[%s1924 + $0x18] sm:$0xff]
    %v1929 = vld [vmem:[%s1924 + $0x20] sm:$0xff]
    %v1930 = vld [vmem:[%s1924 + $0x28] sm:$0xff]
    %v1931 = vld [vmem:[%s1924 + $0x30] sm:$0xff]
    %v1932 = vld [vmem:[%s1924 + $0x38] sm:$0xff]
    %v1933 = vpack.c.bf16 %v1459, %v1459
    %v1934 = vpack.c.bf16 %v1926, %v1925
    %v1935 = vpack.c.bf16 %v1928, %v1927
    %v1936 = vpack.c.bf16 %v1930, %v1929
    %v1937 = vpack.c.bf16 %v1932, %v1931
    %v1939 = vsel %vm1488, %v1933, 0
    %1941 = vmatprep.subr.bf16.mxu0 0
    %1942 = vmatpush1.bf16.msra.mxu0 0
    %1943 = vmatprep.subr.bf16.mxu0 0
    %1944 = vmatpush1.bf16.msra.mxu0 0
    %1945 = vmatprep.subr.bf16.mxu0 0
    %1946 = vmatpush1.bf16.msra.mxu0 0
    %1947 = vmatprep.subr.bf16.mxu0 0
    %1948 = vmatpush1.bf16.msra.mxu0 0
    %1949 = vmatprep.subr.bf16.mxu0 0
    %1950 = vmatpush1.bf16.msra.mxu0 %v1937
    %1951 = vmatprep.subr.bf16.mxu0 0
    %1952 = vmatpush1.bf16.msra.mxu0 %v1936
    %1953 = vmatprep.subr.bf16.mxu0 0
    %1954 = vmatpush1.bf16.msra.mxu0 %v1935
    %1955 = vmatprep.subr.bf16.mxu0 0
    %1956 = vmatpush1.bf16.msra.mxu0 %v1934
    %1957 = vmatprep.subr.bf16.mxu0 0
    %1958 = vmatpush2.bf16.msra.mxu0 0
    %1959 = vmatprep.subr.bf16.mxu0 0
    %1960 = vmatpush2.bf16.msra.mxu0 0
    %1961 = vmatprep.subr.bf16.mxu0 0
    %1962 = vmatpush2.bf16.msra.mxu0 0
    %1963 = vmatprep.subr.bf16.mxu0 0
    %1964 = vmatpush2.bf16.msra.mxu0 0
    %1965 = vmatprep.subr.bf16.mxu0 0
    %1966 = vmatpush2.bf16.msra.mxu0 0
    %1967 = vmatprep.subr.bf16.mxu0 0
    %1968 = vmatpush2.bf16.msra.mxu0 0
    %1969 = vmatprep.subr.bf16.mxu0 0
    %1970 = vmatpush2.bf16.msra.mxu0 0
    %1971 = vmatprep.subr.bf16.mxu0 0
    %1972 = vmatpush2.bf16.msra.mxu0 0
    %1973 = vmatprep.mubr.bf16.mxu0 0
    %1974 = vmatmul.mubr.bf16.gmra.mxu0 %v1939
    %v1975 = vpop.f32.mrf.mxu0
    %v1976 = vadd.f32 0.0, %v1975
    %v1977 = vpop.f32.mrf.mxu0
    %v1978 = vpop.f32.mrf.mxu0
    %v1979 = vpop.f32.mrf.mxu0
    %1980 = vdwg.mxu0
    %v1981 = vadd.f32 %v1923, %v1976
    %v1982 = vld [vmem:[%s17] sm:$0x1]
    %v1984 = vlaneseq
    %v1985 = vshrl.u32 %v1984, 7
    %v1986 = vsub.s32 0, %v1985
    %v1987 = vrot.slane %v1982, %v1986
    %v1989 = vadd.f32 %v1981, %v1987
    %v1990 = vld [vmem:[%s19] sm:$0xff]
    %v1991 = vld [vmem:[%s19 + $0x8] sm:$0xff]
    %v1992 = vld [vmem:[%s19 + $0x10] sm:$0xff]
    %v1993 = vld [vmem:[%s19 + $0x18] sm:$0xff]
    %v1994 = vpack.c.bf16 %v1989, %v1989
    %v1995 = vpack.c.bf16 %v1991, %v1990
    %v1996 = vpack.c.bf16 %v1993, %v1992
    %v1997 = vld [vmem:[%s21] sm:$0x1]
    %v1999 = vlaneseq
    %v2000 = vshrl.u32 %v1999, 7
    %v2001 = vsub.s32 0, %v2000
    %v2002 = vrot.slane %v1997, %v2001
    %v2005 = vsel %vm498, %v1994, 0
    %2007 = vmatprep.subr.bf16.mxu0 0
    %2008 = vmatpush1.bf16.msra.mxu0 0
    %2009 = vmatprep.subr.bf16.mxu0 0
    %2010 = vmatpush1.bf16.msra.mxu0 0
    %2011 = vmatprep.subr.bf16.mxu0 0
    %2012 = vmatpush1.bf16.msra.mxu0 0
    %2013 = vmatprep.subr.bf16.mxu0 0
    %2014 = vmatpush1.bf16.msra.mxu0 0
    %2015 = vmatprep.subr.bf16.mxu0 0
    %2016 = vmatpush1.bf16.msra.mxu0 0
    %2017 = vmatprep.subr.bf16.mxu0 0
    %2018 = vmatpush1.bf16.msra.mxu0 0
    %2019 = vmatprep.subr.bf16.mxu0 0
    %2020 = vmatpush1.bf16.msra.mxu0 %v1996
    %2021 = vmatprep.subr.bf16.mxu0 0
    %2022 = vmatpush1.bf16.msra.mxu0 %v1995
    %2023 = vmatprep.subr.bf16.mxu0 0
    %2024 = vmatpush2.bf16.msra.mxu0 0
    %2025 = vmatprep.subr.bf16.mxu0 0
    %2026 = vmatpush2.bf16.msra.mxu0 0
    %2027 = vmatprep.subr.bf16.mxu0 0
    %2028 = vmatpush2.bf16.msra.mxu0 0
    %2029 = vmatprep.subr.bf16.mxu0 0
    %2030 = vmatpush2.bf16.msra.mxu0 0
    %2031 = vmatprep.subr.bf16.mxu0 0
    %2032 = vmatpush2.bf16.msra.mxu0 0
    %2033 = vmatprep.subr.bf16.mxu0 0
    %2034 = vmatpush2.bf16.msra.mxu0 0
    %2035 = vmatprep.subr.bf16.mxu0 0
    %2036 = vmatpush2.bf16.msra.mxu0 0
    %2037 = vmatprep.subr.bf16.mxu0 0
    %2038 = vmatpush2.bf16.msra.mxu0 0
    %2039 = vmatprep.mubr.bf16.mxu0 0
    %2040 = vmatmul.mubr.bf16.gmra.mxu0 %v2005
    %v2041 = vpop.f32.mrf.mxu0
    %v2042 = vadd.f32 %v2002, %v2041
    %v2043 = vpop.f32.mrf.mxu0
    %v2044 = vpop.f32.mrf.mxu0
    %v2045 = vpop.f32.mrf.mxu0
    %2046 = vdwg.mxu0
    %v2047 = vmax.f32 %v2042, 0.0
    %v2048 = vld [vmem:[%s3] sm:$0xff]
    %v2049 = vld [vmem:[%s3 + $0x8] sm:$0xff]
    %v2050 = vld [vmem:[%s3 + $0x10] sm:$0xff]
    %v2051 = vld [vmem:[%s3 + $0x18] sm:$0xff]
    %v2052 = vld [vmem:[%s3 + $0x20] sm:$0xff]
    %v2053 = vld [vmem:[%s3 + $0x28] sm:$0xff]
    %v2054 = vld [vmem:[%s3 + $0x30] sm:$0xff]
    %v2055 = vld [vmem:[%s3 + $0x38] sm:$0xff]
    %v2056 = vld [vmem:[%s3 + $0x40] sm:$0xff]
    %v2057 = vld [vmem:[%s3 + $0x48] sm:$0xff]
    %v2058 = vld [vmem:[%s3 + $0x50] sm:$0xff]
    %v2059 = vld [vmem:[%s3 + $0x58] sm:$0xff]
    %v2060 = vld [vmem:[%s3 + $0x60] sm:$0xff]
    %v2061 = vld [vmem:[%s3 + $0x68] sm:$0xff]
    %v2062 = vld [vmem:[%s3 + $0x70] sm:$0xff]
    %v2063 = vld [vmem:[%s3 + $0x78] sm:$0xff]
    %v2064 = vld [vmem:[%s23] sm:$0xff]
    %v2065 = vld [vmem:[%s23 + $0x8] sm:$0xff]
    %v2066 = vld [vmem:[%s23 + $0x10] sm:$0xff]
    %v2067 = vld [vmem:[%s23 + $0x18] sm:$0xff]
    %v2068 = vld [vmem:[%s23 + $0x20] sm:$0xff]
    %v2069 = vld [vmem:[%s23 + $0x28] sm:$0xff]
    %v2070 = vld [vmem:[%s23 + $0x30] sm:$0x3]
    %v2071 = vpack.c.bf16 %v2049, %v2048
    %v2072 = vpack.c.bf16 %v2051, %v2050
    %v2073 = vpack.c.bf16 %v2053, %v2052
    %v2074 = vpack.c.bf16 %v2055, %v2054
    %v2075 = vpack.c.bf16 %v2057, %v2056
    %v2076 = vpack.c.bf16 %v2059, %v2058
    %v2077 = vpack.c.bf16 %v2061, %v2060
    %v2078 = vpack.c.bf16 %v2063, %v2062
    %v2079 = vpack.c.bf16 %v2065, %v2064
    %v2080 = vpack.c.bf16 %v2067, %v2066
    %v2081 = vpack.c.bf16 %v2069, %v2068
    %v2082 = vpack.c.bf16 %v2070, %v2070
    %v2083 = vld [vmem:[%s25] sm:$0x1]
    %v2085 = vlaneseq
    %v2086 = vshrl.u32 %v2085, 7
    %v2087 = vsub.s32 0, %v2086
    %v2088 = vrot.slane %v2083, %v2087
    %vm2090 = vcmask 408576
    %v2092 = vsel %vm2090, %v2071, 0
    %v2095 = vsel %vm2090, %v2072, 0
    %v2098 = vsel %vm2090, %v2073, 0
    %v2101 = vsel %vm2090, %v2074, 0
    %v2104 = vsel %vm2090, %v2075, 0
    %v2107 = vsel %vm2090, %v2076, 0
    %v2110 = vsel %vm2090, %v2077, 0
    %v2113 = vsel %vm2090, %v2078, 0
    %vm2115 = vcmask 1040384
    %v2117 = vsel %vm2115, %v2082, 0
    %2119 = vmatprep.subr.bf16.mxu0 0
    %2120 = vmatpush1.bf16.msra.mxu0 0
    %2121 = vmatprep.subr.bf16.mxu0 0
    %2122 = vmatpush1.bf16.msra.mxu0 0
    %2123 = vmatprep.subr.bf16.mxu0 0
    %2124 = vmatpush1.bf16.msra.mxu0 0
    %2125 = vmatprep.subr.bf16.mxu0 0
    %2126 = vmatpush1.bf16.msra.mxu0 0
    %2127 = vmatprep.subr.bf16.mxu0 0
    %2128 = vmatpush1.bf16.msra.mxu0 %v2117
    %2129 = vmatprep.subr.bf16.mxu0 0
    %2130 = vmatpush1.bf16.msra.mxu0 %v2081
    %2131 = vmatprep.subr.bf16.mxu0 0
    %2132 = vmatpush1.bf16.msra.mxu0 %v2080
    %2133 = vmatprep.subr.bf16.mxu0 0
    %2134 = vmatpush1.bf16.msra.mxu0 %v2079
    %2135 = vmatprep.subr.bf16.mxu0 0
    %2136 = vmatpush2.bf16.msra.mxu0 0
    %2137 = vmatprep.subr.bf16.mxu0 0
    %2138 = vmatpush2.bf16.msra.mxu0 0
    %2139 = vmatprep.subr.bf16.mxu0 0
    %2140 = vmatpush2.bf16.msra.mxu0 0
    %2141 = vmatprep.subr.bf16.mxu0 0
    %2142 = vmatpush2.bf16.msra.mxu0 0
    %2143 = vmatprep.subr.bf16.mxu0 0
    %2144 = vmatpush2.bf16.msra.mxu0 0
    %2145 = vmatprep.subr.bf16.mxu0 0
    %2146 = vmatpush2.bf16.msra.mxu0 0
    %2147 = vmatprep.subr.bf16.mxu0 0
    %2148 = vmatpush2.bf16.msra.mxu0 0
    %2149 = vmatprep.subr.bf16.mxu0 0
    %2150 = vmatpush2.bf16.msra.mxu0 0
    %2151 = vmatprep.mubr.bf16.mxu0 0
    %2152 = vmatmul.mubr.bf16.gmra.mxu0 %v2092
    %v2153 = vpop.f32.mrf.mxu0
    %v2154 = vadd.f32 %v2088, %v2153
    %v2155 = vpop.f32.mrf.mxu0
    %v2156 = vpop.f32.mrf.mxu0
    %v2157 = vadd.f32 %v2088, %v2156
    %v2158 = vpop.f32.mrf.mxu0
    %2159 = vmatprep.mubr.bf16.mxu0 0
    %2160 = vmatmul.mubr.bf16.gmra.mxu0 %v2095
    %v2161 = vpop.f32.mrf.mxu0
    %v2162 = vadd.f32 %v2088, %v2161
    %v2163 = vpop.f32.mrf.mxu0
    %v2164 = vpop.f32.mrf.mxu0
    %v2165 = vadd.f32 %v2088, %v2164
    %v2166 = vpop.f32.mrf.mxu0
    %2167 = vmatprep.mubr.bf16.mxu0 0
    %2168 = vmatmul.mubr.bf16.gmra.mxu0 %v2098
    %v2169 = vpop.f32.mrf.mxu0
    %v2170 = vadd.f32 %v2088, %v2169
    %v2171 = vpop.f32.mrf.mxu0
    %v2172 = vpop.f32.mrf.mxu0
    %v2173 = vadd.f32 %v2088, %v2172
    %v2174 = vpop.f32.mrf.mxu0
    %2175 = vmatprep.mubr.bf16.mxu0 0
    %2176 = vmatmul.mubr.bf16.gmra.mxu0 %v2101
    %v2177 = vpop.f32.mrf.mxu0
    %v2178 = vadd.f32 %v2088, %v2177
    %v2179 = vpop.f32.mrf.mxu0
    %v2180 = vpop.f32.mrf.mxu0
    %v2181 = vadd.f32 %v2088, %v2180
    %v2182 = vpop.f32.mrf.mxu0
    %2183 = vmatprep.mubr.bf16.mxu0 0
    %2184 = vmatmul.mubr.bf16.gmra.mxu0 %v2104
    %v2185 = vpop.f32.mrf.mxu0
    %v2186 = vadd.f32 %v2088, %v2185
    %v2187 = vpop.f32.mrf.mxu0
    %v2188 = vpop.f32.mrf.mxu0
    %v2189 = vadd.f32 %v2088, %v2188
    %v2190 = vpop.f32.mrf.mxu0
    %2191 = vmatprep.mubr.bf16.mxu0 0
    %2192 = vmatmul.mubr.bf16.gmra.mxu0 %v2107
    %v2193 = vpop.f32.mrf.mxu0
    %v2194 = vadd.f32 %v2088, %v2193
    %v2195 = vpop.f32.mrf.mxu0
    %v2196 = vpop.f32.mrf.mxu0
    %v2197 = vadd.f32 %v2088, %v2196
    %v2198 = vpop.f32.mrf.mxu0
    %2199 = vmatprep.mubr.bf16.mxu0 0
    %2200 = vmatmul.mubr.bf16.gmra.mxu0 %v2110
    %v2201 = vpop.f32.mrf.mxu0
    %v2202 = vadd.f32 %v2088, %v2201
    %v2203 = vpop.f32.mrf.mxu0
    %v2204 = vpop.f32.mrf.mxu0
    %v2205 = vadd.f32 %v2088, %v2204
    %v2206 = vpop.f32.mrf.mxu0
    %2207 = vmatprep.mubr.bf16.mxu0 0
    %2208 = vmatmul.mubr.bf16.gmra.mxu0 %v2113
    %v2209 = vpop.f32.mrf.mxu0
    %v2210 = vadd.f32 %v2088, %v2209
    %v2211 = vpop.f32.mrf.mxu0
    %v2212 = vpop.f32.mrf.mxu0
    %v2213 = vadd.f32 %v2088, %v2212
    %v2214 = vpop.f32.mrf.mxu0
    %2215 = vdwg.mxu0
    %v2216 = vmax.f32 %v2154, 0.0
    %v2217 = vmax.f32 %v2157, 0.0
    %v2218 = vmax.f32 %v2162, 0.0
    %v2219 = vmax.f32 %v2165, 0.0
    %v2220 = vmax.f32 %v2170, 0.0
    %v2221 = vmax.f32 %v2173, 0.0
    %v2222 = vmax.f32 %v2178, 0.0
    %v2223 = vmax.f32 %v2181, 0.0
    %v2224 = vmax.f32 %v2186, 0.0
    %v2225 = vmax.f32 %v2189, 0.0
    %v2226 = vmax.f32 %v2194, 0.0
    %v2227 = vmax.f32 %v2197, 0.0
    %v2228 = vmax.f32 %v2202, 0.0
    %v2229 = vmax.f32 %v2205, 0.0
    %v2230 = vmax.f32 %v2210, 0.0
    %v2231 = vmax.f32 %v2213, 0.0
    %v2232 = vpack.c.bf16 %v2217, %v2216
    %v2233 = vpack.c.bf16 %v2219, %v2218
    %v2234 = vpack.c.bf16 %v2221, %v2220
    %v2235 = vpack.c.bf16 %v2223, %v2222
    %v2236 = vpack.c.bf16 %v2225, %v2224
    %v2237 = vpack.c.bf16 %v2227, %v2226
    %v2238 = vpack.c.bf16 %v2229, %v2228
    %v2239 = vpack.c.bf16 %v2231, %v2230
    %2240 = vmatprep.subr.bf16.mxu0 0
    %2241 = vmatpush1.bf16.msra.mxu0 %v2239
    %2242 = vmatprep.subr.bf16.mxu0 0
    %2243 = vmatpush1.bf16.msra.mxu0 %v2238
    %2244 = vmatprep.subr.bf16.mxu0 0
    %2245 = vmatpush1.bf16.msra.mxu0 %v2237
    %2246 = vmatprep.subr.bf16.mxu0 0
    %2247 = vmatpush1.bf16.msra.mxu0 %v2236
    %2248 = vmatprep.subr.bf16.mxu0 0
    %2249 = vmatpush1.bf16.msra.mxu0 %v2235
    %2250 = vmatprep.subr.bf16.mxu0 0
    %2251 = vmatpush1.bf16.msra.mxu0 %v2234
    %2252 = vmatprep.subr.bf16.mxu0 0
    %2253 = vmatpush1.bf16.msra.mxu0 %v2233
    %2254 = vmatprep.subr.bf16.mxu0 0
    %2255 = vmatpush1.bf16.msra.mxu0 %v2232
    %2256 = vmatprep.subr.bf16.mxu0 0
    %2257 = vmatpush2.bf16.msra.mxu0 0
    %2258 = vmatprep.subr.bf16.mxu0 0
    %2259 = vmatpush2.bf16.msra.mxu0 0
    %2260 = vmatprep.subr.bf16.mxu0 0
    %2261 = vmatpush2.bf16.msra.mxu0 0
    %2262 = vmatprep.subr.bf16.mxu0 0
    %2263 = vmatpush2.bf16.msra.mxu0 0
    %2264 = vmatprep.subr.bf16.mxu0 0
    %2265 = vmatpush2.bf16.msra.mxu0 0
    %2266 = vmatprep.subr.bf16.mxu0 0
    %2267 = vmatpush2.bf16.msra.mxu0 0
    %2268 = vmatprep.subr.bf16.mxu0 0
    %2269 = vmatpush2.bf16.msra.mxu0 0
    %2270 = vmatprep.subr.bf16.mxu0 0
    %2271 = vmatpush2.bf16.msra.mxu0 0
    %2272 = vmatprep.mubr.bf16.mxu0 0
    %2273 = vmatmul.mubr.bf16.gmra.mxu0 %v369
    %v2274 = vpop.f32.mrf.mxu0
    %v2275 = vadd.f32 0.0, %v2274
    %v2276 = vpop.f32.mrf.mxu0
    %v2277 = vpop.f32.mrf.mxu0
    %v2278 = vadd.f32 0.0, %v2277
    %v2279 = vpop.f32.mrf.mxu0
    %2280 = vmatprep.mubr.bf16.mxu0 0
    %2281 = vmatmul.mubr.bf16.gmra.mxu0 %v370
    %v2282 = vpop.f32.mrf.mxu0
    %v2283 = vadd.f32 0.0, %v2282
    %v2284 = vpop.f32.mrf.mxu0
    %v2285 = vpop.f32.mrf.mxu0
    %v2286 = vpop.f32.mrf.mxu0
    %2287 = vdwg.mxu0
    %v2288 = vld [vmem:[%s27] sm:$0xff]
    %v2289 = vld [vmem:[%s27 + $0x8] sm:$0xff]
    %v2290 = vld [vmem:[%s27 + $0x10] sm:$0xff]
    %v2291 = vld [vmem:[%s27 + $0x18] sm:$0xff]
    %v2292 = vpack.c.bf16 %v2278, %v2275
    %v2293 = vpack.c.bf16 %v2283, %v2283
    %v2294 = vpack.c.bf16 %v2289, %v2288
    %v2295 = vpack.c.bf16 %v2291, %v2290
    %2296 = vmatprep.subr.bf16.mxu0 0
    %2297 = vmatpush1.bf16.msra.mxu0 %v2239
    %2298 = vmatprep.subr.bf16.mxu0 0
    %2299 = vmatpush1.bf16.msra.mxu0 %v2238
    %2300 = vmatprep.subr.bf16.mxu0 0
    %2301 = vmatpush1.bf16.msra.mxu0 %v2237
    %2302 = vmatprep.subr.bf16.mxu0 0
    %2303 = vmatpush1.bf16.msra.mxu0 %v2236
    %2304 = vmatprep.subr.bf16.mxu0 0
    %2305 = vmatpush1.bf16.msra.mxu0 %v2235
    %2306 = vmatprep.subr.bf16.mxu0 0
    %2307 = vmatpush1.bf16.msra.mxu0 %v2234
    %2308 = vmatprep.subr.bf16.mxu0 0
    %2309 = vmatpush1.bf16.msra.mxu0 %v2233
    %2310 = vmatprep.subr.bf16.mxu0 0
    %2311 = vmatpush1.bf16.msra.mxu0 %v2232
    %2312 = vmatprep.subr.bf16.mxu0 0
    %2313 = vmatpush2.bf16.msra.mxu0 0
    %2314 = vmatprep.subr.bf16.mxu0 0
    %2315 = vmatpush2.bf16.msra.mxu0 0
    %2316 = vmatprep.subr.bf16.mxu0 0
    %2317 = vmatpush2.bf16.msra.mxu0 0
    %2318 = vmatprep.subr.bf16.mxu0 0
    %2319 = vmatpush2.bf16.msra.mxu0 0
    %2320 = vmatprep.subr.bf16.mxu0 0
    %2321 = vmatpush2.bf16.msra.mxu0 0
    %2322 = vmatprep.subr.bf16.mxu0 0
    %2323 = vmatpush2.bf16.msra.mxu0 0
    %2324 = vmatprep.subr.bf16.mxu0 0
    %2325 = vmatpush2.bf16.msra.mxu0 0
    %2326 = vmatprep.subr.bf16.mxu0 0
    %2327 = vmatpush2.bf16.msra.mxu0 0
    %2328 = vmatprep.mubr.bf16.mxu0 0
    %2329 = vmatmul.mubr.bf16.gmra.mxu0 %v439
    %v2330 = vpop.f32.mrf.mxu0
    %v2331 = vadd.f32 0.0, %v2330
    %v2332 = vpop.f32.mrf.mxu0
    %v2333 = vpop.f32.mrf.mxu0
    %v2334 = vadd.f32 0.0, %v2333
    %v2335 = vpop.f32.mrf.mxu0
    %2336 = vmatprep.mubr.bf16.mxu0 0
    %2337 = vmatmul.mubr.bf16.gmra.mxu0 %v440
    %v2338 = vpop.f32.mrf.mxu0
    %v2339 = vadd.f32 0.0, %v2338
    %v2340 = vpop.f32.mrf.mxu0
    %v2341 = vpop.f32.mrf.mxu0
    %v2342 = vpop.f32.mrf.mxu0
    %2343 = vdwg.mxu0
    %s2344 = scalar_lea.vmem %s27, 32
    %v2345 = vld [vmem:[%s2344] sm:$0xff]
    %v2346 = vld [vmem:[%s2344 + $0x8] sm:$0xff]
    %v2347 = vld [vmem:[%s2344 + $0x10] sm:$0xff]
    %v2348 = vld [vmem:[%s2344 + $0x18] sm:$0xff]
    %v2349 = vpack.c.bf16 %v2334, %v2331
    %v2350 = vpack.c.bf16 %v2339, %v2339
    %v2351 = vpack.c.bf16 %v2346, %v2345
    %v2352 = vpack.c.bf16 %v2348, %v2347
    %v2354 = vsel %vm498, %v2349, 0
    %v2357 = vsel %vm498, %v2350, 0
    %2359 = vmatprep.subr.bf16.mxu0 0
    %2360 = vmatpush1.bf16.msra.mxu0 0
    %2361 = vmatprep.subr.bf16.mxu0 0
    %2362 = vmatpush1.bf16.msra.mxu0 0
    %2363 = vmatprep.subr.bf16.mxu0 0
    %2364 = vmatpush1.bf16.msra.mxu0 0
    %2365 = vmatprep.subr.bf16.mxu0 0
    %2366 = vmatpush1.bf16.msra.mxu0 0
    %2367 = vmatprep.subr.bf16.mxu0 0
    %2368 = vmatpush1.bf16.msra.mxu0 0
    %2369 = vmatprep.subr.bf16.mxu0 0
    %2370 = vmatpush1.bf16.msra.mxu0 0
    %2371 = vmatprep.subr.bf16.mxu0 0
    %2372 = vmatpush1.bf16.msra.mxu0 %v2352
    %2373 = vmatprep.subr.bf16.mxu0 0
    %2374 = vmatpush1.bf16.msra.mxu0 %v2351
    %2375 = vmatprep.subr.bf16.mxu0 0
    %2376 = vmatpush2.bf16.msra.mxu0 0
    %2377 = vmatprep.subr.bf16.mxu0 0
    %2378 = vmatpush2.bf16.msra.mxu0 0
    %2379 = vmatprep.subr.bf16.mxu0 0
    %2380 = vmatpush2.bf16.msra.mxu0 0
    %2381 = vmatprep.subr.bf16.mxu0 0
    %2382 = vmatpush2.bf16.msra.mxu0 0
    %2383 = vmatprep.subr.bf16.mxu0 0
    %2384 = vmatpush2.bf16.msra.mxu0 0
    %2385 = vmatprep.subr.bf16.mxu0 0
    %2386 = vmatpush2.bf16.msra.mxu0 0
    %2387 = vmatprep.subr.bf16.mxu0 0
    %2388 = vmatpush2.bf16.msra.mxu0 0
    %2389 = vmatprep.subr.bf16.mxu0 0
    %2390 = vmatpush2.bf16.msra.mxu0 0
    %2391 = vmatprep.mubr.bf16.mxu0 0
    %2392 = vmatmul.mubr.bf16.gmra.mxu0 %v2354
    %v2393 = vpop.f32.mrf.mxu0
    %v2394 = vadd.f32 0.0, %v2393
    %v2395 = vpop.f32.mrf.mxu0
    %v2396 = vpop.f32.mrf.mxu0
    %v2397 = vadd.f32 0.0, %v2396
    %v2398 = vpop.f32.mrf.mxu0
    %2399 = vmatprep.mubr.bf16.mxu0 0
    %2400 = vmatmul.mubr.bf16.gmra.mxu0 %v2357
    %v2401 = vpop.f32.mrf.mxu0
    %v2402 = vadd.f32 0.0, %v2401
    %v2403 = vpop.f32.mrf.mxu0
    %v2404 = vpop.f32.mrf.mxu0
    %v2405 = vpop.f32.mrf.mxu0
    %2406 = vdwg.mxu0
    %v2408 = vsel %vm498, %v2292, 0
    %v2411 = vsel %vm498, %v2293, 0
    %2413 = vmatprep.subr.bf16.mxu0 0
    %2414 = vmatpush1.bf16.msra.mxu0 0
    %2415 = vmatprep.subr.bf16.mxu0 0
    %2416 = vmatpush1.bf16.msra.mxu0 0
    %2417 = vmatprep.subr.bf16.mxu0 0
    %2418 = vmatpush1.bf16.msra.mxu0 0
    %2419 = vmatprep.subr.bf16.mxu0 0
    %2420 = vmatpush1.bf16.msra.mxu0 0
    %2421 = vmatprep.subr.bf16.mxu0 0
    %2422 = vmatpush1.bf16.msra.mxu0 0
    %2423 = vmatprep.subr.bf16.mxu0 0
    %2424 = vmatpush1.bf16.msra.mxu0 0
    %2425 = vmatprep.subr.bf16.mxu0 0
    %2426 = vmatpush1.bf16.msra.mxu0 %v2295
    %2427 = vmatprep.subr.bf16.mxu0 0
    %2428 = vmatpush1.bf16.msra.mxu0 %v2294
    %2429 = vmatprep.subr.bf16.mxu0 0
    %2430 = vmatpush2.bf16.msra.mxu0 0
    %2431 = vmatprep.subr.bf16.mxu0 0
    %2432 = vmatpush2.bf16.msra.mxu0 0
    %2433 = vmatprep.subr.bf16.mxu0 0
    %2434 = vmatpush2.bf16.msra.mxu0 0
    %2435 = vmatprep.subr.bf16.mxu0 0
    %2436 = vmatpush2.bf16.msra.mxu0 0
    %2437 = vmatprep.subr.bf16.mxu0 0
    %2438 = vmatpush2.bf16.msra.mxu0 0
    %2439 = vmatprep.subr.bf16.mxu0 0
    %2440 = vmatpush2.bf16.msra.mxu0 0
    %2441 = vmatprep.subr.bf16.mxu0 0
    %2442 = vmatpush2.bf16.msra.mxu0 0
    %2443 = vmatprep.subr.bf16.mxu0 0
    %2444 = vmatpush2.bf16.msra.mxu0 0
    %2445 = vmatprep.mubr.bf16.mxu0 0
    %2446 = vmatmul.mubr.bf16.gmra.mxu0 %v2408
    %v2447 = vpop.f32.mrf.mxu0
    %v2448 = vadd.f32 %v2394, %v2447
    %v2449 = vpop.f32.mrf.mxu0
    %v2450 = vpop.f32.mrf.mxu0
    %v2451 = vadd.f32 %v2397, %v2450
    %v2452 = vpop.f32.mrf.mxu0
    %2453 = vmatprep.mubr.bf16.mxu0 0
    %2454 = vmatmul.mubr.bf16.gmra.mxu0 %v2411
    %v2455 = vpop.f32.mrf.mxu0
    %v2456 = vadd.f32 %v2402, %v2455
    %v2457 = vpop.f32.mrf.mxu0
    %v2458 = vpop.f32.mrf.mxu0
    %v2459 = vpop.f32.mrf.mxu0
    %2460 = vdwg.mxu0
    %2461 = vmatprep.subr.bf16.mxu0 0
    %2462 = vmatpush1.bf16.msra.mxu0 %v2239
    %2463 = vmatprep.subr.bf16.mxu0 0
    %2464 = vmatpush1.bf16.msra.mxu0 %v2238
    %2465 = vmatprep.subr.bf16.mxu0 0
    %2466 = vmatpush1.bf16.msra.mxu0 %v2237
    %2467 = vmatprep.subr.bf16.mxu0 0
    %2468 = vmatpush1.bf16.msra.mxu0 %v2236
    %2469 = vmatprep.subr.bf16.mxu0 0
    %2470 = vmatpush1.bf16.msra.mxu0 %v2235
    %2471 = vmatprep.subr.bf16.mxu0 0
    %2472 = vmatpush1.bf16.msra.mxu0 %v2234
    %2473 = vmatprep.subr.bf16.mxu0 0
    %2474 = vmatpush1.bf16.msra.mxu0 %v2233
    %2475 = vmatprep.subr.bf16.mxu0 0
    %2476 = vmatpush1.bf16.msra.mxu0 %v2232
    %2477 = vmatprep.subr.bf16.mxu0 0
    %2478 = vmatpush2.bf16.msra.mxu0 0
    %2479 = vmatprep.subr.bf16.mxu0 0
    %2480 = vmatpush2.bf16.msra.mxu0 0
    %2481 = vmatprep.subr.bf16.mxu0 0
    %2482 = vmatpush2.bf16.msra.mxu0 0
    %2483 = vmatprep.subr.bf16.mxu0 0
    %2484 = vmatpush2.bf16.msra.mxu0 0
    %2485 = vmatprep.subr.bf16.mxu0 0
    %2486 = vmatpush2.bf16.msra.mxu0 0
    %2487 = vmatprep.subr.bf16.mxu0 0
    %2488 = vmatpush2.bf16.msra.mxu0 0
    %2489 = vmatprep.subr.bf16.mxu0 0
    %2490 = vmatpush2.bf16.msra.mxu0 0
    %2491 = vmatprep.subr.bf16.mxu0 0
    %2492 = vmatpush2.bf16.msra.mxu0 0
    %2493 = vmatprep.mubr.bf16.mxu0 0
    %2494 = vmatmul.mubr.bf16.gmra.mxu0 %v611
    %v2495 = vpop.f32.mrf.mxu0
    %v2496 = vadd.f32 0.0, %v2495
    %v2497 = vpop.f32.mrf.mxu0
    %v2498 = vpop.f32.mrf.mxu0
    %v2499 = vadd.f32 0.0, %v2498
    %v2500 = vpop.f32.mrf.mxu0
    %2501 = vmatprep.mubr.bf16.mxu0 0
    %2502 = vmatmul.mubr.bf16.gmra.mxu0 %v612
    %v2503 = vpop.f32.mrf.mxu0
    %v2504 = vadd.f32 0.0, %v2503
    %v2505 = vpop.f32.mrf.mxu0
    %v2506 = vpop.f32.mrf.mxu0
    %v2507 = vpop.f32.mrf.mxu0
    %2508 = vdwg.mxu0
    %s2509 = scalar_lea.vmem %s27, 64
    %v2510 = vld [vmem:[%s2509] sm:$0xff]
    %v2511 = vld [vmem:[%s2509 + $0x8] sm:$0xff]
    %v2512 = vld [vmem:[%s2509 + $0x10] sm:$0xff]
    %v2513 = vld [vmem:[%s2509 + $0x18] sm:$0xff]
    %v2514 = vpack.c.bf16 %v2499, %v2496
    %v2515 = vpack.c.bf16 %v2504, %v2504
    %v2516 = vpack.c.bf16 %v2511, %v2510
    %v2517 = vpack.c.bf16 %v2513, %v2512
    %v2519 = vsel %vm498, %v2514, 0
    %v2522 = vsel %vm498, %v2515, 0
    %2524 = vmatprep.subr.bf16.mxu0 0
    %2525 = vmatpush1.bf16.msra.mxu0 0
    %2526 = vmatprep.subr.bf16.mxu0 0
    %2527 = vmatpush1.bf16.msra.mxu0 0
    %2528 = vmatprep.subr.bf16.mxu0 0
    %2529 = vmatpush1.bf16.msra.mxu0 0
    %2530 = vmatprep.subr.bf16.mxu0 0
    %2531 = vmatpush1.bf16.msra.mxu0 0
    %2532 = vmatprep.subr.bf16.mxu0 0
    %2533 = vmatpush1.bf16.msra.mxu0 0
    %2534 = vmatprep.subr.bf16.mxu0 0
    %2535 = vmatpush1.bf16.msra.mxu0 0
    %2536 = vmatprep.subr.bf16.mxu0 0
    %2537 = vmatpush1.bf16.msra.mxu0 %v2517
    %2538 = vmatprep.subr.bf16.mxu0 0
    %2539 = vmatpush1.bf16.msra.mxu0 %v2516
    %2540 = vmatprep.subr.bf16.mxu0 0
    %2541 = vmatpush2.bf16.msra.mxu0 0
    %2542 = vmatprep.subr.bf16.mxu0 0
    %2543 = vmatpush2.bf16.msra.mxu0 0
    %2544 = vmatprep.subr.bf16.mxu0 0
    %2545 = vmatpush2.bf16.msra.mxu0 0
    %2546 = vmatprep.subr.bf16.mxu0 0
    %2547 = vmatpush2.bf16.msra.mxu0 0
    %2548 = vmatprep.subr.bf16.mxu0 0
    %2549 = vmatpush2.bf16.msra.mxu0 0
    %2550 = vmatprep.subr.bf16.mxu0 0
    %2551 = vmatpush2.bf16.msra.mxu0 0
    %2552 = vmatprep.subr.bf16.mxu0 0
    %2553 = vmatpush2.bf16.msra.mxu0 0
    %2554 = vmatprep.subr.bf16.mxu0 0
    %2555 = vmatpush2.bf16.msra.mxu0 0
    %2556 = vmatprep.mubr.bf16.mxu0 0
    %2557 = vmatmul.mubr.bf16.gmra.mxu0 %v2519
    %v2558 = vpop.f32.mrf.mxu0
    %v2559 = vadd.f32 0.0, %v2558
    %v2560 = vpop.f32.mrf.mxu0
    %v2561 = vpop.f32.mrf.mxu0
    %v2562 = vadd.f32 0.0, %v2561
    %v2563 = vpop.f32.mrf.mxu0
    %2564 = vmatprep.mubr.bf16.mxu0 0
    %2565 = vmatmul.mubr.bf16.gmra.mxu0 %v2522
    %v2566 = vpop.f32.mrf.mxu0
    %v2567 = vadd.f32 0.0, %v2566
    %v2568 = vpop.f32.mrf.mxu0
    %v2569 = vpop.f32.mrf.mxu0
    %v2570 = vpop.f32.mrf.mxu0
    %2571 = vdwg.mxu0
    %v2572 = vadd.f32 %v2448, %v2559
    %v2573 = vadd.f32 %v2451, %v2562
    %v2574 = vadd.f32 %v2456, %v2567
    %2575 = vmatprep.subr.bf16.mxu0 0
    %2576 = vmatpush1.bf16.msra.mxu0 %v2239
    %2577 = vmatprep.subr.bf16.mxu0 0
    %2578 = vmatpush1.bf16.msra.mxu0 %v2238
    %2579 = vmatprep.subr.bf16.mxu0 0
    %2580 = vmatpush1.bf16.msra.mxu0 %v2237
    %2581 = vmatprep.subr.bf16.mxu0 0
    %2582 = vmatpush1.bf16.msra.mxu0 %v2236
    %2583 = vmatprep.subr.bf16.mxu0 0
    %2584 = vmatpush1.bf16.msra.mxu0 %v2235
    %2585 = vmatprep.subr.bf16.mxu0 0
    %2586 = vmatpush1.bf16.msra.mxu0 %v2234
    %2587 = vmatprep.subr.bf16.mxu0 0
    %2588 = vmatpush1.bf16.msra.mxu0 %v2233
    %2589 = vmatprep.subr.bf16.mxu0 0
    %2590 = vmatpush1.bf16.msra.mxu0 %v2232
    %2591 = vmatprep.subr.bf16.mxu0 0
    %2592 = vmatpush2.bf16.msra.mxu0 0
    %2593 = vmatprep.subr.bf16.mxu0 0
    %2594 = vmatpush2.bf16.msra.mxu0 0
    %2595 = vmatprep.subr.bf16.mxu0 0
    %2596 = vmatpush2.bf16.msra.mxu0 0
    %2597 = vmatprep.subr.bf16.mxu0 0
    %2598 = vmatpush2.bf16.msra.mxu0 0
    %2599 = vmatprep.subr.bf16.mxu0 0
    %2600 = vmatpush2.bf16.msra.mxu0 0
    %2601 = vmatprep.subr.bf16.mxu0 0
    %2602 = vmatpush2.bf16.msra.mxu0 0
    %2603 = vmatprep.subr.bf16.mxu0 0
    %2604 = vmatpush2.bf16.msra.mxu0 0
    %2605 = vmatprep.subr.bf16.mxu0 0
    %2606 = vmatpush2.bf16.msra.mxu0 0
    %2607 = vmatprep.mubr.bf16.mxu0 0
    %2608 = vmatmul.mubr.bf16.gmra.mxu0 %v731
    %v2609 = vpop.f32.mrf.mxu0
    %v2610 = vadd.f32 0.0, %v2609
    %v2611 = vpop.f32.mrf.mxu0
    %v2612 = vpop.f32.mrf.mxu0
    %v2613 = vadd.f32 0.0, %v2612
    %v2614 = vpop.f32.mrf.mxu0
    %2615 = vmatprep.mubr.bf16.mxu0 0
    %2616 = vmatmul.mubr.bf16.gmra.mxu0 %v732
    %v2617 = vpop.f32.mrf.mxu0
    %v2618 = vadd.f32 0.0, %v2617
    %v2619 = vpop.f32.mrf.mxu0
    %v2620 = vpop.f32.mrf.mxu0
    %v2621 = vpop.f32.mrf.mxu0
    %2622 = vdwg.mxu0
    %s2623 = scalar_lea.vmem %s27, 96
    %v2624 = vld [vmem:[%s2623] sm:$0xff]
    %v2625 = vld [vmem:[%s2623 + $0x8] sm:$0xff]
    %v2626 = vld [vmem:[%s2623 + $0x10] sm:$0xff]
    %v2627 = vld [vmem:[%s2623 + $0x18] sm:$0xff]
    %v2628 = vpack.c.bf16 %v2613, %v2610
    %v2629 = vpack.c.bf16 %v2618, %v2618
    %v2630 = vpack.c.bf16 %v2625, %v2624
    %v2631 = vpack.c.bf16 %v2627, %v2626
    %v2633 = vsel %vm498, %v2628, 0
    %v2636 = vsel %vm498, %v2629, 0
    %2638 = vmatprep.subr.bf16.mxu0 0
    %2639 = vmatpush1.bf16.msra.mxu0 0
    %2640 = vmatprep.subr.bf16.mxu0 0
    %2641 = vmatpush1.bf16.msra.mxu0 0
    %2642 = vmatprep.subr.bf16.mxu0 0
    %2643 = vmatpush1.bf16.msra.mxu0 0
    %2644 = vmatprep.subr.bf16.mxu0 0
    %2645 = vmatpush1.bf16.msra.mxu0 0
    %2646 = vmatprep.subr.bf16.mxu0 0
    %2647 = vmatpush1.bf16.msra.mxu0 0
    %2648 = vmatprep.subr.bf16.mxu0 0
    %2649 = vmatpush1.bf16.msra.mxu0 0
    %2650 = vmatprep.subr.bf16.mxu0 0
    %2651 = vmatpush1.bf16.msra.mxu0 %v2631
    %2652 = vmatprep.subr.bf16.mxu0 0
    %2653 = vmatpush1.bf16.msra.mxu0 %v2630
    %2654 = vmatprep.subr.bf16.mxu0 0
    %2655 = vmatpush2.bf16.msra.mxu0 0
    %2656 = vmatprep.subr.bf16.mxu0 0
    %2657 = vmatpush2.bf16.msra.mxu0 0
    %2658 = vmatprep.subr.bf16.mxu0 0
    %2659 = vmatpush2.bf16.msra.mxu0 0
    %2660 = vmatprep.subr.bf16.mxu0 0
    %2661 = vmatpush2.bf16.msra.mxu0 0
    %2662 = vmatprep.subr.bf16.mxu0 0
    %2663 = vmatpush2.bf16.msra.mxu0 0
    %2664 = vmatprep.subr.bf16.mxu0 0
    %2665 = vmatpush2.bf16.msra.mxu0 0
    %2666 = vmatprep.subr.bf16.mxu0 0
    %2667 = vmatpush2.bf16.msra.mxu0 0
    %2668 = vmatprep.subr.bf16.mxu0 0
    %2669 = vmatpush2.bf16.msra.mxu0 0
    %2670 = vmatprep.mubr.bf16.mxu0 0
    %2671 = vmatmul.mubr.bf16.gmra.mxu0 %v2633
    %v2672 = vpop.f32.mrf.mxu0
    %v2673 = vadd.f32 0.0, %v2672
    %v2674 = vpop.f32.mrf.mxu0
    %v2675 = vpop.f32.mrf.mxu0
    %v2676 = vadd.f32 0.0, %v2675
    %v2677 = vpop.f32.mrf.mxu0
    %2678 = vmatprep.mubr.bf16.mxu0 0
    %2679 = vmatmul.mubr.bf16.gmra.mxu0 %v2636
    %v2680 = vpop.f32.mrf.mxu0
    %v2681 = vadd.f32 0.0, %v2680
    %v2682 = vpop.f32.mrf.mxu0
    %v2683 = vpop.f32.mrf.mxu0
    %v2684 = vpop.f32.mrf.mxu0
    %2685 = vdwg.mxu0
    %v2686 = vadd.f32 %v2572, %v2673
    %v2687 = vadd.f32 %v2573, %v2676
    %v2688 = vadd.f32 %v2574, %v2681
    %2689 = vmatprep.subr.bf16.mxu0 0
    %2690 = vmatpush1.bf16.msra.mxu0 %v2239
    %2691 = vmatprep.subr.bf16.mxu0 0
    %2692 = vmatpush1.bf16.msra.mxu0 %v2238
    %2693 = vmatprep.subr.bf16.mxu0 0
    %2694 = vmatpush1.bf16.msra.mxu0 %v2237
    %2695 = vmatprep.subr.bf16.mxu0 0
    %2696 = vmatpush1.bf16.msra.mxu0 %v2236
    %2697 = vmatprep.subr.bf16.mxu0 0
    %2698 = vmatpush1.bf16.msra.mxu0 %v2235
    %2699 = vmatprep.subr.bf16.mxu0 0
    %2700 = vmatpush1.bf16.msra.mxu0 %v2234
    %2701 = vmatprep.subr.bf16.mxu0 0
    %2702 = vmatpush1.bf16.msra.mxu0 %v2233
    %2703 = vmatprep.subr.bf16.mxu0 0
    %2704 = vmatpush1.bf16.msra.mxu0 %v2232
    %2705 = vmatprep.subr.bf16.mxu0 0
    %2706 = vmatpush2.bf16.msra.mxu0 0
    %2707 = vmatprep.subr.bf16.mxu0 0
    %2708 = vmatpush2.bf16.msra.mxu0 0
    %2709 = vmatprep.subr.bf16.mxu0 0
    %2710 = vmatpush2.bf16.msra.mxu0 0
    %2711 = vmatprep.subr.bf16.mxu0 0
    %2712 = vmatpush2.bf16.msra.mxu0 0
    %2713 = vmatprep.subr.bf16.mxu0 0
    %2714 = vmatpush2.bf16.msra.mxu0 0
    %2715 = vmatprep.subr.bf16.mxu0 0
    %2716 = vmatpush2.bf16.msra.mxu0 0
    %2717 = vmatprep.subr.bf16.mxu0 0
    %2718 = vmatpush2.bf16.msra.mxu0 0
    %2719 = vmatprep.subr.bf16.mxu0 0
    %2720 = vmatpush2.bf16.msra.mxu0 0
    %2721 = vmatprep.mubr.bf16.mxu0 0
    %2722 = vmatmul.mubr.bf16.gmra.mxu0 %v851
    %v2723 = vpop.f32.mrf.mxu0
    %v2724 = vadd.f32 0.0, %v2723
    %v2725 = vpop.f32.mrf.mxu0
    %v2726 = vpop.f32.mrf.mxu0
    %v2727 = vadd.f32 0.0, %v2726
    %v2728 = vpop.f32.mrf.mxu0
    %2729 = vmatprep.mubr.bf16.mxu0 0
    %2730 = vmatmul.mubr.bf16.gmra.mxu0 %v852
    %v2731 = vpop.f32.mrf.mxu0
    %v2732 = vadd.f32 0.0, %v2731
    %v2733 = vpop.f32.mrf.mxu0
    %v2734 = vpop.f32.mrf.mxu0
    %v2735 = vpop.f32.mrf.mxu0
    %2736 = vdwg.mxu0
    %s2737 = scalar_lea.vmem %s27, 128
    %v2738 = vld [vmem:[%s2737] sm:$0xff]
    %v2739 = vld [vmem:[%s2737 + $0x8] sm:$0xff]
    %v2740 = vld [vmem:[%s2737 + $0x10] sm:$0xff]
    %v2741 = vld [vmem:[%s2737 + $0x18] sm:$0xff]
    %v2742 = vpack.c.bf16 %v2727, %v2724
    %v2743 = vpack.c.bf16 %v2732, %v2732
    %v2744 = vpack.c.bf16 %v2739, %v2738
    %v2745 = vpack.c.bf16 %v2741, %v2740
    %v2747 = vsel %vm498, %v2742, 0
    %v2750 = vsel %vm498, %v2743, 0
    %2752 = vmatprep.subr.bf16.mxu0 0
    %2753 = vmatpush1.bf16.msra.mxu0 0
    %2754 = vmatprep.subr.bf16.mxu0 0
    %2755 = vmatpush1.bf16.msra.mxu0 0
    %2756 = vmatprep.subr.bf16.mxu0 0
    %2757 = vmatpush1.bf16.msra.mxu0 0
    %2758 = vmatprep.subr.bf16.mxu0 0
    %2759 = vmatpush1.bf16.msra.mxu0 0
    %2760 = vmatprep.subr.bf16.mxu0 0
    %2761 = vmatpush1.bf16.msra.mxu0 0
    %2762 = vmatprep.subr.bf16.mxu0 0
    %2763 = vmatpush1.bf16.msra.mxu0 0
    %2764 = vmatprep.subr.bf16.mxu0 0
    %2765 = vmatpush1.bf16.msra.mxu0 %v2745
    %2766 = vmatprep.subr.bf16.mxu0 0
    %2767 = vmatpush1.bf16.msra.mxu0 %v2744
    %2768 = vmatprep.subr.bf16.mxu0 0
    %2769 = vmatpush2.bf16.msra.mxu0 0
    %2770 = vmatprep.subr.bf16.mxu0 0
    %2771 = vmatpush2.bf16.msra.mxu0 0
    %2772 = vmatprep.subr.bf16.mxu0 0
    %2773 = vmatpush2.bf16.msra.mxu0 0
    %2774 = vmatprep.subr.bf16.mxu0 0
    %2775 = vmatpush2.bf16.msra.mxu0 0
    %2776 = vmatprep.subr.bf16.mxu0 0
    %2777 = vmatpush2.bf16.msra.mxu0 0
    %2778 = vmatprep.subr.bf16.mxu0 0
    %2779 = vmatpush2.bf16.msra.mxu0 0
    %2780 = vmatprep.subr.bf16.mxu0 0
    %2781 = vmatpush2.bf16.msra.mxu0 0
    %2782 = vmatprep.subr.bf16.mxu0 0
    %2783 = vmatpush2.bf16.msra.mxu0 0
    %2784 = vmatprep.mubr.bf16.mxu0 0
    %2785 = vmatmul.mubr.bf16.gmra.mxu0 %v2747
    %v2786 = vpop.f32.mrf.mxu0
    %v2787 = vadd.f32 0.0, %v2786
    %v2788 = vpop.f32.mrf.mxu0
    %v2789 = vpop.f32.mrf.mxu0
    %v2790 = vadd.f32 0.0, %v2789
    %v2791 = vpop.f32.mrf.mxu0
    %2792 = vmatprep.mubr.bf16.mxu0 0
    %2793 = vmatmul.mubr.bf16.gmra.mxu0 %v2750
    %v2794 = vpop.f32.mrf.mxu0
    %v2795 = vadd.f32 0.0, %v2794
    %v2796 = vpop.f32.mrf.mxu0
    %v2797 = vpop.f32.mrf.mxu0
    %v2798 = vpop.f32.mrf.mxu0
    %2799 = vdwg.mxu0
    %v2800 = vadd.f32 %v2686, %v2787
    %v2801 = vadd.f32 %v2687, %v2790
    %v2802 = vadd.f32 %v2688, %v2795
    %2803 = vmatprep.subr.bf16.mxu0 0
    %2804 = vmatpush1.bf16.msra.mxu0 %v2239
    %2805 = vmatprep.subr.bf16.mxu0 0
    %2806 = vmatpush1.bf16.msra.mxu0 %v2238
    %2807 = vmatprep.subr.bf16.mxu0 0
    %2808 = vmatpush1.bf16.msra.mxu0 %v2237
    %2809 = vmatprep.subr.bf16.mxu0 0
    %2810 = vmatpush1.bf16.msra.mxu0 %v2236
    %2811 = vmatprep.subr.bf16.mxu0 0
    %2812 = vmatpush1.bf16.msra.mxu0 %v2235
    %2813 = vmatprep.subr.bf16.mxu0 0
    %2814 = vmatpush1.bf16.msra.mxu0 %v2234
    %2815 = vmatprep.subr.bf16.mxu0 0
    %2816 = vmatpush1.bf16.msra.mxu0 %v2233
    %2817 = vmatprep.subr.bf16.mxu0 0
    %2818 = vmatpush1.bf16.msra.mxu0 %v2232
    %2819 = vmatprep.subr.bf16.mxu0 0
    %2820 = vmatpush2.bf16.msra.mxu0 0
    %2821 = vmatprep.subr.bf16.mxu0 0
    %2822 = vmatpush2.bf16.msra.mxu0 0
    %2823 = vmatprep.subr.bf16.mxu0 0
    %2824 = vmatpush2.bf16.msra.mxu0 0
    %2825 = vmatprep.subr.bf16.mxu0 0
    %2826 = vmatpush2.bf16.msra.mxu0 0
    %2827 = vmatprep.subr.bf16.mxu0 0
    %2828 = vmatpush2.bf16.msra.mxu0 0
    %2829 = vmatprep.subr.bf16.mxu0 0
    %2830 = vmatpush2.bf16.msra.mxu0 0
    %2831 = vmatprep.subr.bf16.mxu0 0
    %2832 = vmatpush2.bf16.msra.mxu0 0
    %2833 = vmatprep.subr.bf16.mxu0 0
    %2834 = vmatpush2.bf16.msra.mxu0 0
    %2835 = vmatprep.mubr.bf16.mxu0 0
    %2836 = vmatmul.mubr.bf16.gmra.mxu0 %v971
    %v2837 = vpop.f32.mrf.mxu0
    %v2838 = vadd.f32 0.0, %v2837
    %v2839 = vpop.f32.mrf.mxu0
    %v2840 = vpop.f32.mrf.mxu0
    %v2841 = vadd.f32 0.0, %v2840
    %v2842 = vpop.f32.mrf.mxu0
    %2843 = vmatprep.mubr.bf16.mxu0 0
    %2844 = vmatmul.mubr.bf16.gmra.mxu0 %v972
    %v2845 = vpop.f32.mrf.mxu0
    %v2846 = vadd.f32 0.0, %v2845
    %v2847 = vpop.f32.mrf.mxu0
    %v2848 = vpop.f32.mrf.mxu0
    %v2849 = vpop.f32.mrf.mxu0
    %2850 = vdwg.mxu0
    %s2851 = scalar_lea.vmem %s27, 160
    %v2852 = vld [vmem:[%s2851] sm:$0xff]
    %v2853 = vld [vmem:[%s2851 + $0x8] sm:$0xff]
    %v2854 = vld [vmem:[%s2851 + $0x10] sm:$0xff]
    %v2855 = vld [vmem:[%s2851 + $0x18] sm:$0xff]
    %v2856 = vpack.c.bf16 %v2841, %v2838
    %v2857 = vpack.c.bf16 %v2846, %v2846
    %v2858 = vpack.c.bf16 %v2853, %v2852
    %v2859 = vpack.c.bf16 %v2855, %v2854
    %v2861 = vsel %vm498, %v2856, 0
    %v2864 = vsel %vm498, %v2857, 0
    %2866 = vmatprep.subr.bf16.mxu0 0
    %2867 = vmatpush1.bf16.msra.mxu0 0
    %2868 = vmatprep.subr.bf16.mxu0 0
    %2869 = vmatpush1.bf16.msra.mxu0 0
    %2870 = vmatprep.subr.bf16.mxu0 0
    %2871 = vmatpush1.bf16.msra.mxu0 0
    %2872 = vmatprep.subr.bf16.mxu0 0
    %2873 = vmatpush1.bf16.msra.mxu0 0
    %2874 = vmatprep.subr.bf16.mxu0 0
    %2875 = vmatpush1.bf16.msra.mxu0 0
    %2876 = vmatprep.subr.bf16.mxu0 0
    %2877 = vmatpush1.bf16.msra.mxu0 0
    %2878 = vmatprep.subr.bf16.mxu0 0
    %2879 = vmatpush1.bf16.msra.mxu0 %v2859
    %2880 = vmatprep.subr.bf16.mxu0 0
    %2881 = vmatpush1.bf16.msra.mxu0 %v2858
    %2882 = vmatprep.subr.bf16.mxu0 0
    %2883 = vmatpush2.bf16.msra.mxu0 0
    %2884 = vmatprep.subr.bf16.mxu0 0
    %2885 = vmatpush2.bf16.msra.mxu0 0
    %2886 = vmatprep.subr.bf16.mxu0 0
    %2887 = vmatpush2.bf16.msra.mxu0 0
    %2888 = vmatprep.subr.bf16.mxu0 0
    %2889 = vmatpush2.bf16.msra.mxu0 0
    %2890 = vmatprep.subr.bf16.mxu0 0
    %2891 = vmatpush2.bf16.msra.mxu0 0
    %2892 = vmatprep.subr.bf16.mxu0 0
    %2893 = vmatpush2.bf16.msra.mxu0 0
    %2894 = vmatprep.subr.bf16.mxu0 0
    %2895 = vmatpush2.bf16.msra.mxu0 0
    %2896 = vmatprep.subr.bf16.mxu0 0
    %2897 = vmatpush2.bf16.msra.mxu0 0
    %2898 = vmatprep.mubr.bf16.mxu0 0
    %2899 = vmatmul.mubr.bf16.gmra.mxu0 %v2861
    %v2900 = vpop.f32.mrf.mxu0
    %v2901 = vadd.f32 0.0, %v2900
    %v2902 = vpop.f32.mrf.mxu0
    %v2903 = vpop.f32.mrf.mxu0
    %v2904 = vadd.f32 0.0, %v2903
    %v2905 = vpop.f32.mrf.mxu0
    %2906 = vmatprep.mubr.bf16.mxu0 0
    %2907 = vmatmul.mubr.bf16.gmra.mxu0 %v2864
    %v2908 = vpop.f32.mrf.mxu0
    %v2909 = vadd.f32 0.0, %v2908
    %v2910 = vpop.f32.mrf.mxu0
    %v2911 = vpop.f32.mrf.mxu0
    %v2912 = vpop.f32.mrf.mxu0
    %2913 = vdwg.mxu0
    %v2914 = vadd.f32 %v2800, %v2901
    %v2915 = vadd.f32 %v2801, %v2904
    %v2916 = vadd.f32 %v2802, %v2909
    %2917 = vmatprep.subr.bf16.mxu0 0
    %2918 = vmatpush1.bf16.msra.mxu0 %v2239
    %2919 = vmatprep.subr.bf16.mxu0 0
    %2920 = vmatpush1.bf16.msra.mxu0 %v2238
    %2921 = vmatprep.subr.bf16.mxu0 0
    %2922 = vmatpush1.bf16.msra.mxu0 %v2237
    %2923 = vmatprep.subr.bf16.mxu0 0
    %2924 = vmatpush1.bf16.msra.mxu0 %v2236
    %2925 = vmatprep.subr.bf16.mxu0 0
    %2926 = vmatpush1.bf16.msra.mxu0 %v2235
    %2927 = vmatprep.subr.bf16.mxu0 0
    %2928 = vmatpush1.bf16.msra.mxu0 %v2234
    %2929 = vmatprep.subr.bf16.mxu0 0
    %2930 = vmatpush1.bf16.msra.mxu0 %v2233
    %2931 = vmatprep.subr.bf16.mxu0 0
    %2932 = vmatpush1.bf16.msra.mxu0 %v2232
    %2933 = vmatprep.subr.bf16.mxu0 0
    %2934 = vmatpush2.bf16.msra.mxu0 0
    %2935 = vmatprep.subr.bf16.mxu0 0
    %2936 = vmatpush2.bf16.msra.mxu0 0
    %2937 = vmatprep.subr.bf16.mxu0 0
    %2938 = vmatpush2.bf16.msra.mxu0 0
    %2939 = vmatprep.subr.bf16.mxu0 0
    %2940 = vmatpush2.bf16.msra.mxu0 0
    %2941 = vmatprep.subr.bf16.mxu0 0
    %2942 = vmatpush2.bf16.msra.mxu0 0
    %2943 = vmatprep.subr.bf16.mxu0 0
    %2944 = vmatpush2.bf16.msra.mxu0 0
    %2945 = vmatprep.subr.bf16.mxu0 0
    %2946 = vmatpush2.bf16.msra.mxu0 0
    %2947 = vmatprep.subr.bf16.mxu0 0
    %2948 = vmatpush2.bf16.msra.mxu0 0
    %2949 = vmatprep.mubr.bf16.mxu0 0
    %2950 = vmatmul.mubr.bf16.gmra.mxu0 %v1091
    %v2951 = vpop.f32.mrf.mxu0
    %v2952 = vadd.f32 0.0, %v2951
    %v2953 = vpop.f32.mrf.mxu0
    %v2954 = vpop.f32.mrf.mxu0
    %v2955 = vadd.f32 0.0, %v2954
    %v2956 = vpop.f32.mrf.mxu0
    %2957 = vmatprep.mubr.bf16.mxu0 0
    %2958 = vmatmul.mubr.bf16.gmra.mxu0 %v1092
    %v2959 = vpop.f32.mrf.mxu0
    %v2960 = vadd.f32 0.0, %v2959
    %v2961 = vpop.f32.mrf.mxu0
    %v2962 = vpop.f32.mrf.mxu0
    %v2963 = vpop.f32.mrf.mxu0
    %2964 = vdwg.mxu0
    %s2965 = scalar_lea.vmem %s27, 192
    %v2966 = vld [vmem:[%s2965] sm:$0xff]
    %v2967 = vld [vmem:[%s2965 + $0x8] sm:$0xff]
    %v2968 = vld [vmem:[%s2965 + $0x10] sm:$0xff]
    %v2969 = vld [vmem:[%s2965 + $0x18] sm:$0xff]
    %v2970 = vpack.c.bf16 %v2955, %v2952
    %v2971 = vpack.c.bf16 %v2960, %v2960
    %v2972 = vpack.c.bf16 %v2967, %v2966
    %v2973 = vpack.c.bf16 %v2969, %v2968
    %v2975 = vsel %vm498, %v2970, 0
    %v2978 = vsel %vm498, %v2971, 0
    %2980 = vmatprep.subr.bf16.mxu0 0
    %2981 = vmatpush1.bf16.msra.mxu0 0
    %2982 = vmatprep.subr.bf16.mxu0 0
    %2983 = vmatpush1.bf16.msra.mxu0 0
    %2984 = vmatprep.subr.bf16.mxu0 0
    %2985 = vmatpush1.bf16.msra.mxu0 0
    %2986 = vmatprep.subr.bf16.mxu0 0
    %2987 = vmatpush1.bf16.msra.mxu0 0
    %2988 = vmatprep.subr.bf16.mxu0 0
    %2989 = vmatpush1.bf16.msra.mxu0 0
    %2990 = vmatprep.subr.bf16.mxu0 0
    %2991 = vmatpush1.bf16.msra.mxu0 0
    %2992 = vmatprep.subr.bf16.mxu0 0
    %2993 = vmatpush1.bf16.msra.mxu0 %v2973
    %2994 = vmatprep.subr.bf16.mxu0 0
    %2995 = vmatpush1.bf16.msra.mxu0 %v2972
    %2996 = vmatprep.subr.bf16.mxu0 0
    %2997 = vmatpush2.bf16.msra.mxu0 0
    %2998 = vmatprep.subr.bf16.mxu0 0
    %2999 = vmatpush2.bf16.msra.mxu0 0
    %3000 = vmatprep.subr.bf16.mxu0 0
    %3001 = vmatpush2.bf16.msra.mxu0 0
    %3002 = vmatprep.subr.bf16.mxu0 0
    %3003 = vmatpush2.bf16.msra.mxu0 0
    %3004 = vmatprep.subr.bf16.mxu0 0
    %3005 = vmatpush2.bf16.msra.mxu0 0
    %3006 = vmatprep.subr.bf16.mxu0 0
    %3007 = vmatpush2.bf16.msra.mxu0 0
    %3008 = vmatprep.subr.bf16.mxu0 0
    %3009 = vmatpush2.bf16.msra.mxu0 0
    %3010 = vmatprep.subr.bf16.mxu0 0
    %3011 = vmatpush2.bf16.msra.mxu0 0
    %3012 = vmatprep.mubr.bf16.mxu0 0
    %3013 = vmatmul.mubr.bf16.gmra.mxu0 %v2975
    %v3014 = vpop.f32.mrf.mxu0
    %v3015 = vadd.f32 0.0, %v3014
    %v3016 = vpop.f32.mrf.mxu0
    %v3017 = vpop.f32.mrf.mxu0
    %v3018 = vadd.f32 0.0, %v3017
    %v3019 = vpop.f32.mrf.mxu0
    %3020 = vmatprep.mubr.bf16.mxu0 0
    %3021 = vmatmul.mubr.bf16.gmra.mxu0 %v2978
    %v3022 = vpop.f32.mrf.mxu0
    %v3023 = vadd.f32 0.0, %v3022
    %v3024 = vpop.f32.mrf.mxu0
    %v3025 = vpop.f32.mrf.mxu0
    %v3026 = vpop.f32.mrf.mxu0
    %3027 = vdwg.mxu0
    %v3028 = vadd.f32 %v2914, %v3015
    %v3029 = vadd.f32 %v2915, %v3018
    %v3030 = vadd.f32 %v2916, %v3023
    %3031 = vmatprep.subr.bf16.mxu0 0
    %3032 = vmatpush1.bf16.msra.mxu0 %v2239
    %3033 = vmatprep.subr.bf16.mxu0 0
    %3034 = vmatpush1.bf16.msra.mxu0 %v2238
    %3035 = vmatprep.subr.bf16.mxu0 0
    %3036 = vmatpush1.bf16.msra.mxu0 %v2237
    %3037 = vmatprep.subr.bf16.mxu0 0
    %3038 = vmatpush1.bf16.msra.mxu0 %v2236
    %3039 = vmatprep.subr.bf16.mxu0 0
    %3040 = vmatpush1.bf16.msra.mxu0 %v2235
    %3041 = vmatprep.subr.bf16.mxu0 0
    %3042 = vmatpush1.bf16.msra.mxu0 %v2234
    %3043 = vmatprep.subr.bf16.mxu0 0
    %3044 = vmatpush1.bf16.msra.mxu0 %v2233
    %3045 = vmatprep.subr.bf16.mxu0 0
    %3046 = vmatpush1.bf16.msra.mxu0 %v2232
    %3047 = vmatprep.subr.bf16.mxu0 0
    %3048 = vmatpush2.bf16.msra.mxu0 0
    %3049 = vmatprep.subr.bf16.mxu0 0
    %3050 = vmatpush2.bf16.msra.mxu0 0
    %3051 = vmatprep.subr.bf16.mxu0 0
    %3052 = vmatpush2.bf16.msra.mxu0 0
    %3053 = vmatprep.subr.bf16.mxu0 0
    %3054 = vmatpush2.bf16.msra.mxu0 0
    %3055 = vmatprep.subr.bf16.mxu0 0
    %3056 = vmatpush2.bf16.msra.mxu0 0
    %3057 = vmatprep.subr.bf16.mxu0 0
    %3058 = vmatpush2.bf16.msra.mxu0 0
    %3059 = vmatprep.subr.bf16.mxu0 0
    %3060 = vmatpush2.bf16.msra.mxu0 0
    %3061 = vmatprep.subr.bf16.mxu0 0
    %3062 = vmatpush2.bf16.msra.mxu0 0
    %3063 = vmatprep.mubr.bf16.mxu0 0
    %3064 = vmatmul.mubr.bf16.gmra.mxu0 %v1211
    %v3065 = vpop.f32.mrf.mxu0
    %v3066 = vadd.f32 0.0, %v3065
    %v3067 = vpop.f32.mrf.mxu0
    %v3068 = vpop.f32.mrf.mxu0
    %v3069 = vadd.f32 0.0, %v3068
    %v3070 = vpop.f32.mrf.mxu0
    %3071 = vmatprep.mubr.bf16.mxu0 0
    %3072 = vmatmul.mubr.bf16.gmra.mxu0 %v1212
    %v3073 = vpop.f32.mrf.mxu0
    %v3074 = vadd.f32 0.0, %v3073
    %v3075 = vpop.f32.mrf.mxu0
    %v3076 = vpop.f32.mrf.mxu0
    %v3077 = vpop.f32.mrf.mxu0
    %3078 = vdwg.mxu0
    %s3079 = scalar_lea.vmem %s27, 224
    %v3080 = vld [vmem:[%s3079] sm:$0xff]
    %v3081 = vld [vmem:[%s3079 + $0x8] sm:$0xff]
    %v3082 = vld [vmem:[%s3079 + $0x10] sm:$0xff]
    %v3083 = vld [vmem:[%s3079 + $0x18] sm:$0xff]
    %v3084 = vpack.c.bf16 %v3069, %v3066
    %v3085 = vpack.c.bf16 %v3074, %v3074
    %v3086 = vpack.c.bf16 %v3081, %v3080
    %v3087 = vpack.c.bf16 %v3083, %v3082
    %v3089 = vsel %vm498, %v3084, 0
    %v3092 = vsel %vm498, %v3085, 0
    %3094 = vmatprep.subr.bf16.mxu0 0
    %3095 = vmatpush1.bf16.msra.mxu0 0
    %3096 = vmatprep.subr.bf16.mxu0 0
    %3097 = vmatpush1.bf16.msra.mxu0 0
    %3098 = vmatprep.subr.bf16.mxu0 0
    %3099 = vmatpush1.bf16.msra.mxu0 0
    %3100 = vmatprep.subr.bf16.mxu0 0
    %3101 = vmatpush1.bf16.msra.mxu0 0
    %3102 = vmatprep.subr.bf16.mxu0 0
    %3103 = vmatpush1.bf16.msra.mxu0 0
    %3104 = vmatprep.subr.bf16.mxu0 0
    %3105 = vmatpush1.bf16.msra.mxu0 0
    %3106 = vmatprep.subr.bf16.mxu0 0
    %3107 = vmatpush1.bf16.msra.mxu0 %v3087
    %3108 = vmatprep.subr.bf16.mxu0 0
    %3109 = vmatpush1.bf16.msra.mxu0 %v3086
    %3110 = vmatprep.subr.bf16.mxu0 0
    %3111 = vmatpush2.bf16.msra.mxu0 0
    %3112 = vmatprep.subr.bf16.mxu0 0
    %3113 = vmatpush2.bf16.msra.mxu0 0
    %3114 = vmatprep.subr.bf16.mxu0 0
    %3115 = vmatpush2.bf16.msra.mxu0 0
    %3116 = vmatprep.subr.bf16.mxu0 0
    %3117 = vmatpush2.bf16.msra.mxu0 0
    %3118 = vmatprep.subr.bf16.mxu0 0
    %3119 = vmatpush2.bf16.msra.mxu0 0
    %3120 = vmatprep.subr.bf16.mxu0 0
    %3121 = vmatpush2.bf16.msra.mxu0 0
    %3122 = vmatprep.subr.bf16.mxu0 0
    %3123 = vmatpush2.bf16.msra.mxu0 0
    %3124 = vmatprep.subr.bf16.mxu0 0
    %3125 = vmatpush2.bf16.msra.mxu0 0
    %3126 = vmatprep.mubr.bf16.mxu0 0
    %3127 = vmatmul.mubr.bf16.gmra.mxu0 %v3089
    %v3128 = vpop.f32.mrf.mxu0
    %v3129 = vadd.f32 0.0, %v3128
    %v3130 = vpop.f32.mrf.mxu0
    %v3131 = vpop.f32.mrf.mxu0
    %v3132 = vadd.f32 0.0, %v3131
    %v3133 = vpop.f32.mrf.mxu0
    %3134 = vmatprep.mubr.bf16.mxu0 0
    %3135 = vmatmul.mubr.bf16.gmra.mxu0 %v3092
    %v3136 = vpop.f32.mrf.mxu0
    %v3137 = vadd.f32 0.0, %v3136
    %v3138 = vpop.f32.mrf.mxu0
    %v3139 = vpop.f32.mrf.mxu0
    %v3140 = vpop.f32.mrf.mxu0
    %3141 = vdwg.mxu0
    %v3142 = vadd.f32 %v3028, %v3129
    %v3143 = vadd.f32 %v3029, %v3132
    %v3144 = vadd.f32 %v3030, %v3137
    %3145 = vmatprep.subr.bf16.mxu0 0
    %3146 = vmatpush1.bf16.msra.mxu0 %v2239
    %3147 = vmatprep.subr.bf16.mxu0 0
    %3148 = vmatpush1.bf16.msra.mxu0 %v2238
    %3149 = vmatprep.subr.bf16.mxu0 0
    %3150 = vmatpush1.bf16.msra.mxu0 %v2237
    %3151 = vmatprep.subr.bf16.mxu0 0
    %3152 = vmatpush1.bf16.msra.mxu0 %v2236
    %3153 = vmatprep.subr.bf16.mxu0 0
    %3154 = vmatpush1.bf16.msra.mxu0 %v2235
    %3155 = vmatprep.subr.bf16.mxu0 0
    %3156 = vmatpush1.bf16.msra.mxu0 %v2234
    %3157 = vmatprep.subr.bf16.mxu0 0
    %3158 = vmatpush1.bf16.msra.mxu0 %v2233
    %3159 = vmatprep.subr.bf16.mxu0 0
    %3160 = vmatpush1.bf16.msra.mxu0 %v2232
    %3161 = vmatprep.subr.bf16.mxu0 0
    %3162 = vmatpush2.bf16.msra.mxu0 0
    %3163 = vmatprep.subr.bf16.mxu0 0
    %3164 = vmatpush2.bf16.msra.mxu0 0
    %3165 = vmatprep.subr.bf16.mxu0 0
    %3166 = vmatpush2.bf16.msra.mxu0 0
    %3167 = vmatprep.subr.bf16.mxu0 0
    %3168 = vmatpush2.bf16.msra.mxu0 0
    %3169 = vmatprep.subr.bf16.mxu0 0
    %3170 = vmatpush2.bf16.msra.mxu0 0
    %3171 = vmatprep.subr.bf16.mxu0 0
    %3172 = vmatpush2.bf16.msra.mxu0 0
    %3173 = vmatprep.subr.bf16.mxu0 0
    %3174 = vmatpush2.bf16.msra.mxu0 0
    %3175 = vmatprep.subr.bf16.mxu0 0
    %3176 = vmatpush2.bf16.msra.mxu0 0
    %3177 = vmatprep.mubr.bf16.mxu0 0
    %3178 = vmatmul.mubr.bf16.gmra.mxu0 %v1331
    %v3179 = vpop.f32.mrf.mxu0
    %v3180 = vadd.f32 0.0, %v3179
    %v3181 = vpop.f32.mrf.mxu0
    %v3182 = vpop.f32.mrf.mxu0
    %v3183 = vadd.f32 0.0, %v3182
    %v3184 = vpop.f32.mrf.mxu0
    %3185 = vmatprep.mubr.bf16.mxu0 0
    %3186 = vmatmul.mubr.bf16.gmra.mxu0 %v1332
    %v3187 = vpop.f32.mrf.mxu0
    %v3188 = vadd.f32 0.0, %v3187
    %v3189 = vpop.f32.mrf.mxu0
    %v3190 = vpop.f32.mrf.mxu0
    %v3191 = vpop.f32.mrf.mxu0
    %3192 = vdwg.mxu0
    %s3193 = scalar_lea.vmem %s27, 256
    %v3194 = vld [vmem:[%s3193] sm:$0xff]
    %v3195 = vld [vmem:[%s3193 + $0x8] sm:$0xff]
    %v3196 = vld [vmem:[%s3193 + $0x10] sm:$0xff]
    %v3197 = vld [vmem:[%s3193 + $0x18] sm:$0xff]
    %v3198 = vpack.c.bf16 %v3183, %v3180
    %v3199 = vpack.c.bf16 %v3188, %v3188
    %v3200 = vpack.c.bf16 %v3195, %v3194
    %v3201 = vpack.c.bf16 %v3197, %v3196
    %v3203 = vsel %vm498, %v3198, 0
    %v3206 = vsel %vm498, %v3199, 0
    %3208 = vmatprep.subr.bf16.mxu0 0
    %3209 = vmatpush1.bf16.msra.mxu0 0
    %3210 = vmatprep.subr.bf16.mxu0 0
    %3211 = vmatpush1.bf16.msra.mxu0 0
    %3212 = vmatprep.subr.bf16.mxu0 0
    %3213 = vmatpush1.bf16.msra.mxu0 0
    %3214 = vmatprep.subr.bf16.mxu0 0
    %3215 = vmatpush1.bf16.msra.mxu0 0
    %3216 = vmatprep.subr.bf16.mxu0 0
    %3217 = vmatpush1.bf16.msra.mxu0 0
    %3218 = vmatprep.subr.bf16.mxu0 0
    %3219 = vmatpush1.bf16.msra.mxu0 0
    %3220 = vmatprep.subr.bf16.mxu0 0
    %3221 = vmatpush1.bf16.msra.mxu0 %v3201
    %3222 = vmatprep.subr.bf16.mxu0 0
    %3223 = vmatpush1.bf16.msra.mxu0 %v3200
    %3224 = vmatprep.subr.bf16.mxu0 0
    %3225 = vmatpush2.bf16.msra.mxu0 0
    %3226 = vmatprep.subr.bf16.mxu0 0
    %3227 = vmatpush2.bf16.msra.mxu0 0
    %3228 = vmatprep.subr.bf16.mxu0 0
    %3229 = vmatpush2.bf16.msra.mxu0 0
    %3230 = vmatprep.subr.bf16.mxu0 0
    %3231 = vmatpush2.bf16.msra.mxu0 0
    %3232 = vmatprep.subr.bf16.mxu0 0
    %3233 = vmatpush2.bf16.msra.mxu0 0
    %3234 = vmatprep.subr.bf16.mxu0 0
    %3235 = vmatpush2.bf16.msra.mxu0 0
    %3236 = vmatprep.subr.bf16.mxu0 0
    %3237 = vmatpush2.bf16.msra.mxu0 0
    %3238 = vmatprep.subr.bf16.mxu0 0
    %3239 = vmatpush2.bf16.msra.mxu0 0
    %3240 = vmatprep.mubr.bf16.mxu0 0
    %3241 = vmatmul.mubr.bf16.gmra.mxu0 %v3203
    %v3242 = vpop.f32.mrf.mxu0
    %v3243 = vadd.f32 0.0, %v3242
    %v3244 = vpop.f32.mrf.mxu0
    %v3245 = vpop.f32.mrf.mxu0
    %v3246 = vadd.f32 0.0, %v3245
    %v3247 = vpop.f32.mrf.mxu0
    %3248 = vmatprep.mubr.bf16.mxu0 0
    %3249 = vmatmul.mubr.bf16.gmra.mxu0 %v3206
    %v3250 = vpop.f32.mrf.mxu0
    %v3251 = vadd.f32 0.0, %v3250
    %v3252 = vpop.f32.mrf.mxu0
    %v3253 = vpop.f32.mrf.mxu0
    %v3254 = vpop.f32.mrf.mxu0
    %3255 = vdwg.mxu0
    %v3256 = vadd.f32 %v3142, %v3243
    %v3257 = vadd.f32 %v3143, %v3246
    %v3258 = vadd.f32 %v3144, %v3251
    %v3259 = vld [vmem:[%s29] sm:$0x1]
    %v3261 = vlaneseq
    %v3262 = vshrl.u32 %v3261, 7
    %v3263 = vsub.s32 0, %v3262
    %v3264 = vrot.slane %v3259, %v3263
    %v3266 = vadd.f32 %v3256, %v3264
    %v3267 = vadd.f32 %v3257, %v3264
    %v3268 = vadd.f32 %v3258, %v3264
    %v3269 = vmax.f32 %v3266, 0.0
    %v3270 = vmax.f32 %v3267, 0.0
    %v3271 = vmax.f32 %v3268, 0.0
    %v3272 = vld [vmem:[%s31] sm:$0xff]
    %v3273 = vld [vmem:[%s31 + $0x8] sm:$0xff]
    %v3274 = vld [vmem:[%s31 + $0x10] sm:$0xff]
    %v3275 = vld [vmem:[%s31 + $0x18] sm:$0xff]
    %v3276 = vld [vmem:[%s31 + $0x20] sm:$0xff]
    %v3277 = vld [vmem:[%s31 + $0x28] sm:$0xff]
    %v3278 = vld [vmem:[%s31 + $0x30] sm:$0xff]
    %v3279 = vld [vmem:[%s31 + $0x38] sm:$0xff]
    %v3280 = vpack.c.bf16 %v3269, %v3269
    %v3281 = vpack.c.bf16 %v3273, %v3272
    %v3282 = vpack.c.bf16 %v3275, %v3274
    %v3283 = vpack.c.bf16 %v3277, %v3276
    %v3284 = vpack.c.bf16 %v3279, %v3278
    %s3285 = scalar_lea.vmem %s31, 64
    %v3286 = vld [vmem:[%s3285] sm:$0xff]
    %v3287 = vld [vmem:[%s3285 + $0x8] sm:$0xff]
    %v3288 = vld [vmem:[%s3285 + $0x10] sm:$0xff]
    %v3289 = vld [vmem:[%s3285 + $0x18] sm:$0xff]
    %v3290 = vld [vmem:[%s3285 + $0x20] sm:$0xff]
    %v3291 = vld [vmem:[%s3285 + $0x28] sm:$0xff]
    %v3292 = vld [vmem:[%s3285 + $0x30] sm:$0xff]
    %v3293 = vld [vmem:[%s3285 + $0x38] sm:$0xff]
    %v3294 = vpack.c.bf16 %v3287, %v3286
    %v3295 = vpack.c.bf16 %v3289, %v3288
    %v3296 = vpack.c.bf16 %v3291, %v3290
    %v3297 = vpack.c.bf16 %v3293, %v3292
    %v3299 = vrot.slane %v3280, 1
    %v3301 = vsel %vm1488, %v3299, 0
    %3303 = vmatprep.subr.bf16.mxu0 0
    %3304 = vmatpush1.bf16.msra.mxu0 0
    %3305 = vmatprep.subr.bf16.mxu0 0
    %3306 = vmatpush1.bf16.msra.mxu0 0
    %3307 = vmatprep.subr.bf16.mxu0 0
    %3308 = vmatpush1.bf16.msra.mxu0 0
    %3309 = vmatprep.subr.bf16.mxu0 0
    %3310 = vmatpush1.bf16.msra.mxu0 0
    %3311 = vmatprep.subr.bf16.mxu0 0
    %3312 = vmatpush1.bf16.msra.mxu0 %v3297
    %3313 = vmatprep.subr.bf16.mxu0 0
    %3314 = vmatpush1.bf16.msra.mxu0 %v3296
    %3315 = vmatprep.subr.bf16.mxu0 0
    %3316 = vmatpush1.bf16.msra.mxu0 %v3295
    %3317 = vmatprep.subr.bf16.mxu0 0
    %3318 = vmatpush1.bf16.msra.mxu0 %v3294
    %3319 = vmatprep.subr.bf16.mxu0 0
    %3320 = vmatpush2.bf16.msra.mxu0 0
    %3321 = vmatprep.subr.bf16.mxu0 0
    %3322 = vmatpush2.bf16.msra.mxu0 0
    %3323 = vmatprep.subr.bf16.mxu0 0
    %3324 = vmatpush2.bf16.msra.mxu0 0
    %3325 = vmatprep.subr.bf16.mxu0 0
    %3326 = vmatpush2.bf16.msra.mxu0 0
    %3327 = vmatprep.subr.bf16.mxu0 0
    %3328 = vmatpush2.bf16.msra.mxu0 0
    %3329 = vmatprep.subr.bf16.mxu0 0
    %3330 = vmatpush2.bf16.msra.mxu0 0
    %3331 = vmatprep.subr.bf16.mxu0 0
    %3332 = vmatpush2.bf16.msra.mxu0 0
    %3333 = vmatprep.subr.bf16.mxu0 0
    %3334 = vmatpush2.bf16.msra.mxu0 0
    %3335 = vmatprep.mubr.bf16.mxu0 0
    %3336 = vmatmul.mubr.bf16.gmra.mxu0 %v3301
    %v3337 = vpop.f32.mrf.mxu0
    %v3338 = vadd.f32 0.0, %v3337
    %v3339 = vpop.f32.mrf.mxu0
    %v3340 = vpop.f32.mrf.mxu0
    %v3341 = vpop.f32.mrf.mxu0
    %3342 = vdwg.mxu0
    %v3344 = vsel %vm1488, %v3280, 0
    %3346 = vmatprep.subr.bf16.mxu0 0
    %3347 = vmatpush1.bf16.msra.mxu0 0
    %3348 = vmatprep.subr.bf16.mxu0 0
    %3349 = vmatpush1.bf16.msra.mxu0 0
    %3350 = vmatprep.subr.bf16.mxu0 0
    %3351 = vmatpush1.bf16.msra.mxu0 0
    %3352 = vmatprep.subr.bf16.mxu0 0
    %3353 = vmatpush1.bf16.msra.mxu0 0
    %3354 = vmatprep.subr.bf16.mxu0 0
    %3355 = vmatpush1.bf16.msra.mxu0 %v3284
    %3356 = vmatprep.subr.bf16.mxu0 0
    %3357 = vmatpush1.bf16.msra.mxu0 %v3283
    %3358 = vmatprep.subr.bf16.mxu0 0
    %3359 = vmatpush1.bf16.msra.mxu0 %v3282
    %3360 = vmatprep.subr.bf16.mxu0 0
    %3361 = vmatpush1.bf16.msra.mxu0 %v3281
    %3362 = vmatprep.subr.bf16.mxu0 0
    %3363 = vmatpush2.bf16.msra.mxu0 0
    %3364 = vmatprep.subr.bf16.mxu0 0
    %3365 = vmatpush2.bf16.msra.mxu0 0
    %3366 = vmatprep.subr.bf16.mxu0 0
    %3367 = vmatpush2.bf16.msra.mxu0 0
    %3368 = vmatprep.subr.bf16.mxu0 0
    %3369 = vmatpush2.bf16.msra.mxu0 0
    %3370 = vmatprep.subr.bf16.mxu0 0
    %3371 = vmatpush2.bf16.msra.mxu0 0
    %3372 = vmatprep.subr.bf16.mxu0 0
    %3373 = vmatpush2.bf16.msra.mxu0 0
    %3374 = vmatprep.subr.bf16.mxu0 0
    %3375 = vmatpush2.bf16.msra.mxu0 0
    %3376 = vmatprep.subr.bf16.mxu0 0
    %3377 = vmatpush2.bf16.msra.mxu0 0
    %3378 = vmatprep.mubr.bf16.mxu0 0
    %3379 = vmatmul.mubr.bf16.gmra.mxu0 %v3344
    %v3380 = vpop.f32.mrf.mxu0
    %v3381 = vadd.f32 %v3338, %v3380
    %v3382 = vpop.f32.mrf.mxu0
    %v3383 = vpop.f32.mrf.mxu0
    %v3384 = vpop.f32.mrf.mxu0
    %3385 = vdwg.mxu0
    %s3386 = scalar_lea.vmem %s31, 128
    %v3387 = vld [vmem:[%s3386] sm:$0xff]
    %v3388 = vld [vmem:[%s3386 + $0x8] sm:$0xff]
    %v3389 = vld [vmem:[%s3386 + $0x10] sm:$0xff]
    %v3390 = vld [vmem:[%s3386 + $0x18] sm:$0xff]
    %v3391 = vld [vmem:[%s3386 + $0x20] sm:$0xff]
    %v3392 = vld [vmem:[%s3386 + $0x28] sm:$0xff]
    %v3393 = vld [vmem:[%s3386 + $0x30] sm:$0xff]
    %v3394 = vld [vmem:[%s3386 + $0x38] sm:$0xff]
    %v3395 = vpack.c.bf16 %v3388, %v3387
    %v3396 = vpack.c.bf16 %v3390, %v3389
    %v3397 = vpack.c.bf16 %v3392, %v3391
    %v3398 = vpack.c.bf16 %v3394, %v3393
    %v3399 = vrot.slane %v3280, 2
    %v3401 = vsel %vm1488, %v3399, 0
    %3403 = vmatprep.subr.bf16.mxu0 0
    %3404 = vmatpush1.bf16.msra.mxu0 0
    %3405 = vmatprep.subr.bf16.mxu0 0
    %3406 = vmatpush1.bf16.msra.mxu0 0
    %3407 = vmatprep.subr.bf16.mxu0 0
    %3408 = vmatpush1.bf16.msra.mxu0 0
    %3409 = vmatprep.subr.bf16.mxu0 0
    %3410 = vmatpush1.bf16.msra.mxu0 0
    %3411 = vmatprep.subr.bf16.mxu0 0
    %3412 = vmatpush1.bf16.msra.mxu0 %v3398
    %3413 = vmatprep.subr.bf16.mxu0 0
    %3414 = vmatpush1.bf16.msra.mxu0 %v3397
    %3415 = vmatprep.subr.bf16.mxu0 0
    %3416 = vmatpush1.bf16.msra.mxu0 %v3396
    %3417 = vmatprep.subr.bf16.mxu0 0
    %3418 = vmatpush1.bf16.msra.mxu0 %v3395
    %3419 = vmatprep.subr.bf16.mxu0 0
    %3420 = vmatpush2.bf16.msra.mxu0 0
    %3421 = vmatprep.subr.bf16.mxu0 0
    %3422 = vmatpush2.bf16.msra.mxu0 0
    %3423 = vmatprep.subr.bf16.mxu0 0
    %3424 = vmatpush2.bf16.msra.mxu0 0
    %3425 = vmatprep.subr.bf16.mxu0 0
    %3426 = vmatpush2.bf16.msra.mxu0 0
    %3427 = vmatprep.subr.bf16.mxu0 0
    %3428 = vmatpush2.bf16.msra.mxu0 0
    %3429 = vmatprep.subr.bf16.mxu0 0
    %3430 = vmatpush2.bf16.msra.mxu0 0
    %3431 = vmatprep.subr.bf16.mxu0 0
    %3432 = vmatpush2.bf16.msra.mxu0 0
    %3433 = vmatprep.subr.bf16.mxu0 0
    %3434 = vmatpush2.bf16.msra.mxu0 0
    %3435 = vmatprep.mubr.bf16.mxu0 0
    %3436 = vmatmul.mubr.bf16.gmra.mxu0 %v3401
    %v3437 = vpop.f32.mrf.mxu0
    %v3438 = vadd.f32 0.0, %v3437
    %v3439 = vpop.f32.mrf.mxu0
    %v3440 = vpop.f32.mrf.mxu0
    %v3441 = vpop.f32.mrf.mxu0
    %3442 = vdwg.mxu0
    %v3443 = vadd.f32 %v3381, %v3438
    %s3444 = scalar_lea.vmem %s31, 192
    %v3445 = vld [vmem:[%s3444] sm:$0xff]
    %v3446 = vld [vmem:[%s3444 + $0x8] sm:$0xff]
    %v3447 = vld [vmem:[%s3444 + $0x10] sm:$0xff]
    %v3448 = vld [vmem:[%s3444 + $0x18] sm:$0xff]
    %v3449 = vld [vmem:[%s3444 + $0x20] sm:$0xff]
    %v3450 = vld [vmem:[%s3444 + $0x28] sm:$0xff]
    %v3451 = vld [vmem:[%s3444 + $0x30] sm:$0xff]
    %v3452 = vld [vmem:[%s3444 + $0x38] sm:$0xff]
    %v3453 = vpack.c.bf16 %v3446, %v3445
    %v3454 = vpack.c.bf16 %v3448, %v3447
    %v3455 = vpack.c.bf16 %v3450, %v3449
    %v3456 = vpack.c.bf16 %v3452, %v3451
    %v3457 = vrot.slane %v3280, 3
    %v3459 = vsel %vm1488, %v3457, 0
    %3461 = vmatprep.subr.bf16.mxu0 0
    %3462 = vmatpush1.bf16.msra.mxu0 0
    %3463 = vmatprep.subr.bf16.mxu0 0
    %3464 = vmatpush1.bf16.msra.mxu0 0
    %3465 = vmatprep.subr.bf16.mxu0 0
    %3466 = vmatpush1.bf16.msra.mxu0 0
    %3467 = vmatprep.subr.bf16.mxu0 0
    %3468 = vmatpush1.bf16.msra.mxu0 0
    %3469 = vmatprep.subr.bf16.mxu0 0
    %3470 = vmatpush1.bf16.msra.mxu0 %v3456
    %3471 = vmatprep.subr.bf16.mxu0 0
    %3472 = vmatpush1.bf16.msra.mxu0 %v3455
    %3473 = vmatprep.subr.bf16.mxu0 0
    %3474 = vmatpush1.bf16.msra.mxu0 %v3454
    %3475 = vmatprep.subr.bf16.mxu0 0
    %3476 = vmatpush1.bf16.msra.mxu0 %v3453
    %3477 = vmatprep.subr.bf16.mxu0 0
    %3478 = vmatpush2.bf16.msra.mxu0 0
    %3479 = vmatprep.subr.bf16.mxu0 0
    %3480 = vmatpush2.bf16.msra.mxu0 0
    %3481 = vmatprep.subr.bf16.mxu0 0
    %3482 = vmatpush2.bf16.msra.mxu0 0
    %3483 = vmatprep.subr.bf16.mxu0 0
    %3484 = vmatpush2.bf16.msra.mxu0 0
    %3485 = vmatprep.subr.bf16.mxu0 0
    %3486 = vmatpush2.bf16.msra.mxu0 0
    %3487 = vmatprep.subr.bf16.mxu0 0
    %3488 = vmatpush2.bf16.msra.mxu0 0
    %3489 = vmatprep.subr.bf16.mxu0 0
    %3490 = vmatpush2.bf16.msra.mxu0 0
    %3491 = vmatprep.subr.bf16.mxu0 0
    %3492 = vmatpush2.bf16.msra.mxu0 0
    %3493 = vmatprep.mubr.bf16.mxu0 0
    %3494 = vmatmul.mubr.bf16.gmra.mxu0 %v3459
    %v3495 = vpop.f32.mrf.mxu0
    %v3496 = vadd.f32 0.0, %v3495
    %v3497 = vpop.f32.mrf.mxu0
    %v3498 = vpop.f32.mrf.mxu0
    %v3499 = vpop.f32.mrf.mxu0
    %3500 = vdwg.mxu0
    %v3501 = vadd.f32 %v3443, %v3496
    %s3502 = scalar_lea.vmem %s31, 256
    %v3503 = vld [vmem:[%s3502] sm:$0xff]
    %v3504 = vld [vmem:[%s3502 + $0x8] sm:$0xff]
    %v3505 = vld [vmem:[%s3502 + $0x10] sm:$0xff]
    %v3506 = vld [vmem:[%s3502 + $0x18] sm:$0xff]
    %v3507 = vld [vmem:[%s3502 + $0x20] sm:$0xff]
    %v3508 = vld [vmem:[%s3502 + $0x28] sm:$0xff]
    %v3509 = vld [vmem:[%s3502 + $0x30] sm:$0xff]
    %v3510 = vld [vmem:[%s3502 + $0x38] sm:$0xff]
    %v3511 = vpack.c.bf16 %v3270, %v3270
    %v3512 = vpack.c.bf16 %v3504, %v3503
    %v3513 = vpack.c.bf16 %v3506, %v3505
    %v3514 = vpack.c.bf16 %v3508, %v3507
    %v3515 = vpack.c.bf16 %v3510, %v3509
    %v3517 = vsel %vm1488, %v3511, 0
    %3519 = vmatprep.subr.bf16.mxu0 0
    %3520 = vmatpush1.bf16.msra.mxu0 0
    %3521 = vmatprep.subr.bf16.mxu0 0
    %3522 = vmatpush1.bf16.msra.mxu0 0
    %3523 = vmatprep.subr.bf16.mxu0 0
    %3524 = vmatpush1.bf16.msra.mxu0 0
    %3525 = vmatprep.subr.bf16.mxu0 0
    %3526 = vmatpush1.bf16.msra.mxu0 0
    %3527 = vmatprep.subr.bf16.mxu0 0
    %3528 = vmatpush1.bf16.msra.mxu0 %v3515
    %3529 = vmatprep.subr.bf16.mxu0 0
    %3530 = vmatpush1.bf16.msra.mxu0 %v3514
    %3531 = vmatprep.subr.bf16.mxu0 0
    %3532 = vmatpush1.bf16.msra.mxu0 %v3513
    %3533 = vmatprep.subr.bf16.mxu0 0
    %3534 = vmatpush1.bf16.msra.mxu0 %v3512
    %3535 = vmatprep.subr.bf16.mxu0 0
    %3536 = vmatpush2.bf16.msra.mxu0 0
    %3537 = vmatprep.subr.bf16.mxu0 0
    %3538 = vmatpush2.bf16.msra.mxu0 0
    %3539 = vmatprep.subr.bf16.mxu0 0
    %3540 = vmatpush2.bf16.msra.mxu0 0
    %3541 = vmatprep.subr.bf16.mxu0 0
    %3542 = vmatpush2.bf16.msra.mxu0 0
    %3543 = vmatprep.subr.bf16.mxu0 0
    %3544 = vmatpush2.bf16.msra.mxu0 0
    %3545 = vmatprep.subr.bf16.mxu0 0
    %3546 = vmatpush2.bf16.msra.mxu0 0
    %3547 = vmatprep.subr.bf16.mxu0 0
    %3548 = vmatpush2.bf16.msra.mxu0 0
    %3549 = vmatprep.subr.bf16.mxu0 0
    %3550 = vmatpush2.bf16.msra.mxu0 0
    %3551 = vmatprep.mubr.bf16.mxu0 0
    %3552 = vmatmul.mubr.bf16.gmra.mxu0 %v3517
    %v3553 = vpop.f32.mrf.mxu0
    %v3554 = vadd.f32 0.0, %v3553
    %v3555 = vpop.f32.mrf.mxu0
    %v3556 = vpop.f32.mrf.mxu0
    %v3557 = vpop.f32.mrf.mxu0
    %3558 = vdwg.mxu0
    %v3559 = vadd.f32 %v3501, %v3554
    %s3560 = scalar_lea.vmem %s31, 320
    %v3561 = vld [vmem:[%s3560] sm:$0xff]
    %v3562 = vld [vmem:[%s3560 + $0x8] sm:$0xff]
    %v3563 = vld [vmem:[%s3560 + $0x10] sm:$0xff]
    %v3564 = vld [vmem:[%s3560 + $0x18] sm:$0xff]
    %v3565 = vld [vmem:[%s3560 + $0x20] sm:$0xff]
    %v3566 = vld [vmem:[%s3560 + $0x28] sm:$0xff]
    %v3567 = vld [vmem:[%s3560 + $0x30] sm:$0xff]
    %v3568 = vld [vmem:[%s3560 + $0x38] sm:$0xff]
    %v3569 = vpack.c.bf16 %v3562, %v3561
    %v3570 = vpack.c.bf16 %v3564, %v3563
    %v3571 = vpack.c.bf16 %v3566, %v3565
    %v3572 = vpack.c.bf16 %v3568, %v3567
    %v3574 = vrot.slane %v3511, 1
    %v3576 = vsel %vm1488, %v3574, 0
    %3578 = vmatprep.subr.bf16.mxu0 0
    %3579 = vmatpush1.bf16.msra.mxu0 0
    %3580 = vmatprep.subr.bf16.mxu0 0
    %3581 = vmatpush1.bf16.msra.mxu0 0
    %3582 = vmatprep.subr.bf16.mxu0 0
    %3583 = vmatpush1.bf16.msra.mxu0 0
    %3584 = vmatprep.subr.bf16.mxu0 0
    %3585 = vmatpush1.bf16.msra.mxu0 0
    %3586 = vmatprep.subr.bf16.mxu0 0
    %3587 = vmatpush1.bf16.msra.mxu0 %v3572
    %3588 = vmatprep.subr.bf16.mxu0 0
    %3589 = vmatpush1.bf16.msra.mxu0 %v3571
    %3590 = vmatprep.subr.bf16.mxu0 0
    %3591 = vmatpush1.bf16.msra.mxu0 %v3570
    %3592 = vmatprep.subr.bf16.mxu0 0
    %3593 = vmatpush1.bf16.msra.mxu0 %v3569
    %3594 = vmatprep.subr.bf16.mxu0 0
    %3595 = vmatpush2.bf16.msra.mxu0 0
    %3596 = vmatprep.subr.bf16.mxu0 0
    %3597 = vmatpush2.bf16.msra.mxu0 0
    %3598 = vmatprep.subr.bf16.mxu0 0
    %3599 = vmatpush2.bf16.msra.mxu0 0
    %3600 = vmatprep.subr.bf16.mxu0 0
    %3601 = vmatpush2.bf16.msra.mxu0 0
    %3602 = vmatprep.subr.bf16.mxu0 0
    %3603 = vmatpush2.bf16.msra.mxu0 0
    %3604 = vmatprep.subr.bf16.mxu0 0
    %3605 = vmatpush2.bf16.msra.mxu0 0
    %3606 = vmatprep.subr.bf16.mxu0 0
    %3607 = vmatpush2.bf16.msra.mxu0 0
    %3608 = vmatprep.subr.bf16.mxu0 0
    %3609 = vmatpush2.bf16.msra.mxu0 0
    %3610 = vmatprep.mubr.bf16.mxu0 0
    %3611 = vmatmul.mubr.bf16.gmra.mxu0 %v3576
    %v3612 = vpop.f32.mrf.mxu0
    %v3613 = vadd.f32 0.0, %v3612
    %v3614 = vpop.f32.mrf.mxu0
    %v3615 = vpop.f32.mrf.mxu0
    %v3616 = vpop.f32.mrf.mxu0
    %3617 = vdwg.mxu0
    %v3618 = vadd.f32 %v3559, %v3613
    %s3619 = scalar_lea.vmem %s31, 384
    %v3620 = vld [vmem:[%s3619] sm:$0xff]
    %v3621 = vld [vmem:[%s3619 + $0x8] sm:$0xff]
    %v3622 = vld [vmem:[%s3619 + $0x10] sm:$0xff]
    %v3623 = vld [vmem:[%s3619 + $0x18] sm:$0xff]
    %v3624 = vld [vmem:[%s3619 + $0x20] sm:$0xff]
    %v3625 = vld [vmem:[%s3619 + $0x28] sm:$0xff]
    %v3626 = vld [vmem:[%s3619 + $0x30] sm:$0xff]
    %v3627 = vld [vmem:[%s3619 + $0x38] sm:$0xff]
    %v3628 = vpack.c.bf16 %v3621, %v3620
    %v3629 = vpack.c.bf16 %v3623, %v3622
    %v3630 = vpack.c.bf16 %v3625, %v3624
    %v3631 = vpack.c.bf16 %v3627, %v3626
    %v3632 = vrot.slane %v3511, 2
    %v3634 = vsel %vm1488, %v3632, 0
    %3636 = vmatprep.subr.bf16.mxu0 0
    %3637 = vmatpush1.bf16.msra.mxu0 0
    %3638 = vmatprep.subr.bf16.mxu0 0
    %3639 = vmatpush1.bf16.msra.mxu0 0
    %3640 = vmatprep.subr.bf16.mxu0 0
    %3641 = vmatpush1.bf16.msra.mxu0 0
    %3642 = vmatprep.subr.bf16.mxu0 0
    %3643 = vmatpush1.bf16.msra.mxu0 0
    %3644 = vmatprep.subr.bf16.mxu0 0
    %3645 = vmatpush1.bf16.msra.mxu0 %v3631
    %3646 = vmatprep.subr.bf16.mxu0 0
    %3647 = vmatpush1.bf16.msra.mxu0 %v3630
    %3648 = vmatprep.subr.bf16.mxu0 0
    %3649 = vmatpush1.bf16.msra.mxu0 %v3629
    %3650 = vmatprep.subr.bf16.mxu0 0
    %3651 = vmatpush1.bf16.msra.mxu0 %v3628
    %3652 = vmatprep.subr.bf16.mxu0 0
    %3653 = vmatpush2.bf16.msra.mxu0 0
    %3654 = vmatprep.subr.bf16.mxu0 0
    %3655 = vmatpush2.bf16.msra.mxu0 0
    %3656 = vmatprep.subr.bf16.mxu0 0
    %3657 = vmatpush2.bf16.msra.mxu0 0
    %3658 = vmatprep.subr.bf16.mxu0 0
    %3659 = vmatpush2.bf16.msra.mxu0 0
    %3660 = vmatprep.subr.bf16.mxu0 0
    %3661 = vmatpush2.bf16.msra.mxu0 0
    %3662 = vmatprep.subr.bf16.mxu0 0
    %3663 = vmatpush2.bf16.msra.mxu0 0
    %3664 = vmatprep.subr.bf16.mxu0 0
    %3665 = vmatpush2.bf16.msra.mxu0 0
    %3666 = vmatprep.subr.bf16.mxu0 0
    %3667 = vmatpush2.bf16.msra.mxu0 0
    %3668 = vmatprep.mubr.bf16.mxu0 0
    %3669 = vmatmul.mubr.bf16.gmra.mxu0 %v3634
    %v3670 = vpop.f32.mrf.mxu0
    %v3671 = vadd.f32 0.0, %v3670
    %v3672 = vpop.f32.mrf.mxu0
    %v3673 = vpop.f32.mrf.mxu0
    %v3674 = vpop.f32.mrf.mxu0
    %3675 = vdwg.mxu0
    %v3676 = vadd.f32 %v3618, %v3671
    %s3677 = scalar_lea.vmem %s31, 448
    %v3678 = vld [vmem:[%s3677] sm:$0xff]
    %v3679 = vld [vmem:[%s3677 + $0x8] sm:$0xff]
    %v3680 = vld [vmem:[%s3677 + $0x10] sm:$0xff]
    %v3681 = vld [vmem:[%s3677 + $0x18] sm:$0xff]
    %v3682 = vld [vmem:[%s3677 + $0x20] sm:$0xff]
    %v3683 = vld [vmem:[%s3677 + $0x28] sm:$0xff]
    %v3684 = vld [vmem:[%s3677 + $0x30] sm:$0xff]
    %v3685 = vld [vmem:[%s3677 + $0x38] sm:$0xff]
    %v3686 = vpack.c.bf16 %v3679, %v3678
    %v3687 = vpack.c.bf16 %v3681, %v3680
    %v3688 = vpack.c.bf16 %v3683, %v3682
    %v3689 = vpack.c.bf16 %v3685, %v3684
    %v3690 = vrot.slane %v3511, 3
    %v3692 = vsel %vm1488, %v3690, 0
    %3694 = vmatprep.subr.bf16.mxu0 0
    %3695 = vmatpush1.bf16.msra.mxu0 0
    %3696 = vmatprep.subr.bf16.mxu0 0
    %3697 = vmatpush1.bf16.msra.mxu0 0
    %3698 = vmatprep.subr.bf16.mxu0 0
    %3699 = vmatpush1.bf16.msra.mxu0 0
    %3700 = vmatprep.subr.bf16.mxu0 0
    %3701 = vmatpush1.bf16.msra.mxu0 0
    %3702 = vmatprep.subr.bf16.mxu0 0
    %3703 = vmatpush1.bf16.msra.mxu0 %v3689
    %3704 = vmatprep.subr.bf16.mxu0 0
    %3705 = vmatpush1.bf16.msra.mxu0 %v3688
    %3706 = vmatprep.subr.bf16.mxu0 0
    %3707 = vmatpush1.bf16.msra.mxu0 %v3687
    %3708 = vmatprep.subr.bf16.mxu0 0
    %3709 = vmatpush1.bf16.msra.mxu0 %v3686
    %3710 = vmatprep.subr.bf16.mxu0 0
    %3711 = vmatpush2.bf16.msra.mxu0 0
    %3712 = vmatprep.subr.bf16.mxu0 0
    %3713 = vmatpush2.bf16.msra.mxu0 0
    %3714 = vmatprep.subr.bf16.mxu0 0
    %3715 = vmatpush2.bf16.msra.mxu0 0
    %3716 = vmatprep.subr.bf16.mxu0 0
    %3717 = vmatpush2.bf16.msra.mxu0 0
    %3718 = vmatprep.subr.bf16.mxu0 0
    %3719 = vmatpush2.bf16.msra.mxu0 0
    %3720 = vmatprep.subr.bf16.mxu0 0
    %3721 = vmatpush2.bf16.msra.mxu0 0
    %3722 = vmatprep.subr.bf16.mxu0 0
    %3723 = vmatpush2.bf16.msra.mxu0 0
    %3724 = vmatprep.subr.bf16.mxu0 0
    %3725 = vmatpush2.bf16.msra.mxu0 0
    %3726 = vmatprep.mubr.bf16.mxu0 0
    %3727 = vmatmul.mubr.bf16.gmra.mxu0 %v3692
    %v3728 = vpop.f32.mrf.mxu0
    %v3729 = vadd.f32 0.0, %v3728
    %v3730 = vpop.f32.mrf.mxu0
    %v3731 = vpop.f32.mrf.mxu0
    %v3732 = vpop.f32.mrf.mxu0
    %3733 = vdwg.mxu0
    %v3734 = vadd.f32 %v3676, %v3729
    %s3735 = scalar_lea.vmem %s31, 512
    %v3736 = vld [vmem:[%s3735] sm:$0xff]
    %v3737 = vld [vmem:[%s3735 + $0x8] sm:$0xff]
    %v3738 = vld [vmem:[%s3735 + $0x10] sm:$0xff]
    %v3739 = vld [vmem:[%s3735 + $0x18] sm:$0xff]
    %v3740 = vld [vmem:[%s3735 + $0x20] sm:$0xff]
    %v3741 = vld [vmem:[%s3735 + $0x28] sm:$0xff]
    %v3742 = vld [vmem:[%s3735 + $0x30] sm:$0xff]
    %v3743 = vld [vmem:[%s3735 + $0x38] sm:$0xff]
    %v3744 = vpack.c.bf16 %v3271, %v3271
    %v3745 = vpack.c.bf16 %v3737, %v3736
    %v3746 = vpack.c.bf16 %v3739, %v3738
    %v3747 = vpack.c.bf16 %v3741, %v3740
    %v3748 = vpack.c.bf16 %v3743, %v3742
    %v3750 = vsel %vm1488, %v3744, 0
    %3752 = vmatprep.subr.bf16.mxu0 0
    %3753 = vmatpush1.bf16.msra.mxu0 0
    %3754 = vmatprep.subr.bf16.mxu0 0
    %3755 = vmatpush1.bf16.msra.mxu0 0
    %3756 = vmatprep.subr.bf16.mxu0 0
    %3757 = vmatpush1.bf16.msra.mxu0 0
    %3758 = vmatprep.subr.bf16.mxu0 0
    %3759 = vmatpush1.bf16.msra.mxu0 0
    %3760 = vmatprep.subr.bf16.mxu0 0
    %3761 = vmatpush1.bf16.msra.mxu0 %v3748
    %3762 = vmatprep.subr.bf16.mxu0 0
    %3763 = vmatpush1.bf16.msra.mxu0 %v3747
    %3764 = vmatprep.subr.bf16.mxu0 0
    %3765 = vmatpush1.bf16.msra.mxu0 %v3746
    %3766 = vmatprep.subr.bf16.mxu0 0
    %3767 = vmatpush1.bf16.msra.mxu0 %v3745
    %3768 = vmatprep.subr.bf16.mxu0 0
    %3769 = vmatpush2.bf16.msra.mxu0 0
    %3770 = vmatprep.subr.bf16.mxu0 0
    %3771 = vmatpush2.bf16.msra.mxu0 0
    %3772 = vmatprep.subr.bf16.mxu0 0
    %3773 = vmatpush2.bf16.msra.mxu0 0
    %3774 = vmatprep.subr.bf16.mxu0 0
    %3775 = vmatpush2.bf16.msra.mxu0 0
    %3776 = vmatprep.subr.bf16.mxu0 0
    %3777 = vmatpush2.bf16.msra.mxu0 0
    %3778 = vmatprep.subr.bf16.mxu0 0
    %3779 = vmatpush2.bf16.msra.mxu0 0
    %3780 = vmatprep.subr.bf16.mxu0 0
    %3781 = vmatpush2.bf16.msra.mxu0 0
    %3782 = vmatprep.subr.bf16.mxu0 0
    %3783 = vmatpush2.bf16.msra.mxu0 0
    %3784 = vmatprep.mubr.bf16.mxu0 0
    %3785 = vmatmul.mubr.bf16.gmra.mxu0 %v3750
    %v3786 = vpop.f32.mrf.mxu0
    %v3787 = vadd.f32 0.0, %v3786
    %v3788 = vpop.f32.mrf.mxu0
    %v3789 = vpop.f32.mrf.mxu0
    %v3790 = vpop.f32.mrf.mxu0
    %3791 = vdwg.mxu0
    %v3792 = vadd.f32 %v3734, %v3787
    %v3793 = vld [vmem:[%s33] sm:$0x1]
    %v3795 = vlaneseq
    %v3796 = vshrl.u32 %v3795, 7
    %v3797 = vsub.s32 0, %v3796
    %v3798 = vrot.slane %v3793, %v3797
    %v3800 = vadd.f32 %v3792, %v3798
    %v3801 = vld [vmem:[%s35] sm:$0xff]
    %v3802 = vld [vmem:[%s35 + $0x8] sm:$0xff]
    %v3803 = vld [vmem:[%s35 + $0x10] sm:$0xff]
    %v3804 = vld [vmem:[%s35 + $0x18] sm:$0xff]
    %v3805 = vpack.c.bf16 %v3800, %v3800
    %v3806 = vpack.c.bf16 %v3802, %v3801
    %v3807 = vpack.c.bf16 %v3804, %v3803
    %v3808 = vld [vmem:[%s37] sm:$0x1]
    %v3810 = vlaneseq
    %v3811 = vshrl.u32 %v3810, 7
    %v3812 = vsub.s32 0, %v3811
    %v3813 = vrot.slane %v3808, %v3812
    %v3816 = vsel %vm498, %v3805, 0
    %3818 = vmatprep.subr.bf16.mxu0 0
    %3819 = vmatpush1.bf16.msra.mxu0 0
    %3820 = vmatprep.subr.bf16.mxu0 0
    %3821 = vmatpush1.bf16.msra.mxu0 0
    %3822 = vmatprep.subr.bf16.mxu0 0
    %3823 = vmatpush1.bf16.msra.mxu0 0
    %3824 = vmatprep.subr.bf16.mxu0 0
    %3825 = vmatpush1.bf16.msra.mxu0 0
    %3826 = vmatprep.subr.bf16.mxu0 0
    %3827 = vmatpush1.bf16.msra.mxu0 0
    %3828 = vmatprep.subr.bf16.mxu0 0
    %3829 = vmatpush1.bf16.msra.mxu0 0
    %3830 = vmatprep.subr.bf16.mxu0 0
    %3831 = vmatpush1.bf16.msra.mxu0 %v3807
    %3832 = vmatprep.subr.bf16.mxu0 0
    %3833 = vmatpush1.bf16.msra.mxu0 %v3806
    %3834 = vmatprep.subr.bf16.mxu0 0
    %3835 = vmatpush2.bf16.msra.mxu0 0
    %3836 = vmatprep.subr.bf16.mxu0 0
    %3837 = vmatpush2.bf16.msra.mxu0 0
    %3838 = vmatprep.subr.bf16.mxu0 0
    %3839 = vmatpush2.bf16.msra.mxu0 0
    %3840 = vmatprep.subr.bf16.mxu0 0
    %3841 = vmatpush2.bf16.msra.mxu0 0
    %3842 = vmatprep.subr.bf16.mxu0 0
    %3843 = vmatpush2.bf16.msra.mxu0 0
    %3844 = vmatprep.subr.bf16.mxu0 0
    %3845 = vmatpush2.bf16.msra.mxu0 0
    %3846 = vmatprep.subr.bf16.mxu0 0
    %3847 = vmatpush2.bf16.msra.mxu0 0
    %3848 = vmatprep.subr.bf16.mxu0 0
    %3849 = vmatpush2.bf16.msra.mxu0 0
    %3850 = vmatprep.mubr.bf16.mxu0 0
    %3851 = vmatmul.mubr.bf16.gmra.mxu0 %v3816
    %v3852 = vpop.f32.mrf.mxu0
    %v3853 = vadd.f32 %v3813, %v3852
    %v3854 = vpop.f32.mrf.mxu0
    %v3855 = vpop.f32.mrf.mxu0
    %v3856 = vpop.f32.mrf.mxu0
    %3857 = vdwg.mxu0
    %v3858 = vmax.f32 %v3853, 0.0
    %v3859 = vld [vmem:[%s39] sm:$0x3]
    %v3860 = vld [vmem:[%s41] sm:$0x3]
    %v3861 = vld [vmem:[%s43] sm:$0x3]
    %v3862 = vld [vmem:[%s45] sm:$0x3]
    %v3863 = vld [vmem:[%s63] sm:$0x1]
    %v3864 = vld [vmem:[%s51] sm:$0xff]
    %v3865 = vld [vmem:[%s51 + $0x8] sm:$0xff]
    %v3866 = vld [vmem:[%s51 + $0x10] sm:$0xff]
    %v3867 = vld [vmem:[%s51 + $0x18] sm:$0xff]
    %v3868 = vld [vmem:[%s51 + $0x20] sm:$0xff]
    %v3869 = vld [vmem:[%s51 + $0x28] sm:$0xff]
    %v3870 = vld [vmem:[%s51 + $0x30] sm:$0xff]
    %v3871 = vld [vmem:[%s51 + $0x38] sm:$0xff]
    %v3872 = vld [vmem:[%s51 + $0x40] sm:$0xff]
    %v3873 = vld [vmem:[%s51 + $0x48] sm:$0xff]
    %v3874 = vld [vmem:[%s51 + $0x50] sm:$0xff]
    %v3875 = vld [vmem:[%s51 + $0x58] sm:$0xff]
    %v3876 = vld [vmem:[%s51 + $0x60] sm:$0xff]
    %v3877 = vld [vmem:[%s51 + $0x68] sm:$0xff]
    %v3878 = vld [vmem:[%s51 + $0x70] sm:$0xff]
    %v3879 = vld [vmem:[%s51 + $0x78] sm:$0xff]
    %v3880 = vpack.c.bf16 %v2047, %v2047
    %v3881 = vpack.c.bf16 %v3865, %v3864
    %v3882 = vpack.c.bf16 %v3867, %v3866
    %v3883 = vpack.c.bf16 %v3869, %v3868
    %v3884 = vpack.c.bf16 %v3871, %v3870
    %v3885 = vpack.c.bf16 %v3873, %v3872
    %v3886 = vpack.c.bf16 %v3875, %v3874
    %v3887 = vpack.c.bf16 %v3877, %v3876
    %v3888 = vpack.c.bf16 %v3879, %v3878
    %3889 = vmatprep.subr.bf16.mxu0 0
    %3890 = vmatpush1.bf16.msra.mxu0 %v3888
    %3891 = vmatprep.subr.bf16.mxu0 0
    %3892 = vmatpush1.bf16.msra.mxu0 %v3887
    %3893 = vmatprep.subr.bf16.mxu0 0
    %3894 = vmatpush1.bf16.msra.mxu0 %v3886
    %3895 = vmatprep.subr.bf16.mxu0 0
    %3896 = vmatpush1.bf16.msra.mxu0 %v3885
    %3897 = vmatprep.subr.bf16.mxu0 0
    %3898 = vmatpush1.bf16.msra.mxu0 %v3884
    %3899 = vmatprep.subr.bf16.mxu0 0
    %3900 = vmatpush1.bf16.msra.mxu0 %v3883
    %3901 = vmatprep.subr.bf16.mxu0 0
    %3902 = vmatpush1.bf16.msra.mxu0 %v3882
    %3903 = vmatprep.subr.bf16.mxu0 0
    %3904 = vmatpush1.bf16.msra.mxu0 %v3881
    %3905 = vmatprep.subr.bf16.mxu0 0
    %3906 = vmatpush2.bf16.msra.mxu0 0
    %3907 = vmatprep.subr.bf16.mxu0 0
    %3908 = vmatpush2.bf16.msra.mxu0 0
    %3909 = vmatprep.subr.bf16.mxu0 0
    %3910 = vmatpush2.bf16.msra.mxu0 0
    %3911 = vmatprep.subr.bf16.mxu0 0
    %3912 = vmatpush2.bf16.msra.mxu0 0
    %3913 = vmatprep.subr.bf16.mxu0 0
    %3914 = vmatpush2.bf16.msra.mxu0 0
    %3915 = vmatprep.subr.bf16.mxu0 0
    %3916 = vmatpush2.bf16.msra.mxu0 0
    %3917 = vmatprep.subr.bf16.mxu0 0
    %3918 = vmatpush2.bf16.msra.mxu0 0
    %3919 = vmatprep.subr.bf16.mxu0 0
    %3920 = vmatpush2.bf16.msra.mxu0 0
    %3921 = vmatprep.mubr.bf16.mxu0 0
    %3922 = vmatmul.mubr.bf16.gmra.mxu0 %v3880
    %v3923 = vpop.f32.mrf.mxu0
    %v3924 = vadd.f32 0.0, %v3923
    %v3925 = vpop.f32.mrf.mxu0
    %v3926 = vpop.f32.mrf.mxu0
    %v3927 = vpop.f32.mrf.mxu0
    %3928 = vdwg.mxu0
    %v3930 = vlaneseq
    %v3931 = vshrl.u32 %v3930, 7
    %v3932 = vsub.s32 0, %v3931
    %v3933 = vrot.slane %v3863, %v3932
    %v3935 = vadd.f32 %v3933, %v3924
    %v3936 = vld [vmem:[%s53] sm:$0xff]
    %v3937 = vld [vmem:[%s53 + $0x8] sm:$0xff]
    %v3938 = vpack.c.bf16 %v3859, %v3859
    %v3939 = vpack.c.bf16 %v3937, %v3936
    %vm3940 = vcmask 130048
    %v3942 = vsel %vm3940, %v3938, 0
    %3944 = vmatprep.subr.bf16.mxu0 0
    %3945 = vmatpush1.bf16.msra.mxu0 0
    %3946 = vmatprep.subr.bf16.mxu0 0
    %3947 = vmatpush1.bf16.msra.mxu0 0
    %3948 = vmatprep.subr.bf16.mxu0 0
    %3949 = vmatpush1.bf16.msra.mxu0 0
    %3950 = vmatprep.subr.bf16.mxu0 0
    %3951 = vmatpush1.bf16.msra.mxu0 0
    %3952 = vmatprep.subr.bf16.mxu0 0
    %3953 = vmatpush1.bf16.msra.mxu0 0
    %3954 = vmatprep.subr.bf16.mxu0 0
    %3955 = vmatpush1.bf16.msra.mxu0 0
    %3956 = vmatprep.subr.bf16.mxu0 0
    %3957 = vmatpush1.bf16.msra.mxu0 0
    %3958 = vmatprep.subr.bf16.mxu0 0
    %3959 = vmatpush1.bf16.msra.mxu0 %v3939
    %3960 = vmatprep.subr.bf16.mxu0 0
    %3961 = vmatpush2.bf16.msra.mxu0 0
    %3962 = vmatprep.subr.bf16.mxu0 0
    %3963 = vmatpush2.bf16.msra.mxu0 0
    %3964 = vmatprep.subr.bf16.mxu0 0
    %3965 = vmatpush2.bf16.msra.mxu0 0
    %3966 = vmatprep.subr.bf16.mxu0 0
    %3967 = vmatpush2.bf16.msra.mxu0 0
    %3968 = vmatprep.subr.bf16.mxu0 0
    %3969 = vmatpush2.bf16.msra.mxu0 0
    %3970 = vmatprep.subr.bf16.mxu0 0
    %3971 = vmatpush2.bf16.msra.mxu0 0
    %3972 = vmatprep.subr.bf16.mxu0 0
    %3973 = vmatpush2.bf16.msra.mxu0 0
    %3974 = vmatprep.subr.bf16.mxu0 0
    %3975 = vmatpush2.bf16.msra.mxu0 0
    %3976 = vmatprep.mubr.bf16.mxu0 0
    %3977 = vmatmul.mubr.bf16.gmra.mxu0 %v3942
    %v3978 = vpop.f32.mrf.mxu0
    %v3979 = vadd.f32 0.0, %v3978
    %v3980 = vpop.f32.mrf.mxu0
    %v3981 = vpop.f32.mrf.mxu0
    %v3982 = vpop.f32.mrf.mxu0
    %3983 = vdwg.mxu0
    %v3984 = vadd.f32 %v3935, %v3979
    %v3985 = vld [vmem:[%s55] sm:$0xff]
    %v3986 = vld [vmem:[%s55 + $0x8] sm:$0xff]
    %v3987 = vld [vmem:[%s55 + $0x10] sm:$0xff]
    %v3988 = vld [vmem:[%s55 + $0x18] sm:$0xff]
    %v3989 = vld [vmem:[%s55 + $0x20] sm:$0xff]
    %v3990 = vld [vmem:[%s55 + $0x28] sm:$0xff]
    %v3991 = vld [vmem:[%s55 + $0x30] sm:$0xff]
    %v3992 = vld [vmem:[%s55 + $0x38] sm:$0xff]
    %v3993 = vld [vmem:[%s55 + $0x40] sm:$0xff]
    %v3994 = vld [vmem:[%s55 + $0x48] sm:$0xff]
    %v3995 = vld [vmem:[%s55 + $0x50] sm:$0xff]
    %v3996 = vld [vmem:[%s55 + $0x58] sm:$0xff]
    %v3997 = vld [vmem:[%s55 + $0x60] sm:$0xff]
    %v3998 = vld [vmem:[%s55 + $0x68] sm:$0xff]
    %v3999 = vld [vmem:[%s55 + $0x70] sm:$0xff]
    %v4000 = vld [vmem:[%s55 + $0x78] sm:$0xff]
    %v4001 = vpack.c.bf16 %v3858, %v3858
    %v4002 = vpack.c.bf16 %v3986, %v3985
    %v4003 = vpack.c.bf16 %v3988, %v3987
    %v4004 = vpack.c.bf16 %v3990, %v3989
    %v4005 = vpack.c.bf16 %v3992, %v3991
    %v4006 = vpack.c.bf16 %v3994, %v3993
    %v4007 = vpack.c.bf16 %v3996, %v3995
    %v4008 = vpack.c.bf16 %v3998, %v3997
    %v4009 = vpack.c.bf16 %v4000, %v3999
    %4010 = vmatprep.subr.bf16.mxu0 0
    %4011 = vmatpush1.bf16.msra.mxu0 %v4009
    %4012 = vmatprep.subr.bf16.mxu0 0
    %4013 = vmatpush1.bf16.msra.mxu0 %v4008
    %4014 = vmatprep.subr.bf16.mxu0 0
    %4015 = vmatpush1.bf16.msra.mxu0 %v4007
    %4016 = vmatprep.subr.bf16.mxu0 0
    %4017 = vmatpush1.bf16.msra.mxu0 %v4006
    %4018 = vmatprep.subr.bf16.mxu0 0
    %4019 = vmatpush1.bf16.msra.mxu0 %v4005
    %4020 = vmatprep.subr.bf16.mxu0 0
    %4021 = vmatpush1.bf16.msra.mxu0 %v4004
    %4022 = vmatprep.subr.bf16.mxu0 0
    %4023 = vmatpush1.bf16.msra.mxu0 %v4003
    %4024 = vmatprep.subr.bf16.mxu0 0
    %4025 = vmatpush1.bf16.msra.mxu0 %v4002
    %4026 = vmatprep.subr.bf16.mxu0 0
    %4027 = vmatpush2.bf16.msra.mxu0 0
    %4028 = vmatprep.subr.bf16.mxu0 0
    %4029 = vmatpush2.bf16.msra.mxu0 0
    %4030 = vmatprep.subr.bf16.mxu0 0
    %4031 = vmatpush2.bf16.msra.mxu0 0
    %4032 = vmatprep.subr.bf16.mxu0 0
    %4033 = vmatpush2.bf16.msra.mxu0 0
    %4034 = vmatprep.subr.bf16.mxu0 0
    %4035 = vmatpush2.bf16.msra.mxu0 0
    %4036 = vmatprep.subr.bf16.mxu0 0
    %4037 = vmatpush2.bf16.msra.mxu0 0
    %4038 = vmatprep.subr.bf16.mxu0 0
    %4039 = vmatpush2.bf16.msra.mxu0 0
    %4040 = vmatprep.subr.bf16.mxu0 0
    %4041 = vmatpush2.bf16.msra.mxu0 0
    %4042 = vmatprep.mubr.bf16.mxu0 0
    %4043 = vmatmul.mubr.bf16.gmra.mxu0 %v4001
    %v4044 = vpop.f32.mrf.mxu0
    %v4045 = vadd.f32 0.0, %v4044
    %v4046 = vpop.f32.mrf.mxu0
    %v4047 = vpop.f32.mrf.mxu0
    %v4048 = vpop.f32.mrf.mxu0
    %4049 = vdwg.mxu0
    %v4050 = vadd.f32 %v3984, %v4045
    %v4051 = vld [vmem:[%s57] sm:$0xf]
    %v4052 = vpack.c.bf16 %v3860, %v3860
    %v4053 = vpack.c.bf16 %v4051, %v4051
    %vm4054 = vcmask 31744
    %v4056 = vsel %vm4054, %v4052, 0
    %v4059 = vsel %vm249, %v4053, 0
    %4061 = vmatprep.subr.bf16.mxu0 0
    %4062 = vmatpush1.bf16.msra.mxu0 0
    %4063 = vmatprep.subr.bf16.mxu0 0
    %4064 = vmatpush1.bf16.msra.mxu0 0
    %4065 = vmatprep.subr.bf16.mxu0 0
    %4066 = vmatpush1.bf16.msra.mxu0 0
    %4067 = vmatprep.subr.bf16.mxu0 0
    %4068 = vmatpush1.bf16.msra.mxu0 0
    %4069 = vmatprep.subr.bf16.mxu0 0
    %4070 = vmatpush1.bf16.msra.mxu0 0
    %4071 = vmatprep.subr.bf16.mxu0 0
    %4072 = vmatpush1.bf16.msra.mxu0 0
    %4073 = vmatprep.subr.bf16.mxu0 0
    %4074 = vmatpush1.bf16.msra.mxu0 0
    %4075 = vmatprep.subr.bf16.mxu0 0
    %4076 = vmatpush1.bf16.msra.mxu0 %v4059
    %4077 = vmatprep.subr.bf16.mxu0 0
    %4078 = vmatpush2.bf16.msra.mxu0 0
    %4079 = vmatprep.subr.bf16.mxu0 0
    %4080 = vmatpush2.bf16.msra.mxu0 0
    %4081 = vmatprep.subr.bf16.mxu0 0
    %4082 = vmatpush2.bf16.msra.mxu0 0
    %4083 = vmatprep.subr.bf16.mxu0 0
    %4084 = vmatpush2.bf16.msra.mxu0 0
    %4085 = vmatprep.subr.bf16.mxu0 0
    %4086 = vmatpush2.bf16.msra.mxu0 0
    %4087 = vmatprep.subr.bf16.mxu0 0
    %4088 = vmatpush2.bf16.msra.mxu0 0
    %4089 = vmatprep.subr.bf16.mxu0 0
    %4090 = vmatpush2.bf16.msra.mxu0 0
    %4091 = vmatprep.subr.bf16.mxu0 0
    %4092 = vmatpush2.bf16.msra.mxu0 0
    %4093 = vmatprep.mubr.bf16.mxu0 0
    %4094 = vmatmul.mubr.bf16.gmra.mxu0 %v4056
    %v4095 = vpop.f32.mrf.mxu0
    %v4096 = vadd.f32 0.0, %v4095
    %v4097 = vpop.f32.mrf.mxu0
    %v4098 = vpop.f32.mrf.mxu0
    %v4099 = vpop.f32.mrf.mxu0
    %4100 = vdwg.mxu0
    %v4101 = vadd.f32 %v4050, %v4096
    %v4102 = vld [vmem:[%s59] sm:$0xff]
    %v4103 = vld [vmem:[%s59 + $0x8] sm:$0xff]
    %v4104 = vld [vmem:[%s59 + $0x10] sm:$0xff]
    %v4105 = vld [vmem:[%s59 + $0x18] sm:$0xff]
    %v4106 = vpack.c.bf16 %v3861, %v3861
    %v4107 = vpack.c.bf16 %v4103, %v4102
    %v4108 = vpack.c.bf16 %v4105, %v4104
    %v4110 = vsel %vm498, %v4106, 0
    %4112 = vmatprep.subr.bf16.mxu0 0
    %4113 = vmatpush1.bf16.msra.mxu0 0
    %4114 = vmatprep.subr.bf16.mxu0 0
    %4115 = vmatpush1.bf16.msra.mxu0 0
    %4116 = vmatprep.subr.bf16.mxu0 0
    %4117 = vmatpush1.bf16.msra.mxu0 0
    %4118 = vmatprep.subr.bf16.mxu0 0
    %4119 = vmatpush1.bf16.msra.mxu0 0
    %4120 = vmatprep.subr.bf16.mxu0 0
    %4121 = vmatpush1.bf16.msra.mxu0 0
    %4122 = vmatprep.subr.bf16.mxu0 0
    %4123 = vmatpush1.bf16.msra.mxu0 0
    %4124 = vmatprep.subr.bf16.mxu0 0
    %4125 = vmatpush1.bf16.msra.mxu0 %v4108
    %4126 = vmatprep.subr.bf16.mxu0 0
    %4127 = vmatpush1.bf16.msra.mxu0 %v4107
    %4128 = vmatprep.subr.bf16.mxu0 0
    %4129 = vmatpush2.bf16.msra.mxu0 0
    %4130 = vmatprep.subr.bf16.mxu0 0
    %4131 = vmatpush2.bf16.msra.mxu0 0
    %4132 = vmatprep.subr.bf16.mxu0 0
    %4133 = vmatpush2.bf16.msra.mxu0 0
    %4134 = vmatprep.subr.bf16.mxu0 0
    %4135 = vmatpush2.bf16.msra.mxu0 0
    %4136 = vmatprep.subr.bf16.mxu0 0
    %4137 = vmatpush2.bf16.msra.mxu0 0
    %4138 = vmatprep.subr.bf16.mxu0 0
    %4139 = vmatpush2.bf16.msra.mxu0 0
    %4140 = vmatprep.subr.bf16.mxu0 0
    %4141 = vmatpush2.bf16.msra.mxu0 0
    %4142 = vmatprep.subr.bf16.mxu0 0
    %4143 = vmatpush2.bf16.msra.mxu0 0
    %4144 = vmatprep.mubr.bf16.mxu0 0
    %4145 = vmatmul.mubr.bf16.gmra.mxu0 %v4110
    %v4146 = vpop.f32.mrf.mxu0
    %v4147 = vadd.f32 0.0, %v4146
    %v4148 = vpop.f32.mrf.mxu0
    %v4149 = vpop.f32.mrf.mxu0
    %v4150 = vpop.f32.mrf.mxu0
    %4151 = vdwg.mxu0
    %v4152 = vadd.f32 %v4101, %v4147
    %v4153 = vld [vmem:[%s61] sm:$0xff]
    %v4154 = vld [vmem:[%s61 + $0x8] sm:$0xff]
    %v4155 = vld [vmem:[%s61 + $0x10] sm:$0xff]
    %v4156 = vld [vmem:[%s61 + $0x18] sm:$0xff]
    %v4157 = vld [vmem:[%s61 + $0x20] sm:$0xff]
    %v4158 = vld [vmem:[%s61 + $0x28] sm:$0xff]
    %v4159 = vld [vmem:[%s61 + $0x30] sm:$0xff]
    %v4160 = vld [vmem:[%s61 + $0x38] sm:$0xff]
    %v4161 = vld [vmem:[%s61 + $0x40] sm:$0xff]
    %v4162 = vld [vmem:[%s61 + $0x48] sm:$0xff]
    %v4163 = vld [vmem:[%s61 + $0x50] sm:$0xff]
    %v4164 = vld [vmem:[%s61 + $0x58] sm:$0xff]
    %v4165 = vld [vmem:[%s61 + $0x60] sm:$0xff]
    %v4166 = vld [vmem:[%s61 + $0x68] sm:$0xff]
    %v4167 = vld [vmem:[%s61 + $0x70] sm:$0xff]
    %v4168 = vld [vmem:[%s61 + $0x78] sm:$0xff]
    %v4169 = vpack.c.bf16 %v3862, %v3862
    %v4170 = vpack.c.bf16 %v4154, %v4153
    %v4171 = vpack.c.bf16 %v4156, %v4155
    %v4172 = vpack.c.bf16 %v4158, %v4157
    %v4173 = vpack.c.bf16 %v4160, %v4159
    %v4174 = vpack.c.bf16 %v4162, %v4161
    %v4175 = vpack.c.bf16 %v4164, %v4163
    %v4176 = vpack.c.bf16 %v4166, %v4165
    %v4177 = vpack.c.bf16 %v4168, %v4167
    %4178 = vmatprep.subr.bf16.mxu0 0
    %4179 = vmatpush1.bf16.msra.mxu0 %v4177
    %4180 = vmatprep.subr.bf16.mxu0 0
    %4181 = vmatpush1.bf16.msra.mxu0 %v4176
    %4182 = vmatprep.subr.bf16.mxu0 0
    %4183 = vmatpush1.bf16.msra.mxu0 %v4175
    %4184 = vmatprep.subr.bf16.mxu0 0
    %4185 = vmatpush1.bf16.msra.mxu0 %v4174
    %4186 = vmatprep.subr.bf16.mxu0 0
    %4187 = vmatpush1.bf16.msra.mxu0 %v4173
    %4188 = vmatprep.subr.bf16.mxu0 0
    %4189 = vmatpush1.bf16.msra.mxu0 %v4172
    %4190 = vmatprep.subr.bf16.mxu0 0
    %4191 = vmatpush1.bf16.msra.mxu0 %v4171
    %4192 = vmatprep.subr.bf16.mxu0 0
    %4193 = vmatpush1.bf16.msra.mxu0 %v4170
    %4194 = vmatprep.subr.bf16.mxu0 0
    %4195 = vmatpush2.bf16.msra.mxu0 0
    %4196 = vmatprep.subr.bf16.mxu0 0
    %4197 = vmatpush2.bf16.msra.mxu0 0
    %4198 = vmatprep.subr.bf16.mxu0 0
    %4199 = vmatpush2.bf16.msra.mxu0 0
    %4200 = vmatprep.subr.bf16.mxu0 0
    %4201 = vmatpush2.bf16.msra.mxu0 0
    %4202 = vmatprep.subr.bf16.mxu0 0
    %4203 = vmatpush2.bf16.msra.mxu0 0
    %4204 = vmatprep.subr.bf16.mxu0 0
    %4205 = vmatpush2.bf16.msra.mxu0 0
    %4206 = vmatprep.subr.bf16.mxu0 0
    %4207 = vmatpush2.bf16.msra.mxu0 0
    %4208 = vmatprep.subr.bf16.mxu0 0
    %4209 = vmatpush2.bf16.msra.mxu0 0
    %4210 = vmatprep.mubr.bf16.mxu0 0
    %4211 = vmatmul.mubr.bf16.gmra.mxu0 %v4169
    %v4212 = vpop.f32.mrf.mxu0
    %v4213 = vadd.f32 0.0, %v4212
    %v4214 = vpop.f32.mrf.mxu0
    %v4215 = vpop.f32.mrf.mxu0
    %v4216 = vpop.f32.mrf.mxu0
    %4217 = vdwg.mxu0
    %v4218 = vadd.f32 %v4152, %v4213
    %v4219 = vld [vmem:[%s47] sm:$0xff]
    %v4220 = vld [vmem:[%s47 + $0x8] sm:$0xff]
    %v4221 = vld [vmem:[%s47 + $0x10] sm:$0xff]
    %v4222 = vld [vmem:[%s47 + $0x18] sm:$0xff]
    %v4223 = vld [vmem:[%s47 + $0x20] sm:$0xff]
    %v4224 = vld [vmem:[%s47 + $0x28] sm:$0xff]
    %v4225 = vld [vmem:[%s65] sm:$0xff]
    %v4226 = vld [vmem:[%s65 + $0x8] sm:$0xff]
    %v4227 = vld [vmem:[%s65 + $0x10] sm:$0xff]
    %v4228 = vld [vmem:[%s65 + $0x18] sm:$0xff]
    %v4229 = vld [vmem:[%s65 + $0x20] sm:$0xff]
    %v4230 = vld [vmem:[%s65 + $0x28] sm:$0xff]
    %v4231 = vld [vmem:[%s65 + $0x30] sm:$0xff]
    %v4232 = vld [vmem:[%s65 + $0x38] sm:$0xff]
    %v4233 = vld [vmem:[%s65 + $0x40] sm:$0xff]
    %v4234 = vld [vmem:[%s65 + $0x48] sm:$0xff]
    %v4235 = vld [vmem:[%s65 + $0x50] sm:$0xff]
    %v4236 = vld [vmem:[%s65 + $0x58] sm:$0xff]
    %v4237 = vld [vmem:[%s65 + $0x60] sm:$0xff]
    %v4238 = vld [vmem:[%s65 + $0x68] sm:$0xff]
    %v4239 = vld [vmem:[%s65 + $0x70] sm:$0xff]
    %v4240 = vld [vmem:[%s65 + $0x78] sm:$0xff]
    %v4241 = vld [vmem:[%s65 + $0x80] sm:$0xff]
    %v4242 = vld [vmem:[%s65 + $0x88] sm:$0xff]
    %v4243 = vld [vmem:[%s65 + $0x90] sm:$0xff]
    %v4244 = vld [vmem:[%s65 + $0x98] sm:$0xff]
    %v4245 = vld [vmem:[%s65 + $0xa0] sm:$0xff]
    %v4246 = vld [vmem:[%s65 + $0xa8] sm:$0xff]
    %v4247 = vld [vmem:[%s65 + $0xb0] sm:$0xff]
    %v4248 = vld [vmem:[%s65 + $0xb8] sm:$0xff]
    %v4249 = vld [vmem:[%s65 + $0xc0] sm:$0xff]
    %v4250 = vld [vmem:[%s65 + $0xc8] sm:$0xff]
    %v4251 = vld [vmem:[%s65 + $0xd0] sm:$0xff]
    %v4252 = vld [vmem:[%s65 + $0xd8] sm:$0xff]
    %v4253 = vld [vmem:[%s65 + $0xe0] sm:$0xff]
    %v4254 = vld [vmem:[%s65 + $0xe8] sm:$0xff]
    %v4255 = vld [vmem:[%s65 + $0xf0] sm:$0xff]
    %v4256 = vld [vmem:[%s65 + $0xf8] sm:$0xff]
    %v4257 = vld [vmem:[%s65 + $0x100] sm:$0xff]
    %v4258 = vld [vmem:[%s65 + $0x108] sm:$0xff]
    %v4259 = vld [vmem:[%s65 + $0x110] sm:$0xff]
    %v4260 = vld [vmem:[%s65 + $0x118] sm:$0xff]
    %v4261 = vld [vmem:[%s65 + $0x120] sm:$0xff]
    %v4262 = vld [vmem:[%s65 + $0x128] sm:$0xff]
    %v4263 = vld [vmem:[%s65 + $0x130] sm:$0xff]
    %v4264 = vld [vmem:[%s65 + $0x138] sm:$0xff]
    %v4265 = vld [vmem:[%s65 + $0x140] sm:$0xff]
    %v4266 = vld [vmem:[%s65 + $0x148] sm:$0xff]
    %v4267 = vld [vmem:[%s65 + $0x150] sm:$0xff]
    %v4268 = vld [vmem:[%s65 + $0x158] sm:$0xff]
    %v4269 = vld [vmem:[%s65 + $0x160] sm:$0xff]
    %v4270 = vld [vmem:[%s65 + $0x168] sm:$0xff]
    %v4271 = vld [vmem:[%s65 + $0x170] sm:$0xff]
    %v4272 = vld [vmem:[%s65 + $0x178] sm:$0xff]
    %v4273 = vld [vmem:[%s65 + $0x180] sm:$0xff]
    %v4274 = vld [vmem:[%s65 + $0x188] sm:$0xff]
    %v4275 = vld [vmem:[%s65 + $0x190] sm:$0xff]
    %v4276 = vld [vmem:[%s65 + $0x198] sm:$0xff]
    %v4277 = vld [vmem:[%s65 + $0x1a0] sm:$0xff]
    %v4278 = vld [vmem:[%s65 + $0x1a8] sm:$0xff]
    %v4279 = vld [vmem:[%s65 + $0x1b0] sm:$0xff]
    %v4280 = vld [vmem:[%s65 + $0x1b8] sm:$0xff]
    %v4281 = vld [vmem:[%s65 + $0x1c0] sm:$0xff]
    %v4282 = vld [vmem:[%s65 + $0x1c8] sm:$0xff]
    %v4283 = vld [vmem:[%s65 + $0x1d0] sm:$0xff]
    %v4284 = vld [vmem:[%s65 + $0x1d8] sm:$0xff]
    %v4285 = vld [vmem:[%s65 + $0x1e0] sm:$0xff]
    %v4286 = vld [vmem:[%s65 + $0x1e8] sm:$0xff]
    %v4287 = vld [vmem:[%s65 + $0x1f0] sm:$0xff]
    %v4288 = vld [vmem:[%s65 + $0x1f8] sm:$0xff]
    %v4289 = vld [vmem:[%s65 + $0x200] sm:$0xff]
    %v4290 = vld [vmem:[%s65 + $0x208] sm:$0xff]
    %v4291 = vld [vmem:[%s65 + $0x210] sm:$0xff]
    %v4292 = vld [vmem:[%s65 + $0x218] sm:$0xff]
    %v4293 = vld [vmem:[%s65 + $0x220] sm:$0xff]
    %v4294 = vld [vmem:[%s65 + $0x228] sm:$0xff]
    %v4295 = vld [vmem:[%s65 + $0x230] sm:$0xff]
    %v4296 = vld [vmem:[%s65 + $0x238] sm:$0xff]
    %v4297 = vld [vmem:[%s65 + $0x240] sm:$0xff]
    %v4298 = vld [vmem:[%s65 + $0x248] sm:$0xff]
    %v4299 = vld [vmem:[%s65 + $0x250] sm:$0xff]
    %v4300 = vld [vmem:[%s65 + $0x258] sm:$0xff]
    %v4301 = vld [vmem:[%s65 + $0x260] sm:$0xf]
    %v4302 = vld [vmem:[%s65 + $0x268] sm:$0xf]
    %v4303 = vpack.c.bf16 %v4222, %v4219
    %v4304 = vpack.c.bf16 %v4223, %v4220
    %v4305 = vpack.c.bf16 %v4224, %v4221
    %v4306 = vpack.c.bf16 %v4227, %v4225
    %v4307 = vpack.c.bf16 %v4228, %v4226
    %v4308 = vpack.c.bf16 %v4231, %v4229
    %v4309 = vpack.c.bf16 %v4232, %v4230
    %v4310 = vpack.c.bf16 %v4235, %v4233
    %v4311 = vpack.c.bf16 %v4236, %v4234
    %v4312 = vpack.c.bf16 %v4239, %v4237
    %v4313 = vpack.c.bf16 %v4240, %v4238
    %v4314 = vpack.c.bf16 %v4243, %v4241
    %v4315 = vpack.c.bf16 %v4244, %v4242
    %v4316 = vpack.c.bf16 %v4247, %v4245
    %v4317 = vpack.c.bf16 %v4248, %v4246
    %v4318 = vpack.c.bf16 %v4251, %v4249
    %v4319 = vpack.c.bf16 %v4252, %v4250
    %v4320 = vpack.c.bf16 %v4255, %v4253
    %v4321 = vpack.c.bf16 %v4256, %v4254
    %v4322 = vpack.c.bf16 %v4259, %v4257
    %v4323 = vpack.c.bf16 %v4260, %v4258
    %v4324 = vpack.c.bf16 %v4263, %v4261
    %v4325 = vpack.c.bf16 %v4264, %v4262
    %v4326 = vpack.c.bf16 %v4267, %v4265
    %v4327 = vpack.c.bf16 %v4268, %v4266
    %v4328 = vpack.c.bf16 %v4271, %v4269
    %v4329 = vpack.c.bf16 %v4272, %v4270
    %v4330 = vpack.c.bf16 %v4275, %v4273
    %v4331 = vpack.c.bf16 %v4276, %v4274
    %v4332 = vpack.c.bf16 %v4279, %v4277
    %v4333 = vpack.c.bf16 %v4280, %v4278
    %v4334 = vpack.c.bf16 %v4283, %v4281
    %v4335 = vpack.c.bf16 %v4284, %v4282
    %v4336 = vpack.c.bf16 %v4287, %v4285
    %v4337 = vpack.c.bf16 %v4288, %v4286
    %v4338 = vpack.c.bf16 %v4291, %v4289
    %v4339 = vpack.c.bf16 %v4292, %v4290
    %v4340 = vpack.c.bf16 %v4295, %v4293
    %v4341 = vpack.c.bf16 %v4296, %v4294
    %v4342 = vpack.c.bf16 %v4299, %v4297
    %v4343 = vpack.c.bf16 %v4300, %v4298
    %v4344 = vpack.c.bf16 %v4301, %v4301
    %v4345 = vpack.c.bf16 %v4302, %v4302
    %v4346 = vld [vmem:[%s67] sm:$0x3]
    %v4348 = vlaneseq
    %v4349 = vshrl.u32 %v4348, 7
    %v4350 = vsub.s32 0, %v4349
    %v4351 = vrot.slane %v4346, %v4350
    %v4352 = vlaneseq
    %v4353 = vshrl.u32 %v4352, 7
    %v4354 = vsub.s32 1, %v4353
    %v4355 = vrot.slane %v4346, %v4354
    %vm4358 = vcmask 424960
    %v4360 = vsel %vm4358, %v4305, 0
    %v4363 = vsel %vm249, %v4344, 0
    %v4366 = vsel %vm249, %v4345, 0
    %4368 = vmatprep.subr.bf16.mxu0 %v4321
    %4369 = vmatpush1.bf16.msra.mxu0 %v4320
    %4370 = vmatprep.subr.bf16.mxu0 %v4319
    %4371 = vmatpush1.bf16.msra.mxu0 %v4318
    %4372 = vmatprep.subr.bf16.mxu0 %v4317
    %4373 = vmatpush1.bf16.msra.mxu0 %v4316
    %4374 = vmatprep.subr.bf16.mxu0 %v4315
    %4375 = vmatpush1.bf16.msra.mxu0 %v4314
    %4376 = vmatprep.subr.bf16.mxu0 %v4313
    %4377 = vmatpush1.bf16.msra.mxu0 %v4312
    %4378 = vmatprep.subr.bf16.mxu0 %v4311
    %4379 = vmatpush1.bf16.msra.mxu0 %v4310
    %4380 = vmatprep.subr.bf16.mxu0 %v4309
    %4381 = vmatpush1.bf16.msra.mxu0 %v4308
    %4382 = vmatprep.subr.bf16.mxu0 %v4307
    %4383 = vmatpush1.bf16.msra.mxu0 %v4306
    %4384 = vmatprep.subr.bf16.mxu0 %v4337
    %4385 = vmatpush2.bf16.msra.mxu0 %v4336
    %4386 = vmatprep.subr.bf16.mxu0 %v4335
    %4387 = vmatpush2.bf16.msra.mxu0 %v4334
    %4388 = vmatprep.subr.bf16.mxu0 %v4333
    %4389 = vmatpush2.bf16.msra.mxu0 %v4332
    %4390 = vmatprep.subr.bf16.mxu0 %v4331
    %4391 = vmatpush2.bf16.msra.mxu0 %v4330
    %4392 = vmatprep.subr.bf16.mxu0 %v4329
    %4393 = vmatpush2.bf16.msra.mxu0 %v4328
    %4394 = vmatprep.subr.bf16.mxu0 %v4327
    %4395 = vmatpush2.bf16.msra.mxu0 %v4326
    %4396 = vmatprep.subr.bf16.mxu0 %v4325
    %4397 = vmatpush2.bf16.msra.mxu0 %v4324
    %4398 = vmatprep.subr.bf16.mxu0 %v4323
    %4399 = vmatpush2.bf16.msra.mxu0 %v4322
    %4400 = vmatprep.mubr.bf16.mxu0 %v4304
    %4401 = vmatmul.mubr.bf16.gmra.mxu0 %v4303
    %v4402 = vpop.f32.mrf.mxu0
    %v4403 = vadd.f32 %v4351, %v4402
    %v4404 = vpop.f32.mrf.mxu0
    %v4405 = vadd.f32 %v4355, %v4404
    %v4406 = vpop.f32.mrf.mxu0
    %v4407 = vadd.f32 %v4351, %v4406
    %v4408 = vpop.f32.mrf.mxu0
    %v4409 = vadd.f32 %v4355, %v4408
    %4410 = vdwg.mxu0
    %4411 = vmatprep.subr.bf16.mxu0 0
    %4412 = vmatpush1.bf16.msra.mxu0 0
    %4413 = vmatprep.subr.bf16.mxu0 0
    %4414 = vmatpush1.bf16.msra.mxu0 0
    %4415 = vmatprep.subr.bf16.mxu0 0
    %4416 = vmatpush1.bf16.msra.mxu0 0
    %4417 = vmatprep.subr.bf16.mxu0 0
    %4418 = vmatpush1.bf16.msra.mxu0 0
    %4419 = vmatprep.subr.bf16.mxu0 %v4366
    %4420 = vmatpush1.bf16.msra.mxu0 %v4363
    %4421 = vmatprep.subr.bf16.mxu0 %v4343
    %4422 = vmatpush1.bf16.msra.mxu0 %v4342
    %4423 = vmatprep.subr.bf16.mxu0 %v4341
    %4424 = vmatpush1.bf16.msra.mxu0 %v4340
    %4425 = vmatprep.subr.bf16.mxu0 %v4339
    %4426 = vmatpush1.bf16.msra.mxu0 %v4338
    %4427 = vmatprep.subr.bf16.mxu0 0
    %4428 = vmatpush2.bf16.msra.mxu0 0
    %4429 = vmatprep.subr.bf16.mxu0 0
    %4430 = vmatpush2.bf16.msra.mxu0 0
    %4431 = vmatprep.subr.bf16.mxu0 0
    %4432 = vmatpush2.bf16.msra.mxu0 0
    %4433 = vmatprep.subr.bf16.mxu0 0
    %4434 = vmatpush2.bf16.msra.mxu0 0
    %4435 = vmatprep.subr.bf16.mxu0 0
    %4436 = vmatpush2.bf16.msra.mxu0 0
    %4437 = vmatprep.subr.bf16.mxu0 0
    %4438 = vmatpush2.bf16.msra.mxu0 0
    %4439 = vmatprep.subr.bf16.mxu0 0
    %4440 = vmatpush2.bf16.msra.mxu0 0
    %4441 = vmatprep.subr.bf16.mxu0 0
    %4442 = vmatpush2.bf16.msra.mxu0 0
    %4443 = vmatprep.mubr.bf16.mxu0 0
    %4444 = vmatmul.mubr.bf16.gmra.mxu0 %v4360
    %v4445 = vpop.f32.mrf.mxu0
    %v4446 = vadd.f32 %v4403, %v4445
    %v4447 = vpop.f32.mrf.mxu0
    %v4448 = vadd.f32 %v4405, %v4447
    %v4449 = vpop.f32.mrf.mxu0
    %v4450 = vadd.f32 %v4407, %v4449
    %v4451 = vpop.f32.mrf.mxu0
    %v4452 = vadd.f32 %v4409, %v4451
    %4453 = vdwg.mxu0
    %v4454 = vpack.c.bf16 %v4218, %v4218
    %v4455 = vpack.c.bf16 %v4450, %v4446
    %4456 = vmatprep.subr.bf16.mxu0 0
    %4457 = vmatpush1.bf16.xpose.msra.mxu0 0
    %4458 = vmatprep.subr.bf16.mxu0 0
    %4459 = vmatpush1.bf16.xpose.msra.mxu0 0
    %4460 = vmatprep.subr.bf16.mxu0 0
    %4461 = vmatpush1.bf16.xpose.msra.mxu0 0
    %4462 = vmatprep.subr.bf16.mxu0 0
    %4463 = vmatpush1.bf16.xpose.msra.mxu0 0
    %4464 = vmatprep.subr.bf16.mxu0 0
    %4465 = vmatpush1.bf16.xpose.msra.mxu0 0
    %4466 = vmatprep.subr.bf16.mxu0 0
    %4467 = vmatpush1.bf16.xpose.msra.mxu0 0
    %4468 = vmatprep.subr.bf16.mxu0 0
    %4469 = vmatpush1.bf16.xpose.msra.mxu0 0
    %4470 = vmatprep.subr.bf16.mxu0 0
    %4471 = vmatpush1.bf16.xpose.msra.mxu0 %v4455
    %4472 = vmatprep.subr.bf16.mxu0 0
    %4473 = vmatpush2.bf16.xpose.msra.mxu0 0
    %4474 = vmatprep.subr.bf16.mxu0 0
    %4475 = vmatpush2.bf16.xpose.msra.mxu0 0
    %4476 = vmatprep.subr.bf16.mxu0 0
    %4477 = vmatpush2.bf16.xpose.msra.mxu0 0
    %4478 = vmatprep.subr.bf16.mxu0 0
    %4479 = vmatpush2.bf16.xpose.msra.mxu0 0
    %4480 = vmatprep.subr.bf16.mxu0 0
    %4481 = vmatpush2.bf16.xpose.msra.mxu0 0
    %4482 = vmatprep.subr.bf16.mxu0 0
    %4483 = vmatpush2.bf16.xpose.msra.mxu0 0
    %4484 = vmatprep.subr.bf16.mxu0 0
    %4485 = vmatpush2.bf16.xpose.msra.mxu0 0
    %4486 = vmatprep.subr.bf16.mxu0 0
    %4487 = vmatpush2.bf16.xpose.msra.mxu0 0
    %4488 = vmatprep.mubr.bf16.mxu0 0
    %4489 = vmatmul.mubr.bf16.gmra.mxu0 %v4454
    %v4490 = vpop.f32.mrf.mxu0
    %v4491 = vadd.f32 0.0, %v4490
    %v4492 = vpop.f32.mrf.mxu0
    %v4493 = vpop.f32.mrf.mxu0
    %v4494 = vpop.f32.mrf.mxu0
    %4495 = vdwg.mxu0
    %v4496 = vmul.f32 %v4491, 0.088388346
    %v4497 = vld [vmem:[%s49] sm:$0x3]
    %v4498 = vadd.f32 %v4496, %v4497
    %vm4499 = vcmask 123904
    %v4500 = vsel %vm4499, %v4498, -inf
    %4501 = vmax.xlane.f32.xlu0 %v4500
    %v4502 = vpop.xlane.xlu0 %4501
    %v4503 = vsub.f32 %v4498, %v4502
    %v4504 = vmul.f32 %v4503, 1.442695
    %v4505 = vpow.pop %v4504
    %v4506 = vsel %vm4499, %v4505, 0.0
    %4507 = vadd.xlane.f32.xlu0 %v4506
    %v4508 = vpop.xlane.xlu0 %4507
    %v4509 = vrcp.pop %v4508
    %v4510 = vmul.f32 %v4505, %v4509
    %v4511 = vpack.c.bf16 %v4510, %v4510
    %v4512 = vpack.c.bf16 %v4452, %v4448
    %v4514 = vsel %vm3940, %v4511, 0
    %4516 = vmatprep.subr.bf16.mxu0 0
    %4517 = vmatpush1.bf16.msra.mxu0 0
    %4518 = vmatprep.subr.bf16.mxu0 0
    %4519 = vmatpush1.bf16.msra.mxu0 0
    %4520 = vmatprep.subr.bf16.mxu0 0
    %4521 = vmatpush1.bf16.msra.mxu0 0
    %4522 = vmatprep.subr.bf16.mxu0 0
    %4523 = vmatpush1.bf16.msra.mxu0 0
    %4524 = vmatprep.subr.bf16.mxu0 0
    %4525 = vmatpush1.bf16.msra.mxu0 0
    %4526 = vmatprep.subr.bf16.mxu0 0
    %4527 = vmatpush1.bf16.msra.mxu0 0
    %4528 = vmatprep.subr.bf16.mxu0 0
    %4529 = vmatpush1.bf16.msra.mxu0 0
    %4530 = vmatprep.subr.bf16.mxu0 0
    %4531 = vmatpush1.bf16.msra.mxu0 %v4512
    %4532 = vmatprep.subr.bf16.mxu0 0
    %4533 = vmatpush2.bf16.msra.mxu0 0
    %4534 = vmatprep.subr.bf16.mxu0 0
    %4535 = vmatpush2.bf16.msra.mxu0 0
    %4536 = vmatprep.subr.bf16.mxu0 0
    %4537 = vmatpush2.bf16.msra.mxu0 0
    %4538 = vmatprep.subr.bf16.mxu0 0
    %4539 = vmatpush2.bf16.msra.mxu0 0
    %4540 = vmatprep.subr.bf16.mxu0 0
    %4541 = vmatpush2.bf16.msra.mxu0 0
    %4542 = vmatprep.subr.bf16.mxu0 0
    %4543 = vmatpush2.bf16.msra.mxu0 0
    %4544 = vmatprep.subr.bf16.mxu0 0
    %4545 = vmatpush2.bf16.msra.mxu0 0
    %4546 = vmatprep.subr.bf16.mxu0 0
    %4547 = vmatpush2.bf16.msra.mxu0 0
    %4548 = vmatprep.mubr.bf16.mxu0 0
    %4549 = vmatmul.mubr.bf16.gmra.mxu0 %v4514
    %v4550 = vpop.f32.mrf.mxu0
    %v4551 = vadd.f32 0.0, %v4550
    %v4552 = vpop.f32.mrf.mxu0
    %v4553 = vpop.f32.mrf.mxu0
    %v4554 = vpop.f32.mrf.mxu0
    %4555 = vdwg.mxu0
    %v4556 = vld [vmem:[%s69] sm:$0xff]
    %v4557 = vld [vmem:[%s69 + $0x8] sm:$0xff]
    %v4558 = vld [vmem:[%s69 + $0x10] sm:$0xff]
    %v4559 = vld [vmem:[%s69 + $0x18] sm:$0xff]
    %v4560 = vld [vmem:[%s69 + $0x20] sm:$0xff]
    %v4561 = vld [vmem:[%s69 + $0x28] sm:$0xff]
    %v4562 = vld [vmem:[%s69 + $0x30] sm:$0xff]
    %v4563 = vld [vmem:[%s69 + $0x38] sm:$0xff]
    %v4564 = vld [vmem:[%s69 + $0x40] sm:$0xff]
    %v4565 = vld [vmem:[%s69 + $0x48] sm:$0xff]
    %v4566 = vld [vmem:[%s69 + $0x50] sm:$0xff]
    %v4567 = vld [vmem:[%s69 + $0x58] sm:$0xff]
    %v4568 = vld [vmem:[%s69 + $0x60] sm:$0xff]
    %v4569 = vld [vmem:[%s69 + $0x68] sm:$0xff]
    %v4570 = vld [vmem:[%s69 + $0x70] sm:$0xff]
    %v4571 = vld [vmem:[%s69 + $0x78] sm:$0xff]
    %v4572 = vpack.c.bf16 %v4551, %v4551
    %v4573 = vpack.c.bf16 %v4557, %v4556
    %v4574 = vpack.c.bf16 %v4559, %v4558
    %v4575 = vpack.c.bf16 %v4561, %v4560
    %v4576 = vpack.c.bf16 %v4563, %v4562
    %v4577 = vpack.c.bf16 %v4565, %v4564
    %v4578 = vpack.c.bf16 %v4567, %v4566
    %v4579 = vpack.c.bf16 %v4569, %v4568
    %v4580 = vpack.c.bf16 %v4571, %v4570
    %v4581 = vld [vmem:[%s71] sm:$0x1]
    %v4583 = vlaneseq
    %v4584 = vshrl.u32 %v4583, 7
    %v4585 = vsub.s32 0, %v4584
    %v4586 = vrot.slane %v4581, %v4585
    %4588 = vmatprep.subr.bf16.mxu0 0
    %4589 = vmatpush1.bf16.msra.mxu0 %v4580
    %4590 = vmatprep.subr.bf16.mxu0 0
    %4591 = vmatpush1.bf16.msra.mxu0 %v4579
    %4592 = vmatprep.subr.bf16.mxu0 0
    %4593 = vmatpush1.bf16.msra.mxu0 %v4578
    %4594 = vmatprep.subr.bf16.mxu0 0
    %4595 = vmatpush1.bf16.msra.mxu0 %v4577
    %4596 = vmatprep.subr.bf16.mxu0 0
    %4597 = vmatpush1.bf16.msra.mxu0 %v4576
    %4598 = vmatprep.subr.bf16.mxu0 0
    %4599 = vmatpush1.bf16.msra.mxu0 %v4575
    %4600 = vmatprep.subr.bf16.mxu0 0
    %4601 = vmatpush1.bf16.msra.mxu0 %v4574
    %4602 = vmatprep.subr.bf16.mxu0 0
    %4603 = vmatpush1.bf16.msra.mxu0 %v4573
    %4604 = vmatprep.subr.bf16.mxu0 0
    %4605 = vmatpush2.bf16.msra.mxu0 0
    %4606 = vmatprep.subr.bf16.mxu0 0
    %4607 = vmatpush2.bf16.msra.mxu0 0
    %4608 = vmatprep.subr.bf16.mxu0 0
    %4609 = vmatpush2.bf16.msra.mxu0 0
    %4610 = vmatprep.subr.bf16.mxu0 0
    %4611 = vmatpush2.bf16.msra.mxu0 0
    %4612 = vmatprep.subr.bf16.mxu0 0
    %4613 = vmatpush2.bf16.msra.mxu0 0
    %4614 = vmatprep.subr.bf16.mxu0 0
    %4615 = vmatpush2.bf16.msra.mxu0 0
    %4616 = vmatprep.subr.bf16.mxu0 0
    %4617 = vmatpush2.bf16.msra.mxu0 0
    %4618 = vmatprep.subr.bf16.mxu0 0
    %4619 = vmatpush2.bf16.msra.mxu0 0
    %4620 = vmatprep.mubr.bf16.mxu0 0
    %4621 = vmatmul.mubr.bf16.gmra.mxu0 %v4572
    %v4622 = vpop.f32.mrf.mxu0
    %v4623 = vadd.f32 %v4586, %v4622
    %v4624 = vpop.f32.mrf.mxu0
    %v4625 = vpop.f32.mrf.mxu0
    %v4626 = vpop.f32.mrf.mxu0
    %4627 = vdwg.mxu0
    %v4628 = vadd.f32 %v4218, %v4623
    %v4629 = vld [vmem:[%s73] sm:$0xff]
    %v4630 = vld [vmem:[%s73 + $0x8] sm:$0xff]
    %v4631 = vld [vmem:[%s73 + $0x10] sm:$0xff]
    %v4632 = vld [vmem:[%s73 + $0x18] sm:$0xff]
    %v4633 = vld [vmem:[%s73 + $0x20] sm:$0xff]
    %v4634 = vld [vmem:[%s73 + $0x28] sm:$0xff]
    %v4635 = vld [vmem:[%s73 + $0x30] sm:$0xff]
    %v4636 = vld [vmem:[%s73 + $0x38] sm:$0xff]
    %v4637 = vld [vmem:[%s73 + $0x40] sm:$0xff]
    %v4638 = vld [vmem:[%s73 + $0x48] sm:$0xff]
    %v4639 = vld [vmem:[%s73 + $0x50] sm:$0xff]
    %v4640 = vld [vmem:[%s73 + $0x58] sm:$0xff]
    %v4641 = vld [vmem:[%s73 + $0x60] sm:$0xff]
    %v4642 = vld [vmem:[%s73 + $0x68] sm:$0xff]
    %v4643 = vld [vmem:[%s73 + $0x70] sm:$0xff]
    %v4644 = vld [vmem:[%s73 + $0x78] sm:$0xff]
    %v4645 = vpack.c.bf16 %v4628, %v4628
    %v4646 = vpack.c.bf16 %v4630, %v4629
    %v4647 = vpack.c.bf16 %v4632, %v4631
    %v4648 = vpack.c.bf16 %v4634, %v4633
    %v4649 = vpack.c.bf16 %v4636, %v4635
    %v4650 = vpack.c.bf16 %v4638, %v4637
    %v4651 = vpack.c.bf16 %v4640, %v4639
    %v4652 = vpack.c.bf16 %v4642, %v4641
    %v4653 = vpack.c.bf16 %v4644, %v4643
    %v4654 = vld [vmem:[%s75] sm:$0x1]
    %v4656 = vlaneseq
    %v4657 = vshrl.u32 %v4656, 7
    %v4658 = vsub.s32 0, %v4657
    %v4659 = vrot.slane %v4654, %v4658
    %4661 = vmatprep.subr.bf16.mxu0 0
    %4662 = vmatpush1.bf16.msra.mxu0 %v4653
    %4663 = vmatprep.subr.bf16.mxu0 0
    %4664 = vmatpush1.bf16.msra.mxu0 %v4652
    %4665 = vmatprep.subr.bf16.mxu0 0
    %4666 = vmatpush1.bf16.msra.mxu0 %v4651
    %4667 = vmatprep.subr.bf16.mxu0 0
    %4668 = vmatpush1.bf16.msra.mxu0 %v4650
    %4669 = vmatprep.subr.bf16.mxu0 0
    %4670 = vmatpush1.bf16.msra.mxu0 %v4649
    %4671 = vmatprep.subr.bf16.mxu0 0
    %4672 = vmatpush1.bf16.msra.mxu0 %v4648
    %4673 = vmatprep.subr.bf16.mxu0 0
    %4674 = vmatpush1.bf16.msra.mxu0 %v4647
    %4675 = vmatprep.subr.bf16.mxu0 0
    %4676 = vmatpush1.bf16.msra.mxu0 %v4646
    %4677 = vmatprep.subr.bf16.mxu0 0
    %4678 = vmatpush2.bf16.msra.mxu0 0
    %4679 = vmatprep.subr.bf16.mxu0 0
    %4680 = vmatpush2.bf16.msra.mxu0 0
    %4681 = vmatprep.subr.bf16.mxu0 0
    %4682 = vmatpush2.bf16.msra.mxu0 0
    %4683 = vmatprep.subr.bf16.mxu0 0
    %4684 = vmatpush2.bf16.msra.mxu0 0
    %4685 = vmatprep.subr.bf16.mxu0 0
    %4686 = vmatpush2.bf16.msra.mxu0 0
    %4687 = vmatprep.subr.bf16.mxu0 0
    %4688 = vmatpush2.bf16.msra.mxu0 0
    %4689 = vmatprep.subr.bf16.mxu0 0
    %4690 = vmatpush2.bf16.msra.mxu0 0
    %4691 = vmatprep.subr.bf16.mxu0 0
    %4692 = vmatpush2.bf16.msra.mxu0 0
    %4693 = vmatprep.mubr.bf16.mxu0 0
    %4694 = vmatmul.mubr.bf16.gmra.mxu0 %v4645
    %v4695 = vpop.f32.mrf.mxu0
    %v4696 = vadd.f32 %v4659, %v4695
    %v4697 = vpop.f32.mrf.mxu0
    %v4698 = vpop.f32.mrf.mxu0
    %v4699 = vpop.f32.mrf.mxu0
    %4700 = vdwg.mxu0
    %v4701 = vmax.f32 %v4696, 0.0
    %v4702 = vld [vmem:[%s77] sm:$0xff]
    %v4703 = vld [vmem:[%s77 + $0x8] sm:$0xff]
    %v4704 = vld [vmem:[%s77 + $0x10] sm:$0xff]
    %v4705 = vld [vmem:[%s77 + $0x18] sm:$0xff]
    %v4706 = vld [vmem:[%s77 + $0x20] sm:$0xff]
    %v4707 = vld [vmem:[%s77 + $0x28] sm:$0xff]
    %v4708 = vld [vmem:[%s77 + $0x30] sm:$0xff]
    %v4709 = vld [vmem:[%s77 + $0x38] sm:$0xff]
    %v4710 = vld [vmem:[%s77 + $0x40] sm:$0xff]
    %v4711 = vld [vmem:[%s77 + $0x48] sm:$0xff]
    %v4712 = vld [vmem:[%s77 + $0x50] sm:$0xff]
    %v4713 = vld [vmem:[%s77 + $0x58] sm:$0xff]
    %v4714 = vld [vmem:[%s77 + $0x60] sm:$0xff]
    %v4715 = vld [vmem:[%s77 + $0x68] sm:$0xff]
    %v4716 = vld [vmem:[%s77 + $0x70] sm:$0xff]
    %v4717 = vld [vmem:[%s77 + $0x78] sm:$0xff]
    %v4718 = vpack.c.bf16 %v4701, %v4701
    %v4719 = vpack.c.bf16 %v4703, %v4702
    %v4720 = vpack.c.bf16 %v4705, %v4704
    %v4721 = vpack.c.bf16 %v4707, %v4706
    %v4722 = vpack.c.bf16 %v4709, %v4708
    %v4723 = vpack.c.bf16 %v4711, %v4710
    %v4724 = vpack.c.bf16 %v4713, %v4712
    %v4725 = vpack.c.bf16 %v4715, %v4714
    %v4726 = vpack.c.bf16 %v4717, %v4716
    %v4727 = vld [vmem:[%s79] sm:$0x1]
    %v4729 = vlaneseq
    %v4730 = vshrl.u32 %v4729, 7
    %v4731 = vsub.s32 0, %v4730
    %v4732 = vrot.slane %v4727, %v4731
    %4734 = vmatprep.subr.bf16.mxu0 0
    %4735 = vmatpush1.bf16.msra.mxu0 %v4726
    %4736 = vmatprep.subr.bf16.mxu0 0
    %4737 = vmatpush1.bf16.msra.mxu0 %v4725
    %4738 = vmatprep.subr.bf16.mxu0 0
    %4739 = vmatpush1.bf16.msra.mxu0 %v4724
    %4740 = vmatprep.subr.bf16.mxu0 0
    %4741 = vmatpush1.bf16.msra.mxu0 %v4723
    %4742 = vmatprep.subr.bf16.mxu0 0
    %4743 = vmatpush1.bf16.msra.mxu0 %v4722
    %4744 = vmatprep.subr.bf16.mxu0 0
    %4745 = vmatpush1.bf16.msra.mxu0 %v4721
    %4746 = vmatprep.subr.bf16.mxu0 0
    %4747 = vmatpush1.bf16.msra.mxu0 %v4720
    %4748 = vmatprep.subr.bf16.mxu0 0
    %4749 = vmatpush1.bf16.msra.mxu0 %v4719
    %4750 = vmatprep.subr.bf16.mxu0 0
    %4751 = vmatpush2.bf16.msra.mxu0 0
    %4752 = vmatprep.subr.bf16.mxu0 0
    %4753 = vmatpush2.bf16.msra.mxu0 0
    %4754 = vmatprep.subr.bf16.mxu0 0
    %4755 = vmatpush2.bf16.msra.mxu0 0
    %4756 = vmatprep.subr.bf16.mxu0 0
    %4757 = vmatpush2.bf16.msra.mxu0 0
    %4758 = vmatprep.subr.bf16.mxu0 0
    %4759 = vmatpush2.bf16.msra.mxu0 0
    %4760 = vmatprep.subr.bf16.mxu0 0
    %4761 = vmatpush2.bf16.msra.mxu0 0
    %4762 = vmatprep.subr.bf16.mxu0 0
    %4763 = vmatpush2.bf16.msra.mxu0 0
    %4764 = vmatprep.subr.bf16.mxu0 0
    %4765 = vmatpush2.bf16.msra.mxu0 0
    %4766 = vmatprep.mubr.bf16.mxu0 0
    %4767 = vmatmul.mubr.bf16.gmra.mxu0 %v4718
    %v4768 = vpop.f32.mrf.mxu0
    %v4769 = vadd.f32 %v4732, %v4768
    %v4770 = vpop.f32.mrf.mxu0
    %v4771 = vpop.f32.mrf.mxu0
    %v4772 = vpop.f32.mrf.mxu0
    %4773 = vdwg.mxu0
    %v4774 = vadd.f32 %v4628, %v4769
    %4775 = vst [vmem:[#allocation2] sm:$0x3] %v4774
    %4776 = vst [vmem:[%s83] sm:$0x3] %v2047
    %4777 = vst [vmem:[%s85] sm:$0x3] %v3858
    // Predicated region
    $region162: #{audio_nav_option_net_forward.1} parent=1 // pred_check
      _
    $region163: #{audio_nav_option_net_forward.1} parent=1 // pred_check_branch
      %4779 = sbr.rel (0) target = $region165
    $region164: #{audio_nav_option_net_forward.1} parent=1 // pred_region
      %s4781 = ssub.s32 32, 32
      %4782 = vsyncadd [#allocation3], %s4781
      %s4784 = sshll.u32 [#allocation2], 4
      %s4785 = int_to_ptr.vmem [resolvable:$true] %s4784
      %4787 = dma.vmem_to_hbm [thread:$0]  %s4785, 32, %s81, [#allocation3]
    $region165: #{audio_nav_option_net_forward.1} parent=1 // pred_fallthru
      _
    // Predicated region
    $region166: #{audio_nav_option_net_forward.1} parent=1 // pred_check
      _
    $region167: #{audio_nav_option_net_forward.1} parent=1 // pred_check_branch
      %4789 = sbr.rel (0) target = $region169
    $region168: #{audio_nav_option_net_forward.1} parent=1 // pred_region
      _
    $region169: #{audio_nav_option_net_forward.1} parent=1 // pred_fallthru
      _
    // Predicated region
    $region170: #{audio_nav_option_net_forward.1} parent=1 // pred_check
      _
    $region171: #{audio_nav_option_net_forward.1} parent=1 // pred_check_branch
      %4791 = sbr.rel (0) target = $region173
    $region172: #{audio_nav_option_net_forward.1} parent=1 // pred_region
      _
    $region173: #{audio_nav_option_net_forward.1} parent=1 // pred_fallthru
      _
    // Predicated region
    $region174: #{audio_nav_option_net_forward.1} parent=1 // pred_check
      _
    $region175: #{audio_nav_option_net_forward.1} parent=1 // pred_check_branch
      %4793 = sbr.rel (0) target = $region177
    $region176: #{audio_nav_option_net_forward.1} parent=1 // pred_region
      %4794 = dma.done [#allocation3], 32
    $region177: #{audio_nav_option_net_forward.1} parent=1 // pred_fallthru
      _
    // Predicated region
    $region178: #{audio_nav_option_net_forward.1} parent=1 // pred_check
      _
    $region179: #{audio_nav_option_net_forward.1} parent=1 // pred_check_branch
      %4796 = sbr.rel (0) target = $region181
    $region180: #{audio_nav_option_net_forward.1} parent=1 // pred_region
      _
    $region181: #{audio_nav_option_net_forward.1} parent=1 // pred_fallthru
      _
    // Predicated region
    $region182: #{audio_nav_option_net_forward.1} parent=1 // pred_check
      _
    $region183: #{audio_nav_option_net_forward.1} parent=1 // pred_check_branch
      %4798 = sbr.rel (0) target = $region185
    $region184: #{audio_nav_option_net_forward.1} parent=1 // pred_region
      _
    $region185: #{audio_nav_option_net_forward.1} parent=1 // pred_fallthru
      _
    %4799 = vsyncpa [#allocation3], 1

</llo_original>
